<compile_context>
chip_gen: v6e
topology: v6e:2x2x1
jax: 0.10.0
libtpu: 0.0.40
codegen_flags: <defaults>
</compile_context>

<pallas_src>
import functools

import jax
import jax.numpy as jnp
from jax import lax
from jax.experimental import pallas as pl
from jax.experimental.pallas import tpu as pltpu


# ----------------------------------------------------------------------------
# Prologue kernel: per-row inverse norms via the quadratic-form identity.
#   inv_o[i]    = rsqrt(o_i^T G o_i),          G   = O^T O        (D  x D)
#   inv_v[k,i]  = rsqrt(v_ki^T H_k v_ki) / 8,  H_k = V_k^T V_k    (Dv x Dv)
# ----------------------------------------------------------------------------
def _inv_norm_kernel(o_ref, v_ref, g_ref, h_ref, invo_ref, invv_ref):
    o = o_ref[...].astype(jnp.float32)                                 # (TR, D)
    og = jnp.dot(o, g_ref[...], preferred_element_type=jnp.float32)    # (TR, D)
    qf_o = jnp.sum(og * o, axis=1, keepdims=True)                      # (TR, 1)
    invo_ref[...] = lax.rsqrt(qf_o)                                    # EUP

    v = v_ref[...].astype(jnp.float32)                                 # (8, TR, Dv)
    vh = jnp.einsum('kmd,kde->kme', v, h_ref[...],
                    preferred_element_type=jnp.float32)                # (8, TR, Dv)
    qf_v = jnp.sum(vh * v, axis=2, keepdims=True)                      # (8, TR, 1)
    # Fold the 1/8 of the mean over the 8 vgrid slices here (constant fold).
    invv_ref[...] = lax.rsqrt(qf_v) * 0.125


# ----------------------------------------------------------------------------
# Main kernel: one (TM, TN) tile of (sim_normed - mean_vgrid_sim)^2 / N.
# ----------------------------------------------------------------------------
def _batch_loss_kernel(oi_ref, oj_ref, vi_ref, vj_ref, invo_ref, invv_ref,
                       out_ref, *, inv_n):
    # Fold the per-row 1/||sim_row|| scaling into the small left operand,
    # keeping the MXU fed in the input dtype (bf16 stays bf16, f32 stays f32).
    oi = oi_ref[...]
    oi = oi * invo_ref[...].astype(oi.dtype)                           # (TM, D)
    # Gram tile via dot_general contracting the last dims (no .T, no XLU copy).
    sim = lax.dot_general(oi, oj_ref[...], (((1,), (1,)), ((), ())),
                          preferred_element_type=jnp.float32)          # (TM, TN)

    # 8 vgrid Gram tiles in a single batched MXU contraction; the per-row
    # 1/||.|| and the 1/8 mean factor are pre-folded into invv and applied to
    # the small (8, TM, Dv) operand instead of the (8, TM, TN) result.
    vi = vi_ref[...]
    vi = vi * invv_ref[...].astype(vi.dtype)                           # (8, TM, Dv)
    vsims = jnp.einsum('kmd,knd->kmn', vi, vj_ref[...],
                       preferred_element_type=jnp.float32)             # (8, TM, TN)
    mean_v = jnp.sum(vsims, axis=0)                                    # (TM, TN)

    diff = sim - mean_v
    out_ref[...] = diff * diff * inv_n                                 # 1/N folded


def _pick_tile(n, candidates):
    for c in candidates:
        if n % c == 0:
            return c
    return n  # fall back to the full dimension (always legal)


def batch_loss(omic, vgrid, batch_size, world_size):
    """Pallas implementation of BatchLoss.forward (world_size == 1 path)."""
    N = batch_size * world_size
    omic2d = omic.reshape(N, -1)
    vgrid3d = vgrid.reshape(8, N, -1)
    D = omic2d.shape[1]
    Dv = vgrid3d.shape[2]

    # Tile sizes: sublane-aligned TM, lane-dense TN (multiple of 128 if N allows).
    TM = _pick_tile(N, (256, 128, 64, 32, 16, 8))
    TN = _pick_tile(N, (256, 128))
    TR = TM  # row-block size for the prologue

    # --- tiny Grams (D x D and 8 x Dv x Dv), O(N*D^2) flops: plain-JAX prologue
    of32 = omic2d.astype(jnp.float32)
    vf32 = vgrid3d.astype(jnp.float32)
    G = jnp.einsum('nd,ne->de', of32, of32)          # (D, D)
    H = jnp.einsum('knd,kne->kde', vf32, vf32)       # (8, Dv, Dv)

    # --- prologue Pallas call: per-row inverse norms (gridded over row blocks)
    inv_o, inv_v = pl.pallas_call(
        _inv_norm_kernel,
        out_shape=(jax.ShapeDtypeStruct((N, 1), jnp.float32),
                   jax.ShapeDtypeStruct((8, N, 1), jnp.float32)),
        grid=(N // TR,),
        in_specs=[
            pl.BlockSpec((TR, D), lambda i: (i, 0)),
            pl.BlockSpec((8, TR, Dv), lambda i: (0, i, 0)),
            pl.BlockSpec((D, D), lambda i: (0, 0)),
            pl.BlockSpec((8, Dv, Dv), lambda i: (0, 0, 0)),
        ],
        out_specs=(pl.BlockSpec((TR, 1), lambda i: (i, 0)),
                   pl.BlockSpec((8, TR, 1), lambda i: (0, i, 0))),
        compiler_params=pltpu.CompilerParams(
            dimension_semantics=("parallel",),
            vmem_limit_bytes=32 * 1024 * 1024),
    )(omic2d, vgrid3d, G, H)

    # --- main Pallas call: fully parallel (i, j) output-tile grid
    grid = (N // TM, N // TN)
    flops = 2 * N * N * (D + 8 * Dv) + 4 * N * N
    bytes_accessed = 4 * (N * N
                          + grid[1] * N * (D + 8 * Dv + 9)   # i-side row blocks
                          + grid[0] * N * (D + 8 * Dv))      # j-side row blocks

    out = pl.pallas_call(
        functools.partial(_batch_loss_kernel, inv_n=1.0 / N),
        out_shape=jax.ShapeDtypeStruct((N, N), jnp.float32),
        grid=grid,
        in_specs=[
            pl.BlockSpec((TM, D), lambda i, j: (i, 0)),         # omic rows (i)
            pl.BlockSpec((TN, D), lambda i, j: (j, 0)),         # omic rows (j)
            pl.BlockSpec((8, TM, Dv), lambda i, j: (0, i, 0)),  # vgrid rows (i)
            pl.BlockSpec((8, TN, Dv), lambda i, j: (0, j, 0)),  # vgrid rows (j)
            pl.BlockSpec((TM, 1), lambda i, j: (i, 0)),         # 1/||sim_i||
            pl.BlockSpec((8, TM, 1), lambda i, j: (0, i, 0)),   # 1/(8||vsim_ki||)
        ],
        out_specs=pl.BlockSpec((TM, TN), lambda i, j: (i, j)),
        compiler_params=pltpu.CompilerParams(
            dimension_semantics=("parallel", "parallel"),
            vmem_limit_bytes=32 * 1024 * 1024),
        cost_estimate=pl.CostEstimate(flops=flops, transcendentals=0,
                                      bytes_accessed=bytes_accessed),
    )(omic2d, omic2d, vgrid3d, vgrid3d, inv_o, inv_v)
    return out


def batch_loss_ref(omic, vgrid, batch_size, world_size):
    """Pure-JAX reference mirroring the PyTorch forward."""
    N = batch_size * world_size
    omic = omic.reshape(N, -1).astype(jnp.float32)
    vgrid = vgrid.reshape(8, N, -1).astype(jnp.float32)
    sim = omic @ omic.T
    sim = sim / jnp.linalg.norm(sim, axis=1, keepdims=True)
    vsims = []
    for k in range(8):
        vs = vgrid[k] @ vgrid[k].T
        vs = vs / jnp.linalg.norm(vs, axis=1, keepdims=True)
        vsims.append(vs)
    mean_v = jnp.mean(jnp.stack(vsims), axis=0)
    return (sim - mean_v) ** 2 / N


if __name__ == "__main__":
    # N large enough to exercise the (i, j) tile grid and lane-dense stores,
    # while the tensors stay tiny (omic 64 KiB, vgrid 256 KiB, output 1 MiB).
    batch_size = 512
    world_size = 1
    N = batch_size * world_size
    D_OMIC = 32
    D_VGRID = 16

    key = jax.random.PRNGKey(0)
    k1, k2 = jax.random.split(key)
    omic = jax.random.normal(k1, (N, D_OMIC), dtype=jnp.float32)
    vgrid = jax.random.normal(k2, (8, N, D_VGRID), dtype=jnp.float32)

    out = jax.block_until_ready(batch_loss(omic, vgrid, batch_size, world_size))
    ref = batch_loss_ref(omic, vgrid, batch_size, world_size)

    assert out.shape == (N, N)
    # Quadratic-form norms + rsqrt differ from the reference's full-row
    # sqrt+divide path by a few f32 ulps, hence the slightly relaxed tolerance.
    assert jnp.allclose(out, ref, rtol=1e-3, atol=1e-7), "mismatch vs reference"

    print("KERNEL_OK")
</pallas_src>

<mosaic_0001>
module attributes {stable_mosaic.version = 11 : i64} {
  func.func @_inv_norm_kernel(%arg0: i32, %arg1: memref<256x32xf32, #tpu.memory_space<vmem>>, %arg2: memref<8x256x16xf32, #tpu.memory_space<vmem>>, %arg3: memref<32x32xf32, #tpu.memory_space<vmem>>, %arg4: memref<8x16x16xf32, #tpu.memory_space<vmem>>, %arg5: memref<256x1xf32, #tpu.memory_space<vmem>>, %arg6: memref<8x256x1xf32, #tpu.memory_space<vmem>>) attributes {dimension_semantics = [#tpu.dimension_semantics<parallel>], iteration_bounds = array<i64: 2>, scalar_prefetch = 0 : i64, scratch_operands = 0 : i64, tpu.core_type = #tpu.core_type<tc>, window_params = [{transform_indices = @transform_0, window_bounds = array<i64: 256, 32>}, {transform_indices = @transform_1, window_bounds = array<i64: 8, 256, 16>}, {pipeline_mode = #tpu.pipeline_mode<synchronous>, transform_indices = @transform_2, window_bounds = array<i64: 32, 32>}, {pipeline_mode = #tpu.pipeline_mode<synchronous>, transform_indices = @transform_3, window_bounds = array<i64: 8, 16, 16>}, {transform_indices = @transform_4, window_bounds = array<i64: 256, 1>}, {transform_indices = @transform_5, window_bounds = array<i64: 8, 256, 1>}]} {
    %c0 = arith.constant 0 : index
    %c0_0 = arith.constant 0 : index
    %0 = vector.load %arg1[%c0, %c0_0] : memref<256x32xf32, #tpu.memory_space<vmem>>, vector<256x32xf32>
    %c0_1 = arith.constant 0 : index
    %c0_2 = arith.constant 0 : index
    %1 = vector.load %arg3[%c0_1, %c0_2] : memref<32x32xf32, #tpu.memory_space<vmem>>, vector<32x32xf32>
    %cst = arith.constant dense<0.000000e+00> : vector<256x32xf32>
    %2 = tpu.matmul %0, %1, %cst {dimension_numbers = #tpu.dot_dimension_numbers<[1], [0], [0], [1], [0, 0, 1, 1], [], []>} : vector<256x32xf32>, vector<32x32xf32>, vector<256x32xf32> -> vector<256x32xf32>
    %3 = arith.mulf %2, %0 : vector<256x32xf32>
    %cst_3 = arith.constant dense<0.000000e+00> : vector<256xf32>
    %4 = vector.multi_reduction <add>, %3, %cst_3 [1] : vector<256x32xf32> to vector<256xf32>
    %5 = vector.shape_cast %4 : vector<256xf32> to vector<256x1xf32>
    %6 = math.rsqrt %5 : vector<256x1xf32>
    %c0_4 = arith.constant 0 : index
    %c0_5 = arith.constant 0 : index
    %7 = vector.load %arg5[%c0_4, %c0_5] : memref<256x1xf32, #tpu.memory_space<vmem>>, vector<256x1xf32>
    tpu.vector_store %arg5[%c0_4, %c0_5], %6 {strides = array<i32>} : memref<256x1xf32, #tpu.memory_space<vmem>>, vector<256x1xf32>,
    %c0_6 = arith.constant 0 : index
    %c0_7 = arith.constant 0 : index
    %c0_8 = arith.constant 0 : index
    %8 = vector.load %arg2[%c0_6, %c0_7, %c0_8] : memref<8x256x16xf32, #tpu.memory_space<vmem>>, vector<8x256x16xf32>
    %c0_9 = arith.constant 0 : index
    %c0_10 = arith.constant 0 : index
    %c0_11 = arith.constant 0 : index
    %9 = vector.load %arg4[%c0_9, %c0_10, %c0_11] : memref<8x16x16xf32, #tpu.memory_space<vmem>>, vector<8x16x16xf32>
    "tpu.trace_start"() <{level = 10 : i32, message = "kmd,kde->kme"}> : () -> ()
    %cst_12 = arith.constant dense<0.000000e+00> : vector<8x256x16xf32>
    %10 = tpu.matmul %8, %9, %cst_12 {dimension_numbers = #tpu.dot_dimension_numbers<[2], [1], [1], [2], [0, 0, 0, 1, 1, 2], [0], [0]>} : vector<8x256x16xf32>, vector<8x16x16xf32>, vector<8x256x16xf32> -> vector<8x256x16xf32>
    "tpu.trace_stop"() : () -> ()
    %11 = arith.mulf %10, %8 : vector<8x256x16xf32>
    %cst_13 = arith.constant dense<0.000000e+00> : vector<8x256xf32>
    %12 = vector.multi_reduction <add>, %11, %cst_13 [2] : vector<8x256x16xf32> to vector<8x256xf32>
    %13 = vector.shape_cast %12 : vector<8x256xf32> to vector<8x256x1xf32>
    %14 = math.rsqrt %13 : vector<8x256x1xf32>
    %cst_14 = arith.constant 1.250000e-01 : f32
    %15 = vector.broadcast %cst_14 : f32 to vector<8x256x1xf32>
    %16 = arith.mulf %14, %15 : vector<8x256x1xf32>
    %c0_15 = arith.constant 0 : index
    %c0_16 = arith.constant 0 : index
    %c0_17 = arith.constant 0 : index
    %17 = vector.load %arg6[%c0_15, %c0_16, %c0_17] : memref<8x256x1xf32, #tpu.memory_space<vmem>>, vector<8x256x1xf32>
    tpu.vector_store %arg6[%c0_15, %c0_16, %c0_17], %16 {strides = array<i32>} : memref<8x256x1xf32, #tpu.memory_space<vmem>>, vector<8x256x1xf32>,
    return
  }
  func.func @transform_0(%arg0: i32) -> (i32, i32) {
    %c0_i32 = arith.constant 0 : i32
    %c0_i32_0 = arith.constant 0 : i32
    return %arg0, %c0_i32 : i32, i32
  }
  func.func @transform_1(%arg0: i32) -> (i32, i32, i32) {
    %c0_i32 = arith.constant 0 : i32
    %c0_i32_0 = arith.constant 0 : i32
    %c0_i32_1 = arith.constant 0 : i32
    return %c0_i32, %arg0, %c0_i32_0 : i32, i32, i32
  }
  func.func @transform_2(%arg0: i32) -> (i32, i32) {
    %c0_i32 = arith.constant 0 : i32
    %c0_i32_0 = arith.constant 0 : i32
    %c0_i32_1 = arith.constant 0 : i32
    return %c0_i32, %c0_i32_0 : i32, i32
  }
  func.func @transform_3(%arg0: i32) -> (i32, i32, i32) {
    %c0_i32 = arith.constant 0 : i32
    %c0_i32_0 = arith.constant 0 : i32
    %c0_i32_1 = arith.constant 0 : i32
    %c0_i32_2 = arith.constant 0 : i32
    return %c0_i32, %c0_i32_0, %c0_i32_1 : i32, i32, i32
  }
  func.func @transform_4(%arg0: i32) -> (i32, i32) {
    %c0_i32 = arith.constant 0 : i32
    %c0_i32_0 = arith.constant 0 : i32
    return %arg0, %c0_i32 : i32, i32
  }
  func.func @transform_5(%arg0: i32) -> (i32, i32, i32) {
    %c0_i32 = arith.constant 0 : i32
    %c0_i32_0 = arith.constant 0 : i32
    %c0_i32_1 = arith.constant 0 : i32
    return %c0_i32, %arg0, %c0_i32_0 : i32, i32, i32
  }
}

</mosaic_0001>

<llo_original>
// kernel: tpu_custom_call.1
$region0: #{tpu_custom_call.1}
  #allocation0 [shape = 'u32[]', space=smem, size = 0x4, offset = 0x4, fixed_abs, tag = 'smem constant byte address 0x4 - core index']
  #allocation1 [shape = 'u32[144,128]{1,0:T(1,128)}', space=vmem, size = 0x12000, scoped, tag = 'internal scratch']
  %s0 = inlined_call_operand.vmem [shape: f32[512,32], index: 0, kind: input, shape index: {}]
  %s1 = inlined_call_operand.vmem [shape: f32[8,512,16], index: 1, kind: input, shape index: {}]
  %s2 = inlined_call_operand.vmem [shape: f32[32,32], index: 2, kind: input, shape index: {}]
  %s3 = inlined_call_operand.vmem [shape: f32[8,16,16], index: 3, kind: input, shape index: {}]
  %s4 = inlined_call_operand.vmem [shape: f32[512,1], index: 4, kind: output, shape index: {0}]
  %s5 = inlined_call_operand.vmem [shape: f32[8,512,1], index: 5, kind: output, shape index: {1}]
  %6 = xla_tuple %s4, %s5
  %s7 = sld [smem:[#allocation0]]
  $region129: #{tpu_custom_call.1} parent=0
    _
  %s9 = ssub.s32 1, %s7
  %s10 = scalar_select 0, %s9, %s7
  $region1: #{tpu_custom_call.1} parent=0
    #allocation2 [shape = 'u8[2097152]{0}', space=vmem, size = 0x200000, scoped, tag = 'input window, operand 1']
    #allocation3 [shape = 'u8[2097152]{0}', space=vmem, size = 0x200000, scoped, tag = 'output window, operand 1']
    loop: start=0, step=1, limit=4
    $region2: #{tpu_custom_call.1} parent=1 // loop_pre_header
      _
    $region3: #{tpu_custom_call.1} parent=1 // loop_header
      %s12 = sphi 0, %s16
      %p13 = scmp.ge.s32.totalorder %s12, 4
      %s22 = sphi 0, %s24
      %s25 = sphi 0, %s22
      %s26 = sphi 0, %s25
      %s42 = sphi 0, %s26
      %s48 = sphi 0, %s50
      %s51 = sphi 0, %s48
      %s52 = sphi 0, %s51
      %s68 = sphi 0, %s52
      %s72 = sphi 0, %s72
      %s74 = sphi 0, %s72
      %s75 = sphi 0, %s74
      %s89 = sphi 0, %s75
      %s93 = sphi 0, %s93
      %s95 = sphi 0, %s93
      %s96 = sphi 0, %s95
      %s110 = sphi 0, %s96
      %s116 = sphi 0, %s118
      %s119 = sphi 0, %s116
      %s120 = sphi 0, %s119
      %s136 = sphi 0, %s120
      %s142 = sphi 0, %s144
      %s145 = sphi 0, %s142
      %s146 = sphi 0, %s145
      %s162 = sphi 0, %s146
    $region4: #{tpu_custom_call.1} parent=1 // loop_header_branch
      %15 = sbr.rel (%p13) target = $region8
    $region5: #{tpu_custom_call.1} parent=1 // loop_body
      %s17 = ssub.s32 %s12, 1
      %s18 = ssub.s32 %s12, 2
      %s19 = sadd.s32 %s12, 1
      %s20 = ssub.s32 %s12, %s19
      %p21 = scmp.eq.s32.totalorder %s20, 0
      %s23 = sadd.s32 %s22, 1
      %s24 = scalar_select %p21, %s22, %s23
      %p27 = pneg %p21
      %p28 = scmp.eq.s32.totalorder %s12, 1
      %p29 = por %p27, %p28
      %p30 = scmp.ne.s32.totalorder %s22, %s25
      %p31 = scmp.eq.s32.totalorder %s12, 0
      %p32 = por %p30, %p31
      %p33 = scmp.ne.s32.totalorder %s22, %s25
      %p34 = scmp.eq.s32.totalorder %s17, 1
      %p35 = por %p33, %p34
      %p36 = scmp.ne.s32.totalorder %s25, %s26
      %p37 = scmp.eq.s32.totalorder %s17, 0
      %p38 = por %p36, %p37
      %p39 = scmp.ne.s32.totalorder %s25, %s26
      %p40 = scmp.eq.s32.totalorder %s18, 1
      %p41 = por %p39, %p40
      %p43 = scmp.ne.s32.totalorder %s26, %s42
      %p44 = scmp.eq.s32.totalorder %s18, 0
      %p45 = por %p43, %p44
      %s46 = ssub.s32 %s12, %s19
      %p47 = scmp.eq.s32.totalorder %s46, 0
      %s49 = sadd.s32 %s48, 1
      %s50 = scalar_select %p47, %s48, %s49
      %p53 = pneg %p47
      %p54 = scmp.eq.s32.totalorder %s12, 1
      %p55 = por %p53, %p54
      %p56 = scmp.ne.s32.totalorder %s48, %s51
      %p57 = scmp.eq.s32.totalorder %s12, 0
      %p58 = por %p56, %p57
      %p59 = scmp.ne.s32.totalorder %s48, %s51
      %p60 = scmp.eq.s32.totalorder %s17, 1
      %p61 = por %p59, %p60
      %p62 = scmp.ne.s32.totalorder %s51, %s52
      %p63 = scmp.eq.s32.totalorder %s17, 0
      %p64 = por %p62, %p63
      %p65 = scmp.ne.s32.totalorder %s51, %s52
      %p66 = scmp.eq.s32.totalorder %s18, 1
      %p67 = por %p65, %p66
      %p69 = scmp.ne.s32.totalorder %s52, %s68
      %p70 = scmp.eq.s32.totalorder %s18, 0
      %p71 = por %p69, %p70
      %s73 = sadd.s32 %s72, 1
      %p76 = scmp.eq.s32.totalorder %s12, 1
      %p77 = scmp.ne.s32.totalorder %s72, %s74
      %p78 = scmp.eq.s32.totalorder %s12, 0
      %p79 = por %p77, %p78
      %p80 = scmp.ne.s32.totalorder %s72, %s74
      %p81 = scmp.eq.s32.totalorder %s17, 1
      %p82 = por %p80, %p81
      %p83 = scmp.ne.s32.totalorder %s74, %s75
      %p84 = scmp.eq.s32.totalorder %s17, 0
      %p85 = por %p83, %p84
      %p86 = scmp.ne.s32.totalorder %s74, %s75
      %p87 = scmp.eq.s32.totalorder %s18, 1
      %p88 = por %p86, %p87
      %p90 = scmp.ne.s32.totalorder %s75, %s89
      %p91 = scmp.eq.s32.totalorder %s18, 0
      %p92 = por %p90, %p91
      %s94 = sadd.s32 %s93, 1
      %p97 = scmp.eq.s32.totalorder %s12, 1
      %p98 = scmp.ne.s32.totalorder %s93, %s95
      %p99 = scmp.eq.s32.totalorder %s12, 0
      %p100 = por %p98, %p99
      %p101 = scmp.ne.s32.totalorder %s93, %s95
      %p102 = scmp.eq.s32.totalorder %s17, 1
      %p103 = por %p101, %p102
      %p104 = scmp.ne.s32.totalorder %s95, %s96
      %p105 = scmp.eq.s32.totalorder %s17, 0
      %p106 = por %p104, %p105
      %p107 = scmp.ne.s32.totalorder %s95, %s96
      %p108 = scmp.eq.s32.totalorder %s18, 1
      %p109 = por %p107, %p108
      %p111 = scmp.ne.s32.totalorder %s96, %s110
      %p112 = scmp.eq.s32.totalorder %s18, 0
      %p113 = por %p111, %p112
      %s114 = ssub.s32 %s12, %s19
      %p115 = scmp.eq.s32.totalorder %s114, 0
      %s117 = sadd.s32 %s116, 1
      %s118 = scalar_select %p115, %s116, %s117
      %p121 = pneg %p115
      %p122 = scmp.eq.s32.totalorder %s12, 1
      %p123 = por %p121, %p122
      %p124 = scmp.ne.s32.totalorder %s116, %s119
      %p125 = scmp.eq.s32.totalorder %s12, 0
      %p126 = por %p124, %p125
      %p127 = scmp.ne.s32.totalorder %s116, %s119
      %p128 = scmp.eq.s32.totalorder %s17, 1
      %p129 = por %p127, %p128
      %p130 = scmp.ne.s32.totalorder %s119, %s120
      %p131 = scmp.eq.s32.totalorder %s17, 0
      %p132 = por %p130, %p131
      %p133 = scmp.ne.s32.totalorder %s119, %s120
      %p134 = scmp.eq.s32.totalorder %s18, 1
      %p135 = por %p133, %p134
      %p137 = scmp.ne.s32.totalorder %s120, %s136
      %p138 = scmp.eq.s32.totalorder %s18, 0
      %p139 = por %p137, %p138
      %s140 = ssub.s32 %s12, %s19
      %p141 = scmp.eq.s32.totalorder %s140, 0
      %s143 = sadd.s32 %s142, 1
      %s144 = scalar_select %p141, %s142, %s143
      %p147 = pneg %p141
      %p148 = scmp.eq.s32.totalorder %s12, 1
      %p149 = por %p147, %p148
      %p150 = scmp.ne.s32.totalorder %s142, %s145
      %p151 = scmp.eq.s32.totalorder %s12, 0
      %p152 = por %p150, %p151
      %p153 = scmp.ne.s32.totalorder %s142, %s145
      %p154 = scmp.eq.s32.totalorder %s17, 1
      %p155 = por %p153, %p154
      %p156 = scmp.ne.s32.totalorder %s145, %s146
      %p157 = scmp.eq.s32.totalorder %s17, 0
      %p158 = por %p156, %p157
      %p159 = scmp.ne.s32.totalorder %s145, %s146
      %p160 = scmp.eq.s32.totalorder %s18, 1
      %p161 = por %p159, %p160
      %p163 = scmp.ne.s32.totalorder %s146, %s162
      %p164 = scmp.eq.s32.totalorder %s18, 0
      %p165 = por %p163, %p164
      %p166 = scmp.le.s32.totalorder 1, %s12
      %p167 = scmp.lt.s32.totalorder %s12, 3
      %p168 = pnand %p166, %p167
      %p169 = pneg %p168
      // Predicated region
      $region9: #{tpu_custom_call.1} parent=5 // pred_check
        _
      $region10: #{tpu_custom_call.1} parent=5 // pred_check_branch
        %171 = sbr.rel (%p168) target = $region12
      $region11: #{tpu_custom_call.1} parent=5 // pred_region
        %s172 = ssub.s32 %s12, 1
        // Predicated region
        $region13: #{tpu_custom_call.1} parent=11 // pred_check
          %p173 = pneg %p85
        $region14: #{tpu_custom_call.1} parent=11 // pred_check_branch
          %175 = sbr.rel (%p173) target = $region16
        $region15: #{tpu_custom_call.1} parent=11 // pred_region
          _
        $region16: #{tpu_custom_call.1} parent=11 // pred_fallthru
          _
        // Predicated region
        $region17: #{tpu_custom_call.1} parent=11 // pred_check
          %p176 = pneg %p106
        $region18: #{tpu_custom_call.1} parent=11 // pred_check_branch
          %178 = sbr.rel (%p176) target = $region20
        $region19: #{tpu_custom_call.1} parent=11 // pred_region
          _
        $region20: #{tpu_custom_call.1} parent=11 // pred_fallthru
          _
      $region12: #{tpu_custom_call.1} parent=5 // pred_fallthru
        _
      %p179 = scmp.lt.s32.totalorder %s12, 2
      // Predicated region
      $region21: #{tpu_custom_call.1} parent=5 // pred_check
        %p180 = pneg %p179
      $region22: #{tpu_custom_call.1} parent=5 // pred_check_branch
        %182 = sbr.rel (%p180) target = $region24
      $region23: #{tpu_custom_call.1} parent=5 // pred_region
        // Predicated region
        $region25: #{tpu_custom_call.1} parent=23 // pred_check
          %p183 = pneg %p32
        $region26: #{tpu_custom_call.1} parent=23 // pred_check_branch
          %185 = sbr.rel (%p183) target = $region28
        $region27: #{tpu_custom_call.1} parent=23 // pred_region
          %s186 = smul.u32 32, %s12
          %p187 = scmp.lt.s32.totalorder %s186, 63
          %s188 = scalar_select %p187, %s186, 63
          %s189 = smul.addr %s188, 8
          %s190 = scalar_lea.vmem %s0, %s189
          %s191 = smul.u32 32, %s12
        $region28: #{tpu_custom_call.1} parent=23 // pred_fallthru
          _
        // Predicated region
        $region29: #{tpu_custom_call.1} parent=23 // pred_check
          %p192 = pneg %p58
        $region30: #{tpu_custom_call.1} parent=23 // pred_check_branch
          %194 = sbr.rel (%p192) target = $region32
        $region31: #{tpu_custom_call.1} parent=23 // pred_region
          %s195 = sand.u32 %s48, 1
          %s196 = sand.u32 %s48, 1
          %s197 = smul.addr %s196, 2048
          %s198 = scalar_lea.vmem [#allocation2], %s197
          %s199 = smul.u32 32, %s12
          %s200 = smul.addr %s199, 8
          %s201 = scalar_lea.vmem %s1, %s200
          // Predicated region
          $region33: #{tpu_custom_call.1} parent=31 // pred_check
            _
          $region34: #{tpu_custom_call.1} parent=31 // pred_check_branch
            %203 = sbr.rel (0) target = $region36
          $region35: #{tpu_custom_call.1} parent=31 // pred_region
            // Predicated region
            $region37: #{tpu_custom_call.1} parent=35 // pred_check
              _
            $region38: #{tpu_custom_call.1} parent=35 // pred_check_branch
              %205 = sbr.rel (0) target = $region40
            $region39: #{tpu_custom_call.1} parent=35 // pred_region
              // Predicated region
              $region52: #{tpu_custom_call.1} parent=39 // pred_check
                _
              $region53: #{tpu_custom_call.1} parent=39 // pred_check_branch
                %731 = sbr.rel (0) target = $region55
              $region54: #{tpu_custom_call.1} parent=39 // pred_region
                loop: start=0, step=1, limit=1
                $region56: #{tpu_custom_call.1} parent=54 // loop_pre_header
                  _
                $region57: #{tpu_custom_call.1} parent=54 // loop_header
                  %s733 = sphi 0, %s737
                  %p734 = scmp.ge.s32.totalorder %s733, 1
                  %s738 = sphi %s201, %s201
                  %s739 = sphi %s198, %s198
                $region58: #{tpu_custom_call.1} parent=54 // loop_header_branch
                  %736 = sbr.rel (%p734) target = $region62
                $region59: #{tpu_custom_call.1} parent=54 // loop_body
                  %v740 = vld [vmem:[%s738] sm:$0xff]
                  %741 = vst [vmem:[%s739] sm:$0xff] %v740
                  %v742 = vld [vmem:[%s738 + $0x8] sm:$0xff]
                  %743 = vst [vmem:[%s739 + $0x8] sm:$0xff] %v742
                  %v744 = vld [vmem:[%s738 + $0x10] sm:$0xff]
                  %745 = vst [vmem:[%s739 + $0x10] sm:$0xff] %v744
                  %v746 = vld [vmem:[%s738 + $0x18] sm:$0xff]
                  %747 = vst [vmem:[%s739 + $0x18] sm:$0xff] %v746
                  %v748 = vld [vmem:[%s738 + $0x20] sm:$0xff]
                  %749 = vst [vmem:[%s739 + $0x20] sm:$0xff] %v748
                  %v750 = vld [vmem:[%s738 + $0x28] sm:$0xff]
                  %751 = vst [vmem:[%s739 + $0x28] sm:$0xff] %v750
                  %v752 = vld [vmem:[%s738 + $0x30] sm:$0xff]
                  %753 = vst [vmem:[%s739 + $0x30] sm:$0xff] %v752
                  %v754 = vld [vmem:[%s738 + $0x38] sm:$0xff]
                  %755 = vst [vmem:[%s739 + $0x38] sm:$0xff] %v754
                  %v756 = vld [vmem:[%s738 + $0x40] sm:$0xff]
                  %757 = vst [vmem:[%s739 + $0x40] sm:$0xff] %v756
                  %v758 = vld [vmem:[%s738 + $0x48] sm:$0xff]
                  %759 = vst [vmem:[%s739 + $0x48] sm:$0xff] %v758
                  %v760 = vld [vmem:[%s738 + $0x50] sm:$0xff]
                  %761 = vst [vmem:[%s739 + $0x50] sm:$0xff] %v760
                  %v762 = vld [vmem:[%s738 + $0x58] sm:$0xff]
                  %763 = vst [vmem:[%s739 + $0x58] sm:$0xff] %v762
                  %v764 = vld [vmem:[%s738 + $0x60] sm:$0xff]
                  %765 = vst [vmem:[%s739 + $0x60] sm:$0xff] %v764
                  %v766 = vld [vmem:[%s738 + $0x68] sm:$0xff]
                  %767 = vst [vmem:[%s739 + $0x68] sm:$0xff] %v766
                  %v768 = vld [vmem:[%s738 + $0x70] sm:$0xff]
                  %769 = vst [vmem:[%s739 + $0x70] sm:$0xff] %v768
                  %v770 = vld [vmem:[%s738 + $0x78] sm:$0xff]
                  %771 = vst [vmem:[%s739 + $0x78] sm:$0xff] %v770
                  %v772 = vld [vmem:[%s738 + $0x80] sm:$0xff]
                  %773 = vst [vmem:[%s739 + $0x80] sm:$0xff] %v772
                  %v774 = vld [vmem:[%s738 + $0x88] sm:$0xff]
                  %775 = vst [vmem:[%s739 + $0x88] sm:$0xff] %v774
                  %v776 = vld [vmem:[%s738 + $0x90] sm:$0xff]
                  %777 = vst [vmem:[%s739 + $0x90] sm:$0xff] %v776
                  %v778 = vld [vmem:[%s738 + $0x98] sm:$0xff]
                  %779 = vst [vmem:[%s739 + $0x98] sm:$0xff] %v778
                  %v780 = vld [vmem:[%s738 + $0xa0] sm:$0xff]
                  %781 = vst [vmem:[%s739 + $0xa0] sm:$0xff] %v780
                  %v782 = vld [vmem:[%s738 + $0xa8] sm:$0xff]
                  %783 = vst [vmem:[%s739 + $0xa8] sm:$0xff] %v782
                  %v784 = vld [vmem:[%s738 + $0xb0] sm:$0xff]
                  %785 = vst [vmem:[%s739 + $0xb0] sm:$0xff] %v784
                  %v786 = vld [vmem:[%s738 + $0xb8] sm:$0xff]
                  %787 = vst [vmem:[%s739 + $0xb8] sm:$0xff] %v786
                  %v788 = vld [vmem:[%s738 + $0xc0] sm:$0xff]
                  %789 = vst [vmem:[%s739 + $0xc0] sm:$0xff] %v788
                  %v790 = vld [vmem:[%s738 + $0xc8] sm:$0xff]
                  %791 = vst [vmem:[%s739 + $0xc8] sm:$0xff] %v790
                  %v792 = vld [vmem:[%s738 + $0xd0] sm:$0xff]
                  %793 = vst [vmem:[%s739 + $0xd0] sm:$0xff] %v792
                  %v794 = vld [vmem:[%s738 + $0xd8] sm:$0xff]
                  %795 = vst [vmem:[%s739 + $0xd8] sm:$0xff] %v794
                  %v796 = vld [vmem:[%s738 + $0xe0] sm:$0xff]
                  %797 = vst [vmem:[%s739 + $0xe0] sm:$0xff] %v796
                  %v798 = vld [vmem:[%s738 + $0xe8] sm:$0xff]
                  %799 = vst [vmem:[%s739 + $0xe8] sm:$0xff] %v798
                  %v800 = vld [vmem:[%s738 + $0xf0] sm:$0xff]
                  %801 = vst [vmem:[%s739 + $0xf0] sm:$0xff] %v800
                  %v802 = vld [vmem:[%s738 + $0xf8] sm:$0xff]
                  %803 = vst [vmem:[%s739 + $0xf8] sm:$0xff] %v802
                  %v804 = vld [vmem:[%s738 + $0x200] sm:$0xff]
                  %805 = vst [vmem:[%s739 + $0x100] sm:$0xff] %v804
                  %v806 = vld [vmem:[%s738 + $0x208] sm:$0xff]
                  %807 = vst [vmem:[%s739 + $0x108] sm:$0xff] %v806
                  %v808 = vld [vmem:[%s738 + $0x210] sm:$0xff]
                  %809 = vst [vmem:[%s739 + $0x110] sm:$0xff] %v808
                  %v810 = vld [vmem:[%s738 + $0x218] sm:$0xff]
                  %811 = vst [vmem:[%s739 + $0x118] sm:$0xff] %v810
                  %v812 = vld [vmem:[%s738 + $0x220] sm:$0xff]
                  %813 = vst [vmem:[%s739 + $0x120] sm:$0xff] %v812
                  %v814 = vld [vmem:[%s738 + $0x228] sm:$0xff]
                  %815 = vst [vmem:[%s739 + $0x128] sm:$0xff] %v814
                  %v816 = vld [vmem:[%s738 + $0x230] sm:$0xff]
                  %817 = vst [vmem:[%s739 + $0x130] sm:$0xff] %v816
                  %v818 = vld [vmem:[%s738 + $0x238] sm:$0xff]
                  %819 = vst [vmem:[%s739 + $0x138] sm:$0xff] %v818
                  %v820 = vld [vmem:[%s738 + $0x240] sm:$0xff]
                  %821 = vst [vmem:[%s739 + $0x140] sm:$0xff] %v820
                  %v822 = vld [vmem:[%s738 + $0x248] sm:$0xff]
                  %823 = vst [vmem:[%s739 + $0x148] sm:$0xff] %v822
                  %v824 = vld [vmem:[%s738 + $0x250] sm:$0xff]
                  %825 = vst [vmem:[%s739 + $0x150] sm:$0xff] %v824
                  %v826 = vld [vmem:[%s738 + $0x258] sm:$0xff]
                  %827 = vst [vmem:[%s739 + $0x158] sm:$0xff] %v826
                  %v828 = vld [vmem:[%s738 + $0x260] sm:$0xff]
                  %829 = vst [vmem:[%s739 + $0x160] sm:$0xff] %v828
                  %v830 = vld [vmem:[%s738 + $0x268] sm:$0xff]
                  %831 = vst [vmem:[%s739 + $0x168] sm:$0xff] %v830
                  %v832 = vld [vmem:[%s738 + $0x270] sm:$0xff]
                  %833 = vst [vmem:[%s739 + $0x170] sm:$0xff] %v832
                  %v834 = vld [vmem:[%s738 + $0x278] sm:$0xff]
                  %835 = vst [vmem:[%s739 + $0x178] sm:$0xff] %v834
                  %v836 = vld [vmem:[%s738 + $0x280] sm:$0xff]
                  %837 = vst [vmem:[%s739 + $0x180] sm:$0xff] %v836
                  %v838 = vld [vmem:[%s738 + $0x288] sm:$0xff]
                  %839 = vst [vmem:[%s739 + $0x188] sm:$0xff] %v838
                  %v840 = vld [vmem:[%s738 + $0x290] sm:$0xff]
                  %841 = vst [vmem:[%s739 + $0x190] sm:$0xff] %v840
                  %v842 = vld [vmem:[%s738 + $0x298] sm:$0xff]
                  %843 = vst [vmem:[%s739 + $0x198] sm:$0xff] %v842
                  %v844 = vld [vmem:[%s738 + $0x2a0] sm:$0xff]
                  %845 = vst [vmem:[%s739 + $0x1a0] sm:$0xff] %v844
                  %v846 = vld [vmem:[%s738 + $0x2a8] sm:$0xff]
                  %847 = vst [vmem:[%s739 + $0x1a8] sm:$0xff] %v846
                  %v848 = vld [vmem:[%s738 + $0x2b0] sm:$0xff]
                  %849 = vst [vmem:[%s739 + $0x1b0] sm:$0xff] %v848
                  %v850 = vld [vmem:[%s738 + $0x2b8] sm:$0xff]
                  %851 = vst [vmem:[%s739 + $0x1b8] sm:$0xff] %v850
                  %v852 = vld [vmem:[%s738 + $0x2c0] sm:$0xff]
                  %853 = vst [vmem:[%s739 + $0x1c0] sm:$0xff] %v852
                  %v854 = vld [vmem:[%s738 + $0x2c8] sm:$0xff]
                  %855 = vst [vmem:[%s739 + $0x1c8] sm:$0xff] %v854
                  %v856 = vld [vmem:[%s738 + $0x2d0] sm:$0xff]
                  %857 = vst [vmem:[%s739 + $0x1d0] sm:$0xff] %v856
                  %v858 = vld [vmem:[%s738 + $0x2d8] sm:$0xff]
                  %859 = vst [vmem:[%s739 + $0x1d8] sm:$0xff] %v858
                  %v860 = vld [vmem:[%s738 + $0x2e0] sm:$0xff]
                  %861 = vst [vmem:[%s739 + $0x1e0] sm:$0xff] %v860
                  %v862 = vld [vmem:[%s738 + $0x2e8] sm:$0xff]
                  %863 = vst [vmem:[%s739 + $0x1e8] sm:$0xff] %v862
                  %v864 = vld [vmem:[%s738 + $0x2f0] sm:$0xff]
                  %865 = vst [vmem:[%s739 + $0x1f0] sm:$0xff] %v864
                  %v866 = vld [vmem:[%s738 + $0x2f8] sm:$0xff]
                  %867 = vst [vmem:[%s739 + $0x1f8] sm:$0xff] %v866
                  %v868 = vld [vmem:[%s738 + $0x400] sm:$0xff]
                  %869 = vst [vmem:[%s739 + $0x200] sm:$0xff] %v868
                  %v870 = vld [vmem:[%s738 + $0x408] sm:$0xff]
                  %871 = vst [vmem:[%s739 + $0x208] sm:$0xff] %v870
                  %v872 = vld [vmem:[%s738 + $0x410] sm:$0xff]
                  %873 = vst [vmem:[%s739 + $0x210] sm:$0xff] %v872
                  %v874 = vld [vmem:[%s738 + $0x418] sm:$0xff]
                  %875 = vst [vmem:[%s739 + $0x218] sm:$0xff] %v874
                  %v876 = vld [vmem:[%s738 + $0x420] sm:$0xff]
                  %877 = vst [vmem:[%s739 + $0x220] sm:$0xff] %v876
                  %v878 = vld [vmem:[%s738 + $0x428] sm:$0xff]
                  %879 = vst [vmem:[%s739 + $0x228] sm:$0xff] %v878
                  %v880 = vld [vmem:[%s738 + $0x430] sm:$0xff]
                  %881 = vst [vmem:[%s739 + $0x230] sm:$0xff] %v880
                  %v882 = vld [vmem:[%s738 + $0x438] sm:$0xff]
                  %883 = vst [vmem:[%s739 + $0x238] sm:$0xff] %v882
                  %v884 = vld [vmem:[%s738 + $0x440] sm:$0xff]
                  %885 = vst [vmem:[%s739 + $0x240] sm:$0xff] %v884
                  %v886 = vld [vmem:[%s738 + $0x448] sm:$0xff]
                  %887 = vst [vmem:[%s739 + $0x248] sm:$0xff] %v886
                  %v888 = vld [vmem:[%s738 + $0x450] sm:$0xff]
                  %889 = vst [vmem:[%s739 + $0x250] sm:$0xff] %v888
                  %v890 = vld [vmem:[%s738 + $0x458] sm:$0xff]
                  %891 = vst [vmem:[%s739 + $0x258] sm:$0xff] %v890
                  %v892 = vld [vmem:[%s738 + $0x460] sm:$0xff]
                  %893 = vst [vmem:[%s739 + $0x260] sm:$0xff] %v892
                  %v894 = vld [vmem:[%s738 + $0x468] sm:$0xff]
                  %895 = vst [vmem:[%s739 + $0x268] sm:$0xff] %v894
                  %v896 = vld [vmem:[%s738 + $0x470] sm:$0xff]
                  %897 = vst [vmem:[%s739 + $0x270] sm:$0xff] %v896
                  %v898 = vld [vmem:[%s738 + $0x478] sm:$0xff]
                  %899 = vst [vmem:[%s739 + $0x278] sm:$0xff] %v898
                  %v900 = vld [vmem:[%s738 + $0x480] sm:$0xff]
                  %901 = vst [vmem:[%s739 + $0x280] sm:$0xff] %v900
                  %v902 = vld [vmem:[%s738 + $0x488] sm:$0xff]
                  %903 = vst [vmem:[%s739 + $0x288] sm:$0xff] %v902
                  %v904 = vld [vmem:[%s738 + $0x490] sm:$0xff]
                  %905 = vst [vmem:[%s739 + $0x290] sm:$0xff] %v904
                  %v906 = vld [vmem:[%s738 + $0x498] sm:$0xff]
                  %907 = vst [vmem:[%s739 + $0x298] sm:$0xff] %v906
                  %v908 = vld [vmem:[%s738 + $0x4a0] sm:$0xff]
                  %909 = vst [vmem:[%s739 + $0x2a0] sm:$0xff] %v908
                  %v910 = vld [vmem:[%s738 + $0x4a8] sm:$0xff]
                  %911 = vst [vmem:[%s739 + $0x2a8] sm:$0xff] %v910
                  %v912 = vld [vmem:[%s738 + $0x4b0] sm:$0xff]
                  %913 = vst [vmem:[%s739 + $0x2b0] sm:$0xff] %v912
                  %v914 = vld [vmem:[%s738 + $0x4b8] sm:$0xff]
                  %915 = vst [vmem:[%s739 + $0x2b8] sm:$0xff] %v914
                  %v916 = vld [vmem:[%s738 + $0x4c0] sm:$0xff]
                  %917 = vst [vmem:[%s739 + $0x2c0] sm:$0xff] %v916
                  %v918 = vld [vmem:[%s738 + $0x4c8] sm:$0xff]
                  %919 = vst [vmem:[%s739 + $0x2c8] sm:$0xff] %v918
                  %v920 = vld [vmem:[%s738 + $0x4d0] sm:$0xff]
                  %921 = vst [vmem:[%s739 + $0x2d0] sm:$0xff] %v920
                  %v922 = vld [vmem:[%s738 + $0x4d8] sm:$0xff]
                  %923 = vst [vmem:[%s739 + $0x2d8] sm:$0xff] %v922
                  %v924 = vld [vmem:[%s738 + $0x4e0] sm:$0xff]
                  %925 = vst [vmem:[%s739 + $0x2e0] sm:$0xff] %v924
                  %v926 = vld [vmem:[%s738 + $0x4e8] sm:$0xff]
                  %927 = vst [vmem:[%s739 + $0x2e8] sm:$0xff] %v926
                  %v928 = vld [vmem:[%s738 + $0x4f0] sm:$0xff]
                  %929 = vst [vmem:[%s739 + $0x2f0] sm:$0xff] %v928
                  %v930 = vld [vmem:[%s738 + $0x4f8] sm:$0xff]
                  %931 = vst [vmem:[%s739 + $0x2f8] sm:$0xff] %v930
                  %v932 = vld [vmem:[%s738 + $0x600] sm:$0xff]
                  %933 = vst [vmem:[%s739 + $0x300] sm:$0xff] %v932
                  %v934 = vld [vmem:[%s738 + $0x608] sm:$0xff]
                  %935 = vst [vmem:[%s739 + $0x308] sm:$0xff] %v934
                  %v936 = vld [vmem:[%s738 + $0x610] sm:$0xff]
                  %937 = vst [vmem:[%s739 + $0x310] sm:$0xff] %v936
                  %v938 = vld [vmem:[%s738 + $0x618] sm:$0xff]
                  %939 = vst [vmem:[%s739 + $0x318] sm:$0xff] %v938
                  %v940 = vld [vmem:[%s738 + $0x620] sm:$0xff]
                  %941 = vst [vmem:[%s739 + $0x320] sm:$0xff] %v940
                  %v942 = vld [vmem:[%s738 + $0x628] sm:$0xff]
                  %943 = vst [vmem:[%s739 + $0x328] sm:$0xff] %v942
                  %v944 = vld [vmem:[%s738 + $0x630] sm:$0xff]
                  %945 = vst [vmem:[%s739 + $0x330] sm:$0xff] %v944
                  %v946 = vld [vmem:[%s738 + $0x638] sm:$0xff]
                  %947 = vst [vmem:[%s739 + $0x338] sm:$0xff] %v946
                  %v948 = vld [vmem:[%s738 + $0x640] sm:$0xff]
                  %949 = vst [vmem:[%s739 + $0x340] sm:$0xff] %v948
                  %v950 = vld [vmem:[%s738 + $0x648] sm:$0xff]
                  %951 = vst [vmem:[%s739 + $0x348] sm:$0xff] %v950
                  %v952 = vld [vmem:[%s738 + $0x650] sm:$0xff]
                  %953 = vst [vmem:[%s739 + $0x350] sm:$0xff] %v952
                  %v954 = vld [vmem:[%s738 + $0x658] sm:$0xff]
                  %955 = vst [vmem:[%s739 + $0x358] sm:$0xff] %v954
                  %v956 = vld [vmem:[%s738 + $0x660] sm:$0xff]
                  %957 = vst [vmem:[%s739 + $0x360] sm:$0xff] %v956
                  %v958 = vld [vmem:[%s738 + $0x668] sm:$0xff]
                  %959 = vst [vmem:[%s739 + $0x368] sm:$0xff] %v958
                  %v960 = vld [vmem:[%s738 + $0x670] sm:$0xff]
                  %961 = vst [vmem:[%s739 + $0x370] sm:$0xff] %v960
                  %v962 = vld [vmem:[%s738 + $0x678] sm:$0xff]
                  %963 = vst [vmem:[%s739 + $0x378] sm:$0xff] %v962
                  %v964 = vld [vmem:[%s738 + $0x680] sm:$0xff]
                  %965 = vst [vmem:[%s739 + $0x380] sm:$0xff] %v964
                  %v966 = vld [vmem:[%s738 + $0x688] sm:$0xff]
                  %967 = vst [vmem:[%s739 + $0x388] sm:$0xff] %v966
                  %v968 = vld [vmem:[%s738 + $0x690] sm:$0xff]
                  %969 = vst [vmem:[%s739 + $0x390] sm:$0xff] %v968
                  %v970 = vld [vmem:[%s738 + $0x698] sm:$0xff]
                  %971 = vst [vmem:[%s739 + $0x398] sm:$0xff] %v970
                  %v972 = vld [vmem:[%s738 + $0x6a0] sm:$0xff]
                  %973 = vst [vmem:[%s739 + $0x3a0] sm:$0xff] %v972
                  %v974 = vld [vmem:[%s738 + $0x6a8] sm:$0xff]
                  %975 = vst [vmem:[%s739 + $0x3a8] sm:$0xff] %v974
                  %v976 = vld [vmem:[%s738 + $0x6b0] sm:$0xff]
                  %977 = vst [vmem:[%s739 + $0x3b0] sm:$0xff] %v976
                  %v978 = vld [vmem:[%s738 + $0x6b8] sm:$0xff]
                  %979 = vst [vmem:[%s739 + $0x3b8] sm:$0xff] %v978
                  %v980 = vld [vmem:[%s738 + $0x6c0] sm:$0xff]
                  %981 = vst [vmem:[%s739 + $0x3c0] sm:$0xff] %v980
                  %v982 = vld [vmem:[%s738 + $0x6c8] sm:$0xff]
                  %983 = vst [vmem:[%s739 + $0x3c8] sm:$0xff] %v982
                  %v984 = vld [vmem:[%s738 + $0x6d0] sm:$0xff]
                  %985 = vst [vmem:[%s739 + $0x3d0] sm:$0xff] %v984
                  %v986 = vld [vmem:[%s738 + $0x6d8] sm:$0xff]
                  %987 = vst [vmem:[%s739 + $0x3d8] sm:$0xff] %v986
                  %v988 = vld [vmem:[%s738 + $0x6e0] sm:$0xff]
                  %989 = vst [vmem:[%s739 + $0x3e0] sm:$0xff] %v988
                  %v990 = vld [vmem:[%s738 + $0x6e8] sm:$0xff]
                  %991 = vst [vmem:[%s739 + $0x3e8] sm:$0xff] %v990
                  %v992 = vld [vmem:[%s738 + $0x6f0] sm:$0xff]
                  %993 = vst [vmem:[%s739 + $0x3f0] sm:$0xff] %v992
                  %v994 = vld [vmem:[%s738 + $0x6f8] sm:$0xff]
                  %995 = vst [vmem:[%s739 + $0x3f8] sm:$0xff] %v994
                  %v996 = vld [vmem:[%s738 + $0x800] sm:$0xff]
                  %997 = vst [vmem:[%s739 + $0x400] sm:$0xff] %v996
                  %v998 = vld [vmem:[%s738 + $0x808] sm:$0xff]
                  %999 = vst [vmem:[%s739 + $0x408] sm:$0xff] %v998
                  %v1000 = vld [vmem:[%s738 + $0x810] sm:$0xff]
                  %1001 = vst [vmem:[%s739 + $0x410] sm:$0xff] %v1000
                  %v1002 = vld [vmem:[%s738 + $0x818] sm:$0xff]
                  %1003 = vst [vmem:[%s739 + $0x418] sm:$0xff] %v1002
                  %v1004 = vld [vmem:[%s738 + $0x820] sm:$0xff]
                  %1005 = vst [vmem:[%s739 + $0x420] sm:$0xff] %v1004
                  %v1006 = vld [vmem:[%s738 + $0x828] sm:$0xff]
                  %1007 = vst [vmem:[%s739 + $0x428] sm:$0xff] %v1006
                  %v1008 = vld [vmem:[%s738 + $0x830] sm:$0xff]
                  %1009 = vst [vmem:[%s739 + $0x430] sm:$0xff] %v1008
                  %v1010 = vld [vmem:[%s738 + $0x838] sm:$0xff]
                  %1011 = vst [vmem:[%s739 + $0x438] sm:$0xff] %v1010
                  %v1012 = vld [vmem:[%s738 + $0x840] sm:$0xff]
                  %1013 = vst [vmem:[%s739 + $0x440] sm:$0xff] %v1012
                  %v1014 = vld [vmem:[%s738 + $0x848] sm:$0xff]
                  %1015 = vst [vmem:[%s739 + $0x448] sm:$0xff] %v1014
                  %v1016 = vld [vmem:[%s738 + $0x850] sm:$0xff]
                  %1017 = vst [vmem:[%s739 + $0x450] sm:$0xff] %v1016
                  %v1018 = vld [vmem:[%s738 + $0x858] sm:$0xff]
                  %1019 = vst [vmem:[%s739 + $0x458] sm:$0xff] %v1018
                  %v1020 = vld [vmem:[%s738 + $0x860] sm:$0xff]
                  %1021 = vst [vmem:[%s739 + $0x460] sm:$0xff] %v1020
                  %v1022 = vld [vmem:[%s738 + $0x868] sm:$0xff]
                  %1023 = vst [vmem:[%s739 + $0x468] sm:$0xff] %v1022
                  %v1024 = vld [vmem:[%s738 + $0x870] sm:$0xff]
                  %1025 = vst [vmem:[%s739 + $0x470] sm:$0xff] %v1024
                  %v1026 = vld [vmem:[%s738 + $0x878] sm:$0xff]
                  %1027 = vst [vmem:[%s739 + $0x478] sm:$0xff] %v1026
                  %v1028 = vld [vmem:[%s738 + $0x880] sm:$0xff]
                  %1029 = vst [vmem:[%s739 + $0x480] sm:$0xff] %v1028
                  %v1030 = vld [vmem:[%s738 + $0x888] sm:$0xff]
                  %1031 = vst [vmem:[%s739 + $0x488] sm:$0xff] %v1030
                  %v1032 = vld [vmem:[%s738 + $0x890] sm:$0xff]
                  %1033 = vst [vmem:[%s739 + $0x490] sm:$0xff] %v1032
                  %v1034 = vld [vmem:[%s738 + $0x898] sm:$0xff]
                  %1035 = vst [vmem:[%s739 + $0x498] sm:$0xff] %v1034
                  %v1036 = vld [vmem:[%s738 + $0x8a0] sm:$0xff]
                  %1037 = vst [vmem:[%s739 + $0x4a0] sm:$0xff] %v1036
                  %v1038 = vld [vmem:[%s738 + $0x8a8] sm:$0xff]
                  %1039 = vst [vmem:[%s739 + $0x4a8] sm:$0xff] %v1038
                  %v1040 = vld [vmem:[%s738 + $0x8b0] sm:$0xff]
                  %1041 = vst [vmem:[%s739 + $0x4b0] sm:$0xff] %v1040
                  %v1042 = vld [vmem:[%s738 + $0x8b8] sm:$0xff]
                  %1043 = vst [vmem:[%s739 + $0x4b8] sm:$0xff] %v1042
                  %v1044 = vld [vmem:[%s738 + $0x8c0] sm:$0xff]
                  %1045 = vst [vmem:[%s739 + $0x4c0] sm:$0xff] %v1044
                  %v1046 = vld [vmem:[%s738 + $0x8c8] sm:$0xff]
                  %1047 = vst [vmem:[%s739 + $0x4c8] sm:$0xff] %v1046
                  %v1048 = vld [vmem:[%s738 + $0x8d0] sm:$0xff]
                  %1049 = vst [vmem:[%s739 + $0x4d0] sm:$0xff] %v1048
                  %v1050 = vld [vmem:[%s738 + $0x8d8] sm:$0xff]
                  %1051 = vst [vmem:[%s739 + $0x4d8] sm:$0xff] %v1050
                  %v1052 = vld [vmem:[%s738 + $0x8e0] sm:$0xff]
                  %1053 = vst [vmem:[%s739 + $0x4e0] sm:$0xff] %v1052
                  %v1054 = vld [vmem:[%s738 + $0x8e8] sm:$0xff]
                  %1055 = vst [vmem:[%s739 + $0x4e8] sm:$0xff] %v1054
                  %v1056 = vld [vmem:[%s738 + $0x8f0] sm:$0xff]
                  %1057 = vst [vmem:[%s739 + $0x4f0] sm:$0xff] %v1056
                  %v1058 = vld [vmem:[%s738 + $0x8f8] sm:$0xff]
                  %1059 = vst [vmem:[%s739 + $0x4f8] sm:$0xff] %v1058
                  %v1060 = vld [vmem:[%s738 + $0xa00] sm:$0xff]
                  %1061 = vst [vmem:[%s739 + $0x500] sm:$0xff] %v1060
                  %v1062 = vld [vmem:[%s738 + $0xa08] sm:$0xff]
                  %1063 = vst [vmem:[%s739 + $0x508] sm:$0xff] %v1062
                  %v1064 = vld [vmem:[%s738 + $0xa10] sm:$0xff]
                  %1065 = vst [vmem:[%s739 + $0x510] sm:$0xff] %v1064
                  %v1066 = vld [vmem:[%s738 + $0xa18] sm:$0xff]
                  %1067 = vst [vmem:[%s739 + $0x518] sm:$0xff] %v1066
                  %v1068 = vld [vmem:[%s738 + $0xa20] sm:$0xff]
                  %1069 = vst [vmem:[%s739 + $0x520] sm:$0xff] %v1068
                  %v1070 = vld [vmem:[%s738 + $0xa28] sm:$0xff]
                  %1071 = vst [vmem:[%s739 + $0x528] sm:$0xff] %v1070
                  %v1072 = vld [vmem:[%s738 + $0xa30] sm:$0xff]
                  %1073 = vst [vmem:[%s739 + $0x530] sm:$0xff] %v1072
                  %v1074 = vld [vmem:[%s738 + $0xa38] sm:$0xff]
                  %1075 = vst [vmem:[%s739 + $0x538] sm:$0xff] %v1074
                  %v1076 = vld [vmem:[%s738 + $0xa40] sm:$0xff]
                  %1077 = vst [vmem:[%s739 + $0x540] sm:$0xff] %v1076
                  %v1078 = vld [vmem:[%s738 + $0xa48] sm:$0xff]
                  %1079 = vst [vmem:[%s739 + $0x548] sm:$0xff] %v1078
                  %v1080 = vld [vmem:[%s738 + $0xa50] sm:$0xff]
                  %1081 = vst [vmem:[%s739 + $0x550] sm:$0xff] %v1080
                  %v1082 = vld [vmem:[%s738 + $0xa58] sm:$0xff]
                  %1083 = vst [vmem:[%s739 + $0x558] sm:$0xff] %v1082
                  %v1084 = vld [vmem:[%s738 + $0xa60] sm:$0xff]
                  %1085 = vst [vmem:[%s739 + $0x560] sm:$0xff] %v1084
                  %v1086 = vld [vmem:[%s738 + $0xa68] sm:$0xff]
                  %1087 = vst [vmem:[%s739 + $0x568] sm:$0xff] %v1086
                  %v1088 = vld [vmem:[%s738 + $0xa70] sm:$0xff]
                  %1089 = vst [vmem:[%s739 + $0x570] sm:$0xff] %v1088
                  %v1090 = vld [vmem:[%s738 + $0xa78] sm:$0xff]
                  %1091 = vst [vmem:[%s739 + $0x578] sm:$0xff] %v1090
                  %v1092 = vld [vmem:[%s738 + $0xa80] sm:$0xff]
                  %1093 = vst [vmem:[%s739 + $0x580] sm:$0xff] %v1092
                  %v1094 = vld [vmem:[%s738 + $0xa88] sm:$0xff]
                  %1095 = vst [vmem:[%s739 + $0x588] sm:$0xff] %v1094
                  %v1096 = vld [vmem:[%s738 + $0xa90] sm:$0xff]
                  %1097 = vst [vmem:[%s739 + $0x590] sm:$0xff] %v1096
                  %v1098 = vld [vmem:[%s738 + $0xa98] sm:$0xff]
                  %1099 = vst [vmem:[%s739 + $0x598] sm:$0xff] %v1098
                  %v1100 = vld [vmem:[%s738 + $0xaa0] sm:$0xff]
                  %1101 = vst [vmem:[%s739 + $0x5a0] sm:$0xff] %v1100
                  %v1102 = vld [vmem:[%s738 + $0xaa8] sm:$0xff]
                  %1103 = vst [vmem:[%s739 + $0x5a8] sm:$0xff] %v1102
                  %v1104 = vld [vmem:[%s738 + $0xab0] sm:$0xff]
                  %1105 = vst [vmem:[%s739 + $0x5b0] sm:$0xff] %v1104
                  %v1106 = vld [vmem:[%s738 + $0xab8] sm:$0xff]
                  %1107 = vst [vmem:[%s739 + $0x5b8] sm:$0xff] %v1106
                  %v1108 = vld [vmem:[%s738 + $0xac0] sm:$0xff]
                  %1109 = vst [vmem:[%s739 + $0x5c0] sm:$0xff] %v1108
                  %v1110 = vld [vmem:[%s738 + $0xac8] sm:$0xff]
                  %1111 = vst [vmem:[%s739 + $0x5c8] sm:$0xff] %v1110
                  %v1112 = vld [vmem:[%s738 + $0xad0] sm:$0xff]
                  %1113 = vst [vmem:[%s739 + $0x5d0] sm:$0xff] %v1112
                  %v1114 = vld [vmem:[%s738 + $0xad8] sm:$0xff]
                  %1115 = vst [vmem:[%s739 + $0x5d8] sm:$0xff] %v1114
                  %v1116 = vld [vmem:[%s738 + $0xae0] sm:$0xff]
                  %1117 = vst [vmem:[%s739 + $0x5e0] sm:$0xff] %v1116
                  %v1118 = vld [vmem:[%s738 + $0xae8] sm:$0xff]
                  %1119 = vst [vmem:[%s739 + $0x5e8] sm:$0xff] %v1118
                  %v1120 = vld [vmem:[%s738 + $0xaf0] sm:$0xff]
                  %1121 = vst [vmem:[%s739 + $0x5f0] sm:$0xff] %v1120
                  %v1122 = vld [vmem:[%s738 + $0xaf8] sm:$0xff]
                  %1123 = vst [vmem:[%s739 + $0x5f8] sm:$0xff] %v1122
                  %v1124 = vld [vmem:[%s738 + $0xc00] sm:$0xff]
                  %1125 = vst [vmem:[%s739 + $0x600] sm:$0xff] %v1124
                  %v1126 = vld [vmem:[%s738 + $0xc08] sm:$0xff]
                  %1127 = vst [vmem:[%s739 + $0x608] sm:$0xff] %v1126
                  %v1128 = vld [vmem:[%s738 + $0xc10] sm:$0xff]
                  %1129 = vst [vmem:[%s739 + $0x610] sm:$0xff] %v1128
                  %v1130 = vld [vmem:[%s738 + $0xc18] sm:$0xff]
                  %1131 = vst [vmem:[%s739 + $0x618] sm:$0xff] %v1130
                  %v1132 = vld [vmem:[%s738 + $0xc20] sm:$0xff]
                  %1133 = vst [vmem:[%s739 + $0x620] sm:$0xff] %v1132
                  %v1134 = vld [vmem:[%s738 + $0xc28] sm:$0xff]
                  %1135 = vst [vmem:[%s739 + $0x628] sm:$0xff] %v1134
                  %v1136 = vld [vmem:[%s738 + $0xc30] sm:$0xff]
                  %1137 = vst [vmem:[%s739 + $0x630] sm:$0xff] %v1136
                  %v1138 = vld [vmem:[%s738 + $0xc38] sm:$0xff]
                  %1139 = vst [vmem:[%s739 + $0x638] sm:$0xff] %v1138
                  %v1140 = vld [vmem:[%s738 + $0xc40] sm:$0xff]
                  %1141 = vst [vmem:[%s739 + $0x640] sm:$0xff] %v1140
                  %v1142 = vld [vmem:[%s738 + $0xc48] sm:$0xff]
                  %1143 = vst [vmem:[%s739 + $0x648] sm:$0xff] %v1142
                  %v1144 = vld [vmem:[%s738 + $0xc50] sm:$0xff]
                  %1145 = vst [vmem:[%s739 + $0x650] sm:$0xff] %v1144
                  %v1146 = vld [vmem:[%s738 + $0xc58] sm:$0xff]
                  %1147 = vst [vmem:[%s739 + $0x658] sm:$0xff] %v1146
                  %v1148 = vld [vmem:[%s738 + $0xc60] sm:$0xff]
                  %1149 = vst [vmem:[%s739 + $0x660] sm:$0xff] %v1148
                  %v1150 = vld [vmem:[%s738 + $0xc68] sm:$0xff]
                  %1151 = vst [vmem:[%s739 + $0x668] sm:$0xff] %v1150
                  %v1152 = vld [vmem:[%s738 + $0xc70] sm:$0xff]
                  %1153 = vst [vmem:[%s739 + $0x670] sm:$0xff] %v1152
                  %v1154 = vld [vmem:[%s738 + $0xc78] sm:$0xff]
                  %1155 = vst [vmem:[%s739 + $0x678] sm:$0xff] %v1154
                  %v1156 = vld [vmem:[%s738 + $0xc80] sm:$0xff]
                  %1157 = vst [vmem:[%s739 + $0x680] sm:$0xff] %v1156
                  %v1158 = vld [vmem:[%s738 + $0xc88] sm:$0xff]
                  %1159 = vst [vmem:[%s739 + $0x688] sm:$0xff] %v1158
                  %v1160 = vld [vmem:[%s738 + $0xc90] sm:$0xff]
                  %1161 = vst [vmem:[%s739 + $0x690] sm:$0xff] %v1160
                  %v1162 = vld [vmem:[%s738 + $0xc98] sm:$0xff]
                  %1163 = vst [vmem:[%s739 + $0x698] sm:$0xff] %v1162
                  %v1164 = vld [vmem:[%s738 + $0xca0] sm:$0xff]
                  %1165 = vst [vmem:[%s739 + $0x6a0] sm:$0xff] %v1164
                  %v1166 = vld [vmem:[%s738 + $0xca8] sm:$0xff]
                  %1167 = vst [vmem:[%s739 + $0x6a8] sm:$0xff] %v1166
                  %v1168 = vld [vmem:[%s738 + $0xcb0] sm:$0xff]
                  %1169 = vst [vmem:[%s739 + $0x6b0] sm:$0xff] %v1168
                  %v1170 = vld [vmem:[%s738 + $0xcb8] sm:$0xff]
                  %1171 = vst [vmem:[%s739 + $0x6b8] sm:$0xff] %v1170
                  %v1172 = vld [vmem:[%s738 + $0xcc0] sm:$0xff]
                  %1173 = vst [vmem:[%s739 + $0x6c0] sm:$0xff] %v1172
                  %v1174 = vld [vmem:[%s738 + $0xcc8] sm:$0xff]
                  %1175 = vst [vmem:[%s739 + $0x6c8] sm:$0xff] %v1174
                  %v1176 = vld [vmem:[%s738 + $0xcd0] sm:$0xff]
                  %1177 = vst [vmem:[%s739 + $0x6d0] sm:$0xff] %v1176
                  %v1178 = vld [vmem:[%s738 + $0xcd8] sm:$0xff]
                  %1179 = vst [vmem:[%s739 + $0x6d8] sm:$0xff] %v1178
                  %v1180 = vld [vmem:[%s738 + $0xce0] sm:$0xff]
                  %1181 = vst [vmem:[%s739 + $0x6e0] sm:$0xff] %v1180
                  %v1182 = vld [vmem:[%s738 + $0xce8] sm:$0xff]
                  %1183 = vst [vmem:[%s739 + $0x6e8] sm:$0xff] %v1182
                  %v1184 = vld [vmem:[%s738 + $0xcf0] sm:$0xff]
                  %1185 = vst [vmem:[%s739 + $0x6f0] sm:$0xff] %v1184
                  %v1186 = vld [vmem:[%s738 + $0xcf8] sm:$0xff]
                  %1187 = vst [vmem:[%s739 + $0x6f8] sm:$0xff] %v1186
                  %v1188 = vld [vmem:[%s738 + $0xe00] sm:$0xff]
                  %1189 = vst [vmem:[%s739 + $0x700] sm:$0xff] %v1188
                  %v1190 = vld [vmem:[%s738 + $0xe08] sm:$0xff]
                  %1191 = vst [vmem:[%s739 + $0x708] sm:$0xff] %v1190
                  %v1192 = vld [vmem:[%s738 + $0xe10] sm:$0xff]
                  %1193 = vst [vmem:[%s739 + $0x710] sm:$0xff] %v1192
                  %v1194 = vld [vmem:[%s738 + $0xe18] sm:$0xff]
                  %1195 = vst [vmem:[%s739 + $0x718] sm:$0xff] %v1194
                  %v1196 = vld [vmem:[%s738 + $0xe20] sm:$0xff]
                  %1197 = vst [vmem:[%s739 + $0x720] sm:$0xff] %v1196
                  %v1198 = vld [vmem:[%s738 + $0xe28] sm:$0xff]
                  %1199 = vst [vmem:[%s739 + $0x728] sm:$0xff] %v1198
                  %v1200 = vld [vmem:[%s738 + $0xe30] sm:$0xff]
                  %1201 = vst [vmem:[%s739 + $0x730] sm:$0xff] %v1200
                  %v1202 = vld [vmem:[%s738 + $0xe38] sm:$0xff]
                  %1203 = vst [vmem:[%s739 + $0x738] sm:$0xff] %v1202
                  %v1204 = vld [vmem:[%s738 + $0xe40] sm:$0xff]
                  %1205 = vst [vmem:[%s739 + $0x740] sm:$0xff] %v1204
                  %v1206 = vld [vmem:[%s738 + $0xe48] sm:$0xff]
                  %1207 = vst [vmem:[%s739 + $0x748] sm:$0xff] %v1206
                  %v1208 = vld [vmem:[%s738 + $0xe50] sm:$0xff]
                  %1209 = vst [vmem:[%s739 + $0x750] sm:$0xff] %v1208
                  %v1210 = vld [vmem:[%s738 + $0xe58] sm:$0xff]
                  %1211 = vst [vmem:[%s739 + $0x758] sm:$0xff] %v1210
                  %v1212 = vld [vmem:[%s738 + $0xe60] sm:$0xff]
                  %1213 = vst [vmem:[%s739 + $0x760] sm:$0xff] %v1212
                  %v1214 = vld [vmem:[%s738 + $0xe68] sm:$0xff]
                  %1215 = vst [vmem:[%s739 + $0x768] sm:$0xff] %v1214
                  %v1216 = vld [vmem:[%s738 + $0xe70] sm:$0xff]
                  %1217 = vst [vmem:[%s739 + $0x770] sm:$0xff] %v1216
                  %v1218 = vld [vmem:[%s738 + $0xe78] sm:$0xff]
                  %1219 = vst [vmem:[%s739 + $0x778] sm:$0xff] %v1218
                  %v1220 = vld [vmem:[%s738 + $0xe80] sm:$0xff]
                  %1221 = vst [vmem:[%s739 + $0x780] sm:$0xff] %v1220
                  %v1222 = vld [vmem:[%s738 + $0xe88] sm:$0xff]
                  %1223 = vst [vmem:[%s739 + $0x788] sm:$0xff] %v1222
                  %v1224 = vld [vmem:[%s738 + $0xe90] sm:$0xff]
                  %1225 = vst [vmem:[%s739 + $0x790] sm:$0xff] %v1224
                  %v1226 = vld [vmem:[%s738 + $0xe98] sm:$0xff]
                  %1227 = vst [vmem:[%s739 + $0x798] sm:$0xff] %v1226
                  %v1228 = vld [vmem:[%s738 + $0xea0] sm:$0xff]
                  %1229 = vst [vmem:[%s739 + $0x7a0] sm:$0xff] %v1228
                  %v1230 = vld [vmem:[%s738 + $0xea8] sm:$0xff]
                  %1231 = vst [vmem:[%s739 + $0x7a8] sm:$0xff] %v1230
                  %v1232 = vld [vmem:[%s738 + $0xeb0] sm:$0xff]
                  %1233 = vst [vmem:[%s739 + $0x7b0] sm:$0xff] %v1232
                  %v1234 = vld [vmem:[%s738 + $0xeb8] sm:$0xff]
                  %1235 = vst [vmem:[%s739 + $0x7b8] sm:$0xff] %v1234
                  %v1236 = vld [vmem:[%s738 + $0xec0] sm:$0xff]
                  %1237 = vst [vmem:[%s739 + $0x7c0] sm:$0xff] %v1236
                  %v1238 = vld [vmem:[%s738 + $0xec8] sm:$0xff]
                  %1239 = vst [vmem:[%s739 + $0x7c8] sm:$0xff] %v1238
                  %v1240 = vld [vmem:[%s738 + $0xed0] sm:$0xff]
                  %1241 = vst [vmem:[%s739 + $0x7d0] sm:$0xff] %v1240
                  %v1242 = vld [vmem:[%s738 + $0xed8] sm:$0xff]
                  %1243 = vst [vmem:[%s739 + $0x7d8] sm:$0xff] %v1242
                  %v1244 = vld [vmem:[%s738 + $0xee0] sm:$0xff]
                  %1245 = vst [vmem:[%s739 + $0x7e0] sm:$0xff] %v1244
                  %v1246 = vld [vmem:[%s738 + $0xee8] sm:$0xff]
                  %1247 = vst [vmem:[%s739 + $0x7e8] sm:$0xff] %v1246
                  %v1248 = vld [vmem:[%s738 + $0xef0] sm:$0xff]
                  %1249 = vst [vmem:[%s739 + $0x7f0] sm:$0xff] %v1248
                  %v1250 = vld [vmem:[%s738 + $0xef8] sm:$0xff]
                  %1251 = vst [vmem:[%s739 + $0x7f8] sm:$0xff] %v1250
                $region60: #{tpu_custom_call.1} parent=54 // loop_footer
                  %s737 = sadd.s32 1, %s733
                $region61: #{tpu_custom_call.1} parent=54 // loop_footer_branch
                  %732 = sbr.rel target = $region57
                $region62: #{tpu_custom_call.1} parent=54 // loop_exit
                  _
              $region55: #{tpu_custom_call.1} parent=39 // pred_fallthru
                _
              // Predicated region
              $region63: #{tpu_custom_call.1} parent=39 // pred_check
                _
              $region64: #{tpu_custom_call.1} parent=39 // pred_check_branch
                %1253 = sbr.rel target = $region66
              $region65: #{tpu_custom_call.1} parent=39 // pred_region
                _
              $region66: #{tpu_custom_call.1} parent=39 // pred_fallthru
                _
            $region40: #{tpu_custom_call.1} parent=35 // pred_fallthru
              _
            // Predicated region
            $region41: #{tpu_custom_call.1} parent=35 // pred_check
              _
            $region42: #{tpu_custom_call.1} parent=35 // pred_check_branch
              %207 = sbr.rel target = $region44
            $region43: #{tpu_custom_call.1} parent=35 // pred_region
              %s209 = ssub.s32 256, 1
              loop: start=0, step=1, limit=1
              $region45: #{tpu_custom_call.1} parent=43 // loop_pre_header
                _
              $region46: #{tpu_custom_call.1} parent=43 // loop_header
                %s211 = sphi 0, %s215
                %p212 = scmp.ge.s32.totalorder %s211, 1
                %s216 = sphi %s201, %s201
                %s217 = sphi %s198, %s198
              $region47: #{tpu_custom_call.1} parent=43 // loop_header_branch
                %214 = sbr.rel (%p212) target = $region51
              $region48: #{tpu_custom_call.1} parent=43 // loop_body
                %v218 = vld [vmem:[%s216] sm:%s209]
                %219 = vst [vmem:[%s217] sm:%s209] %v218
                %v220 = vld [vmem:[%s216 + $0x8] sm:%s209]
                %221 = vst [vmem:[%s217 + $0x8] sm:%s209] %v220
                %v222 = vld [vmem:[%s216 + $0x10] sm:%s209]
                %223 = vst [vmem:[%s217 + $0x10] sm:%s209] %v222
                %v224 = vld [vmem:[%s216 + $0x18] sm:%s209]
                %225 = vst [vmem:[%s217 + $0x18] sm:%s209] %v224
                %v226 = vld [vmem:[%s216 + $0x20] sm:%s209]
                %227 = vst [vmem:[%s217 + $0x20] sm:%s209] %v226
                %v228 = vld [vmem:[%s216 + $0x28] sm:%s209]
                %229 = vst [vmem:[%s217 + $0x28] sm:%s209] %v228
                %v230 = vld [vmem:[%s216 + $0x30] sm:%s209]
                %231 = vst [vmem:[%s217 + $0x30] sm:%s209] %v230
                %v232 = vld [vmem:[%s216 + $0x38] sm:%s209]
                %233 = vst [vmem:[%s217 + $0x38] sm:%s209] %v232
                %v234 = vld [vmem:[%s216 + $0x40] sm:%s209]
                %235 = vst [vmem:[%s217 + $0x40] sm:%s209] %v234
                %v236 = vld [vmem:[%s216 + $0x48] sm:%s209]
                %237 = vst [vmem:[%s217 + $0x48] sm:%s209] %v236
                %v238 = vld [vmem:[%s216 + $0x50] sm:%s209]
                %239 = vst [vmem:[%s217 + $0x50] sm:%s209] %v238
                %v240 = vld [vmem:[%s216 + $0x58] sm:%s209]
                %241 = vst [vmem:[%s217 + $0x58] sm:%s209] %v240
                %v242 = vld [vmem:[%s216 + $0x60] sm:%s209]
                %243 = vst [vmem:[%s217 + $0x60] sm:%s209] %v242
                %v244 = vld [vmem:[%s216 + $0x68] sm:%s209]
                %245 = vst [vmem:[%s217 + $0x68] sm:%s209] %v244
                %v246 = vld [vmem:[%s216 + $0x70] sm:%s209]
                %247 = vst [vmem:[%s217 + $0x70] sm:%s209] %v246
                %v248 = vld [vmem:[%s216 + $0x78] sm:%s209]
                %249 = vst [vmem:[%s217 + $0x78] sm:%s209] %v248
                %v250 = vld [vmem:[%s216 + $0x80] sm:%s209]
                %251 = vst [vmem:[%s217 + $0x80] sm:%s209] %v250
                %v252 = vld [vmem:[%s216 + $0x88] sm:%s209]
                %253 = vst [vmem:[%s217 + $0x88] sm:%s209] %v252
                %v254 = vld [vmem:[%s216 + $0x90] sm:%s209]
                %255 = vst [vmem:[%s217 + $0x90] sm:%s209] %v254
                %v256 = vld [vmem:[%s216 + $0x98] sm:%s209]
                %257 = vst [vmem:[%s217 + $0x98] sm:%s209] %v256
                %v258 = vld [vmem:[%s216 + $0xa0] sm:%s209]
                %259 = vst [vmem:[%s217 + $0xa0] sm:%s209] %v258
                %v260 = vld [vmem:[%s216 + $0xa8] sm:%s209]
                %261 = vst [vmem:[%s217 + $0xa8] sm:%s209] %v260
                %v262 = vld [vmem:[%s216 + $0xb0] sm:%s209]
                %263 = vst [vmem:[%s217 + $0xb0] sm:%s209] %v262
                %v264 = vld [vmem:[%s216 + $0xb8] sm:%s209]
                %265 = vst [vmem:[%s217 + $0xb8] sm:%s209] %v264
                %v266 = vld [vmem:[%s216 + $0xc0] sm:%s209]
                %267 = vst [vmem:[%s217 + $0xc0] sm:%s209] %v266
                %v268 = vld [vmem:[%s216 + $0xc8] sm:%s209]
                %269 = vst [vmem:[%s217 + $0xc8] sm:%s209] %v268
                %v270 = vld [vmem:[%s216 + $0xd0] sm:%s209]
                %271 = vst [vmem:[%s217 + $0xd0] sm:%s209] %v270
                %v272 = vld [vmem:[%s216 + $0xd8] sm:%s209]
                %273 = vst [vmem:[%s217 + $0xd8] sm:%s209] %v272
                %v274 = vld [vmem:[%s216 + $0xe0] sm:%s209]
                %275 = vst [vmem:[%s217 + $0xe0] sm:%s209] %v274
                %v276 = vld [vmem:[%s216 + $0xe8] sm:%s209]
                %277 = vst [vmem:[%s217 + $0xe8] sm:%s209] %v276
                %v278 = vld [vmem:[%s216 + $0xf0] sm:%s209]
                %279 = vst [vmem:[%s217 + $0xf0] sm:%s209] %v278
                %v280 = vld [vmem:[%s216 + $0xf8] sm:%s209]
                %281 = vst [vmem:[%s217 + $0xf8] sm:%s209] %v280
                %v282 = vld [vmem:[%s216 + $0x200] sm:%s209]
                %283 = vst [vmem:[%s217 + $0x100] sm:%s209] %v282
                %v284 = vld [vmem:[%s216 + $0x208] sm:%s209]
                %285 = vst [vmem:[%s217 + $0x108] sm:%s209] %v284
                %v286 = vld [vmem:[%s216 + $0x210] sm:%s209]
                %287 = vst [vmem:[%s217 + $0x110] sm:%s209] %v286
                %v288 = vld [vmem:[%s216 + $0x218] sm:%s209]
                %289 = vst [vmem:[%s217 + $0x118] sm:%s209] %v288
                %v290 = vld [vmem:[%s216 + $0x220] sm:%s209]
                %291 = vst [vmem:[%s217 + $0x120] sm:%s209] %v290
                %v292 = vld [vmem:[%s216 + $0x228] sm:%s209]
                %293 = vst [vmem:[%s217 + $0x128] sm:%s209] %v292
                %v294 = vld [vmem:[%s216 + $0x230] sm:%s209]
                %295 = vst [vmem:[%s217 + $0x130] sm:%s209] %v294
                %v296 = vld [vmem:[%s216 + $0x238] sm:%s209]
                %297 = vst [vmem:[%s217 + $0x138] sm:%s209] %v296
                %v298 = vld [vmem:[%s216 + $0x240] sm:%s209]
                %299 = vst [vmem:[%s217 + $0x140] sm:%s209] %v298
                %v300 = vld [vmem:[%s216 + $0x248] sm:%s209]
                %301 = vst [vmem:[%s217 + $0x148] sm:%s209] %v300
                %v302 = vld [vmem:[%s216 + $0x250] sm:%s209]
                %303 = vst [vmem:[%s217 + $0x150] sm:%s209] %v302
                %v304 = vld [vmem:[%s216 + $0x258] sm:%s209]
                %305 = vst [vmem:[%s217 + $0x158] sm:%s209] %v304
                %v306 = vld [vmem:[%s216 + $0x260] sm:%s209]
                %307 = vst [vmem:[%s217 + $0x160] sm:%s209] %v306
                %v308 = vld [vmem:[%s216 + $0x268] sm:%s209]
                %309 = vst [vmem:[%s217 + $0x168] sm:%s209] %v308
                %v310 = vld [vmem:[%s216 + $0x270] sm:%s209]
                %311 = vst [vmem:[%s217 + $0x170] sm:%s209] %v310
                %v312 = vld [vmem:[%s216 + $0x278] sm:%s209]
                %313 = vst [vmem:[%s217 + $0x178] sm:%s209] %v312
                %v314 = vld [vmem:[%s216 + $0x280] sm:%s209]
                %315 = vst [vmem:[%s217 + $0x180] sm:%s209] %v314
                %v316 = vld [vmem:[%s216 + $0x288] sm:%s209]
                %317 = vst [vmem:[%s217 + $0x188] sm:%s209] %v316
                %v318 = vld [vmem:[%s216 + $0x290] sm:%s209]
                %319 = vst [vmem:[%s217 + $0x190] sm:%s209] %v318
                %v320 = vld [vmem:[%s216 + $0x298] sm:%s209]
                %321 = vst [vmem:[%s217 + $0x198] sm:%s209] %v320
                %v322 = vld [vmem:[%s216 + $0x2a0] sm:%s209]
                %323 = vst [vmem:[%s217 + $0x1a0] sm:%s209] %v322
                %v324 = vld [vmem:[%s216 + $0x2a8] sm:%s209]
                %325 = vst [vmem:[%s217 + $0x1a8] sm:%s209] %v324
                %v326 = vld [vmem:[%s216 + $0x2b0] sm:%s209]
                %327 = vst [vmem:[%s217 + $0x1b0] sm:%s209] %v326
                %v328 = vld [vmem:[%s216 + $0x2b8] sm:%s209]
                %329 = vst [vmem:[%s217 + $0x1b8] sm:%s209] %v328
                %v330 = vld [vmem:[%s216 + $0x2c0] sm:%s209]
                %331 = vst [vmem:[%s217 + $0x1c0] sm:%s209] %v330
                %v332 = vld [vmem:[%s216 + $0x2c8] sm:%s209]
                %333 = vst [vmem:[%s217 + $0x1c8] sm:%s209] %v332
                %v334 = vld [vmem:[%s216 + $0x2d0] sm:%s209]
                %335 = vst [vmem:[%s217 + $0x1d0] sm:%s209] %v334
                %v336 = vld [vmem:[%s216 + $0x2d8] sm:%s209]
                %337 = vst [vmem:[%s217 + $0x1d8] sm:%s209] %v336
                %v338 = vld [vmem:[%s216 + $0x2e0] sm:%s209]
                %339 = vst [vmem:[%s217 + $0x1e0] sm:%s209] %v338
                %v340 = vld [vmem:[%s216 + $0x2e8] sm:%s209]
                %341 = vst [vmem:[%s217 + $0x1e8] sm:%s209] %v340
                %v342 = vld [vmem:[%s216 + $0x2f0] sm:%s209]
                %343 = vst [vmem:[%s217 + $0x1f0] sm:%s209] %v342
                %v344 = vld [vmem:[%s216 + $0x2f8] sm:%s209]
                %345 = vst [vmem:[%s217 + $0x1f8] sm:%s209] %v344
                %v346 = vld [vmem:[%s216 + $0x400] sm:%s209]
                %347 = vst [vmem:[%s217 + $0x200] sm:%s209] %v346
                %v348 = vld [vmem:[%s216 + $0x408] sm:%s209]
                %349 = vst [vmem:[%s217 + $0x208] sm:%s209] %v348
                %v350 = vld [vmem:[%s216 + $0x410] sm:%s209]
                %351 = vst [vmem:[%s217 + $0x210] sm:%s209] %v350
                %v352 = vld [vmem:[%s216 + $0x418] sm:%s209]
                %353 = vst [vmem:[%s217 + $0x218] sm:%s209] %v352
                %v354 = vld [vmem:[%s216 + $0x420] sm:%s209]
                %355 = vst [vmem:[%s217 + $0x220] sm:%s209] %v354
                %v356 = vld [vmem:[%s216 + $0x428] sm:%s209]
                %357 = vst [vmem:[%s217 + $0x228] sm:%s209] %v356
                %v358 = vld [vmem:[%s216 + $0x430] sm:%s209]
                %359 = vst [vmem:[%s217 + $0x230] sm:%s209] %v358
                %v360 = vld [vmem:[%s216 + $0x438] sm:%s209]
                %361 = vst [vmem:[%s217 + $0x238] sm:%s209] %v360
                %v362 = vld [vmem:[%s216 + $0x440] sm:%s209]
                %363 = vst [vmem:[%s217 + $0x240] sm:%s209] %v362
                %v364 = vld [vmem:[%s216 + $0x448] sm:%s209]
                %365 = vst [vmem:[%s217 + $0x248] sm:%s209] %v364
                %v366 = vld [vmem:[%s216 + $0x450] sm:%s209]
                %367 = vst [vmem:[%s217 + $0x250] sm:%s209] %v366
                %v368 = vld [vmem:[%s216 + $0x458] sm:%s209]
                %369 = vst [vmem:[%s217 + $0x258] sm:%s209] %v368
                %v370 = vld [vmem:[%s216 + $0x460] sm:%s209]
                %371 = vst [vmem:[%s217 + $0x260] sm:%s209] %v370
                %v372 = vld [vmem:[%s216 + $0x468] sm:%s209]
                %373 = vst [vmem:[%s217 + $0x268] sm:%s209] %v372
                %v374 = vld [vmem:[%s216 + $0x470] sm:%s209]
                %375 = vst [vmem:[%s217 + $0x270] sm:%s209] %v374
                %v376 = vld [vmem:[%s216 + $0x478] sm:%s209]
                %377 = vst [vmem:[%s217 + $0x278] sm:%s209] %v376
                %v378 = vld [vmem:[%s216 + $0x480] sm:%s209]
                %379 = vst [vmem:[%s217 + $0x280] sm:%s209] %v378
                %v380 = vld [vmem:[%s216 + $0x488] sm:%s209]
                %381 = vst [vmem:[%s217 + $0x288] sm:%s209] %v380
                %v382 = vld [vmem:[%s216 + $0x490] sm:%s209]
                %383 = vst [vmem:[%s217 + $0x290] sm:%s209] %v382
                %v384 = vld [vmem:[%s216 + $0x498] sm:%s209]
                %385 = vst [vmem:[%s217 + $0x298] sm:%s209] %v384
                %v386 = vld [vmem:[%s216 + $0x4a0] sm:%s209]
                %387 = vst [vmem:[%s217 + $0x2a0] sm:%s209] %v386
                %v388 = vld [vmem:[%s216 + $0x4a8] sm:%s209]
                %389 = vst [vmem:[%s217 + $0x2a8] sm:%s209] %v388
                %v390 = vld [vmem:[%s216 + $0x4b0] sm:%s209]
                %391 = vst [vmem:[%s217 + $0x2b0] sm:%s209] %v390
                %v392 = vld [vmem:[%s216 + $0x4b8] sm:%s209]
                %393 = vst [vmem:[%s217 + $0x2b8] sm:%s209] %v392
                %v394 = vld [vmem:[%s216 + $0x4c0] sm:%s209]
                %395 = vst [vmem:[%s217 + $0x2c0] sm:%s209] %v394
                %v396 = vld [vmem:[%s216 + $0x4c8] sm:%s209]
                %397 = vst [vmem:[%s217 + $0x2c8] sm:%s209] %v396
                %v398 = vld [vmem:[%s216 + $0x4d0] sm:%s209]
                %399 = vst [vmem:[%s217 + $0x2d0] sm:%s209] %v398
                %v400 = vld [vmem:[%s216 + $0x4d8] sm:%s209]
                %401 = vst [vmem:[%s217 + $0x2d8] sm:%s209] %v400
                %v402 = vld [vmem:[%s216 + $0x4e0] sm:%s209]
                %403 = vst [vmem:[%s217 + $0x2e0] sm:%s209] %v402
                %v404 = vld [vmem:[%s216 + $0x4e8] sm:%s209]
                %405 = vst [vmem:[%s217 + $0x2e8] sm:%s209] %v404
                %v406 = vld [vmem:[%s216 + $0x4f0] sm:%s209]
                %407 = vst [vmem:[%s217 + $0x2f0] sm:%s209] %v406
                %v408 = vld [vmem:[%s216 + $0x4f8] sm:%s209]
                %409 = vst [vmem:[%s217 + $0x2f8] sm:%s209] %v408
                %v410 = vld [vmem:[%s216 + $0x600] sm:%s209]
                %411 = vst [vmem:[%s217 + $0x300] sm:%s209] %v410
                %v412 = vld [vmem:[%s216 + $0x608] sm:%s209]
                %413 = vst [vmem:[%s217 + $0x308] sm:%s209] %v412
                %v414 = vld [vmem:[%s216 + $0x610] sm:%s209]
                %415 = vst [vmem:[%s217 + $0x310] sm:%s209] %v414
                %v416 = vld [vmem:[%s216 + $0x618] sm:%s209]
                %417 = vst [vmem:[%s217 + $0x318] sm:%s209] %v416
                %v418 = vld [vmem:[%s216 + $0x620] sm:%s209]
                %419 = vst [vmem:[%s217 + $0x320] sm:%s209] %v418
                %v420 = vld [vmem:[%s216 + $0x628] sm:%s209]
                %421 = vst [vmem:[%s217 + $0x328] sm:%s209] %v420
                %v422 = vld [vmem:[%s216 + $0x630] sm:%s209]
                %423 = vst [vmem:[%s217 + $0x330] sm:%s209] %v422
                %v424 = vld [vmem:[%s216 + $0x638] sm:%s209]
                %425 = vst [vmem:[%s217 + $0x338] sm:%s209] %v424
                %v426 = vld [vmem:[%s216 + $0x640] sm:%s209]
                %427 = vst [vmem:[%s217 + $0x340] sm:%s209] %v426
                %v428 = vld [vmem:[%s216 + $0x648] sm:%s209]
                %429 = vst [vmem:[%s217 + $0x348] sm:%s209] %v428
                %v430 = vld [vmem:[%s216 + $0x650] sm:%s209]
                %431 = vst [vmem:[%s217 + $0x350] sm:%s209] %v430
                %v432 = vld [vmem:[%s216 + $0x658] sm:%s209]
                %433 = vst [vmem:[%s217 + $0x358] sm:%s209] %v432
                %v434 = vld [vmem:[%s216 + $0x660] sm:%s209]
                %435 = vst [vmem:[%s217 + $0x360] sm:%s209] %v434
                %v436 = vld [vmem:[%s216 + $0x668] sm:%s209]
                %437 = vst [vmem:[%s217 + $0x368] sm:%s209] %v436
                %v438 = vld [vmem:[%s216 + $0x670] sm:%s209]
                %439 = vst [vmem:[%s217 + $0x370] sm:%s209] %v438
                %v440 = vld [vmem:[%s216 + $0x678] sm:%s209]
                %441 = vst [vmem:[%s217 + $0x378] sm:%s209] %v440
                %v442 = vld [vmem:[%s216 + $0x680] sm:%s209]
                %443 = vst [vmem:[%s217 + $0x380] sm:%s209] %v442
                %v444 = vld [vmem:[%s216 + $0x688] sm:%s209]
                %445 = vst [vmem:[%s217 + $0x388] sm:%s209] %v444
                %v446 = vld [vmem:[%s216 + $0x690] sm:%s209]
                %447 = vst [vmem:[%s217 + $0x390] sm:%s209] %v446
                %v448 = vld [vmem:[%s216 + $0x698] sm:%s209]
                %449 = vst [vmem:[%s217 + $0x398] sm:%s209] %v448
                %v450 = vld [vmem:[%s216 + $0x6a0] sm:%s209]
                %451 = vst [vmem:[%s217 + $0x3a0] sm:%s209] %v450
                %v452 = vld [vmem:[%s216 + $0x6a8] sm:%s209]
                %453 = vst [vmem:[%s217 + $0x3a8] sm:%s209] %v452
                %v454 = vld [vmem:[%s216 + $0x6b0] sm:%s209]
                %455 = vst [vmem:[%s217 + $0x3b0] sm:%s209] %v454
                %v456 = vld [vmem:[%s216 + $0x6b8] sm:%s209]
                %457 = vst [vmem:[%s217 + $0x3b8] sm:%s209] %v456
                %v458 = vld [vmem:[%s216 + $0x6c0] sm:%s209]
                %459 = vst [vmem:[%s217 + $0x3c0] sm:%s209] %v458
                %v460 = vld [vmem:[%s216 + $0x6c8] sm:%s209]
                %461 = vst [vmem:[%s217 + $0x3c8] sm:%s209] %v460
                %v462 = vld [vmem:[%s216 + $0x6d0] sm:%s209]
                %463 = vst [vmem:[%s217 + $0x3d0] sm:%s209] %v462
                %v464 = vld [vmem:[%s216 + $0x6d8] sm:%s209]
                %465 = vst [vmem:[%s217 + $0x3d8] sm:%s209] %v464
                %v466 = vld [vmem:[%s216 + $0x6e0] sm:%s209]
                %467 = vst [vmem:[%s217 + $0x3e0] sm:%s209] %v466
                %v468 = vld [vmem:[%s216 + $0x6e8] sm:%s209]
                %469 = vst [vmem:[%s217 + $0x3e8] sm:%s209] %v468
                %v470 = vld [vmem:[%s216 + $0x6f0] sm:%s209]
                %471 = vst [vmem:[%s217 + $0x3f0] sm:%s209] %v470
                %v472 = vld [vmem:[%s216 + $0x6f8] sm:%s209]
                %473 = vst [vmem:[%s217 + $0x3f8] sm:%s209] %v472
                %v474 = vld [vmem:[%s216 + $0x800] sm:%s209]
                %475 = vst [vmem:[%s217 + $0x400] sm:%s209] %v474
                %v476 = vld [vmem:[%s216 + $0x808] sm:%s209]
                %477 = vst [vmem:[%s217 + $0x408] sm:%s209] %v476
                %v478 = vld [vmem:[%s216 + $0x810] sm:%s209]
                %479 = vst [vmem:[%s217 + $0x410] sm:%s209] %v478
                %v480 = vld [vmem:[%s216 + $0x818] sm:%s209]
                %481 = vst [vmem:[%s217 + $0x418] sm:%s209] %v480
                %v482 = vld [vmem:[%s216 + $0x820] sm:%s209]
                %483 = vst [vmem:[%s217 + $0x420] sm:%s209] %v482
                %v484 = vld [vmem:[%s216 + $0x828] sm:%s209]
                %485 = vst [vmem:[%s217 + $0x428] sm:%s209] %v484
                %v486 = vld [vmem:[%s216 + $0x830] sm:%s209]
                %487 = vst [vmem:[%s217 + $0x430] sm:%s209] %v486
                %v488 = vld [vmem:[%s216 + $0x838] sm:%s209]
                %489 = vst [vmem:[%s217 + $0x438] sm:%s209] %v488
                %v490 = vld [vmem:[%s216 + $0x840] sm:%s209]
                %491 = vst [vmem:[%s217 + $0x440] sm:%s209] %v490
                %v492 = vld [vmem:[%s216 + $0x848] sm:%s209]
                %493 = vst [vmem:[%s217 + $0x448] sm:%s209] %v492
                %v494 = vld [vmem:[%s216 + $0x850] sm:%s209]
                %495 = vst [vmem:[%s217 + $0x450] sm:%s209] %v494
                %v496 = vld [vmem:[%s216 + $0x858] sm:%s209]
                %497 = vst [vmem:[%s217 + $0x458] sm:%s209] %v496
                %v498 = vld [vmem:[%s216 + $0x860] sm:%s209]
                %499 = vst [vmem:[%s217 + $0x460] sm:%s209] %v498
                %v500 = vld [vmem:[%s216 + $0x868] sm:%s209]
                %501 = vst [vmem:[%s217 + $0x468] sm:%s209] %v500
                %v502 = vld [vmem:[%s216 + $0x870] sm:%s209]
                %503 = vst [vmem:[%s217 + $0x470] sm:%s209] %v502
                %v504 = vld [vmem:[%s216 + $0x878] sm:%s209]
                %505 = vst [vmem:[%s217 + $0x478] sm:%s209] %v504
                %v506 = vld [vmem:[%s216 + $0x880] sm:%s209]
                %507 = vst [vmem:[%s217 + $0x480] sm:%s209] %v506
                %v508 = vld [vmem:[%s216 + $0x888] sm:%s209]
                %509 = vst [vmem:[%s217 + $0x488] sm:%s209] %v508
                %v510 = vld [vmem:[%s216 + $0x890] sm:%s209]
                %511 = vst [vmem:[%s217 + $0x490] sm:%s209] %v510
                %v512 = vld [vmem:[%s216 + $0x898] sm:%s209]
                %513 = vst [vmem:[%s217 + $0x498] sm:%s209] %v512
                %v514 = vld [vmem:[%s216 + $0x8a0] sm:%s209]
                %515 = vst [vmem:[%s217 + $0x4a0] sm:%s209] %v514
                %v516 = vld [vmem:[%s216 + $0x8a8] sm:%s209]
                %517 = vst [vmem:[%s217 + $0x4a8] sm:%s209] %v516
                %v518 = vld [vmem:[%s216 + $0x8b0] sm:%s209]
                %519 = vst [vmem:[%s217 + $0x4b0] sm:%s209] %v518
                %v520 = vld [vmem:[%s216 + $0x8b8] sm:%s209]
                %521 = vst [vmem:[%s217 + $0x4b8] sm:%s209] %v520
                %v522 = vld [vmem:[%s216 + $0x8c0] sm:%s209]
                %523 = vst [vmem:[%s217 + $0x4c0] sm:%s209] %v522
                %v524 = vld [vmem:[%s216 + $0x8c8] sm:%s209]
                %525 = vst [vmem:[%s217 + $0x4c8] sm:%s209] %v524
                %v526 = vld [vmem:[%s216 + $0x8d0] sm:%s209]
                %527 = vst [vmem:[%s217 + $0x4d0] sm:%s209] %v526
                %v528 = vld [vmem:[%s216 + $0x8d8] sm:%s209]
                %529 = vst [vmem:[%s217 + $0x4d8] sm:%s209] %v528
                %v530 = vld [vmem:[%s216 + $0x8e0] sm:%s209]
                %531 = vst [vmem:[%s217 + $0x4e0] sm:%s209] %v530
                %v532 = vld [vmem:[%s216 + $0x8e8] sm:%s209]
                %533 = vst [vmem:[%s217 + $0x4e8] sm:%s209] %v532
                %v534 = vld [vmem:[%s216 + $0x8f0] sm:%s209]
                %535 = vst [vmem:[%s217 + $0x4f0] sm:%s209] %v534
                %v536 = vld [vmem:[%s216 + $0x8f8] sm:%s209]
                %537 = vst [vmem:[%s217 + $0x4f8] sm:%s209] %v536
                %v538 = vld [vmem:[%s216 + $0xa00] sm:%s209]
                %539 = vst [vmem:[%s217 + $0x500] sm:%s209] %v538
                %v540 = vld [vmem:[%s216 + $0xa08] sm:%s209]
                %541 = vst [vmem:[%s217 + $0x508] sm:%s209] %v540
                %v542 = vld [vmem:[%s216 + $0xa10] sm:%s209]
                %543 = vst [vmem:[%s217 + $0x510] sm:%s209] %v542
                %v544 = vld [vmem:[%s216 + $0xa18] sm:%s209]
                %545 = vst [vmem:[%s217 + $0x518] sm:%s209] %v544
                %v546 = vld [vmem:[%s216 + $0xa20] sm:%s209]
                %547 = vst [vmem:[%s217 + $0x520] sm:%s209] %v546
                %v548 = vld [vmem:[%s216 + $0xa28] sm:%s209]
                %549 = vst [vmem:[%s217 + $0x528] sm:%s209] %v548
                %v550 = vld [vmem:[%s216 + $0xa30] sm:%s209]
                %551 = vst [vmem:[%s217 + $0x530] sm:%s209] %v550
                %v552 = vld [vmem:[%s216 + $0xa38] sm:%s209]
                %553 = vst [vmem:[%s217 + $0x538] sm:%s209] %v552
                %v554 = vld [vmem:[%s216 + $0xa40] sm:%s209]
                %555 = vst [vmem:[%s217 + $0x540] sm:%s209] %v554
                %v556 = vld [vmem:[%s216 + $0xa48] sm:%s209]
                %557 = vst [vmem:[%s217 + $0x548] sm:%s209] %v556
                %v558 = vld [vmem:[%s216 + $0xa50] sm:%s209]
                %559 = vst [vmem:[%s217 + $0x550] sm:%s209] %v558
                %v560 = vld [vmem:[%s216 + $0xa58] sm:%s209]
                %561 = vst [vmem:[%s217 + $0x558] sm:%s209] %v560
                %v562 = vld [vmem:[%s216 + $0xa60] sm:%s209]
                %563 = vst [vmem:[%s217 + $0x560] sm:%s209] %v562
                %v564 = vld [vmem:[%s216 + $0xa68] sm:%s209]
                %565 = vst [vmem:[%s217 + $0x568] sm:%s209] %v564
                %v566 = vld [vmem:[%s216 + $0xa70] sm:%s209]
                %567 = vst [vmem:[%s217 + $0x570] sm:%s209] %v566
                %v568 = vld [vmem:[%s216 + $0xa78] sm:%s209]
                %569 = vst [vmem:[%s217 + $0x578] sm:%s209] %v568
                %v570 = vld [vmem:[%s216 + $0xa80] sm:%s209]
                %571 = vst [vmem:[%s217 + $0x580] sm:%s209] %v570
                %v572 = vld [vmem:[%s216 + $0xa88] sm:%s209]
                %573 = vst [vmem:[%s217 + $0x588] sm:%s209] %v572
                %v574 = vld [vmem:[%s216 + $0xa90] sm:%s209]
                %575 = vst [vmem:[%s217 + $0x590] sm:%s209] %v574
                %v576 = vld [vmem:[%s216 + $0xa98] sm:%s209]
                %577 = vst [vmem:[%s217 + $0x598] sm:%s209] %v576
                %v578 = vld [vmem:[%s216 + $0xaa0] sm:%s209]
                %579 = vst [vmem:[%s217 + $0x5a0] sm:%s209] %v578
                %v580 = vld [vmem:[%s216 + $0xaa8] sm:%s209]
                %581 = vst [vmem:[%s217 + $0x5a8] sm:%s209] %v580
                %v582 = vld [vmem:[%s216 + $0xab0] sm:%s209]
                %583 = vst [vmem:[%s217 + $0x5b0] sm:%s209] %v582
                %v584 = vld [vmem:[%s216 + $0xab8] sm:%s209]
                %585 = vst [vmem:[%s217 + $0x5b8] sm:%s209] %v584
                %v586 = vld [vmem:[%s216 + $0xac0] sm:%s209]
                %587 = vst [vmem:[%s217 + $0x5c0] sm:%s209] %v586
                %v588 = vld [vmem:[%s216 + $0xac8] sm:%s209]
                %589 = vst [vmem:[%s217 + $0x5c8] sm:%s209] %v588
                %v590 = vld [vmem:[%s216 + $0xad0] sm:%s209]
                %591 = vst [vmem:[%s217 + $0x5d0] sm:%s209] %v590
                %v592 = vld [vmem:[%s216 + $0xad8] sm:%s209]
                %593 = vst [vmem:[%s217 + $0x5d8] sm:%s209] %v592
                %v594 = vld [vmem:[%s216 + $0xae0] sm:%s209]
                %595 = vst [vmem:[%s217 + $0x5e0] sm:%s209] %v594
                %v596 = vld [vmem:[%s216 + $0xae8] sm:%s209]
                %597 = vst [vmem:[%s217 + $0x5e8] sm:%s209] %v596
                %v598 = vld [vmem:[%s216 + $0xaf0] sm:%s209]
                %599 = vst [vmem:[%s217 + $0x5f0] sm:%s209] %v598
                %v600 = vld [vmem:[%s216 + $0xaf8] sm:%s209]
                %601 = vst [vmem:[%s217 + $0x5f8] sm:%s209] %v600
                %v602 = vld [vmem:[%s216 + $0xc00] sm:%s209]
                %603 = vst [vmem:[%s217 + $0x600] sm:%s209] %v602
                %v604 = vld [vmem:[%s216 + $0xc08] sm:%s209]
                %605 = vst [vmem:[%s217 + $0x608] sm:%s209] %v604
                %v606 = vld [vmem:[%s216 + $0xc10] sm:%s209]
                %607 = vst [vmem:[%s217 + $0x610] sm:%s209] %v606
                %v608 = vld [vmem:[%s216 + $0xc18] sm:%s209]
                %609 = vst [vmem:[%s217 + $0x618] sm:%s209] %v608
                %v610 = vld [vmem:[%s216 + $0xc20] sm:%s209]
                %611 = vst [vmem:[%s217 + $0x620] sm:%s209] %v610
                %v612 = vld [vmem:[%s216 + $0xc28] sm:%s209]
                %613 = vst [vmem:[%s217 + $0x628] sm:%s209] %v612
                %v614 = vld [vmem:[%s216 + $0xc30] sm:%s209]
                %615 = vst [vmem:[%s217 + $0x630] sm:%s209] %v614
                %v616 = vld [vmem:[%s216 + $0xc38] sm:%s209]
                %617 = vst [vmem:[%s217 + $0x638] sm:%s209] %v616
                %v618 = vld [vmem:[%s216 + $0xc40] sm:%s209]
                %619 = vst [vmem:[%s217 + $0x640] sm:%s209] %v618
                %v620 = vld [vmem:[%s216 + $0xc48] sm:%s209]
                %621 = vst [vmem:[%s217 + $0x648] sm:%s209] %v620
                %v622 = vld [vmem:[%s216 + $0xc50] sm:%s209]
                %623 = vst [vmem:[%s217 + $0x650] sm:%s209] %v622
                %v624 = vld [vmem:[%s216 + $0xc58] sm:%s209]
                %625 = vst [vmem:[%s217 + $0x658] sm:%s209] %v624
                %v626 = vld [vmem:[%s216 + $0xc60] sm:%s209]
                %627 = vst [vmem:[%s217 + $0x660] sm:%s209] %v626
                %v628 = vld [vmem:[%s216 + $0xc68] sm:%s209]
                %629 = vst [vmem:[%s217 + $0x668] sm:%s209] %v628
                %v630 = vld [vmem:[%s216 + $0xc70] sm:%s209]
                %631 = vst [vmem:[%s217 + $0x670] sm:%s209] %v630
                %v632 = vld [vmem:[%s216 + $0xc78] sm:%s209]
                %633 = vst [vmem:[%s217 + $0x678] sm:%s209] %v632
                %v634 = vld [vmem:[%s216 + $0xc80] sm:%s209]
                %635 = vst [vmem:[%s217 + $0x680] sm:%s209] %v634
                %v636 = vld [vmem:[%s216 + $0xc88] sm:%s209]
                %637 = vst [vmem:[%s217 + $0x688] sm:%s209] %v636
                %v638 = vld [vmem:[%s216 + $0xc90] sm:%s209]
                %639 = vst [vmem:[%s217 + $0x690] sm:%s209] %v638
                %v640 = vld [vmem:[%s216 + $0xc98] sm:%s209]
                %641 = vst [vmem:[%s217 + $0x698] sm:%s209] %v640
                %v642 = vld [vmem:[%s216 + $0xca0] sm:%s209]
                %643 = vst [vmem:[%s217 + $0x6a0] sm:%s209] %v642
                %v644 = vld [vmem:[%s216 + $0xca8] sm:%s209]
                %645 = vst [vmem:[%s217 + $0x6a8] sm:%s209] %v644
                %v646 = vld [vmem:[%s216 + $0xcb0] sm:%s209]
                %647 = vst [vmem:[%s217 + $0x6b0] sm:%s209] %v646
                %v648 = vld [vmem:[%s216 + $0xcb8] sm:%s209]
                %649 = vst [vmem:[%s217 + $0x6b8] sm:%s209] %v648
                %v650 = vld [vmem:[%s216 + $0xcc0] sm:%s209]
                %651 = vst [vmem:[%s217 + $0x6c0] sm:%s209] %v650
                %v652 = vld [vmem:[%s216 + $0xcc8] sm:%s209]
                %653 = vst [vmem:[%s217 + $0x6c8] sm:%s209] %v652
                %v654 = vld [vmem:[%s216 + $0xcd0] sm:%s209]
                %655 = vst [vmem:[%s217 + $0x6d0] sm:%s209] %v654
                %v656 = vld [vmem:[%s216 + $0xcd8] sm:%s209]
                %657 = vst [vmem:[%s217 + $0x6d8] sm:%s209] %v656
                %v658 = vld [vmem:[%s216 + $0xce0] sm:%s209]
                %659 = vst [vmem:[%s217 + $0x6e0] sm:%s209] %v658
                %v660 = vld [vmem:[%s216 + $0xce8] sm:%s209]
                %661 = vst [vmem:[%s217 + $0x6e8] sm:%s209] %v660
                %v662 = vld [vmem:[%s216 + $0xcf0] sm:%s209]
                %663 = vst [vmem:[%s217 + $0x6f0] sm:%s209] %v662
                %v664 = vld [vmem:[%s216 + $0xcf8] sm:%s209]
                %665 = vst [vmem:[%s217 + $0x6f8] sm:%s209] %v664
                %v666 = vld [vmem:[%s216 + $0xe00] sm:%s209]
                %667 = vst [vmem:[%s217 + $0x700] sm:%s209] %v666
                %v668 = vld [vmem:[%s216 + $0xe08] sm:%s209]
                %669 = vst [vmem:[%s217 + $0x708] sm:%s209] %v668
                %v670 = vld [vmem:[%s216 + $0xe10] sm:%s209]
                %671 = vst [vmem:[%s217 + $0x710] sm:%s209] %v670
                %v672 = vld [vmem:[%s216 + $0xe18] sm:%s209]
                %673 = vst [vmem:[%s217 + $0x718] sm:%s209] %v672
                %v674 = vld [vmem:[%s216 + $0xe20] sm:%s209]
                %675 = vst [vmem:[%s217 + $0x720] sm:%s209] %v674
                %v676 = vld [vmem:[%s216 + $0xe28] sm:%s209]
                %677 = vst [vmem:[%s217 + $0x728] sm:%s209] %v676
                %v678 = vld [vmem:[%s216 + $0xe30] sm:%s209]
                %679 = vst [vmem:[%s217 + $0x730] sm:%s209] %v678
                %v680 = vld [vmem:[%s216 + $0xe38] sm:%s209]
                %681 = vst [vmem:[%s217 + $0x738] sm:%s209] %v680
                %v682 = vld [vmem:[%s216 + $0xe40] sm:%s209]
                %683 = vst [vmem:[%s217 + $0x740] sm:%s209] %v682
                %v684 = vld [vmem:[%s216 + $0xe48] sm:%s209]
                %685 = vst [vmem:[%s217 + $0x748] sm:%s209] %v684
                %v686 = vld [vmem:[%s216 + $0xe50] sm:%s209]
                %687 = vst [vmem:[%s217 + $0x750] sm:%s209] %v686
                %v688 = vld [vmem:[%s216 + $0xe58] sm:%s209]
                %689 = vst [vmem:[%s217 + $0x758] sm:%s209] %v688
                %v690 = vld [vmem:[%s216 + $0xe60] sm:%s209]
                %691 = vst [vmem:[%s217 + $0x760] sm:%s209] %v690
                %v692 = vld [vmem:[%s216 + $0xe68] sm:%s209]
                %693 = vst [vmem:[%s217 + $0x768] sm:%s209] %v692
                %v694 = vld [vmem:[%s216 + $0xe70] sm:%s209]
                %695 = vst [vmem:[%s217 + $0x770] sm:%s209] %v694
                %v696 = vld [vmem:[%s216 + $0xe78] sm:%s209]
                %697 = vst [vmem:[%s217 + $0x778] sm:%s209] %v696
                %v698 = vld [vmem:[%s216 + $0xe80] sm:%s209]
                %699 = vst [vmem:[%s217 + $0x780] sm:%s209] %v698
                %v700 = vld [vmem:[%s216 + $0xe88] sm:%s209]
                %701 = vst [vmem:[%s217 + $0x788] sm:%s209] %v700
                %v702 = vld [vmem:[%s216 + $0xe90] sm:%s209]
                %703 = vst [vmem:[%s217 + $0x790] sm:%s209] %v702
                %v704 = vld [vmem:[%s216 + $0xe98] sm:%s209]
                %705 = vst [vmem:[%s217 + $0x798] sm:%s209] %v704
                %v706 = vld [vmem:[%s216 + $0xea0] sm:%s209]
                %707 = vst [vmem:[%s217 + $0x7a0] sm:%s209] %v706
                %v708 = vld [vmem:[%s216 + $0xea8] sm:%s209]
                %709 = vst [vmem:[%s217 + $0x7a8] sm:%s209] %v708
                %v710 = vld [vmem:[%s216 + $0xeb0] sm:%s209]
                %711 = vst [vmem:[%s217 + $0x7b0] sm:%s209] %v710
                %v712 = vld [vmem:[%s216 + $0xeb8] sm:%s209]
                %713 = vst [vmem:[%s217 + $0x7b8] sm:%s209] %v712
                %v714 = vld [vmem:[%s216 + $0xec0] sm:%s209]
                %715 = vst [vmem:[%s217 + $0x7c0] sm:%s209] %v714
                %v716 = vld [vmem:[%s216 + $0xec8] sm:%s209]
                %717 = vst [vmem:[%s217 + $0x7c8] sm:%s209] %v716
                %v718 = vld [vmem:[%s216 + $0xed0] sm:%s209]
                %719 = vst [vmem:[%s217 + $0x7d0] sm:%s209] %v718
                %v720 = vld [vmem:[%s216 + $0xed8] sm:%s209]
                %721 = vst [vmem:[%s217 + $0x7d8] sm:%s209] %v720
                %v722 = vld [vmem:[%s216 + $0xee0] sm:%s209]
                %723 = vst [vmem:[%s217 + $0x7e0] sm:%s209] %v722
                %v724 = vld [vmem:[%s216 + $0xee8] sm:%s209]
                %725 = vst [vmem:[%s217 + $0x7e8] sm:%s209] %v724
                %v726 = vld [vmem:[%s216 + $0xef0] sm:%s209]
                %727 = vst [vmem:[%s217 + $0x7f0] sm:%s209] %v726
                %v728 = vld [vmem:[%s216 + $0xef8] sm:%s209]
                %729 = vst [vmem:[%s217 + $0x7f8] sm:%s209] %v728
              $region49: #{tpu_custom_call.1} parent=43 // loop_footer
                %s215 = sadd.s32 1, %s211
              $region50: #{tpu_custom_call.1} parent=43 // loop_footer_branch
                %210 = sbr.rel target = $region46
              $region51: #{tpu_custom_call.1} parent=43 // loop_exit
                _
            $region44: #{tpu_custom_call.1} parent=35 // pred_fallthru
              _
          $region36: #{tpu_custom_call.1} parent=31 // pred_fallthru
            _
          %1254 = vnop
        $region32: #{tpu_custom_call.1} parent=23 // pred_fallthru
          _
      $region24: #{tpu_custom_call.1} parent=5 // pred_fallthru
        _
      %p1255 = scmp.le.s32.totalorder 1, %s12
      %p1256 = scmp.lt.s32.totalorder %s12, 3
      %p1257 = pnand %p1255, %p1256
      %p1258 = pneg %p1257
      // Predicated region
      $region67: #{tpu_custom_call.1} parent=5 // pred_check
        _
      $region68: #{tpu_custom_call.1} parent=5 // pred_check_branch
        %1260 = sbr.rel (%p1257) target = $region70
      $region69: #{tpu_custom_call.1} parent=5 // pred_region
        %s1261 = ssub.s32 %s12, 1
        %s1262 = sand.u32 %s51, 1
        %s1263 = sand.u32 %s51, 1
        %s1264 = smul.addr %s1263, 2048
        %s1265 = scalar_lea.vmem [#allocation2], %s1264
        // Predicated region
        $region71: #{tpu_custom_call.1} parent=69 // pred_check
          %p1266 = pneg %p64
        $region72: #{tpu_custom_call.1} parent=69 // pred_check_branch
          %1268 = sbr.rel (%p1266) target = $region74
        $region73: #{tpu_custom_call.1} parent=69 // pred_region
          _
        $region74: #{tpu_custom_call.1} parent=69 // pred_fallthru
          _
        %s1269 = smul.u32 32, %s17
        %p1270 = scmp.lt.s32.totalorder %s1269, 63
        %s1271 = scalar_select %p1270, %s1269, 63
        %s1272 = smul.addr %s1271, 8
        %s1273 = scalar_lea.vmem %s0, %s1272
        %p1274 = pneg %p38
        %p1275 = pneg %p35
        %s1276 = sand.u32 %s51, 1
        %s1277 = sand.u32 %s51, 1
        %s1278 = smul.addr %s1277, 2048
        %s1279 = scalar_lea.vmem [#allocation2], %s1278
        %p1280 = pneg %p64
        %p1281 = pneg %p61
        %p1282 = pneg %p85
        %p1283 = pneg %p82
        %p1284 = pneg %p106
        %p1285 = pneg %p103
        %p1286 = pneg %p132
        %p1287 = pneg %p129
        %s1288 = smul.u32 32, %s17
        %p1289 = scmp.lt.s32.totalorder %s1288, 63
        %s1290 = scalar_select %p1289, %s1288, 63
        %s1291 = smul.addr %s1290, 8
        %s1292 = scalar_lea.vmem %s4, %s1291
        %p1293 = pneg %p158
        %p1294 = pneg %p155
        %s1295 = sand.u32 %s145, 1
        %s1296 = sand.u32 %s145, 1
        %s1297 = smul.addr %s1296, 2048
        %s1298 = scalar_lea.vmem [#allocation3], %s1297
        %s1299 = smul.u32 32, %s17
        %p1300 = scmp.lt.s32.totalorder %s1299, 63
        %s1301 = scalar_select %p1300, %s1299, 63
        %s1302 = smul.addr %s1301, 8
        %s1303 = scalar_lea.vmem %s0, %s1302
        %s1304 = smul.u32 32, %s17
        %s1305 = smul.u32 32, %s17
        %s1306 = smul.u32 32, %s17
        %p1307 = scmp.lt.s32.totalorder %s1306, 63
        %s1308 = scalar_select %p1307, %s1306, 63
        %s1309 = smul.addr %s1308, 8
        %s1310 = scalar_lea.vmem %s4, %s1309
        %s1311 = smul.u32 32, %s17
        %s1312 = smul.u32 32, %s17
        %v1313 = vld [vmem:[%s1303] sm:$0xff]
        %v1314 = vld [vmem:[%s1303 + $0x8] sm:$0xff]
        %v1315 = vld [vmem:[%s1303 + $0x10] sm:$0xff]
        %v1316 = vld [vmem:[%s1303 + $0x18] sm:$0xff]
        %v1317 = vld [vmem:[%s1303 + $0x20] sm:$0xff]
        %v1318 = vld [vmem:[%s1303 + $0x28] sm:$0xff]
        %v1319 = vld [vmem:[%s1303 + $0x30] sm:$0xff]
        %v1320 = vld [vmem:[%s1303 + $0x38] sm:$0xff]
        %v1321 = vld [vmem:[%s1303 + $0x40] sm:$0xff]
        %v1322 = vld [vmem:[%s1303 + $0x48] sm:$0xff]
        %v1323 = vld [vmem:[%s1303 + $0x50] sm:$0xff]
        %v1324 = vld [vmem:[%s1303 + $0x58] sm:$0xff]
        %v1325 = vld [vmem:[%s1303 + $0x60] sm:$0xff]
        %v1326 = vld [vmem:[%s1303 + $0x68] sm:$0xff]
        %v1327 = vld [vmem:[%s1303 + $0x70] sm:$0xff]
        %v1328 = vld [vmem:[%s1303 + $0x78] sm:$0xff]
        %v1329 = vld [vmem:[%s1303 + $0x80] sm:$0xff]
        %v1330 = vld [vmem:[%s1303 + $0x88] sm:$0xff]
        %v1331 = vld [vmem:[%s1303 + $0x90] sm:$0xff]
        %v1332 = vld [vmem:[%s1303 + $0x98] sm:$0xff]
        %v1333 = vld [vmem:[%s1303 + $0xa0] sm:$0xff]
        %v1334 = vld [vmem:[%s1303 + $0xa8] sm:$0xff]
        %v1335 = vld [vmem:[%s1303 + $0xb0] sm:$0xff]
        %v1336 = vld [vmem:[%s1303 + $0xb8] sm:$0xff]
        %v1337 = vld [vmem:[%s1303 + $0xc0] sm:$0xff]
        %v1338 = vld [vmem:[%s1303 + $0xc8] sm:$0xff]
        %v1339 = vld [vmem:[%s1303 + $0xd0] sm:$0xff]
        %v1340 = vld [vmem:[%s1303 + $0xd8] sm:$0xff]
        %v1341 = vld [vmem:[%s1303 + $0xe0] sm:$0xff]
        %v1342 = vld [vmem:[%s1303 + $0xe8] sm:$0xff]
        %v1343 = vld [vmem:[%s1303 + $0xf0] sm:$0xff]
        %v1344 = vld [vmem:[%s1303 + $0xf8] sm:$0xff]
        %v1345 = vld [vmem:[%s2] sm:$0xff]
        %v1346 = vld [vmem:[%s2 + $0x8] sm:$0xff]
        %v1347 = vld [vmem:[%s2 + $0x10] sm:$0xff]
        %v1348 = vld [vmem:[%s2 + $0x18] sm:$0xff]
        %vm1349 = vcmask 261120
        %v1351 = vsel %vm1349, %v1313, 0
        %v1354 = vsel %vm1349, %v1314, 0
        %v1357 = vsel %vm1349, %v1315, 0
        %v1360 = vsel %vm1349, %v1316, 0
        %v1363 = vsel %vm1349, %v1317, 0
        %v1366 = vsel %vm1349, %v1318, 0
        %v1369 = vsel %vm1349, %v1319, 0
        %v1372 = vsel %vm1349, %v1320, 0
        %v1375 = vsel %vm1349, %v1321, 0
        %v1378 = vsel %vm1349, %v1322, 0
        %v1381 = vsel %vm1349, %v1323, 0
        %v1384 = vsel %vm1349, %v1324, 0
        %v1387 = vsel %vm1349, %v1325, 0
        %v1390 = vsel %vm1349, %v1326, 0
        %v1393 = vsel %vm1349, %v1327, 0
        %v1396 = vsel %vm1349, %v1328, 0
        %v1399 = vsel %vm1349, %v1329, 0
        %v1402 = vsel %vm1349, %v1330, 0
        %v1405 = vsel %vm1349, %v1331, 0
        %v1408 = vsel %vm1349, %v1332, 0
        %v1411 = vsel %vm1349, %v1333, 0
        %v1414 = vsel %vm1349, %v1334, 0
        %v1417 = vsel %vm1349, %v1335, 0
        %v1420 = vsel %vm1349, %v1336, 0
        %v1423 = vsel %vm1349, %v1337, 0
        %v1426 = vsel %vm1349, %v1338, 0
        %v1429 = vsel %vm1349, %v1339, 0
        %v1432 = vsel %vm1349, %v1340, 0
        %v1435 = vsel %vm1349, %v1341, 0
        %v1438 = vsel %vm1349, %v1342, 0
        %v1441 = vsel %vm1349, %v1343, 0
        %v1444 = vsel %vm1349, %v1344, 0
        %1446 = vmatprep.subr.mxu0 0.0
        %1447 = vmatpush1.msra.mxu0 0.0
        %1448 = vmatprep.subr.mxu0 0.0
        %1449 = vmatpush1.msra.mxu0 0.0
        %1450 = vmatprep.subr.mxu0 0.0
        %1451 = vmatpush1.msra.mxu0 0.0
        %1452 = vmatprep.subr.mxu0 0.0
        %1453 = vmatpush1.msra.mxu0 0.0
        %1454 = vmatprep.subr.mxu0 0.0
        %1455 = vmatpush1.msra.mxu0 0.0
        %1456 = vmatprep.subr.mxu0 0.0
        %1457 = vmatpush1.msra.mxu0 0.0
        %1458 = vmatprep.subr.mxu0 0.0
        %1459 = vmatpush1.msra.mxu0 0.0
        %1460 = vmatprep.subr.mxu0 0.0
        %1461 = vmatpush1.msra.mxu0 0.0
        %1462 = vmatprep.subr.mxu0 0.0
        %1463 = vmatpush1.msra.mxu0 0.0
        %1464 = vmatprep.subr.mxu0 0.0
        %1465 = vmatpush1.msra.mxu0 0.0
        %1466 = vmatprep.subr.mxu0 0.0
        %1467 = vmatpush1.msra.mxu0 0.0
        %1468 = vmatprep.subr.mxu0 0.0
        %1469 = vmatpush1.msra.mxu0 0.0
        %1470 = vmatprep.subr.mxu0 0.0
        %1471 = vmatpush1.msra.mxu0 %v1348
        %1472 = vmatprep.subr.mxu0 0.0
        %1473 = vmatpush1.msra.mxu0 %v1347
        %1474 = vmatprep.subr.mxu0 0.0
        %1475 = vmatpush1.msra.mxu0 %v1346
        %1476 = vmatprep.subr.mxu0 0.0
        %1477 = vmatpush1.msra.mxu0 %v1345
        %1478 = vmatprep.subr.mxu0 0.0
        %1479 = vmatpush2.msra.mxu0 0.0
        %1480 = vmatprep.subr.mxu0 0.0
        %1481 = vmatpush2.msra.mxu0 0.0
        %1482 = vmatprep.subr.mxu0 0.0
        %1483 = vmatpush2.msra.mxu0 0.0
        %1484 = vmatprep.subr.mxu0 0.0
        %1485 = vmatpush2.msra.mxu0 0.0
        %1486 = vmatprep.subr.mxu0 0.0
        %1487 = vmatpush2.msra.mxu0 0.0
        %1488 = vmatprep.subr.mxu0 0.0
        %1489 = vmatpush2.msra.mxu0 0.0
        %1490 = vmatprep.subr.mxu0 0.0
        %1491 = vmatpush2.msra.mxu0 0.0
        %1492 = vmatprep.subr.mxu0 0.0
        %1493 = vmatpush2.msra.mxu0 0.0
        %1494 = vmatprep.subr.mxu0 0.0
        %1495 = vmatpush2.msra.mxu0 0.0
        %1496 = vmatprep.subr.mxu0 0.0
        %1497 = vmatpush2.msra.mxu0 0.0
        %1498 = vmatprep.subr.mxu0 0.0
        %1499 = vmatpush2.msra.mxu0 0.0
        %1500 = vmatprep.subr.mxu0 0.0
        %1501 = vmatpush2.msra.mxu0 0.0
        %1502 = vmatprep.subr.mxu0 0.0
        %1503 = vmatpush2.msra.mxu0 0.0
        %1504 = vmatprep.subr.mxu0 0.0
        %1505 = vmatpush2.msra.mxu0 0.0
        %1506 = vmatprep.subr.mxu0 0.0
        %1507 = vmatpush2.msra.mxu0 0.0
        %1508 = vmatprep.subr.mxu0 0.0
        %1509 = vmatpush2.msra.mxu0 0.0
        %1510 = vmatprep.mubr.f32.mxu0 0.0
        %1511 = vmatmul.mubr.f32.gmra.mxu0 %v1351
        %v1512 = vpop.f32.mrf.mxu0
        %v1513 = vadd.f32 0.0, %v1512
        %v1514 = vpop.f32.mrf.mxu0
        %1515 = vmatprep.mubr.f32.mxu0 0.0
        %1516 = vmatmul.mubr.f32.gmra.mxu0 %v1354
        %v1517 = vpop.f32.mrf.mxu0
        %v1518 = vadd.f32 0.0, %v1517
        %v1519 = vpop.f32.mrf.mxu0
        %1520 = vmatprep.mubr.f32.mxu0 0.0
        %1521 = vmatmul.mubr.f32.gmra.mxu0 %v1357
        %v1522 = vpop.f32.mrf.mxu0
        %v1523 = vadd.f32 0.0, %v1522
        %v1524 = vpop.f32.mrf.mxu0
        %1525 = vmatprep.mubr.f32.mxu0 0.0
        %1526 = vmatmul.mubr.f32.gmra.mxu0 %v1360
        %v1527 = vpop.f32.mrf.mxu0
        %v1528 = vadd.f32 0.0, %v1527
        %v1529 = vpop.f32.mrf.mxu0
        %1530 = vmatprep.mubr.f32.mxu0 0.0
        %1531 = vmatmul.mubr.f32.gmra.mxu0 %v1363
        %v1532 = vpop.f32.mrf.mxu0
        %v1533 = vadd.f32 0.0, %v1532
        %v1534 = vpop.f32.mrf.mxu0
        %1535 = vmatprep.mubr.f32.mxu0 0.0
        %1536 = vmatmul.mubr.f32.gmra.mxu0 %v1366
        %v1537 = vpop.f32.mrf.mxu0
        %v1538 = vadd.f32 0.0, %v1537
        %v1539 = vpop.f32.mrf.mxu0
        %1540 = vmatprep.mubr.f32.mxu0 0.0
        %1541 = vmatmul.mubr.f32.gmra.mxu0 %v1369
        %v1542 = vpop.f32.mrf.mxu0
        %v1543 = vadd.f32 0.0, %v1542
        %v1544 = vpop.f32.mrf.mxu0
        %1545 = vmatprep.mubr.f32.mxu0 0.0
        %1546 = vmatmul.mubr.f32.gmra.mxu0 %v1372
        %v1547 = vpop.f32.mrf.mxu0
        %v1548 = vadd.f32 0.0, %v1547
        %v1549 = vpop.f32.mrf.mxu0
        %1550 = vmatprep.mubr.f32.mxu0 0.0
        %1551 = vmatmul.mubr.f32.gmra.mxu0 %v1375
        %v1552 = vpop.f32.mrf.mxu0
        %v1553 = vadd.f32 0.0, %v1552
        %v1554 = vpop.f32.mrf.mxu0
        %1555 = vmatprep.mubr.f32.mxu0 0.0
        %1556 = vmatmul.mubr.f32.gmra.mxu0 %v1378
        %v1557 = vpop.f32.mrf.mxu0
        %v1558 = vadd.f32 0.0, %v1557
        %v1559 = vpop.f32.mrf.mxu0
        %1560 = vmatprep.mubr.f32.mxu0 0.0
        %1561 = vmatmul.mubr.f32.gmra.mxu0 %v1381
        %v1562 = vpop.f32.mrf.mxu0
        %v1563 = vadd.f32 0.0, %v1562
        %v1564 = vpop.f32.mrf.mxu0
        %1565 = vmatprep.mubr.f32.mxu0 0.0
        %1566 = vmatmul.mubr.f32.gmra.mxu0 %v1384
        %v1567 = vpop.f32.mrf.mxu0
        %v1568 = vadd.f32 0.0, %v1567
        %v1569 = vpop.f32.mrf.mxu0
        %1570 = vmatprep.mubr.f32.mxu0 0.0
        %1571 = vmatmul.mubr.f32.gmra.mxu0 %v1387
        %v1572 = vpop.f32.mrf.mxu0
        %v1573 = vadd.f32 0.0, %v1572
        %v1574 = vpop.f32.mrf.mxu0
        %1575 = vmatprep.mubr.f32.mxu0 0.0
        %1576 = vmatmul.mubr.f32.gmra.mxu0 %v1390
        %v1577 = vpop.f32.mrf.mxu0
        %v1578 = vadd.f32 0.0, %v1577
        %v1579 = vpop.f32.mrf.mxu0
        %1580 = vmatprep.mubr.f32.mxu0 0.0
        %1581 = vmatmul.mubr.f32.gmra.mxu0 %v1393
        %v1582 = vpop.f32.mrf.mxu0
        %v1583 = vadd.f32 0.0, %v1582
        %v1584 = vpop.f32.mrf.mxu0
        %1585 = vmatprep.mubr.f32.mxu0 0.0
        %1586 = vmatmul.mubr.f32.gmra.mxu0 %v1396
        %v1587 = vpop.f32.mrf.mxu0
        %v1588 = vadd.f32 0.0, %v1587
        %v1589 = vpop.f32.mrf.mxu0
        %1590 = vmatprep.mubr.f32.mxu0 0.0
        %1591 = vmatmul.mubr.f32.gmra.mxu0 %v1399
        %v1592 = vpop.f32.mrf.mxu0
        %v1593 = vadd.f32 0.0, %v1592
        %v1594 = vpop.f32.mrf.mxu0
        %1595 = vmatprep.mubr.f32.mxu0 0.0
        %1596 = vmatmul.mubr.f32.gmra.mxu0 %v1402
        %v1597 = vpop.f32.mrf.mxu0
        %v1598 = vadd.f32 0.0, %v1597
        %v1599 = vpop.f32.mrf.mxu0
        %1600 = vmatprep.mubr.f32.mxu0 0.0
        %1601 = vmatmul.mubr.f32.gmra.mxu0 %v1405
        %v1602 = vpop.f32.mrf.mxu0
        %v1603 = vadd.f32 0.0, %v1602
        %v1604 = vpop.f32.mrf.mxu0
        %1605 = vmatprep.mubr.f32.mxu0 0.0
        %1606 = vmatmul.mubr.f32.gmra.mxu0 %v1408
        %v1607 = vpop.f32.mrf.mxu0
        %v1608 = vadd.f32 0.0, %v1607
        %v1609 = vpop.f32.mrf.mxu0
        %1610 = vmatprep.mubr.f32.mxu0 0.0
        %1611 = vmatmul.mubr.f32.gmra.mxu0 %v1411
        %v1612 = vpop.f32.mrf.mxu0
        %v1613 = vadd.f32 0.0, %v1612
        %v1614 = vpop.f32.mrf.mxu0
        %1615 = vmatprep.mubr.f32.mxu0 0.0
        %1616 = vmatmul.mubr.f32.gmra.mxu0 %v1414
        %v1617 = vpop.f32.mrf.mxu0
        %v1618 = vadd.f32 0.0, %v1617
        %v1619 = vpop.f32.mrf.mxu0
        %1620 = vmatprep.mubr.f32.mxu0 0.0
        %1621 = vmatmul.mubr.f32.gmra.mxu0 %v1417
        %v1622 = vpop.f32.mrf.mxu0
        %v1623 = vadd.f32 0.0, %v1622
        %v1624 = vpop.f32.mrf.mxu0
        %1625 = vmatprep.mubr.f32.mxu0 0.0
        %1626 = vmatmul.mubr.f32.gmra.mxu0 %v1420
        %v1627 = vpop.f32.mrf.mxu0
        %v1628 = vadd.f32 0.0, %v1627
        %v1629 = vpop.f32.mrf.mxu0
        %1630 = vmatprep.mubr.f32.mxu0 0.0
        %1631 = vmatmul.mubr.f32.gmra.mxu0 %v1423
        %v1632 = vpop.f32.mrf.mxu0
        %v1633 = vadd.f32 0.0, %v1632
        %v1634 = vpop.f32.mrf.mxu0
        %1635 = vmatprep.mubr.f32.mxu0 0.0
        %1636 = vmatmul.mubr.f32.gmra.mxu0 %v1426
        %v1637 = vpop.f32.mrf.mxu0
        %v1638 = vadd.f32 0.0, %v1637
        %v1639 = vpop.f32.mrf.mxu0
        %1640 = vmatprep.mubr.f32.mxu0 0.0
        %1641 = vmatmul.mubr.f32.gmra.mxu0 %v1429
        %v1642 = vpop.f32.mrf.mxu0
        %v1643 = vadd.f32 0.0, %v1642
        %v1644 = vpop.f32.mrf.mxu0
        %1645 = vmatprep.mubr.f32.mxu0 0.0
        %1646 = vmatmul.mubr.f32.gmra.mxu0 %v1432
        %v1647 = vpop.f32.mrf.mxu0
        %v1648 = vadd.f32 0.0, %v1647
        %v1649 = vpop.f32.mrf.mxu0
        %1650 = vmatprep.mubr.f32.mxu0 0.0
        %1651 = vmatmul.mubr.f32.gmra.mxu0 %v1435
        %v1652 = vpop.f32.mrf.mxu0
        %v1653 = vadd.f32 0.0, %v1652
        %v1654 = vpop.f32.mrf.mxu0
        %1655 = vmatprep.mubr.f32.mxu0 0.0
        %1656 = vmatmul.mubr.f32.gmra.mxu0 %v1438
        %v1657 = vpop.f32.mrf.mxu0
        %v1658 = vadd.f32 0.0, %v1657
        %v1659 = vpop.f32.mrf.mxu0
        %1660 = vmatprep.mubr.f32.mxu0 0.0
        %1661 = vmatmul.mubr.f32.gmra.mxu0 %v1441
        %v1662 = vpop.f32.mrf.mxu0
        %v1663 = vadd.f32 0.0, %v1662
        %v1664 = vpop.f32.mrf.mxu0
        %1665 = vmatprep.mubr.f32.mxu0 0.0
        %1666 = vmatmul.mubr.f32.gmra.mxu0 %v1444
        %v1667 = vpop.f32.mrf.mxu0
        %v1668 = vadd.f32 0.0, %v1667
        %v1669 = vpop.f32.mrf.mxu0
        %1670 = vdwg.mxu0
        %v1671 = vmul.f32 %v1513, %v1313
        %v1672 = vmul.f32 %v1518, %v1314
        %v1673 = vmul.f32 %v1523, %v1315
        %v1674 = vmul.f32 %v1528, %v1316
        %v1675 = vmul.f32 %v1533, %v1317
        %v1676 = vmul.f32 %v1538, %v1318
        %v1677 = vmul.f32 %v1543, %v1319
        %v1678 = vmul.f32 %v1548, %v1320
        %v1679 = vmul.f32 %v1553, %v1321
        %v1680 = vmul.f32 %v1558, %v1322
        %v1681 = vmul.f32 %v1563, %v1323
        %v1682 = vmul.f32 %v1568, %v1324
        %v1683 = vmul.f32 %v1573, %v1325
        %v1684 = vmul.f32 %v1578, %v1326
        %v1685 = vmul.f32 %v1583, %v1327
        %v1686 = vmul.f32 %v1588, %v1328
        %v1687 = vmul.f32 %v1593, %v1329
        %v1688 = vmul.f32 %v1598, %v1330
        %v1689 = vmul.f32 %v1603, %v1331
        %v1690 = vmul.f32 %v1608, %v1332
        %v1691 = vmul.f32 %v1613, %v1333
        %v1692 = vmul.f32 %v1618, %v1334
        %v1693 = vmul.f32 %v1623, %v1335
        %v1694 = vmul.f32 %v1628, %v1336
        %v1695 = vmul.f32 %v1633, %v1337
        %v1696 = vmul.f32 %v1638, %v1338
        %v1697 = vmul.f32 %v1643, %v1339
        %v1698 = vmul.f32 %v1648, %v1340
        %v1699 = vmul.f32 %v1653, %v1341
        %v1700 = vmul.f32 %v1658, %v1342
        %v1701 = vmul.f32 %v1663, %v1343
        %v1702 = vmul.f32 %v1668, %v1344
        %v1703 = vsel %vm1349, %v1671, 0.0
        %1704 = vadd.xlane.f32.xlu0 %v1703
        %v1705 = vpop.xlane.xlu0 %1704
        %v1706 = vsel %vm1349, %v1672, 0.0
        %1707 = vadd.xlane.f32.xlu0 %v1706
        %v1708 = vpop.xlane.xlu0 %1707
        %v1709 = vsel %vm1349, %v1673, 0.0
        %1710 = vadd.xlane.f32.xlu0 %v1709
        %v1711 = vpop.xlane.xlu0 %1710
        %v1712 = vsel %vm1349, %v1674, 0.0
        %1713 = vadd.xlane.f32.xlu0 %v1712
        %v1714 = vpop.xlane.xlu0 %1713
        %v1715 = vsel %vm1349, %v1675, 0.0
        %1716 = vadd.xlane.f32.xlu0 %v1715
        %v1717 = vpop.xlane.xlu0 %1716
        %v1718 = vsel %vm1349, %v1676, 0.0
        %1719 = vadd.xlane.f32.xlu0 %v1718
        %v1720 = vpop.xlane.xlu0 %1719
        %v1721 = vsel %vm1349, %v1677, 0.0
        %1722 = vadd.xlane.f32.xlu0 %v1721
        %v1723 = vpop.xlane.xlu0 %1722
        %v1724 = vsel %vm1349, %v1678, 0.0
        %1725 = vadd.xlane.f32.xlu0 %v1724
        %v1726 = vpop.xlane.xlu0 %1725
        %v1727 = vsel %vm1349, %v1679, 0.0
        %1728 = vadd.xlane.f32.xlu0 %v1727
        %v1729 = vpop.xlane.xlu0 %1728
        %v1730 = vsel %vm1349, %v1680, 0.0
        %1731 = vadd.xlane.f32.xlu0 %v1730
        %v1732 = vpop.xlane.xlu0 %1731
        %v1733 = vsel %vm1349, %v1681, 0.0
        %1734 = vadd.xlane.f32.xlu0 %v1733
        %v1735 = vpop.xlane.xlu0 %1734
        %v1736 = vsel %vm1349, %v1682, 0.0
        %1737 = vadd.xlane.f32.xlu0 %v1736
        %v1738 = vpop.xlane.xlu0 %1737
        %v1739 = vsel %vm1349, %v1683, 0.0
        %1740 = vadd.xlane.f32.xlu0 %v1739
        %v1741 = vpop.xlane.xlu0 %1740
        %v1742 = vsel %vm1349, %v1684, 0.0
        %1743 = vadd.xlane.f32.xlu0 %v1742
        %v1744 = vpop.xlane.xlu0 %1743
        %v1745 = vsel %vm1349, %v1685, 0.0
        %1746 = vadd.xlane.f32.xlu0 %v1745
        %v1747 = vpop.xlane.xlu0 %1746
        %v1748 = vsel %vm1349, %v1686, 0.0
        %1749 = vadd.xlane.f32.xlu0 %v1748
        %v1750 = vpop.xlane.xlu0 %1749
        %v1751 = vsel %vm1349, %v1687, 0.0
        %1752 = vadd.xlane.f32.xlu0 %v1751
        %v1753 = vpop.xlane.xlu0 %1752
        %v1754 = vsel %vm1349, %v1688, 0.0
        %1755 = vadd.xlane.f32.xlu0 %v1754
        %v1756 = vpop.xlane.xlu0 %1755
        %v1757 = vsel %vm1349, %v1689, 0.0
        %1758 = vadd.xlane.f32.xlu0 %v1757
        %v1759 = vpop.xlane.xlu0 %1758
        %v1760 = vsel %vm1349, %v1690, 0.0
        %1761 = vadd.xlane.f32.xlu0 %v1760
        %v1762 = vpop.xlane.xlu0 %1761
        %v1763 = vsel %vm1349, %v1691, 0.0
        %1764 = vadd.xlane.f32.xlu0 %v1763
        %v1765 = vpop.xlane.xlu0 %1764
        %v1766 = vsel %vm1349, %v1692, 0.0
        %1767 = vadd.xlane.f32.xlu0 %v1766
        %v1768 = vpop.xlane.xlu0 %1767
        %v1769 = vsel %vm1349, %v1693, 0.0
        %1770 = vadd.xlane.f32.xlu0 %v1769
        %v1771 = vpop.xlane.xlu0 %1770
        %v1772 = vsel %vm1349, %v1694, 0.0
        %1773 = vadd.xlane.f32.xlu0 %v1772
        %v1774 = vpop.xlane.xlu0 %1773
        %v1775 = vsel %vm1349, %v1695, 0.0
        %1776 = vadd.xlane.f32.xlu0 %v1775
        %v1777 = vpop.xlane.xlu0 %1776
        %v1778 = vsel %vm1349, %v1696, 0.0
        %1779 = vadd.xlane.f32.xlu0 %v1778
        %v1780 = vpop.xlane.xlu0 %1779
        %v1781 = vsel %vm1349, %v1697, 0.0
        %1782 = vadd.xlane.f32.xlu0 %v1781
        %v1783 = vpop.xlane.xlu0 %1782
        %v1784 = vsel %vm1349, %v1698, 0.0
        %1785 = vadd.xlane.f32.xlu0 %v1784
        %v1786 = vpop.xlane.xlu0 %1785
        %v1787 = vsel %vm1349, %v1699, 0.0
        %1788 = vadd.xlane.f32.xlu0 %v1787
        %v1789 = vpop.xlane.xlu0 %1788
        %v1790 = vsel %vm1349, %v1700, 0.0
        %1791 = vadd.xlane.f32.xlu0 %v1790
        %v1792 = vpop.xlane.xlu0 %1791
        %v1793 = vsel %vm1349, %v1701, 0.0
        %1794 = vadd.xlane.f32.xlu0 %v1793
        %v1795 = vpop.xlane.xlu0 %1794
        %v1796 = vsel %vm1349, %v1702, 0.0
        %1797 = vadd.xlane.f32.xlu0 %v1796
        %v1798 = vpop.xlane.xlu0 %1797
        %v1799 = vrsqrt.pop %v1705
        %v1800 = vrsqrt.pop %v1708
        %v1801 = vrsqrt.pop %v1711
        %v1802 = vrsqrt.pop %v1714
        %v1803 = vrsqrt.pop %v1717
        %v1804 = vrsqrt.pop %v1720
        %v1805 = vrsqrt.pop %v1723
        %v1806 = vrsqrt.pop %v1726
        %v1807 = vrsqrt.pop %v1729
        %v1808 = vrsqrt.pop %v1732
        %v1809 = vrsqrt.pop %v1735
        %v1810 = vrsqrt.pop %v1738
        %v1811 = vrsqrt.pop %v1741
        %v1812 = vrsqrt.pop %v1744
        %v1813 = vrsqrt.pop %v1747
        %v1814 = vrsqrt.pop %v1750
        %v1815 = vrsqrt.pop %v1753
        %v1816 = vrsqrt.pop %v1756
        %v1817 = vrsqrt.pop %v1759
        %v1818 = vrsqrt.pop %v1762
        %v1819 = vrsqrt.pop %v1765
        %v1820 = vrsqrt.pop %v1768
        %v1821 = vrsqrt.pop %v1771
        %v1822 = vrsqrt.pop %v1774
        %v1823 = vrsqrt.pop %v1777
        %v1824 = vrsqrt.pop %v1780
        %v1825 = vrsqrt.pop %v1783
        %v1826 = vrsqrt.pop %v1786
        %v1827 = vrsqrt.pop %v1789
        %v1828 = vrsqrt.pop %v1792
        %v1829 = vrsqrt.pop %v1795
        %v1830 = vrsqrt.pop %v1798
        %vm1831 = vcmask 7168
        %1832 = vst.msk [vmem:[%s1310] sm:$0xff] %vm1831, %v1799
        %1833 = vst.msk [vmem:[%s1310 + $0x8] sm:$0xff] %vm1831, %v1800
        %1834 = vst.msk [vmem:[%s1310 + $0x10] sm:$0xff] %vm1831, %v1801
        %1835 = vst.msk [vmem:[%s1310 + $0x18] sm:$0xff] %vm1831, %v1802
        %1836 = vst.msk [vmem:[%s1310 + $0x20] sm:$0xff] %vm1831, %v1803
        %1837 = vst.msk [vmem:[%s1310 + $0x28] sm:$0xff] %vm1831, %v1804
        %1838 = vst.msk [vmem:[%s1310 + $0x30] sm:$0xff] %vm1831, %v1805
        %1839 = vst.msk [vmem:[%s1310 + $0x38] sm:$0xff] %vm1831, %v1806
        %1840 = vst.msk [vmem:[%s1310 + $0x40] sm:$0xff] %vm1831, %v1807
        %1841 = vst.msk [vmem:[%s1310 + $0x48] sm:$0xff] %vm1831, %v1808
        %1842 = vst.msk [vmem:[%s1310 + $0x50] sm:$0xff] %vm1831, %v1809
        %1843 = vst.msk [vmem:[%s1310 + $0x58] sm:$0xff] %vm1831, %v1810
        %1844 = vst.msk [vmem:[%s1310 + $0x60] sm:$0xff] %vm1831, %v1811
        %1845 = vst.msk [vmem:[%s1310 + $0x68] sm:$0xff] %vm1831, %v1812
        %1846 = vst.msk [vmem:[%s1310 + $0x70] sm:$0xff] %vm1831, %v1813
        %1847 = vst.msk [vmem:[%s1310 + $0x78] sm:$0xff] %vm1831, %v1814
        %1848 = vst.msk [vmem:[%s1310 + $0x80] sm:$0xff] %vm1831, %v1815
        %1849 = vst.msk [vmem:[%s1310 + $0x88] sm:$0xff] %vm1831, %v1816
        %1850 = vst.msk [vmem:[%s1310 + $0x90] sm:$0xff] %vm1831, %v1817
        %1851 = vst.msk [vmem:[%s1310 + $0x98] sm:$0xff] %vm1831, %v1818
        %1852 = vst.msk [vmem:[%s1310 + $0xa0] sm:$0xff] %vm1831, %v1819
        %1853 = vst.msk [vmem:[%s1310 + $0xa8] sm:$0xff] %vm1831, %v1820
        %1854 = vst.msk [vmem:[%s1310 + $0xb0] sm:$0xff] %vm1831, %v1821
        %1855 = vst.msk [vmem:[%s1310 + $0xb8] sm:$0xff] %vm1831, %v1822
        %1856 = vst.msk [vmem:[%s1310 + $0xc0] sm:$0xff] %vm1831, %v1823
        %1857 = vst.msk [vmem:[%s1310 + $0xc8] sm:$0xff] %vm1831, %v1824
        %1858 = vst.msk [vmem:[%s1310 + $0xd0] sm:$0xff] %vm1831, %v1825
        %1859 = vst.msk [vmem:[%s1310 + $0xd8] sm:$0xff] %vm1831, %v1826
        %1860 = vst.msk [vmem:[%s1310 + $0xe0] sm:$0xff] %vm1831, %v1827
        %1861 = vst.msk [vmem:[%s1310 + $0xe8] sm:$0xff] %vm1831, %v1828
        %1862 = vst.msk [vmem:[%s1310 + $0xf0] sm:$0xff] %vm1831, %v1829
        %1863 = vst.msk [vmem:[%s1310 + $0xf8] sm:$0xff] %vm1831, %v1830
        %v1864 = vld [vmem:[%s1265] sm:$0xff]
        %v1865 = vld [vmem:[%s1265 + $0x8] sm:$0xff]
        %v1866 = vld [vmem:[%s1265 + $0x10] sm:$0xff]
        %v1867 = vld [vmem:[%s1265 + $0x18] sm:$0xff]
        %v1868 = vld [vmem:[%s1265 + $0x20] sm:$0xff]
        %v1869 = vld [vmem:[%s1265 + $0x28] sm:$0xff]
        %v1870 = vld [vmem:[%s1265 + $0x30] sm:$0xff]
        %v1871 = vld [vmem:[%s1265 + $0x38] sm:$0xff]
        %v1872 = vld [vmem:[%s1265 + $0x40] sm:$0xff]
        %v1873 = vld [vmem:[%s1265 + $0x48] sm:$0xff]
        %v1874 = vld [vmem:[%s1265 + $0x50] sm:$0xff]
        %v1875 = vld [vmem:[%s1265 + $0x58] sm:$0xff]
        %v1876 = vld [vmem:[%s1265 + $0x60] sm:$0xff]
        %v1877 = vld [vmem:[%s1265 + $0x68] sm:$0xff]
        %v1878 = vld [vmem:[%s1265 + $0x70] sm:$0xff]
        %v1879 = vld [vmem:[%s1265 + $0x78] sm:$0xff]
        %v1880 = vld [vmem:[%s1265 + $0x80] sm:$0xff]
        %v1881 = vld [vmem:[%s1265 + $0x88] sm:$0xff]
        %v1882 = vld [vmem:[%s1265 + $0x90] sm:$0xff]
        %v1883 = vld [vmem:[%s1265 + $0x98] sm:$0xff]
        %v1884 = vld [vmem:[%s1265 + $0xa0] sm:$0xff]
        %v1885 = vld [vmem:[%s1265 + $0xa8] sm:$0xff]
        %v1886 = vld [vmem:[%s1265 + $0xb0] sm:$0xff]
        %v1887 = vld [vmem:[%s1265 + $0xb8] sm:$0xff]
        %v1888 = vld [vmem:[%s1265 + $0xc0] sm:$0xff]
        %v1889 = vld [vmem:[%s1265 + $0xc8] sm:$0xff]
        %v1890 = vld [vmem:[%s1265 + $0xd0] sm:$0xff]
        %v1891 = vld [vmem:[%s1265 + $0xd8] sm:$0xff]
        %v1892 = vld [vmem:[%s1265 + $0xe0] sm:$0xff]
        %v1893 = vld [vmem:[%s1265 + $0xe8] sm:$0xff]
        %v1894 = vld [vmem:[%s1265 + $0xf0] sm:$0xff]
        %v1895 = vld [vmem:[%s1265 + $0xf8] sm:$0xff]
        %v1896 = vld [vmem:[%s1265 + $0x100] sm:$0xff]
        %v1897 = vld [vmem:[%s1265 + $0x108] sm:$0xff]
        %v1898 = vld [vmem:[%s1265 + $0x110] sm:$0xff]
        %v1899 = vld [vmem:[%s1265 + $0x118] sm:$0xff]
        %v1900 = vld [vmem:[%s1265 + $0x120] sm:$0xff]
        %v1901 = vld [vmem:[%s1265 + $0x128] sm:$0xff]
        %v1902 = vld [vmem:[%s1265 + $0x130] sm:$0xff]
        %v1903 = vld [vmem:[%s1265 + $0x138] sm:$0xff]
        %v1904 = vld [vmem:[%s1265 + $0x140] sm:$0xff]
        %v1905 = vld [vmem:[%s1265 + $0x148] sm:$0xff]
        %v1906 = vld [vmem:[%s1265 + $0x150] sm:$0xff]
        %v1907 = vld [vmem:[%s1265 + $0x158] sm:$0xff]
        %v1908 = vld [vmem:[%s1265 + $0x160] sm:$0xff]
        %v1909 = vld [vmem:[%s1265 + $0x168] sm:$0xff]
        %v1910 = vld [vmem:[%s1265 + $0x170] sm:$0xff]
        %v1911 = vld [vmem:[%s1265 + $0x178] sm:$0xff]
        %v1912 = vld [vmem:[%s1265 + $0x180] sm:$0xff]
        %v1913 = vld [vmem:[%s1265 + $0x188] sm:$0xff]
        %v1914 = vld [vmem:[%s1265 + $0x190] sm:$0xff]
        %v1915 = vld [vmem:[%s1265 + $0x198] sm:$0xff]
        %v1916 = vld [vmem:[%s1265 + $0x1a0] sm:$0xff]
        %v1917 = vld [vmem:[%s1265 + $0x1a8] sm:$0xff]
        %v1918 = vld [vmem:[%s1265 + $0x1b0] sm:$0xff]
        %v1919 = vld [vmem:[%s1265 + $0x1b8] sm:$0xff]
        %v1920 = vld [vmem:[%s1265 + $0x1c0] sm:$0xff]
        %v1921 = vld [vmem:[%s1265 + $0x1c8] sm:$0xff]
        %v1922 = vld [vmem:[%s1265 + $0x1d0] sm:$0xff]
        %v1923 = vld [vmem:[%s1265 + $0x1d8] sm:$0xff]
        %v1924 = vld [vmem:[%s1265 + $0x1e0] sm:$0xff]
        %v1925 = vld [vmem:[%s1265 + $0x1e8] sm:$0xff]
        %v1926 = vld [vmem:[%s1265 + $0x1f0] sm:$0xff]
        %v1927 = vld [vmem:[%s1265 + $0x1f8] sm:$0xff]
        %v1928 = vld [vmem:[%s1265 + $0x200] sm:$0xff]
        %v1929 = vld [vmem:[%s1265 + $0x208] sm:$0xff]
        %v1930 = vld [vmem:[%s1265 + $0x210] sm:$0xff]
        %v1931 = vld [vmem:[%s1265 + $0x218] sm:$0xff]
        %v1932 = vld [vmem:[%s1265 + $0x220] sm:$0xff]
        %v1933 = vld [vmem:[%s1265 + $0x228] sm:$0xff]
        %v1934 = vld [vmem:[%s1265 + $0x230] sm:$0xff]
        %v1935 = vld [vmem:[%s1265 + $0x238] sm:$0xff]
        %v1936 = vld [vmem:[%s1265 + $0x240] sm:$0xff]
        %v1937 = vld [vmem:[%s1265 + $0x248] sm:$0xff]
        %v1938 = vld [vmem:[%s1265 + $0x250] sm:$0xff]
        %v1939 = vld [vmem:[%s1265 + $0x258] sm:$0xff]
        %v1940 = vld [vmem:[%s1265 + $0x260] sm:$0xff]
        %v1941 = vld [vmem:[%s1265 + $0x268] sm:$0xff]
        %v1942 = vld [vmem:[%s1265 + $0x270] sm:$0xff]
        %v1943 = vld [vmem:[%s1265 + $0x278] sm:$0xff]
        %v1944 = vld [vmem:[%s1265 + $0x280] sm:$0xff]
        %v1945 = vld [vmem:[%s1265 + $0x288] sm:$0xff]
        %v1946 = vld [vmem:[%s1265 + $0x290] sm:$0xff]
        %v1947 = vld [vmem:[%s1265 + $0x298] sm:$0xff]
        %v1948 = vld [vmem:[%s1265 + $0x2a0] sm:$0xff]
        %v1949 = vld [vmem:[%s1265 + $0x2a8] sm:$0xff]
        %v1950 = vld [vmem:[%s1265 + $0x2b0] sm:$0xff]
        %v1951 = vld [vmem:[%s1265 + $0x2b8] sm:$0xff]
        %v1952 = vld [vmem:[%s1265 + $0x2c0] sm:$0xff]
        %v1953 = vld [vmem:[%s1265 + $0x2c8] sm:$0xff]
        %v1954 = vld [vmem:[%s1265 + $0x2d0] sm:$0xff]
        %v1955 = vld [vmem:[%s1265 + $0x2d8] sm:$0xff]
        %v1956 = vld [vmem:[%s1265 + $0x2e0] sm:$0xff]
        %v1957 = vld [vmem:[%s1265 + $0x2e8] sm:$0xff]
        %v1958 = vld [vmem:[%s1265 + $0x2f0] sm:$0xff]
        %v1959 = vld [vmem:[%s1265 + $0x2f8] sm:$0xff]
        %v1960 = vld [vmem:[%s1265 + $0x300] sm:$0xff]
        %v1961 = vld [vmem:[%s1265 + $0x308] sm:$0xff]
        %v1962 = vld [vmem:[%s1265 + $0x310] sm:$0xff]
        %v1963 = vld [vmem:[%s1265 + $0x318] sm:$0xff]
        %v1964 = vld [vmem:[%s1265 + $0x320] sm:$0xff]
        %v1965 = vld [vmem:[%s1265 + $0x328] sm:$0xff]
        %v1966 = vld [vmem:[%s1265 + $0x330] sm:$0xff]
        %v1967 = vld [vmem:[%s1265 + $0x338] sm:$0xff]
        %v1968 = vld [vmem:[%s1265 + $0x340] sm:$0xff]
        %v1969 = vld [vmem:[%s1265 + $0x348] sm:$0xff]
        %v1970 = vld [vmem:[%s1265 + $0x350] sm:$0xff]
        %v1971 = vld [vmem:[%s1265 + $0x358] sm:$0xff]
        %v1972 = vld [vmem:[%s1265 + $0x360] sm:$0xff]
        %v1973 = vld [vmem:[%s1265 + $0x368] sm:$0xff]
        %v1974 = vld [vmem:[%s1265 + $0x370] sm:$0xff]
        %v1975 = vld [vmem:[%s1265 + $0x378] sm:$0xff]
        %v1976 = vld [vmem:[%s1265 + $0x380] sm:$0xff]
        %v1977 = vld [vmem:[%s1265 + $0x388] sm:$0xff]
        %v1978 = vld [vmem:[%s1265 + $0x390] sm:$0xff]
        %v1979 = vld [vmem:[%s1265 + $0x398] sm:$0xff]
        %v1980 = vld [vmem:[%s1265 + $0x3a0] sm:$0xff]
        %v1981 = vld [vmem:[%s1265 + $0x3a8] sm:$0xff]
        %v1982 = vld [vmem:[%s1265 + $0x3b0] sm:$0xff]
        %v1983 = vld [vmem:[%s1265 + $0x3b8] sm:$0xff]
        %v1984 = vld [vmem:[%s1265 + $0x3c0] sm:$0xff]
        %v1985 = vld [vmem:[%s1265 + $0x3c8] sm:$0xff]
        %v1986 = vld [vmem:[%s1265 + $0x3d0] sm:$0xff]
        %v1987 = vld [vmem:[%s1265 + $0x3d8] sm:$0xff]
        %v1988 = vld [vmem:[%s1265 + $0x3e0] sm:$0xff]
        %v1989 = vld [vmem:[%s1265 + $0x3e8] sm:$0xff]
        %v1990 = vld [vmem:[%s1265 + $0x3f0] sm:$0xff]
        %v1991 = vld [vmem:[%s1265 + $0x3f8] sm:$0xff]
        %v1992 = vld [vmem:[%s1265 + $0x400] sm:$0xff]
        %v1993 = vld [vmem:[%s1265 + $0x408] sm:$0xff]
        %v1994 = vld [vmem:[%s1265 + $0x410] sm:$0xff]
        %v1995 = vld [vmem:[%s1265 + $0x418] sm:$0xff]
        %v1996 = vld [vmem:[%s1265 + $0x420] sm:$0xff]
        %v1997 = vld [vmem:[%s1265 + $0x428] sm:$0xff]
        %v1998 = vld [vmem:[%s1265 + $0x430] sm:$0xff]
        %v1999 = vld [vmem:[%s1265 + $0x438] sm:$0xff]
        %v2000 = vld [vmem:[%s1265 + $0x440] sm:$0xff]
        %v2001 = vld [vmem:[%s1265 + $0x448] sm:$0xff]
        %v2002 = vld [vmem:[%s1265 + $0x450] sm:$0xff]
        %v2003 = vld [vmem:[%s1265 + $0x458] sm:$0xff]
        %v2004 = vld [vmem:[%s1265 + $0x460] sm:$0xff]
        %v2005 = vld [vmem:[%s1265 + $0x468] sm:$0xff]
        %v2006 = vld [vmem:[%s1265 + $0x470] sm:$0xff]
        %v2007 = vld [vmem:[%s1265 + $0x478] sm:$0xff]
        %v2008 = vld [vmem:[%s1265 + $0x480] sm:$0xff]
        %v2009 = vld [vmem:[%s1265 + $0x488] sm:$0xff]
        %v2010 = vld [vmem:[%s1265 + $0x490] sm:$0xff]
        %v2011 = vld [vmem:[%s1265 + $0x498] sm:$0xff]
        %v2012 = vld [vmem:[%s1265 + $0x4a0] sm:$0xff]
        %v2013 = vld [vmem:[%s1265 + $0x4a8] sm:$0xff]
        %v2014 = vld [vmem:[%s1265 + $0x4b0] sm:$0xff]
        %v2015 = vld [vmem:[%s1265 + $0x4b8] sm:$0xff]
        %v2016 = vld [vmem:[%s1265 + $0x4c0] sm:$0xff]
        %v2017 = vld [vmem:[%s1265 + $0x4c8] sm:$0xff]
        %v2018 = vld [vmem:[%s1265 + $0x4d0] sm:$0xff]
        %v2019 = vld [vmem:[%s1265 + $0x4d8] sm:$0xff]
        %v2020 = vld [vmem:[%s1265 + $0x4e0] sm:$0xff]
        %v2021 = vld [vmem:[%s1265 + $0x4e8] sm:$0xff]
        %v2022 = vld [vmem:[%s1265 + $0x4f0] sm:$0xff]
        %v2023 = vld [vmem:[%s1265 + $0x4f8] sm:$0xff]
        %v2024 = vld [vmem:[%s1265 + $0x500] sm:$0xff]
        %v2025 = vld [vmem:[%s1265 + $0x508] sm:$0xff]
        %v2026 = vld [vmem:[%s1265 + $0x510] sm:$0xff]
        %v2027 = vld [vmem:[%s1265 + $0x518] sm:$0xff]
        %v2028 = vld [vmem:[%s1265 + $0x520] sm:$0xff]
        %v2029 = vld [vmem:[%s1265 + $0x528] sm:$0xff]
        %v2030 = vld [vmem:[%s1265 + $0x530] sm:$0xff]
        %v2031 = vld [vmem:[%s1265 + $0x538] sm:$0xff]
        %v2032 = vld [vmem:[%s1265 + $0x540] sm:$0xff]
        %v2033 = vld [vmem:[%s1265 + $0x548] sm:$0xff]
        %v2034 = vld [vmem:[%s1265 + $0x550] sm:$0xff]
        %v2035 = vld [vmem:[%s1265 + $0x558] sm:$0xff]
        %v2036 = vld [vmem:[%s1265 + $0x560] sm:$0xff]
        %v2037 = vld [vmem:[%s1265 + $0x568] sm:$0xff]
        %v2038 = vld [vmem:[%s1265 + $0x570] sm:$0xff]
        %v2039 = vld [vmem:[%s1265 + $0x578] sm:$0xff]
        %v2040 = vld [vmem:[%s1265 + $0x580] sm:$0xff]
        %v2041 = vld [vmem:[%s1265 + $0x588] sm:$0xff]
        %v2042 = vld [vmem:[%s1265 + $0x590] sm:$0xff]
        %v2043 = vld [vmem:[%s1265 + $0x598] sm:$0xff]
        %v2044 = vld [vmem:[%s1265 + $0x5a0] sm:$0xff]
        %v2045 = vld [vmem:[%s1265 + $0x5a8] sm:$0xff]
        %v2046 = vld [vmem:[%s1265 + $0x5b0] sm:$0xff]
        %v2047 = vld [vmem:[%s1265 + $0x5b8] sm:$0xff]
        %v2048 = vld [vmem:[%s1265 + $0x5c0] sm:$0xff]
        %v2049 = vld [vmem:[%s1265 + $0x5c8] sm:$0xff]
        %v2050 = vld [vmem:[%s1265 + $0x5d0] sm:$0xff]
        %v2051 = vld [vmem:[%s1265 + $0x5d8] sm:$0xff]
        %v2052 = vld [vmem:[%s1265 + $0x5e0] sm:$0xff]
        %v2053 = vld [vmem:[%s1265 + $0x5e8] sm:$0xff]
        %v2054 = vld [vmem:[%s1265 + $0x5f0] sm:$0xff]
        %v2055 = vld [vmem:[%s1265 + $0x5f8] sm:$0xff]
        %v2056 = vld [vmem:[%s1265 + $0x600] sm:$0xff]
        %v2057 = vld [vmem:[%s1265 + $0x608] sm:$0xff]
        %v2058 = vld [vmem:[%s1265 + $0x610] sm:$0xff]
        %v2059 = vld [vmem:[%s1265 + $0x618] sm:$0xff]
        %v2060 = vld [vmem:[%s1265 + $0x620] sm:$0xff]
        %v2061 = vld [vmem:[%s1265 + $0x628] sm:$0xff]
        %v2062 = vld [vmem:[%s1265 + $0x630] sm:$0xff]
        %v2063 = vld [vmem:[%s1265 + $0x638] sm:$0xff]
        %v2064 = vld [vmem:[%s1265 + $0x640] sm:$0xff]
        %v2065 = vld [vmem:[%s1265 + $0x648] sm:$0xff]
        %v2066 = vld [vmem:[%s1265 + $0x650] sm:$0xff]
        %v2067 = vld [vmem:[%s1265 + $0x658] sm:$0xff]
        %v2068 = vld [vmem:[%s1265 + $0x660] sm:$0xff]
        %v2069 = vld [vmem:[%s1265 + $0x668] sm:$0xff]
        %v2070 = vld [vmem:[%s1265 + $0x670] sm:$0xff]
        %v2071 = vld [vmem:[%s1265 + $0x678] sm:$0xff]
        %v2072 = vld [vmem:[%s1265 + $0x680] sm:$0xff]
        %v2073 = vld [vmem:[%s1265 + $0x688] sm:$0xff]
        %v2074 = vld [vmem:[%s1265 + $0x690] sm:$0xff]
        %v2075 = vld [vmem:[%s1265 + $0x698] sm:$0xff]
        %v2076 = vld [vmem:[%s1265 + $0x6a0] sm:$0xff]
        %v2077 = vld [vmem:[%s1265 + $0x6a8] sm:$0xff]
        %v2078 = vld [vmem:[%s1265 + $0x6b0] sm:$0xff]
        %v2079 = vld [vmem:[%s1265 + $0x6b8] sm:$0xff]
        %v2080 = vld [vmem:[%s1265 + $0x6c0] sm:$0xff]
        %v2081 = vld [vmem:[%s1265 + $0x6c8] sm:$0xff]
        %v2082 = vld [vmem:[%s1265 + $0x6d0] sm:$0xff]
        %v2083 = vld [vmem:[%s1265 + $0x6d8] sm:$0xff]
        %v2084 = vld [vmem:[%s1265 + $0x6e0] sm:$0xff]
        %v2085 = vld [vmem:[%s1265 + $0x6e8] sm:$0xff]
        %v2086 = vld [vmem:[%s1265 + $0x6f0] sm:$0xff]
        %v2087 = vld [vmem:[%s1265 + $0x6f8] sm:$0xff]
        %v2088 = vld [vmem:[%s1265 + $0x700] sm:$0xff]
        %v2089 = vld [vmem:[%s1265 + $0x708] sm:$0xff]
        %v2090 = vld [vmem:[%s1265 + $0x710] sm:$0xff]
        %v2091 = vld [vmem:[%s1265 + $0x718] sm:$0xff]
        %v2092 = vld [vmem:[%s1265 + $0x720] sm:$0xff]
        %v2093 = vld [vmem:[%s1265 + $0x728] sm:$0xff]
        %v2094 = vld [vmem:[%s1265 + $0x730] sm:$0xff]
        %v2095 = vld [vmem:[%s1265 + $0x738] sm:$0xff]
        %v2096 = vld [vmem:[%s1265 + $0x740] sm:$0xff]
        %v2097 = vld [vmem:[%s1265 + $0x748] sm:$0xff]
        %v2098 = vld [vmem:[%s1265 + $0x750] sm:$0xff]
        %v2099 = vld [vmem:[%s1265 + $0x758] sm:$0xff]
        %v2100 = vld [vmem:[%s1265 + $0x760] sm:$0xff]
        %v2101 = vld [vmem:[%s1265 + $0x768] sm:$0xff]
        %v2102 = vld [vmem:[%s1265 + $0x770] sm:$0xff]
        %v2103 = vld [vmem:[%s1265 + $0x778] sm:$0xff]
        %v2104 = vld [vmem:[%s1265 + $0x780] sm:$0xff]
        %v2105 = vld [vmem:[%s1265 + $0x788] sm:$0xff]
        %v2106 = vld [vmem:[%s1265 + $0x790] sm:$0xff]
        %v2107 = vld [vmem:[%s1265 + $0x798] sm:$0xff]
        %v2108 = vld [vmem:[%s1265 + $0x7a0] sm:$0xff]
        %v2109 = vld [vmem:[%s1265 + $0x7a8] sm:$0xff]
        %v2110 = vld [vmem:[%s1265 + $0x7b0] sm:$0xff]
        %v2111 = vld [vmem:[%s1265 + $0x7b8] sm:$0xff]
        %v2112 = vld [vmem:[%s1265 + $0x7c0] sm:$0xff]
        %v2113 = vld [vmem:[%s1265 + $0x7c8] sm:$0xff]
        %v2114 = vld [vmem:[%s1265 + $0x7d0] sm:$0xff]
        %v2115 = vld [vmem:[%s1265 + $0x7d8] sm:$0xff]
        %v2116 = vld [vmem:[%s1265 + $0x7e0] sm:$0xff]
        %v2117 = vld [vmem:[%s1265 + $0x7e8] sm:$0xff]
        %v2118 = vld [vmem:[%s1265 + $0x7f0] sm:$0xff]
        %v2119 = vld [vmem:[%s1265 + $0x7f8] sm:$0xff]
        %v2120 = vld [vmem:[%s3] sm:$0xff]
        %v2121 = vld [vmem:[%s3 + $0x8] sm:$0xff]
        %v2122 = vld [vmem:[%s3 + $0x10] sm:$0xff]
        %v2123 = vld [vmem:[%s3 + $0x18] sm:$0xff]
        %v2124 = vld [vmem:[%s3 + $0x20] sm:$0xff]
        %v2125 = vld [vmem:[%s3 + $0x28] sm:$0xff]
        %v2126 = vld [vmem:[%s3 + $0x30] sm:$0xff]
        %v2127 = vld [vmem:[%s3 + $0x38] sm:$0xff]
        %v2128 = vld [vmem:[%s3 + $0x40] sm:$0xff]
        %v2129 = vld [vmem:[%s3 + $0x48] sm:$0xff]
        %v2130 = vld [vmem:[%s3 + $0x50] sm:$0xff]
        %v2131 = vld [vmem:[%s3 + $0x58] sm:$0xff]
        %v2132 = vld [vmem:[%s3 + $0x60] sm:$0xff]
        %v2133 = vld [vmem:[%s3 + $0x68] sm:$0xff]
        %v2134 = vld [vmem:[%s3 + $0x70] sm:$0xff]
        %v2135 = vld [vmem:[%s3 + $0x78] sm:$0xff]
        %vm2136 = vcmask 130048
        %v2138 = vsel %vm2136, %v1864, 0
        %v2141 = vsel %vm2136, %v1865, 0
        %v2144 = vsel %vm2136, %v1866, 0
        %v2147 = vsel %vm2136, %v1867, 0
        %v2150 = vsel %vm2136, %v1868, 0
        %v2153 = vsel %vm2136, %v1869, 0
        %v2156 = vsel %vm2136, %v1870, 0
        %v2159 = vsel %vm2136, %v1871, 0
        %v2162 = vsel %vm2136, %v1872, 0
        %v2165 = vsel %vm2136, %v1873, 0
        %v2168 = vsel %vm2136, %v1874, 0
        %v2171 = vsel %vm2136, %v1875, 0
        %v2174 = vsel %vm2136, %v1876, 0
        %v2177 = vsel %vm2136, %v1877, 0
        %v2180 = vsel %vm2136, %v1878, 0
        %v2183 = vsel %vm2136, %v1879, 0
        %v2186 = vsel %vm2136, %v1880, 0
        %v2189 = vsel %vm2136, %v1881, 0
        %v2192 = vsel %vm2136, %v1882, 0
        %v2195 = vsel %vm2136, %v1883, 0
        %v2198 = vsel %vm2136, %v1884, 0
        %v2201 = vsel %vm2136, %v1885, 0
        %v2204 = vsel %vm2136, %v1886, 0
        %v2207 = vsel %vm2136, %v1887, 0
        %v2210 = vsel %vm2136, %v1888, 0
        %v2213 = vsel %vm2136, %v1889, 0
        %v2216 = vsel %vm2136, %v1890, 0
        %v2219 = vsel %vm2136, %v1891, 0
        %v2222 = vsel %vm2136, %v1892, 0
        %v2225 = vsel %vm2136, %v1893, 0
        %v2228 = vsel %vm2136, %v1894, 0
        %v2231 = vsel %vm2136, %v1895, 0
        %2233 = vmatprep.subr.mxu0 0.0
        %2234 = vmatpush1.msra.mxu0 0.0
        %2235 = vmatprep.subr.mxu0 0.0
        %2236 = vmatpush1.msra.mxu0 0.0
        %2237 = vmatprep.subr.mxu0 0.0
        %2238 = vmatpush1.msra.mxu0 0.0
        %2239 = vmatprep.subr.mxu0 0.0
        %2240 = vmatpush1.msra.mxu0 0.0
        %2241 = vmatprep.subr.mxu0 0.0
        %2242 = vmatpush1.msra.mxu0 0.0
        %2243 = vmatprep.subr.mxu0 0.0
        %2244 = vmatpush1.msra.mxu0 0.0
        %2245 = vmatprep.subr.mxu0 0.0
        %2246 = vmatpush1.msra.mxu0 0.0
        %2247 = vmatprep.subr.mxu0 0.0
        %2248 = vmatpush1.msra.mxu0 0.0
        %2249 = vmatprep.subr.mxu0 0.0
        %2250 = vmatpush1.msra.mxu0 0.0
        %2251 = vmatprep.subr.mxu0 0.0
        %2252 = vmatpush1.msra.mxu0 0.0
        %2253 = vmatprep.subr.mxu0 0.0
        %2254 = vmatpush1.msra.mxu0 0.0
        %2255 = vmatprep.subr.mxu0 0.0
        %2256 = vmatpush1.msra.mxu0 0.0
        %2257 = vmatprep.subr.mxu0 0.0
        %2258 = vmatpush1.msra.mxu0 0.0
        %2259 = vmatprep.subr.mxu0 0.0
        %2260 = vmatpush1.msra.mxu0 0.0
        %2261 = vmatprep.subr.mxu0 0.0
        %2262 = vmatpush1.msra.mxu0 %v2121
        %2263 = vmatprep.subr.mxu0 0.0
        %2264 = vmatpush1.msra.mxu0 %v2120
        %2265 = vmatprep.subr.mxu0 0.0
        %2266 = vmatpush2.msra.mxu0 0.0
        %2267 = vmatprep.subr.mxu0 0.0
        %2268 = vmatpush2.msra.mxu0 0.0
        %2269 = vmatprep.subr.mxu0 0.0
        %2270 = vmatpush2.msra.mxu0 0.0
        %2271 = vmatprep.subr.mxu0 0.0
        %2272 = vmatpush2.msra.mxu0 0.0
        %2273 = vmatprep.subr.mxu0 0.0
        %2274 = vmatpush2.msra.mxu0 0.0
        %2275 = vmatprep.subr.mxu0 0.0
        %2276 = vmatpush2.msra.mxu0 0.0
        %2277 = vmatprep.subr.mxu0 0.0
        %2278 = vmatpush2.msra.mxu0 0.0
        %2279 = vmatprep.subr.mxu0 0.0
        %2280 = vmatpush2.msra.mxu0 0.0
        %2281 = vmatprep.subr.mxu0 0.0
        %2282 = vmatpush2.msra.mxu0 0.0
        %2283 = vmatprep.subr.mxu0 0.0
        %2284 = vmatpush2.msra.mxu0 0.0
        %2285 = vmatprep.subr.mxu0 0.0
        %2286 = vmatpush2.msra.mxu0 0.0
        %2287 = vmatprep.subr.mxu0 0.0
        %2288 = vmatpush2.msra.mxu0 0.0
        %2289 = vmatprep.subr.mxu0 0.0
        %2290 = vmatpush2.msra.mxu0 0.0
        %2291 = vmatprep.subr.mxu0 0.0
        %2292 = vmatpush2.msra.mxu0 0.0
        %2293 = vmatprep.subr.mxu0 0.0
        %2294 = vmatpush2.msra.mxu0 0.0
        %2295 = vmatprep.subr.mxu0 0.0
        %2296 = vmatpush2.msra.mxu0 0.0
        %2297 = vmatprep.mubr.f32.mxu0 0.0
        %2298 = vmatmul.mubr.f32.gmra.mxu0 %v2138
        %v2299 = vpop.f32.mrf.mxu0
        %v2300 = vadd.f32 0.0, %v2299
        %v2301 = vpop.f32.mrf.mxu0
        %2302 = vmatprep.mubr.f32.mxu0 0.0
        %2303 = vmatmul.mubr.f32.gmra.mxu0 %v2141
        %v2304 = vpop.f32.mrf.mxu0
        %v2305 = vadd.f32 0.0, %v2304
        %v2306 = vpop.f32.mrf.mxu0
        %2307 = vmatprep.mubr.f32.mxu0 0.0
        %2308 = vmatmul.mubr.f32.gmra.mxu0 %v2144
        %v2309 = vpop.f32.mrf.mxu0
        %v2310 = vadd.f32 0.0, %v2309
        %v2311 = vpop.f32.mrf.mxu0
        %2312 = vmatprep.mubr.f32.mxu0 0.0
        %2313 = vmatmul.mubr.f32.gmra.mxu0 %v2147
        %v2314 = vpop.f32.mrf.mxu0
        %v2315 = vadd.f32 0.0, %v2314
        %v2316 = vpop.f32.mrf.mxu0
        %2317 = vmatprep.mubr.f32.mxu0 0.0
        %2318 = vmatmul.mubr.f32.gmra.mxu0 %v2150
        %v2319 = vpop.f32.mrf.mxu0
        %v2320 = vadd.f32 0.0, %v2319
        %v2321 = vpop.f32.mrf.mxu0
        %2322 = vmatprep.mubr.f32.mxu0 0.0
        %2323 = vmatmul.mubr.f32.gmra.mxu0 %v2153
        %v2324 = vpop.f32.mrf.mxu0
        %v2325 = vadd.f32 0.0, %v2324
        %v2326 = vpop.f32.mrf.mxu0
        %2327 = vmatprep.mubr.f32.mxu0 0.0
        %2328 = vmatmul.mubr.f32.gmra.mxu0 %v2156
        %v2329 = vpop.f32.mrf.mxu0
        %v2330 = vadd.f32 0.0, %v2329
        %v2331 = vpop.f32.mrf.mxu0
        %2332 = vmatprep.mubr.f32.mxu0 0.0
        %2333 = vmatmul.mubr.f32.gmra.mxu0 %v2159
        %v2334 = vpop.f32.mrf.mxu0
        %v2335 = vadd.f32 0.0, %v2334
        %v2336 = vpop.f32.mrf.mxu0
        %2337 = vmatprep.mubr.f32.mxu0 0.0
        %2338 = vmatmul.mubr.f32.gmra.mxu0 %v2162
        %v2339 = vpop.f32.mrf.mxu0
        %v2340 = vadd.f32 0.0, %v2339
        %v2341 = vpop.f32.mrf.mxu0
        %2342 = vmatprep.mubr.f32.mxu0 0.0
        %2343 = vmatmul.mubr.f32.gmra.mxu0 %v2165
        %v2344 = vpop.f32.mrf.mxu0
        %v2345 = vadd.f32 0.0, %v2344
        %v2346 = vpop.f32.mrf.mxu0
        %2347 = vmatprep.mubr.f32.mxu0 0.0
        %2348 = vmatmul.mubr.f32.gmra.mxu0 %v2168
        %v2349 = vpop.f32.mrf.mxu0
        %v2350 = vadd.f32 0.0, %v2349
        %v2351 = vpop.f32.mrf.mxu0
        %2352 = vmatprep.mubr.f32.mxu0 0.0
        %2353 = vmatmul.mubr.f32.gmra.mxu0 %v2171
        %v2354 = vpop.f32.mrf.mxu0
        %v2355 = vadd.f32 0.0, %v2354
        %v2356 = vpop.f32.mrf.mxu0
        %2357 = vmatprep.mubr.f32.mxu0 0.0
        %2358 = vmatmul.mubr.f32.gmra.mxu0 %v2174
        %v2359 = vpop.f32.mrf.mxu0
        %v2360 = vadd.f32 0.0, %v2359
        %v2361 = vpop.f32.mrf.mxu0
        %2362 = vmatprep.mubr.f32.mxu0 0.0
        %2363 = vmatmul.mubr.f32.gmra.mxu0 %v2177
        %v2364 = vpop.f32.mrf.mxu0
        %v2365 = vadd.f32 0.0, %v2364
        %v2366 = vpop.f32.mrf.mxu0
        %2367 = vmatprep.mubr.f32.mxu0 0.0
        %2368 = vmatmul.mubr.f32.gmra.mxu0 %v2180
        %v2369 = vpop.f32.mrf.mxu0
        %v2370 = vadd.f32 0.0, %v2369
        %v2371 = vpop.f32.mrf.mxu0
        %2372 = vmatprep.mubr.f32.mxu0 0.0
        %2373 = vmatmul.mubr.f32.gmra.mxu0 %v2183
        %v2374 = vpop.f32.mrf.mxu0
        %v2375 = vadd.f32 0.0, %v2374
        %v2376 = vpop.f32.mrf.mxu0
        %2377 = vmatprep.mubr.f32.mxu0 0.0
        %2378 = vmatmul.mubr.f32.gmra.mxu0 %v2186
        %v2379 = vpop.f32.mrf.mxu0
        %v2380 = vadd.f32 0.0, %v2379
        %v2381 = vpop.f32.mrf.mxu0
        %2382 = vmatprep.mubr.f32.mxu0 0.0
        %2383 = vmatmul.mubr.f32.gmra.mxu0 %v2189
        %v2384 = vpop.f32.mrf.mxu0
        %v2385 = vadd.f32 0.0, %v2384
        %v2386 = vpop.f32.mrf.mxu0
        %2387 = vmatprep.mubr.f32.mxu0 0.0
        %2388 = vmatmul.mubr.f32.gmra.mxu0 %v2192
        %v2389 = vpop.f32.mrf.mxu0
        %v2390 = vadd.f32 0.0, %v2389
        %v2391 = vpop.f32.mrf.mxu0
        %2392 = vmatprep.mubr.f32.mxu0 0.0
        %2393 = vmatmul.mubr.f32.gmra.mxu0 %v2195
        %v2394 = vpop.f32.mrf.mxu0
        %v2395 = vadd.f32 0.0, %v2394
        %v2396 = vpop.f32.mrf.mxu0
        %2397 = vmatprep.mubr.f32.mxu0 0.0
        %2398 = vmatmul.mubr.f32.gmra.mxu0 %v2198
        %v2399 = vpop.f32.mrf.mxu0
        %v2400 = vadd.f32 0.0, %v2399
        %v2401 = vpop.f32.mrf.mxu0
        %2402 = vmatprep.mubr.f32.mxu0 0.0
        %2403 = vmatmul.mubr.f32.gmra.mxu0 %v2201
        %v2404 = vpop.f32.mrf.mxu0
        %v2405 = vadd.f32 0.0, %v2404
        %v2406 = vpop.f32.mrf.mxu0
        %2407 = vmatprep.mubr.f32.mxu0 0.0
        %2408 = vmatmul.mubr.f32.gmra.mxu0 %v2204
        %v2409 = vpop.f32.mrf.mxu0
        %v2410 = vadd.f32 0.0, %v2409
        %v2411 = vpop.f32.mrf.mxu0
        %2412 = vmatprep.mubr.f32.mxu0 0.0
        %2413 = vmatmul.mubr.f32.gmra.mxu0 %v2207
        %v2414 = vpop.f32.mrf.mxu0
        %v2415 = vadd.f32 0.0, %v2414
        %v2416 = vpop.f32.mrf.mxu0
        %2417 = vmatprep.mubr.f32.mxu0 0.0
        %2418 = vmatmul.mubr.f32.gmra.mxu0 %v2210
        %v2419 = vpop.f32.mrf.mxu0
        %v2420 = vadd.f32 0.0, %v2419
        %v2421 = vpop.f32.mrf.mxu0
        %2422 = vmatprep.mubr.f32.mxu0 0.0
        %2423 = vmatmul.mubr.f32.gmra.mxu0 %v2213
        %v2424 = vpop.f32.mrf.mxu0
        %v2425 = vadd.f32 0.0, %v2424
        %v2426 = vpop.f32.mrf.mxu0
        %2427 = vmatprep.mubr.f32.mxu0 0.0
        %2428 = vmatmul.mubr.f32.gmra.mxu0 %v2216
        %v2429 = vpop.f32.mrf.mxu0
        %v2430 = vadd.f32 0.0, %v2429
        %v2431 = vpop.f32.mrf.mxu0
        %2432 = vmatprep.mubr.f32.mxu0 0.0
        %2433 = vmatmul.mubr.f32.gmra.mxu0 %v2219
        %v2434 = vpop.f32.mrf.mxu0
        %v2435 = vadd.f32 0.0, %v2434
        %v2436 = vpop.f32.mrf.mxu0
        %2437 = vmatprep.mubr.f32.mxu0 0.0
        %2438 = vmatmul.mubr.f32.gmra.mxu0 %v2222
        %v2439 = vpop.f32.mrf.mxu0
        %v2440 = vadd.f32 0.0, %v2439
        %v2441 = vpop.f32.mrf.mxu0
        %2442 = vmatprep.mubr.f32.mxu0 0.0
        %2443 = vmatmul.mubr.f32.gmra.mxu0 %v2225
        %v2444 = vpop.f32.mrf.mxu0
        %v2445 = vadd.f32 0.0, %v2444
        %v2446 = vpop.f32.mrf.mxu0
        %2447 = vmatprep.mubr.f32.mxu0 0.0
        %2448 = vmatmul.mubr.f32.gmra.mxu0 %v2228
        %v2449 = vpop.f32.mrf.mxu0
        %v2450 = vadd.f32 0.0, %v2449
        %v2451 = vpop.f32.mrf.mxu0
        %2452 = vmatprep.mubr.f32.mxu0 0.0
        %2453 = vmatmul.mubr.f32.gmra.mxu0 %v2231
        %v2454 = vpop.f32.mrf.mxu0
        %v2455 = vadd.f32 0.0, %v2454
        %v2456 = vpop.f32.mrf.mxu0
        %2457 = vdwg.mxu0
        %v2459 = vsel %vm2136, %v1896, 0
        %v2462 = vsel %vm2136, %v1897, 0
        %v2465 = vsel %vm2136, %v1898, 0
        %v2468 = vsel %vm2136, %v1899, 0
        %v2471 = vsel %vm2136, %v1900, 0
        %v2474 = vsel %vm2136, %v1901, 0
        %v2477 = vsel %vm2136, %v1902, 0
        %v2480 = vsel %vm2136, %v1903, 0
        %v2483 = vsel %vm2136, %v1904, 0
        %v2486 = vsel %vm2136, %v1905, 0
        %v2489 = vsel %vm2136, %v1906, 0
        %v2492 = vsel %vm2136, %v1907, 0
        %v2495 = vsel %vm2136, %v1908, 0
        %v2498 = vsel %vm2136, %v1909, 0
        %v2501 = vsel %vm2136, %v1910, 0
        %v2504 = vsel %vm2136, %v1911, 0
        %v2507 = vsel %vm2136, %v1912, 0
        %v2510 = vsel %vm2136, %v1913, 0
        %v2513 = vsel %vm2136, %v1914, 0
        %v2516 = vsel %vm2136, %v1915, 0
        %v2519 = vsel %vm2136, %v1916, 0
        %v2522 = vsel %vm2136, %v1917, 0
        %v2525 = vsel %vm2136, %v1918, 0
        %v2528 = vsel %vm2136, %v1919, 0
        %v2531 = vsel %vm2136, %v1920, 0
        %v2534 = vsel %vm2136, %v1921, 0
        %v2537 = vsel %vm2136, %v1922, 0
        %v2540 = vsel %vm2136, %v1923, 0
        %v2543 = vsel %vm2136, %v1924, 0
        %v2546 = vsel %vm2136, %v1925, 0
        %v2549 = vsel %vm2136, %v1926, 0
        %v2552 = vsel %vm2136, %v1927, 0
        %2554 = vmatprep.subr.mxu0 0.0
        %2555 = vmatpush1.msra.mxu0 0.0
        %2556 = vmatprep.subr.mxu0 0.0
        %2557 = vmatpush1.msra.mxu0 0.0
        %2558 = vmatprep.subr.mxu0 0.0
        %2559 = vmatpush1.msra.mxu0 0.0
        %2560 = vmatprep.subr.mxu0 0.0
        %2561 = vmatpush1.msra.mxu0 0.0
        %2562 = vmatprep.subr.mxu0 0.0
        %2563 = vmatpush1.msra.mxu0 0.0
        %2564 = vmatprep.subr.mxu0 0.0
        %2565 = vmatpush1.msra.mxu0 0.0
        %2566 = vmatprep.subr.mxu0 0.0
        %2567 = vmatpush1.msra.mxu0 0.0
        %2568 = vmatprep.subr.mxu0 0.0
        %2569 = vmatpush1.msra.mxu0 0.0
        %2570 = vmatprep.subr.mxu0 0.0
        %2571 = vmatpush1.msra.mxu0 0.0
        %2572 = vmatprep.subr.mxu0 0.0
        %2573 = vmatpush1.msra.mxu0 0.0
        %2574 = vmatprep.subr.mxu0 0.0
        %2575 = vmatpush1.msra.mxu0 0.0
        %2576 = vmatprep.subr.mxu0 0.0
        %2577 = vmatpush1.msra.mxu0 0.0
        %2578 = vmatprep.subr.mxu0 0.0
        %2579 = vmatpush1.msra.mxu0 0.0
        %2580 = vmatprep.subr.mxu0 0.0
        %2581 = vmatpush1.msra.mxu0 0.0
        %2582 = vmatprep.subr.mxu0 0.0
        %2583 = vmatpush1.msra.mxu0 %v2123
        %2584 = vmatprep.subr.mxu0 0.0
        %2585 = vmatpush1.msra.mxu0 %v2122
        %2586 = vmatprep.subr.mxu0 0.0
        %2587 = vmatpush2.msra.mxu0 0.0
        %2588 = vmatprep.subr.mxu0 0.0
        %2589 = vmatpush2.msra.mxu0 0.0
        %2590 = vmatprep.subr.mxu0 0.0
        %2591 = vmatpush2.msra.mxu0 0.0
        %2592 = vmatprep.subr.mxu0 0.0
        %2593 = vmatpush2.msra.mxu0 0.0
        %2594 = vmatprep.subr.mxu0 0.0
        %2595 = vmatpush2.msra.mxu0 0.0
        %2596 = vmatprep.subr.mxu0 0.0
        %2597 = vmatpush2.msra.mxu0 0.0
        %2598 = vmatprep.subr.mxu0 0.0
        %2599 = vmatpush2.msra.mxu0 0.0
        %2600 = vmatprep.subr.mxu0 0.0
        %2601 = vmatpush2.msra.mxu0 0.0
        %2602 = vmatprep.subr.mxu0 0.0
        %2603 = vmatpush2.msra.mxu0 0.0
        %2604 = vmatprep.subr.mxu0 0.0
        %2605 = vmatpush2.msra.mxu0 0.0
        %2606 = vmatprep.subr.mxu0 0.0
        %2607 = vmatpush2.msra.mxu0 0.0
        %2608 = vmatprep.subr.mxu0 0.0
        %2609 = vmatpush2.msra.mxu0 0.0
        %2610 = vmatprep.subr.mxu0 0.0
        %2611 = vmatpush2.msra.mxu0 0.0
        %2612 = vmatprep.subr.mxu0 0.0
        %2613 = vmatpush2.msra.mxu0 0.0
        %2614 = vmatprep.subr.mxu0 0.0
        %2615 = vmatpush2.msra.mxu0 0.0
        %2616 = vmatprep.subr.mxu0 0.0
        %2617 = vmatpush2.msra.mxu0 0.0
        %2618 = vmatprep.mubr.f32.mxu0 0.0
        %2619 = vmatmul.mubr.f32.gmra.mxu0 %v2459
        %v2620 = vpop.f32.mrf.mxu0
        %v2621 = vadd.f32 0.0, %v2620
        %v2622 = vpop.f32.mrf.mxu0
        %2623 = vmatprep.mubr.f32.mxu0 0.0
        %2624 = vmatmul.mubr.f32.gmra.mxu0 %v2462
        %v2625 = vpop.f32.mrf.mxu0
        %v2626 = vadd.f32 0.0, %v2625
        %v2627 = vpop.f32.mrf.mxu0
        %2628 = vmatprep.mubr.f32.mxu0 0.0
        %2629 = vmatmul.mubr.f32.gmra.mxu0 %v2465
        %v2630 = vpop.f32.mrf.mxu0
        %v2631 = vadd.f32 0.0, %v2630
        %v2632 = vpop.f32.mrf.mxu0
        %2633 = vmatprep.mubr.f32.mxu0 0.0
        %2634 = vmatmul.mubr.f32.gmra.mxu0 %v2468
        %v2635 = vpop.f32.mrf.mxu0
        %v2636 = vadd.f32 0.0, %v2635
        %v2637 = vpop.f32.mrf.mxu0
        %2638 = vmatprep.mubr.f32.mxu0 0.0
        %2639 = vmatmul.mubr.f32.gmra.mxu0 %v2471
        %v2640 = vpop.f32.mrf.mxu0
        %v2641 = vadd.f32 0.0, %v2640
        %v2642 = vpop.f32.mrf.mxu0
        %2643 = vmatprep.mubr.f32.mxu0 0.0
        %2644 = vmatmul.mubr.f32.gmra.mxu0 %v2474
        %v2645 = vpop.f32.mrf.mxu0
        %v2646 = vadd.f32 0.0, %v2645
        %v2647 = vpop.f32.mrf.mxu0
        %2648 = vmatprep.mubr.f32.mxu0 0.0
        %2649 = vmatmul.mubr.f32.gmra.mxu0 %v2477
        %v2650 = vpop.f32.mrf.mxu0
        %v2651 = vadd.f32 0.0, %v2650
        %v2652 = vpop.f32.mrf.mxu0
        %2653 = vmatprep.mubr.f32.mxu0 0.0
        %2654 = vmatmul.mubr.f32.gmra.mxu0 %v2480
        %v2655 = vpop.f32.mrf.mxu0
        %v2656 = vadd.f32 0.0, %v2655
        %v2657 = vpop.f32.mrf.mxu0
        %2658 = vmatprep.mubr.f32.mxu0 0.0
        %2659 = vmatmul.mubr.f32.gmra.mxu0 %v2483
        %v2660 = vpop.f32.mrf.mxu0
        %v2661 = vadd.f32 0.0, %v2660
        %v2662 = vpop.f32.mrf.mxu0
        %2663 = vmatprep.mubr.f32.mxu0 0.0
        %2664 = vmatmul.mubr.f32.gmra.mxu0 %v2486
        %v2665 = vpop.f32.mrf.mxu0
        %v2666 = vadd.f32 0.0, %v2665
        %v2667 = vpop.f32.mrf.mxu0
        %2668 = vmatprep.mubr.f32.mxu0 0.0
        %2669 = vmatmul.mubr.f32.gmra.mxu0 %v2489
        %v2670 = vpop.f32.mrf.mxu0
        %v2671 = vadd.f32 0.0, %v2670
        %v2672 = vpop.f32.mrf.mxu0
        %2673 = vmatprep.mubr.f32.mxu0 0.0
        %2674 = vmatmul.mubr.f32.gmra.mxu0 %v2492
        %v2675 = vpop.f32.mrf.mxu0
        %v2676 = vadd.f32 0.0, %v2675
        %v2677 = vpop.f32.mrf.mxu0
        %2678 = vmatprep.mubr.f32.mxu0 0.0
        %2679 = vmatmul.mubr.f32.gmra.mxu0 %v2495
        %v2680 = vpop.f32.mrf.mxu0
        %v2681 = vadd.f32 0.0, %v2680
        %v2682 = vpop.f32.mrf.mxu0
        %2683 = vmatprep.mubr.f32.mxu0 0.0
        %2684 = vmatmul.mubr.f32.gmra.mxu0 %v2498
        %v2685 = vpop.f32.mrf.mxu0
        %v2686 = vadd.f32 0.0, %v2685
        %v2687 = vpop.f32.mrf.mxu0
        %2688 = vmatprep.mubr.f32.mxu0 0.0
        %2689 = vmatmul.mubr.f32.gmra.mxu0 %v2501
        %v2690 = vpop.f32.mrf.mxu0
        %v2691 = vadd.f32 0.0, %v2690
        %v2692 = vpop.f32.mrf.mxu0
        %2693 = vmatprep.mubr.f32.mxu0 0.0
        %2694 = vmatmul.mubr.f32.gmra.mxu0 %v2504
        %v2695 = vpop.f32.mrf.mxu0
        %v2696 = vadd.f32 0.0, %v2695
        %v2697 = vpop.f32.mrf.mxu0
        %2698 = vmatprep.mubr.f32.mxu0 0.0
        %2699 = vmatmul.mubr.f32.gmra.mxu0 %v2507
        %v2700 = vpop.f32.mrf.mxu0
        %v2701 = vadd.f32 0.0, %v2700
        %v2702 = vpop.f32.mrf.mxu0
        %2703 = vmatprep.mubr.f32.mxu0 0.0
        %2704 = vmatmul.mubr.f32.gmra.mxu0 %v2510
        %v2705 = vpop.f32.mrf.mxu0
        %v2706 = vadd.f32 0.0, %v2705
        %v2707 = vpop.f32.mrf.mxu0
        %2708 = vmatprep.mubr.f32.mxu0 0.0
        %2709 = vmatmul.mubr.f32.gmra.mxu0 %v2513
        %v2710 = vpop.f32.mrf.mxu0
        %v2711 = vadd.f32 0.0, %v2710
        %v2712 = vpop.f32.mrf.mxu0
        %2713 = vmatprep.mubr.f32.mxu0 0.0
        %2714 = vmatmul.mubr.f32.gmra.mxu0 %v2516
        %v2715 = vpop.f32.mrf.mxu0
        %v2716 = vadd.f32 0.0, %v2715
        %v2717 = vpop.f32.mrf.mxu0
        %2718 = vmatprep.mubr.f32.mxu0 0.0
        %2719 = vmatmul.mubr.f32.gmra.mxu0 %v2519
        %v2720 = vpop.f32.mrf.mxu0
        %v2721 = vadd.f32 0.0, %v2720
        %v2722 = vpop.f32.mrf.mxu0
        %2723 = vmatprep.mubr.f32.mxu0 0.0
        %2724 = vmatmul.mubr.f32.gmra.mxu0 %v2522
        %v2725 = vpop.f32.mrf.mxu0
        %v2726 = vadd.f32 0.0, %v2725
        %v2727 = vpop.f32.mrf.mxu0
        %2728 = vmatprep.mubr.f32.mxu0 0.0
        %2729 = vmatmul.mubr.f32.gmra.mxu0 %v2525
        %v2730 = vpop.f32.mrf.mxu0
        %v2731 = vadd.f32 0.0, %v2730
        %v2732 = vpop.f32.mrf.mxu0
        %2733 = vmatprep.mubr.f32.mxu0 0.0
        %2734 = vmatmul.mubr.f32.gmra.mxu0 %v2528
        %v2735 = vpop.f32.mrf.mxu0
        %v2736 = vadd.f32 0.0, %v2735
        %v2737 = vpop.f32.mrf.mxu0
        %2738 = vmatprep.mubr.f32.mxu0 0.0
        %2739 = vmatmul.mubr.f32.gmra.mxu0 %v2531
        %v2740 = vpop.f32.mrf.mxu0
        %v2741 = vadd.f32 0.0, %v2740
        %v2742 = vpop.f32.mrf.mxu0
        %2743 = vmatprep.mubr.f32.mxu0 0.0
        %2744 = vmatmul.mubr.f32.gmra.mxu0 %v2534
        %v2745 = vpop.f32.mrf.mxu0
        %v2746 = vadd.f32 0.0, %v2745
        %v2747 = vpop.f32.mrf.mxu0
        %2748 = vmatprep.mubr.f32.mxu0 0.0
        %2749 = vmatmul.mubr.f32.gmra.mxu0 %v2537
        %v2750 = vpop.f32.mrf.mxu0
        %v2751 = vadd.f32 0.0, %v2750
        %v2752 = vpop.f32.mrf.mxu0
        %2753 = vmatprep.mubr.f32.mxu0 0.0
        %2754 = vmatmul.mubr.f32.gmra.mxu0 %v2540
        %v2755 = vpop.f32.mrf.mxu0
        %v2756 = vadd.f32 0.0, %v2755
        %v2757 = vpop.f32.mrf.mxu0
        %2758 = vmatprep.mubr.f32.mxu0 0.0
        %2759 = vmatmul.mubr.f32.gmra.mxu0 %v2543
        %v2760 = vpop.f32.mrf.mxu0
        %v2761 = vadd.f32 0.0, %v2760
        %v2762 = vpop.f32.mrf.mxu0
        %2763 = vmatprep.mubr.f32.mxu0 0.0
        %2764 = vmatmul.mubr.f32.gmra.mxu0 %v2546
        %v2765 = vpop.f32.mrf.mxu0
        %v2766 = vadd.f32 0.0, %v2765
        %v2767 = vpop.f32.mrf.mxu0
        %2768 = vmatprep.mubr.f32.mxu0 0.0
        %2769 = vmatmul.mubr.f32.gmra.mxu0 %v2549
        %v2770 = vpop.f32.mrf.mxu0
        %v2771 = vadd.f32 0.0, %v2770
        %v2772 = vpop.f32.mrf.mxu0
        %2773 = vmatprep.mubr.f32.mxu0 0.0
        %2774 = vmatmul.mubr.f32.gmra.mxu0 %v2552
        %v2775 = vpop.f32.mrf.mxu0
        %v2776 = vadd.f32 0.0, %v2775
        %v2777 = vpop.f32.mrf.mxu0
        %2778 = vdwg.mxu0
        %v2780 = vsel %vm2136, %v1928, 0
        %v2783 = vsel %vm2136, %v1929, 0
        %v2786 = vsel %vm2136, %v1930, 0
        %v2789 = vsel %vm2136, %v1931, 0
        %v2792 = vsel %vm2136, %v1932, 0
        %v2795 = vsel %vm2136, %v1933, 0
        %v2798 = vsel %vm2136, %v1934, 0
        %v2801 = vsel %vm2136, %v1935, 0
        %v2804 = vsel %vm2136, %v1936, 0
        %v2807 = vsel %vm2136, %v1937, 0
        %v2810 = vsel %vm2136, %v1938, 0
        %v2813 = vsel %vm2136, %v1939, 0
        %v2816 = vsel %vm2136, %v1940, 0
        %v2819 = vsel %vm2136, %v1941, 0
        %v2822 = vsel %vm2136, %v1942, 0
        %v2825 = vsel %vm2136, %v1943, 0
        %v2828 = vsel %vm2136, %v1944, 0
        %v2831 = vsel %vm2136, %v1945, 0
        %v2834 = vsel %vm2136, %v1946, 0
        %v2837 = vsel %vm2136, %v1947, 0
        %v2840 = vsel %vm2136, %v1948, 0
        %v2843 = vsel %vm2136, %v1949, 0
        %v2846 = vsel %vm2136, %v1950, 0
        %v2849 = vsel %vm2136, %v1951, 0
        %v2852 = vsel %vm2136, %v1952, 0
        %v2855 = vsel %vm2136, %v1953, 0
        %v2858 = vsel %vm2136, %v1954, 0
        %v2861 = vsel %vm2136, %v1955, 0
        %v2864 = vsel %vm2136, %v1956, 0
        %v2867 = vsel %vm2136, %v1957, 0
        %v2870 = vsel %vm2136, %v1958, 0
        %v2873 = vsel %vm2136, %v1959, 0
        %2875 = vmatprep.subr.mxu0 0.0
        %2876 = vmatpush1.msra.mxu0 0.0
        %2877 = vmatprep.subr.mxu0 0.0
        %2878 = vmatpush1.msra.mxu0 0.0
        %2879 = vmatprep.subr.mxu0 0.0
        %2880 = vmatpush1.msra.mxu0 0.0
        %2881 = vmatprep.subr.mxu0 0.0
        %2882 = vmatpush1.msra.mxu0 0.0
        %2883 = vmatprep.subr.mxu0 0.0
        %2884 = vmatpush1.msra.mxu0 0.0
        %2885 = vmatprep.subr.mxu0 0.0
        %2886 = vmatpush1.msra.mxu0 0.0
        %2887 = vmatprep.subr.mxu0 0.0
        %2888 = vmatpush1.msra.mxu0 0.0
        %2889 = vmatprep.subr.mxu0 0.0
        %2890 = vmatpush1.msra.mxu0 0.0
        %2891 = vmatprep.subr.mxu0 0.0
        %2892 = vmatpush1.msra.mxu0 0.0
        %2893 = vmatprep.subr.mxu0 0.0
        %2894 = vmatpush1.msra.mxu0 0.0
        %2895 = vmatprep.subr.mxu0 0.0
        %2896 = vmatpush1.msra.mxu0 0.0
        %2897 = vmatprep.subr.mxu0 0.0
        %2898 = vmatpush1.msra.mxu0 0.0
        %2899 = vmatprep.subr.mxu0 0.0
        %2900 = vmatpush1.msra.mxu0 0.0
        %2901 = vmatprep.subr.mxu0 0.0
        %2902 = vmatpush1.msra.mxu0 0.0
        %2903 = vmatprep.subr.mxu0 0.0
        %2904 = vmatpush1.msra.mxu0 %v2125
        %2905 = vmatprep.subr.mxu0 0.0
        %2906 = vmatpush1.msra.mxu0 %v2124
        %2907 = vmatprep.subr.mxu0 0.0
        %2908 = vmatpush2.msra.mxu0 0.0
        %2909 = vmatprep.subr.mxu0 0.0
        %2910 = vmatpush2.msra.mxu0 0.0
        %2911 = vmatprep.subr.mxu0 0.0
        %2912 = vmatpush2.msra.mxu0 0.0
        %2913 = vmatprep.subr.mxu0 0.0
        %2914 = vmatpush2.msra.mxu0 0.0
        %2915 = vmatprep.subr.mxu0 0.0
        %2916 = vmatpush2.msra.mxu0 0.0
        %2917 = vmatprep.subr.mxu0 0.0
        %2918 = vmatpush2.msra.mxu0 0.0
        %2919 = vmatprep.subr.mxu0 0.0
        %2920 = vmatpush2.msra.mxu0 0.0
        %2921 = vmatprep.subr.mxu0 0.0
        %2922 = vmatpush2.msra.mxu0 0.0
        %2923 = vmatprep.subr.mxu0 0.0
        %2924 = vmatpush2.msra.mxu0 0.0
        %2925 = vmatprep.subr.mxu0 0.0
        %2926 = vmatpush2.msra.mxu0 0.0
        %2927 = vmatprep.subr.mxu0 0.0
        %2928 = vmatpush2.msra.mxu0 0.0
        %2929 = vmatprep.subr.mxu0 0.0
        %2930 = vmatpush2.msra.mxu0 0.0
        %2931 = vmatprep.subr.mxu0 0.0
        %2932 = vmatpush2.msra.mxu0 0.0
        %2933 = vmatprep.subr.mxu0 0.0
        %2934 = vmatpush2.msra.mxu0 0.0
        %2935 = vmatprep.subr.mxu0 0.0
        %2936 = vmatpush2.msra.mxu0 0.0
        %2937 = vmatprep.subr.mxu0 0.0
        %2938 = vmatpush2.msra.mxu0 0.0
        %2939 = vmatprep.mubr.f32.mxu0 0.0
        %2940 = vmatmul.mubr.f32.gmra.mxu0 %v2780
        %v2941 = vpop.f32.mrf.mxu0
        %v2942 = vadd.f32 0.0, %v2941
        %v2943 = vpop.f32.mrf.mxu0
        %2944 = vmatprep.mubr.f32.mxu0 0.0
        %2945 = vmatmul.mubr.f32.gmra.mxu0 %v2783
        %v2946 = vpop.f32.mrf.mxu0
        %v2947 = vadd.f32 0.0, %v2946
        %v2948 = vpop.f32.mrf.mxu0
        %2949 = vmatprep.mubr.f32.mxu0 0.0
        %2950 = vmatmul.mubr.f32.gmra.mxu0 %v2786
        %v2951 = vpop.f32.mrf.mxu0
        %v2952 = vadd.f32 0.0, %v2951
        %v2953 = vpop.f32.mrf.mxu0
        %2954 = vmatprep.mubr.f32.mxu0 0.0
        %2955 = vmatmul.mubr.f32.gmra.mxu0 %v2789
        %v2956 = vpop.f32.mrf.mxu0
        %v2957 = vadd.f32 0.0, %v2956
        %v2958 = vpop.f32.mrf.mxu0
        %2959 = vmatprep.mubr.f32.mxu0 0.0
        %2960 = vmatmul.mubr.f32.gmra.mxu0 %v2792
        %v2961 = vpop.f32.mrf.mxu0
        %v2962 = vadd.f32 0.0, %v2961
        %v2963 = vpop.f32.mrf.mxu0
        %2964 = vmatprep.mubr.f32.mxu0 0.0
        %2965 = vmatmul.mubr.f32.gmra.mxu0 %v2795
        %v2966 = vpop.f32.mrf.mxu0
        %v2967 = vadd.f32 0.0, %v2966
        %v2968 = vpop.f32.mrf.mxu0
        %2969 = vmatprep.mubr.f32.mxu0 0.0
        %2970 = vmatmul.mubr.f32.gmra.mxu0 %v2798
        %v2971 = vpop.f32.mrf.mxu0
        %v2972 = vadd.f32 0.0, %v2971
        %v2973 = vpop.f32.mrf.mxu0
        %2974 = vmatprep.mubr.f32.mxu0 0.0
        %2975 = vmatmul.mubr.f32.gmra.mxu0 %v2801
        %v2976 = vpop.f32.mrf.mxu0
        %v2977 = vadd.f32 0.0, %v2976
        %v2978 = vpop.f32.mrf.mxu0
        %2979 = vmatprep.mubr.f32.mxu0 0.0
        %2980 = vmatmul.mubr.f32.gmra.mxu0 %v2804
        %v2981 = vpop.f32.mrf.mxu0
        %v2982 = vadd.f32 0.0, %v2981
        %v2983 = vpop.f32.mrf.mxu0
        %2984 = vmatprep.mubr.f32.mxu0 0.0
        %2985 = vmatmul.mubr.f32.gmra.mxu0 %v2807
        %v2986 = vpop.f32.mrf.mxu0
        %v2987 = vadd.f32 0.0, %v2986
        %v2988 = vpop.f32.mrf.mxu0
        %2989 = vmatprep.mubr.f32.mxu0 0.0
        %2990 = vmatmul.mubr.f32.gmra.mxu0 %v2810
        %v2991 = vpop.f32.mrf.mxu0
        %v2992 = vadd.f32 0.0, %v2991
        %v2993 = vpop.f32.mrf.mxu0
        %2994 = vmatprep.mubr.f32.mxu0 0.0
        %2995 = vmatmul.mubr.f32.gmra.mxu0 %v2813
        %v2996 = vpop.f32.mrf.mxu0
        %v2997 = vadd.f32 0.0, %v2996
        %v2998 = vpop.f32.mrf.mxu0
        %2999 = vmatprep.mubr.f32.mxu0 0.0
        %3000 = vmatmul.mubr.f32.gmra.mxu0 %v2816
        %v3001 = vpop.f32.mrf.mxu0
        %v3002 = vadd.f32 0.0, %v3001
        %v3003 = vpop.f32.mrf.mxu0
        %3004 = vmatprep.mubr.f32.mxu0 0.0
        %3005 = vmatmul.mubr.f32.gmra.mxu0 %v2819
        %v3006 = vpop.f32.mrf.mxu0
        %v3007 = vadd.f32 0.0, %v3006
        %v3008 = vpop.f32.mrf.mxu0
        %3009 = vmatprep.mubr.f32.mxu0 0.0
        %3010 = vmatmul.mubr.f32.gmra.mxu0 %v2822
        %v3011 = vpop.f32.mrf.mxu0
        %v3012 = vadd.f32 0.0, %v3011
        %v3013 = vpop.f32.mrf.mxu0
        %3014 = vmatprep.mubr.f32.mxu0 0.0
        %3015 = vmatmul.mubr.f32.gmra.mxu0 %v2825
        %v3016 = vpop.f32.mrf.mxu0
        %v3017 = vadd.f32 0.0, %v3016
        %v3018 = vpop.f32.mrf.mxu0
        %3019 = vmatprep.mubr.f32.mxu0 0.0
        %3020 = vmatmul.mubr.f32.gmra.mxu0 %v2828
        %v3021 = vpop.f32.mrf.mxu0
        %v3022 = vadd.f32 0.0, %v3021
        %v3023 = vpop.f32.mrf.mxu0
        %3024 = vmatprep.mubr.f32.mxu0 0.0
        %3025 = vmatmul.mubr.f32.gmra.mxu0 %v2831
        %v3026 = vpop.f32.mrf.mxu0
        %v3027 = vadd.f32 0.0, %v3026
        %v3028 = vpop.f32.mrf.mxu0
        %3029 = vmatprep.mubr.f32.mxu0 0.0
        %3030 = vmatmul.mubr.f32.gmra.mxu0 %v2834
        %v3031 = vpop.f32.mrf.mxu0
        %v3032 = vadd.f32 0.0, %v3031
        %v3033 = vpop.f32.mrf.mxu0
        %3034 = vmatprep.mubr.f32.mxu0 0.0
        %3035 = vmatmul.mubr.f32.gmra.mxu0 %v2837
        %v3036 = vpop.f32.mrf.mxu0
        %v3037 = vadd.f32 0.0, %v3036
        %v3038 = vpop.f32.mrf.mxu0
        %3039 = vmatprep.mubr.f32.mxu0 0.0
        %3040 = vmatmul.mubr.f32.gmra.mxu0 %v2840
        %v3041 = vpop.f32.mrf.mxu0
        %v3042 = vadd.f32 0.0, %v3041
        %v3043 = vpop.f32.mrf.mxu0
        %3044 = vmatprep.mubr.f32.mxu0 0.0
        %3045 = vmatmul.mubr.f32.gmra.mxu0 %v2843
        %v3046 = vpop.f32.mrf.mxu0
        %v3047 = vadd.f32 0.0, %v3046
        %v3048 = vpop.f32.mrf.mxu0
        %3049 = vmatprep.mubr.f32.mxu0 0.0
        %3050 = vmatmul.mubr.f32.gmra.mxu0 %v2846
        %v3051 = vpop.f32.mrf.mxu0
        %v3052 = vadd.f32 0.0, %v3051
        %v3053 = vpop.f32.mrf.mxu0
        %3054 = vmatprep.mubr.f32.mxu0 0.0
        %3055 = vmatmul.mubr.f32.gmra.mxu0 %v2849
        %v3056 = vpop.f32.mrf.mxu0
        %v3057 = vadd.f32 0.0, %v3056
        %v3058 = vpop.f32.mrf.mxu0
        %3059 = vmatprep.mubr.f32.mxu0 0.0
        %3060 = vmatmul.mubr.f32.gmra.mxu0 %v2852
        %v3061 = vpop.f32.mrf.mxu0
        %v3062 = vadd.f32 0.0, %v3061
        %v3063 = vpop.f32.mrf.mxu0
        %3064 = vmatprep.mubr.f32.mxu0 0.0
        %3065 = vmatmul.mubr.f32.gmra.mxu0 %v2855
        %v3066 = vpop.f32.mrf.mxu0
        %v3067 = vadd.f32 0.0, %v3066
        %v3068 = vpop.f32.mrf.mxu0
        %3069 = vmatprep.mubr.f32.mxu0 0.0
        %3070 = vmatmul.mubr.f32.gmra.mxu0 %v2858
        %v3071 = vpop.f32.mrf.mxu0
        %v3072 = vadd.f32 0.0, %v3071
        %v3073 = vpop.f32.mrf.mxu0
        %3074 = vmatprep.mubr.f32.mxu0 0.0
        %3075 = vmatmul.mubr.f32.gmra.mxu0 %v2861
        %v3076 = vpop.f32.mrf.mxu0
        %v3077 = vadd.f32 0.0, %v3076
        %v3078 = vpop.f32.mrf.mxu0
        %3079 = vmatprep.mubr.f32.mxu0 0.0
        %3080 = vmatmul.mubr.f32.gmra.mxu0 %v2864
        %v3081 = vpop.f32.mrf.mxu0
        %v3082 = vadd.f32 0.0, %v3081
        %v3083 = vpop.f32.mrf.mxu0
        %3084 = vmatprep.mubr.f32.mxu0 0.0
        %3085 = vmatmul.mubr.f32.gmra.mxu0 %v2867
        %v3086 = vpop.f32.mrf.mxu0
        %v3087 = vadd.f32 0.0, %v3086
        %v3088 = vpop.f32.mrf.mxu0
        %3089 = vmatprep.mubr.f32.mxu0 0.0
        %3090 = vmatmul.mubr.f32.gmra.mxu0 %v2870
        %v3091 = vpop.f32.mrf.mxu0
        %v3092 = vadd.f32 0.0, %v3091
        %v3093 = vpop.f32.mrf.mxu0
        %3094 = vmatprep.mubr.f32.mxu0 0.0
        %3095 = vmatmul.mubr.f32.gmra.mxu0 %v2873
        %v3096 = vpop.f32.mrf.mxu0
        %v3097 = vadd.f32 0.0, %v3096
        %v3098 = vpop.f32.mrf.mxu0
        %3099 = vdwg.mxu0
        %v3101 = vsel %vm2136, %v1960, 0
        %v3104 = vsel %vm2136, %v1961, 0
        %v3107 = vsel %vm2136, %v1962, 0
        %v3110 = vsel %vm2136, %v1963, 0
        %v3113 = vsel %vm2136, %v1964, 0
        %v3116 = vsel %vm2136, %v1965, 0
        %v3119 = vsel %vm2136, %v1966, 0
        %v3122 = vsel %vm2136, %v1967, 0
        %v3125 = vsel %vm2136, %v1968, 0
        %v3128 = vsel %vm2136, %v1969, 0
        %v3131 = vsel %vm2136, %v1970, 0
        %v3134 = vsel %vm2136, %v1971, 0
        %v3137 = vsel %vm2136, %v1972, 0
        %v3140 = vsel %vm2136, %v1973, 0
        %v3143 = vsel %vm2136, %v1974, 0
        %v3146 = vsel %vm2136, %v1975, 0
        %v3149 = vsel %vm2136, %v1976, 0
        %v3152 = vsel %vm2136, %v1977, 0
        %v3155 = vsel %vm2136, %v1978, 0
        %v3158 = vsel %vm2136, %v1979, 0
        %v3161 = vsel %vm2136, %v1980, 0
        %v3164 = vsel %vm2136, %v1981, 0
        %v3167 = vsel %vm2136, %v1982, 0
        %v3170 = vsel %vm2136, %v1983, 0
        %v3173 = vsel %vm2136, %v1984, 0
        %v3176 = vsel %vm2136, %v1985, 0
        %v3179 = vsel %vm2136, %v1986, 0
        %v3182 = vsel %vm2136, %v1987, 0
        %v3185 = vsel %vm2136, %v1988, 0
        %v3188 = vsel %vm2136, %v1989, 0
        %v3191 = vsel %vm2136, %v1990, 0
        %v3194 = vsel %vm2136, %v1991, 0
        %3196 = vmatprep.subr.mxu0 0.0
        %3197 = vmatpush1.msra.mxu0 0.0
        %3198 = vmatprep.subr.mxu0 0.0
        %3199 = vmatpush1.msra.mxu0 0.0
        %3200 = vmatprep.subr.mxu0 0.0
        %3201 = vmatpush1.msra.mxu0 0.0
        %3202 = vmatprep.subr.mxu0 0.0
        %3203 = vmatpush1.msra.mxu0 0.0
        %3204 = vmatprep.subr.mxu0 0.0
        %3205 = vmatpush1.msra.mxu0 0.0
        %3206 = vmatprep.subr.mxu0 0.0
        %3207 = vmatpush1.msra.mxu0 0.0
        %3208 = vmatprep.subr.mxu0 0.0
        %3209 = vmatpush1.msra.mxu0 0.0
        %3210 = vmatprep.subr.mxu0 0.0
        %3211 = vmatpush1.msra.mxu0 0.0
        %3212 = vmatprep.subr.mxu0 0.0
        %3213 = vmatpush1.msra.mxu0 0.0
        %3214 = vmatprep.subr.mxu0 0.0
        %3215 = vmatpush1.msra.mxu0 0.0
        %3216 = vmatprep.subr.mxu0 0.0
        %3217 = vmatpush1.msra.mxu0 0.0
        %3218 = vmatprep.subr.mxu0 0.0
        %3219 = vmatpush1.msra.mxu0 0.0
        %3220 = vmatprep.subr.mxu0 0.0
        %3221 = vmatpush1.msra.mxu0 0.0
        %3222 = vmatprep.subr.mxu0 0.0
        %3223 = vmatpush1.msra.mxu0 0.0
        %3224 = vmatprep.subr.mxu0 0.0
        %3225 = vmatpush1.msra.mxu0 %v2127
        %3226 = vmatprep.subr.mxu0 0.0
        %3227 = vmatpush1.msra.mxu0 %v2126
        %3228 = vmatprep.subr.mxu0 0.0
        %3229 = vmatpush2.msra.mxu0 0.0
        %3230 = vmatprep.subr.mxu0 0.0
        %3231 = vmatpush2.msra.mxu0 0.0
        %3232 = vmatprep.subr.mxu0 0.0
        %3233 = vmatpush2.msra.mxu0 0.0
        %3234 = vmatprep.subr.mxu0 0.0
        %3235 = vmatpush2.msra.mxu0 0.0
        %3236 = vmatprep.subr.mxu0 0.0
        %3237 = vmatpush2.msra.mxu0 0.0
        %3238 = vmatprep.subr.mxu0 0.0
        %3239 = vmatpush2.msra.mxu0 0.0
        %3240 = vmatprep.subr.mxu0 0.0
        %3241 = vmatpush2.msra.mxu0 0.0
        %3242 = vmatprep.subr.mxu0 0.0
        %3243 = vmatpush2.msra.mxu0 0.0
        %3244 = vmatprep.subr.mxu0 0.0
        %3245 = vmatpush2.msra.mxu0 0.0
        %3246 = vmatprep.subr.mxu0 0.0
        %3247 = vmatpush2.msra.mxu0 0.0
        %3248 = vmatprep.subr.mxu0 0.0
        %3249 = vmatpush2.msra.mxu0 0.0
        %3250 = vmatprep.subr.mxu0 0.0
        %3251 = vmatpush2.msra.mxu0 0.0
        %3252 = vmatprep.subr.mxu0 0.0
        %3253 = vmatpush2.msra.mxu0 0.0
        %3254 = vmatprep.subr.mxu0 0.0
        %3255 = vmatpush2.msra.mxu0 0.0
        %3256 = vmatprep.subr.mxu0 0.0
        %3257 = vmatpush2.msra.mxu0 0.0
        %3258 = vmatprep.subr.mxu0 0.0
        %3259 = vmatpush2.msra.mxu0 0.0
        %3260 = vmatprep.mubr.f32.mxu0 0.0
        %3261 = vmatmul.mubr.f32.gmra.mxu0 %v3101
        %v3262 = vpop.f32.mrf.mxu0
        %v3263 = vadd.f32 0.0, %v3262
        %v3264 = vpop.f32.mrf.mxu0
        %3265 = vmatprep.mubr.f32.mxu0 0.0
        %3266 = vmatmul.mubr.f32.gmra.mxu0 %v3104
        %v3267 = vpop.f32.mrf.mxu0
        %v3268 = vadd.f32 0.0, %v3267
        %v3269 = vpop.f32.mrf.mxu0
        %3270 = vmatprep.mubr.f32.mxu0 0.0
        %3271 = vmatmul.mubr.f32.gmra.mxu0 %v3107
        %v3272 = vpop.f32.mrf.mxu0
        %v3273 = vadd.f32 0.0, %v3272
        %v3274 = vpop.f32.mrf.mxu0
        %3275 = vmatprep.mubr.f32.mxu0 0.0
        %3276 = vmatmul.mubr.f32.gmra.mxu0 %v3110
        %v3277 = vpop.f32.mrf.mxu0
        %v3278 = vadd.f32 0.0, %v3277
        %v3279 = vpop.f32.mrf.mxu0
        %3280 = vmatprep.mubr.f32.mxu0 0.0
        %3281 = vmatmul.mubr.f32.gmra.mxu0 %v3113
        %v3282 = vpop.f32.mrf.mxu0
        %v3283 = vadd.f32 0.0, %v3282
        %v3284 = vpop.f32.mrf.mxu0
        %3285 = vmatprep.mubr.f32.mxu0 0.0
        %3286 = vmatmul.mubr.f32.gmra.mxu0 %v3116
        %v3287 = vpop.f32.mrf.mxu0
        %v3288 = vadd.f32 0.0, %v3287
        %v3289 = vpop.f32.mrf.mxu0
        %3290 = vmatprep.mubr.f32.mxu0 0.0
        %3291 = vmatmul.mubr.f32.gmra.mxu0 %v3119
        %v3292 = vpop.f32.mrf.mxu0
        %v3293 = vadd.f32 0.0, %v3292
        %v3294 = vpop.f32.mrf.mxu0
        %3295 = vmatprep.mubr.f32.mxu0 0.0
        %3296 = vmatmul.mubr.f32.gmra.mxu0 %v3122
        %v3297 = vpop.f32.mrf.mxu0
        %v3298 = vadd.f32 0.0, %v3297
        %v3299 = vpop.f32.mrf.mxu0
        %3300 = vmatprep.mubr.f32.mxu0 0.0
        %3301 = vmatmul.mubr.f32.gmra.mxu0 %v3125
        %v3302 = vpop.f32.mrf.mxu0
        %v3303 = vadd.f32 0.0, %v3302
        %v3304 = vpop.f32.mrf.mxu0
        %3305 = vmatprep.mubr.f32.mxu0 0.0
        %3306 = vmatmul.mubr.f32.gmra.mxu0 %v3128
        %v3307 = vpop.f32.mrf.mxu0
        %v3308 = vadd.f32 0.0, %v3307
        %v3309 = vpop.f32.mrf.mxu0
        %3310 = vmatprep.mubr.f32.mxu0 0.0
        %3311 = vmatmul.mubr.f32.gmra.mxu0 %v3131
        %v3312 = vpop.f32.mrf.mxu0
        %v3313 = vadd.f32 0.0, %v3312
        %v3314 = vpop.f32.mrf.mxu0
        %3315 = vmatprep.mubr.f32.mxu0 0.0
        %3316 = vmatmul.mubr.f32.gmra.mxu0 %v3134
        %v3317 = vpop.f32.mrf.mxu0
        %v3318 = vadd.f32 0.0, %v3317
        %v3319 = vpop.f32.mrf.mxu0
        %3320 = vmatprep.mubr.f32.mxu0 0.0
        %3321 = vmatmul.mubr.f32.gmra.mxu0 %v3137
        %v3322 = vpop.f32.mrf.mxu0
        %v3323 = vadd.f32 0.0, %v3322
        %v3324 = vpop.f32.mrf.mxu0
        %3325 = vmatprep.mubr.f32.mxu0 0.0
        %3326 = vmatmul.mubr.f32.gmra.mxu0 %v3140
        %v3327 = vpop.f32.mrf.mxu0
        %v3328 = vadd.f32 0.0, %v3327
        %v3329 = vpop.f32.mrf.mxu0
        %3330 = vmatprep.mubr.f32.mxu0 0.0
        %3331 = vmatmul.mubr.f32.gmra.mxu0 %v3143
        %v3332 = vpop.f32.mrf.mxu0
        %v3333 = vadd.f32 0.0, %v3332
        %v3334 = vpop.f32.mrf.mxu0
        %3335 = vmatprep.mubr.f32.mxu0 0.0
        %3336 = vmatmul.mubr.f32.gmra.mxu0 %v3146
        %v3337 = vpop.f32.mrf.mxu0
        %v3338 = vadd.f32 0.0, %v3337
        %v3339 = vpop.f32.mrf.mxu0
        %3340 = vmatprep.mubr.f32.mxu0 0.0
        %3341 = vmatmul.mubr.f32.gmra.mxu0 %v3149
        %v3342 = vpop.f32.mrf.mxu0
        %v3343 = vadd.f32 0.0, %v3342
        %v3344 = vpop.f32.mrf.mxu0
        %3345 = vmatprep.mubr.f32.mxu0 0.0
        %3346 = vmatmul.mubr.f32.gmra.mxu0 %v3152
        %v3347 = vpop.f32.mrf.mxu0
        %v3348 = vadd.f32 0.0, %v3347
        %v3349 = vpop.f32.mrf.mxu0
        %3350 = vmatprep.mubr.f32.mxu0 0.0
        %3351 = vmatmul.mubr.f32.gmra.mxu0 %v3155
        %v3352 = vpop.f32.mrf.mxu0
        %v3353 = vadd.f32 0.0, %v3352
        %v3354 = vpop.f32.mrf.mxu0
        %3355 = vmatprep.mubr.f32.mxu0 0.0
        %3356 = vmatmul.mubr.f32.gmra.mxu0 %v3158
        %v3357 = vpop.f32.mrf.mxu0
        %v3358 = vadd.f32 0.0, %v3357
        %v3359 = vpop.f32.mrf.mxu0
        %3360 = vmatprep.mubr.f32.mxu0 0.0
        %3361 = vmatmul.mubr.f32.gmra.mxu0 %v3161
        %v3362 = vpop.f32.mrf.mxu0
        %v3363 = vadd.f32 0.0, %v3362
        %v3364 = vpop.f32.mrf.mxu0
        %3365 = vmatprep.mubr.f32.mxu0 0.0
        %3366 = vmatmul.mubr.f32.gmra.mxu0 %v3164
        %v3367 = vpop.f32.mrf.mxu0
        %v3368 = vadd.f32 0.0, %v3367
        %v3369 = vpop.f32.mrf.mxu0
        %3370 = vmatprep.mubr.f32.mxu0 0.0
        %3371 = vmatmul.mubr.f32.gmra.mxu0 %v3167
        %v3372 = vpop.f32.mrf.mxu0
        %v3373 = vadd.f32 0.0, %v3372
        %v3374 = vpop.f32.mrf.mxu0
        %3375 = vmatprep.mubr.f32.mxu0 0.0
        %3376 = vmatmul.mubr.f32.gmra.mxu0 %v3170
        %v3377 = vpop.f32.mrf.mxu0
        %v3378 = vadd.f32 0.0, %v3377
        %v3379 = vpop.f32.mrf.mxu0
        %3380 = vmatprep.mubr.f32.mxu0 0.0
        %3381 = vmatmul.mubr.f32.gmra.mxu0 %v3173
        %v3382 = vpop.f32.mrf.mxu0
        %v3383 = vadd.f32 0.0, %v3382
        %v3384 = vpop.f32.mrf.mxu0
        %3385 = vmatprep.mubr.f32.mxu0 0.0
        %3386 = vmatmul.mubr.f32.gmra.mxu0 %v3176
        %v3387 = vpop.f32.mrf.mxu0
        %v3388 = vadd.f32 0.0, %v3387
        %v3389 = vpop.f32.mrf.mxu0
        %3390 = vmatprep.mubr.f32.mxu0 0.0
        %3391 = vmatmul.mubr.f32.gmra.mxu0 %v3179
        %v3392 = vpop.f32.mrf.mxu0
        %v3393 = vadd.f32 0.0, %v3392
        %v3394 = vpop.f32.mrf.mxu0
        %3395 = vmatprep.mubr.f32.mxu0 0.0
        %3396 = vmatmul.mubr.f32.gmra.mxu0 %v3182
        %v3397 = vpop.f32.mrf.mxu0
        %v3398 = vadd.f32 0.0, %v3397
        %v3399 = vpop.f32.mrf.mxu0
        %3400 = vmatprep.mubr.f32.mxu0 0.0
        %3401 = vmatmul.mubr.f32.gmra.mxu0 %v3185
        %v3402 = vpop.f32.mrf.mxu0
        %v3403 = vadd.f32 0.0, %v3402
        %v3404 = vpop.f32.mrf.mxu0
        %3405 = vmatprep.mubr.f32.mxu0 0.0
        %3406 = vmatmul.mubr.f32.gmra.mxu0 %v3188
        %v3407 = vpop.f32.mrf.mxu0
        %v3408 = vadd.f32 0.0, %v3407
        %v3409 = vpop.f32.mrf.mxu0
        %3410 = vmatprep.mubr.f32.mxu0 0.0
        %3411 = vmatmul.mubr.f32.gmra.mxu0 %v3191
        %v3412 = vpop.f32.mrf.mxu0
        %v3413 = vadd.f32 0.0, %v3412
        %v3414 = vpop.f32.mrf.mxu0
        %3415 = vmatprep.mubr.f32.mxu0 0.0
        %3416 = vmatmul.mubr.f32.gmra.mxu0 %v3194
        %v3417 = vpop.f32.mrf.mxu0
        %v3418 = vadd.f32 0.0, %v3417
        %v3419 = vpop.f32.mrf.mxu0
        %3420 = vdwg.mxu0
        %v3422 = vsel %vm2136, %v1992, 0
        %v3425 = vsel %vm2136, %v1993, 0
        %v3428 = vsel %vm2136, %v1994, 0
        %v3431 = vsel %vm2136, %v1995, 0
        %v3434 = vsel %vm2136, %v1996, 0
        %v3437 = vsel %vm2136, %v1997, 0
        %v3440 = vsel %vm2136, %v1998, 0
        %v3443 = vsel %vm2136, %v1999, 0
        %v3446 = vsel %vm2136, %v2000, 0
        %v3449 = vsel %vm2136, %v2001, 0
        %v3452 = vsel %vm2136, %v2002, 0
        %v3455 = vsel %vm2136, %v2003, 0
        %v3458 = vsel %vm2136, %v2004, 0
        %v3461 = vsel %vm2136, %v2005, 0
        %v3464 = vsel %vm2136, %v2006, 0
        %v3467 = vsel %vm2136, %v2007, 0
        %v3470 = vsel %vm2136, %v2008, 0
        %v3473 = vsel %vm2136, %v2009, 0
        %v3476 = vsel %vm2136, %v2010, 0
        %v3479 = vsel %vm2136, %v2011, 0
        %v3482 = vsel %vm2136, %v2012, 0
        %v3485 = vsel %vm2136, %v2013, 0
        %v3488 = vsel %vm2136, %v2014, 0
        %v3491 = vsel %vm2136, %v2015, 0
        %v3494 = vsel %vm2136, %v2016, 0
        %v3497 = vsel %vm2136, %v2017, 0
        %v3500 = vsel %vm2136, %v2018, 0
        %v3503 = vsel %vm2136, %v2019, 0
        %v3506 = vsel %vm2136, %v2020, 0
        %v3509 = vsel %vm2136, %v2021, 0
        %v3512 = vsel %vm2136, %v2022, 0
        %v3515 = vsel %vm2136, %v2023, 0
        %3517 = vmatprep.subr.mxu0 0.0
        %3518 = vmatpush1.msra.mxu0 0.0
        %3519 = vmatprep.subr.mxu0 0.0
        %3520 = vmatpush1.msra.mxu0 0.0
        %3521 = vmatprep.subr.mxu0 0.0
        %3522 = vmatpush1.msra.mxu0 0.0
        %3523 = vmatprep.subr.mxu0 0.0
        %3524 = vmatpush1.msra.mxu0 0.0
        %3525 = vmatprep.subr.mxu0 0.0
        %3526 = vmatpush1.msra.mxu0 0.0
        %3527 = vmatprep.subr.mxu0 0.0
        %3528 = vmatpush1.msra.mxu0 0.0
        %3529 = vmatprep.subr.mxu0 0.0
        %3530 = vmatpush1.msra.mxu0 0.0
        %3531 = vmatprep.subr.mxu0 0.0
        %3532 = vmatpush1.msra.mxu0 0.0
        %3533 = vmatprep.subr.mxu0 0.0
        %3534 = vmatpush1.msra.mxu0 0.0
        %3535 = vmatprep.subr.mxu0 0.0
        %3536 = vmatpush1.msra.mxu0 0.0
        %3537 = vmatprep.subr.mxu0 0.0
        %3538 = vmatpush1.msra.mxu0 0.0
        %3539 = vmatprep.subr.mxu0 0.0
        %3540 = vmatpush1.msra.mxu0 0.0
        %3541 = vmatprep.subr.mxu0 0.0
        %3542 = vmatpush1.msra.mxu0 0.0
        %3543 = vmatprep.subr.mxu0 0.0
        %3544 = vmatpush1.msra.mxu0 0.0
        %3545 = vmatprep.subr.mxu0 0.0
        %3546 = vmatpush1.msra.mxu0 %v2129
        %3547 = vmatprep.subr.mxu0 0.0
        %3548 = vmatpush1.msra.mxu0 %v2128
        %3549 = vmatprep.subr.mxu0 0.0
        %3550 = vmatpush2.msra.mxu0 0.0
        %3551 = vmatprep.subr.mxu0 0.0
        %3552 = vmatpush2.msra.mxu0 0.0
        %3553 = vmatprep.subr.mxu0 0.0
        %3554 = vmatpush2.msra.mxu0 0.0
        %3555 = vmatprep.subr.mxu0 0.0
        %3556 = vmatpush2.msra.mxu0 0.0
        %3557 = vmatprep.subr.mxu0 0.0
        %3558 = vmatpush2.msra.mxu0 0.0
        %3559 = vmatprep.subr.mxu0 0.0
        %3560 = vmatpush2.msra.mxu0 0.0
        %3561 = vmatprep.subr.mxu0 0.0
        %3562 = vmatpush2.msra.mxu0 0.0
        %3563 = vmatprep.subr.mxu0 0.0
        %3564 = vmatpush2.msra.mxu0 0.0
        %3565 = vmatprep.subr.mxu0 0.0
        %3566 = vmatpush2.msra.mxu0 0.0
        %3567 = vmatprep.subr.mxu0 0.0
        %3568 = vmatpush2.msra.mxu0 0.0
        %3569 = vmatprep.subr.mxu0 0.0
        %3570 = vmatpush2.msra.mxu0 0.0
        %3571 = vmatprep.subr.mxu0 0.0
        %3572 = vmatpush2.msra.mxu0 0.0
        %3573 = vmatprep.subr.mxu0 0.0
        %3574 = vmatpush2.msra.mxu0 0.0
        %3575 = vmatprep.subr.mxu0 0.0
        %3576 = vmatpush2.msra.mxu0 0.0
        %3577 = vmatprep.subr.mxu0 0.0
        %3578 = vmatpush2.msra.mxu0 0.0
        %3579 = vmatprep.subr.mxu0 0.0
        %3580 = vmatpush2.msra.mxu0 0.0
        %3581 = vmatprep.mubr.f32.mxu0 0.0
        %3582 = vmatmul.mubr.f32.gmra.mxu0 %v3422
        %v3583 = vpop.f32.mrf.mxu0
        %v3584 = vadd.f32 0.0, %v3583
        %v3585 = vpop.f32.mrf.mxu0
        %3586 = vmatprep.mubr.f32.mxu0 0.0
        %3587 = vmatmul.mubr.f32.gmra.mxu0 %v3425
        %v3588 = vpop.f32.mrf.mxu0
        %v3589 = vadd.f32 0.0, %v3588
        %v3590 = vpop.f32.mrf.mxu0
        %3591 = vmatprep.mubr.f32.mxu0 0.0
        %3592 = vmatmul.mubr.f32.gmra.mxu0 %v3428
        %v3593 = vpop.f32.mrf.mxu0
        %v3594 = vadd.f32 0.0, %v3593
        %v3595 = vpop.f32.mrf.mxu0
        %3596 = vmatprep.mubr.f32.mxu0 0.0
        %3597 = vmatmul.mubr.f32.gmra.mxu0 %v3431
        %v3598 = vpop.f32.mrf.mxu0
        %v3599 = vadd.f32 0.0, %v3598
        %v3600 = vpop.f32.mrf.mxu0
        %3601 = vmatprep.mubr.f32.mxu0 0.0
        %3602 = vmatmul.mubr.f32.gmra.mxu0 %v3434
        %v3603 = vpop.f32.mrf.mxu0
        %v3604 = vadd.f32 0.0, %v3603
        %v3605 = vpop.f32.mrf.mxu0
        %3606 = vmatprep.mubr.f32.mxu0 0.0
        %3607 = vmatmul.mubr.f32.gmra.mxu0 %v3437
        %v3608 = vpop.f32.mrf.mxu0
        %v3609 = vadd.f32 0.0, %v3608
        %v3610 = vpop.f32.mrf.mxu0
        %3611 = vmatprep.mubr.f32.mxu0 0.0
        %3612 = vmatmul.mubr.f32.gmra.mxu0 %v3440
        %v3613 = vpop.f32.mrf.mxu0
        %v3614 = vadd.f32 0.0, %v3613
        %v3615 = vpop.f32.mrf.mxu0
        %3616 = vmatprep.mubr.f32.mxu0 0.0
        %3617 = vmatmul.mubr.f32.gmra.mxu0 %v3443
        %v3618 = vpop.f32.mrf.mxu0
        %v3619 = vadd.f32 0.0, %v3618
        %v3620 = vpop.f32.mrf.mxu0
        %3621 = vmatprep.mubr.f32.mxu0 0.0
        %3622 = vmatmul.mubr.f32.gmra.mxu0 %v3446
        %v3623 = vpop.f32.mrf.mxu0
        %v3624 = vadd.f32 0.0, %v3623
        %v3625 = vpop.f32.mrf.mxu0
        %3626 = vmatprep.mubr.f32.mxu0 0.0
        %3627 = vmatmul.mubr.f32.gmra.mxu0 %v3449
        %v3628 = vpop.f32.mrf.mxu0
        %v3629 = vadd.f32 0.0, %v3628
        %v3630 = vpop.f32.mrf.mxu0
        %3631 = vmatprep.mubr.f32.mxu0 0.0
        %3632 = vmatmul.mubr.f32.gmra.mxu0 %v3452
        %v3633 = vpop.f32.mrf.mxu0
        %v3634 = vadd.f32 0.0, %v3633
        %v3635 = vpop.f32.mrf.mxu0
        %3636 = vmatprep.mubr.f32.mxu0 0.0
        %3637 = vmatmul.mubr.f32.gmra.mxu0 %v3455
        %v3638 = vpop.f32.mrf.mxu0
        %v3639 = vadd.f32 0.0, %v3638
        %v3640 = vpop.f32.mrf.mxu0
        %3641 = vmatprep.mubr.f32.mxu0 0.0
        %3642 = vmatmul.mubr.f32.gmra.mxu0 %v3458
        %v3643 = vpop.f32.mrf.mxu0
        %v3644 = vadd.f32 0.0, %v3643
        %v3645 = vpop.f32.mrf.mxu0
        %3646 = vmatprep.mubr.f32.mxu0 0.0
        %3647 = vmatmul.mubr.f32.gmra.mxu0 %v3461
        %v3648 = vpop.f32.mrf.mxu0
        %v3649 = vadd.f32 0.0, %v3648
        %v3650 = vpop.f32.mrf.mxu0
        %3651 = vmatprep.mubr.f32.mxu0 0.0
        %3652 = vmatmul.mubr.f32.gmra.mxu0 %v3464
        %v3653 = vpop.f32.mrf.mxu0
        %v3654 = vadd.f32 0.0, %v3653
        %v3655 = vpop.f32.mrf.mxu0
        %3656 = vmatprep.mubr.f32.mxu0 0.0
        %3657 = vmatmul.mubr.f32.gmra.mxu0 %v3467
        %v3658 = vpop.f32.mrf.mxu0
        %v3659 = vadd.f32 0.0, %v3658
        %v3660 = vpop.f32.mrf.mxu0
        %3661 = vmatprep.mubr.f32.mxu0 0.0
        %3662 = vmatmul.mubr.f32.gmra.mxu0 %v3470
        %v3663 = vpop.f32.mrf.mxu0
        %v3664 = vadd.f32 0.0, %v3663
        %v3665 = vpop.f32.mrf.mxu0
        %3666 = vmatprep.mubr.f32.mxu0 0.0
        %3667 = vmatmul.mubr.f32.gmra.mxu0 %v3473
        %v3668 = vpop.f32.mrf.mxu0
        %v3669 = vadd.f32 0.0, %v3668
        %v3670 = vpop.f32.mrf.mxu0
        %3671 = vmatprep.mubr.f32.mxu0 0.0
        %3672 = vmatmul.mubr.f32.gmra.mxu0 %v3476
        %v3673 = vpop.f32.mrf.mxu0
        %v3674 = vadd.f32 0.0, %v3673
        %v3675 = vpop.f32.mrf.mxu0
        %3676 = vmatprep.mubr.f32.mxu0 0.0
        %3677 = vmatmul.mubr.f32.gmra.mxu0 %v3479
        %v3678 = vpop.f32.mrf.mxu0
        %v3679 = vadd.f32 0.0, %v3678
        %v3680 = vpop.f32.mrf.mxu0
        %3681 = vmatprep.mubr.f32.mxu0 0.0
        %3682 = vmatmul.mubr.f32.gmra.mxu0 %v3482
        %v3683 = vpop.f32.mrf.mxu0
        %v3684 = vadd.f32 0.0, %v3683
        %v3685 = vpop.f32.mrf.mxu0
        %3686 = vmatprep.mubr.f32.mxu0 0.0
        %3687 = vmatmul.mubr.f32.gmra.mxu0 %v3485
        %v3688 = vpop.f32.mrf.mxu0
        %v3689 = vadd.f32 0.0, %v3688
        %v3690 = vpop.f32.mrf.mxu0
        %3691 = vmatprep.mubr.f32.mxu0 0.0
        %3692 = vmatmul.mubr.f32.gmra.mxu0 %v3488
        %v3693 = vpop.f32.mrf.mxu0
        %v3694 = vadd.f32 0.0, %v3693
        %v3695 = vpop.f32.mrf.mxu0
        %3696 = vmatprep.mubr.f32.mxu0 0.0
        %3697 = vmatmul.mubr.f32.gmra.mxu0 %v3491
        %v3698 = vpop.f32.mrf.mxu0
        %v3699 = vadd.f32 0.0, %v3698
        %v3700 = vpop.f32.mrf.mxu0
        %3701 = vmatprep.mubr.f32.mxu0 0.0
        %3702 = vmatmul.mubr.f32.gmra.mxu0 %v3494
        %v3703 = vpop.f32.mrf.mxu0
        %v3704 = vadd.f32 0.0, %v3703
        %v3705 = vpop.f32.mrf.mxu0
        %3706 = vmatprep.mubr.f32.mxu0 0.0
        %3707 = vmatmul.mubr.f32.gmra.mxu0 %v3497
        %v3708 = vpop.f32.mrf.mxu0
        %v3709 = vadd.f32 0.0, %v3708
        %v3710 = vpop.f32.mrf.mxu0
        %3711 = vmatprep.mubr.f32.mxu0 0.0
        %3712 = vmatmul.mubr.f32.gmra.mxu0 %v3500
        %v3713 = vpop.f32.mrf.mxu0
        %v3714 = vadd.f32 0.0, %v3713
        %v3715 = vpop.f32.mrf.mxu0
        %3716 = vmatprep.mubr.f32.mxu0 0.0
        %3717 = vmatmul.mubr.f32.gmra.mxu0 %v3503
        %v3718 = vpop.f32.mrf.mxu0
        %v3719 = vadd.f32 0.0, %v3718
        %v3720 = vpop.f32.mrf.mxu0
        %3721 = vmatprep.mubr.f32.mxu0 0.0
        %3722 = vmatmul.mubr.f32.gmra.mxu0 %v3506
        %v3723 = vpop.f32.mrf.mxu0
        %v3724 = vadd.f32 0.0, %v3723
        %v3725 = vpop.f32.mrf.mxu0
        %3726 = vmatprep.mubr.f32.mxu0 0.0
        %3727 = vmatmul.mubr.f32.gmra.mxu0 %v3509
        %v3728 = vpop.f32.mrf.mxu0
        %v3729 = vadd.f32 0.0, %v3728
        %v3730 = vpop.f32.mrf.mxu0
        %3731 = vmatprep.mubr.f32.mxu0 0.0
        %3732 = vmatmul.mubr.f32.gmra.mxu0 %v3512
        %v3733 = vpop.f32.mrf.mxu0
        %v3734 = vadd.f32 0.0, %v3733
        %v3735 = vpop.f32.mrf.mxu0
        %3736 = vmatprep.mubr.f32.mxu0 0.0
        %3737 = vmatmul.mubr.f32.gmra.mxu0 %v3515
        %v3738 = vpop.f32.mrf.mxu0
        %v3739 = vadd.f32 0.0, %v3738
        %v3740 = vpop.f32.mrf.mxu0
        %3741 = vdwg.mxu0
        %v3743 = vsel %vm2136, %v2024, 0
        %v3746 = vsel %vm2136, %v2025, 0
        %v3749 = vsel %vm2136, %v2026, 0
        %v3752 = vsel %vm2136, %v2027, 0
        %v3755 = vsel %vm2136, %v2028, 0
        %v3758 = vsel %vm2136, %v2029, 0
        %v3761 = vsel %vm2136, %v2030, 0
        %v3764 = vsel %vm2136, %v2031, 0
        %v3767 = vsel %vm2136, %v2032, 0
        %v3770 = vsel %vm2136, %v2033, 0
        %v3773 = vsel %vm2136, %v2034, 0
        %v3776 = vsel %vm2136, %v2035, 0
        %v3779 = vsel %vm2136, %v2036, 0
        %v3782 = vsel %vm2136, %v2037, 0
        %v3785 = vsel %vm2136, %v2038, 0
        %v3788 = vsel %vm2136, %v2039, 0
        %v3791 = vsel %vm2136, %v2040, 0
        %v3794 = vsel %vm2136, %v2041, 0
        %v3797 = vsel %vm2136, %v2042, 0
        %v3800 = vsel %vm2136, %v2043, 0
        %v3803 = vsel %vm2136, %v2044, 0
        %v3806 = vsel %vm2136, %v2045, 0
        %v3809 = vsel %vm2136, %v2046, 0
        %v3812 = vsel %vm2136, %v2047, 0
        %v3815 = vsel %vm2136, %v2048, 0
        %v3818 = vsel %vm2136, %v2049, 0
        %v3821 = vsel %vm2136, %v2050, 0
        %v3824 = vsel %vm2136, %v2051, 0
        %v3827 = vsel %vm2136, %v2052, 0
        %v3830 = vsel %vm2136, %v2053, 0
        %v3833 = vsel %vm2136, %v2054, 0
        %v3836 = vsel %vm2136, %v2055, 0
        %3838 = vmatprep.subr.mxu0 0.0
        %3839 = vmatpush1.msra.mxu0 0.0
        %3840 = vmatprep.subr.mxu0 0.0
        %3841 = vmatpush1.msra.mxu0 0.0
        %3842 = vmatprep.subr.mxu0 0.0
        %3843 = vmatpush1.msra.mxu0 0.0
        %3844 = vmatprep.subr.mxu0 0.0
        %3845 = vmatpush1.msra.mxu0 0.0
        %3846 = vmatprep.subr.mxu0 0.0
        %3847 = vmatpush1.msra.mxu0 0.0
        %3848 = vmatprep.subr.mxu0 0.0
        %3849 = vmatpush1.msra.mxu0 0.0
        %3850 = vmatprep.subr.mxu0 0.0
        %3851 = vmatpush1.msra.mxu0 0.0
        %3852 = vmatprep.subr.mxu0 0.0
        %3853 = vmatpush1.msra.mxu0 0.0
        %3854 = vmatprep.subr.mxu0 0.0
        %3855 = vmatpush1.msra.mxu0 0.0
        %3856 = vmatprep.subr.mxu0 0.0
        %3857 = vmatpush1.msra.mxu0 0.0
        %3858 = vmatprep.subr.mxu0 0.0
        %3859 = vmatpush1.msra.mxu0 0.0
        %3860 = vmatprep.subr.mxu0 0.0
        %3861 = vmatpush1.msra.mxu0 0.0
        %3862 = vmatprep.subr.mxu0 0.0
        %3863 = vmatpush1.msra.mxu0 0.0
        %3864 = vmatprep.subr.mxu0 0.0
        %3865 = vmatpush1.msra.mxu0 0.0
        %3866 = vmatprep.subr.mxu0 0.0
        %3867 = vmatpush1.msra.mxu0 %v2131
        %3868 = vmatprep.subr.mxu0 0.0
        %3869 = vmatpush1.msra.mxu0 %v2130
        %3870 = vmatprep.subr.mxu0 0.0
        %3871 = vmatpush2.msra.mxu0 0.0
        %3872 = vmatprep.subr.mxu0 0.0
        %3873 = vmatpush2.msra.mxu0 0.0
        %3874 = vmatprep.subr.mxu0 0.0
        %3875 = vmatpush2.msra.mxu0 0.0
        %3876 = vmatprep.subr.mxu0 0.0
        %3877 = vmatpush2.msra.mxu0 0.0
        %3878 = vmatprep.subr.mxu0 0.0
        %3879 = vmatpush2.msra.mxu0 0.0
        %3880 = vmatprep.subr.mxu0 0.0
        %3881 = vmatpush2.msra.mxu0 0.0
        %3882 = vmatprep.subr.mxu0 0.0
        %3883 = vmatpush2.msra.mxu0 0.0
        %3884 = vmatprep.subr.mxu0 0.0
        %3885 = vmatpush2.msra.mxu0 0.0
        %3886 = vmatprep.subr.mxu0 0.0
        %3887 = vmatpush2.msra.mxu0 0.0
        %3888 = vmatprep.subr.mxu0 0.0
        %3889 = vmatpush2.msra.mxu0 0.0
        %3890 = vmatprep.subr.mxu0 0.0
        %3891 = vmatpush2.msra.mxu0 0.0
        %3892 = vmatprep.subr.mxu0 0.0
        %3893 = vmatpush2.msra.mxu0 0.0
        %3894 = vmatprep.subr.mxu0 0.0
        %3895 = vmatpush2.msra.mxu0 0.0
        %3896 = vmatprep.subr.mxu0 0.0
        %3897 = vmatpush2.msra.mxu0 0.0
        %3898 = vmatprep.subr.mxu0 0.0
        %3899 = vmatpush2.msra.mxu0 0.0
        %3900 = vmatprep.subr.mxu0 0.0
        %3901 = vmatpush2.msra.mxu0 0.0
        %3902 = vmatprep.mubr.f32.mxu0 0.0
        %3903 = vmatmul.mubr.f32.gmra.mxu0 %v3743
        %v3904 = vpop.f32.mrf.mxu0
        %v3905 = vadd.f32 0.0, %v3904
        %v3906 = vpop.f32.mrf.mxu0
        %3907 = vmatprep.mubr.f32.mxu0 0.0
        %3908 = vmatmul.mubr.f32.gmra.mxu0 %v3746
        %v3909 = vpop.f32.mrf.mxu0
        %v3910 = vadd.f32 0.0, %v3909
        %v3911 = vpop.f32.mrf.mxu0
        %3912 = vmatprep.mubr.f32.mxu0 0.0
        %3913 = vmatmul.mubr.f32.gmra.mxu0 %v3749
        %v3914 = vpop.f32.mrf.mxu0
        %v3915 = vadd.f32 0.0, %v3914
        %v3916 = vpop.f32.mrf.mxu0
        %3917 = vmatprep.mubr.f32.mxu0 0.0
        %3918 = vmatmul.mubr.f32.gmra.mxu0 %v3752
        %v3919 = vpop.f32.mrf.mxu0
        %v3920 = vadd.f32 0.0, %v3919
        %v3921 = vpop.f32.mrf.mxu0
        %3922 = vmatprep.mubr.f32.mxu0 0.0
        %3923 = vmatmul.mubr.f32.gmra.mxu0 %v3755
        %v3924 = vpop.f32.mrf.mxu0
        %v3925 = vadd.f32 0.0, %v3924
        %v3926 = vpop.f32.mrf.mxu0
        %3927 = vmatprep.mubr.f32.mxu0 0.0
        %3928 = vmatmul.mubr.f32.gmra.mxu0 %v3758
        %v3929 = vpop.f32.mrf.mxu0
        %v3930 = vadd.f32 0.0, %v3929
        %v3931 = vpop.f32.mrf.mxu0
        %3932 = vmatprep.mubr.f32.mxu0 0.0
        %3933 = vmatmul.mubr.f32.gmra.mxu0 %v3761
        %v3934 = vpop.f32.mrf.mxu0
        %v3935 = vadd.f32 0.0, %v3934
        %v3936 = vpop.f32.mrf.mxu0
        %3937 = vmatprep.mubr.f32.mxu0 0.0
        %3938 = vmatmul.mubr.f32.gmra.mxu0 %v3764
        %v3939 = vpop.f32.mrf.mxu0
        %v3940 = vadd.f32 0.0, %v3939
        %v3941 = vpop.f32.mrf.mxu0
        %3942 = vmatprep.mubr.f32.mxu0 0.0
        %3943 = vmatmul.mubr.f32.gmra.mxu0 %v3767
        %v3944 = vpop.f32.mrf.mxu0
        %v3945 = vadd.f32 0.0, %v3944
        %v3946 = vpop.f32.mrf.mxu0
        %3947 = vmatprep.mubr.f32.mxu0 0.0
        %3948 = vmatmul.mubr.f32.gmra.mxu0 %v3770
        %v3949 = vpop.f32.mrf.mxu0
        %v3950 = vadd.f32 0.0, %v3949
        %v3951 = vpop.f32.mrf.mxu0
        %3952 = vmatprep.mubr.f32.mxu0 0.0
        %3953 = vmatmul.mubr.f32.gmra.mxu0 %v3773
        %v3954 = vpop.f32.mrf.mxu0
        %v3955 = vadd.f32 0.0, %v3954
        %v3956 = vpop.f32.mrf.mxu0
        %3957 = vmatprep.mubr.f32.mxu0 0.0
        %3958 = vmatmul.mubr.f32.gmra.mxu0 %v3776
        %v3959 = vpop.f32.mrf.mxu0
        %v3960 = vadd.f32 0.0, %v3959
        %v3961 = vpop.f32.mrf.mxu0
        %3962 = vmatprep.mubr.f32.mxu0 0.0
        %3963 = vmatmul.mubr.f32.gmra.mxu0 %v3779
        %v3964 = vpop.f32.mrf.mxu0
        %v3965 = vadd.f32 0.0, %v3964
        %v3966 = vpop.f32.mrf.mxu0
        %3967 = vmatprep.mubr.f32.mxu0 0.0
        %3968 = vmatmul.mubr.f32.gmra.mxu0 %v3782
        %v3969 = vpop.f32.mrf.mxu0
        %v3970 = vadd.f32 0.0, %v3969
        %v3971 = vpop.f32.mrf.mxu0
        %3972 = vmatprep.mubr.f32.mxu0 0.0
        %3973 = vmatmul.mubr.f32.gmra.mxu0 %v3785
        %v3974 = vpop.f32.mrf.mxu0
        %v3975 = vadd.f32 0.0, %v3974
        %v3976 = vpop.f32.mrf.mxu0
        %3977 = vmatprep.mubr.f32.mxu0 0.0
        %3978 = vmatmul.mubr.f32.gmra.mxu0 %v3788
        %v3979 = vpop.f32.mrf.mxu0
        %v3980 = vadd.f32 0.0, %v3979
        %v3981 = vpop.f32.mrf.mxu0
        %3982 = vmatprep.mubr.f32.mxu0 0.0
        %3983 = vmatmul.mubr.f32.gmra.mxu0 %v3791
        %v3984 = vpop.f32.mrf.mxu0
        %v3985 = vadd.f32 0.0, %v3984
        %v3986 = vpop.f32.mrf.mxu0
        %3987 = vmatprep.mubr.f32.mxu0 0.0
        %3988 = vmatmul.mubr.f32.gmra.mxu0 %v3794
        %v3989 = vpop.f32.mrf.mxu0
        %v3990 = vadd.f32 0.0, %v3989
        %v3991 = vpop.f32.mrf.mxu0
        %3992 = vmatprep.mubr.f32.mxu0 0.0
        %3993 = vmatmul.mubr.f32.gmra.mxu0 %v3797
        %v3994 = vpop.f32.mrf.mxu0
        %v3995 = vadd.f32 0.0, %v3994
        %v3996 = vpop.f32.mrf.mxu0
        %3997 = vmatprep.mubr.f32.mxu0 0.0
        %3998 = vmatmul.mubr.f32.gmra.mxu0 %v3800
        %v3999 = vpop.f32.mrf.mxu0
        %v4000 = vadd.f32 0.0, %v3999
        %v4001 = vpop.f32.mrf.mxu0
        %4002 = vmatprep.mubr.f32.mxu0 0.0
        %4003 = vmatmul.mubr.f32.gmra.mxu0 %v3803
        %v4004 = vpop.f32.mrf.mxu0
        %v4005 = vadd.f32 0.0, %v4004
        %v4006 = vpop.f32.mrf.mxu0
        %4007 = vmatprep.mubr.f32.mxu0 0.0
        %4008 = vmatmul.mubr.f32.gmra.mxu0 %v3806
        %v4009 = vpop.f32.mrf.mxu0
        %v4010 = vadd.f32 0.0, %v4009
        %v4011 = vpop.f32.mrf.mxu0
        %4012 = vmatprep.mubr.f32.mxu0 0.0
        %4013 = vmatmul.mubr.f32.gmra.mxu0 %v3809
        %v4014 = vpop.f32.mrf.mxu0
        %v4015 = vadd.f32 0.0, %v4014
        %v4016 = vpop.f32.mrf.mxu0
        %4017 = vmatprep.mubr.f32.mxu0 0.0
        %4018 = vmatmul.mubr.f32.gmra.mxu0 %v3812
        %v4019 = vpop.f32.mrf.mxu0
        %v4020 = vadd.f32 0.0, %v4019
        %v4021 = vpop.f32.mrf.mxu0
        %4022 = vmatprep.mubr.f32.mxu0 0.0
        %4023 = vmatmul.mubr.f32.gmra.mxu0 %v3815
        %v4024 = vpop.f32.mrf.mxu0
        %v4025 = vadd.f32 0.0, %v4024
        %v4026 = vpop.f32.mrf.mxu0
        %4027 = vmatprep.mubr.f32.mxu0 0.0
        %4028 = vmatmul.mubr.f32.gmra.mxu0 %v3818
        %v4029 = vpop.f32.mrf.mxu0
        %v4030 = vadd.f32 0.0, %v4029
        %v4031 = vpop.f32.mrf.mxu0
        %4032 = vmatprep.mubr.f32.mxu0 0.0
        %4033 = vmatmul.mubr.f32.gmra.mxu0 %v3821
        %v4034 = vpop.f32.mrf.mxu0
        %v4035 = vadd.f32 0.0, %v4034
        %v4036 = vpop.f32.mrf.mxu0
        %4037 = vmatprep.mubr.f32.mxu0 0.0
        %4038 = vmatmul.mubr.f32.gmra.mxu0 %v3824
        %v4039 = vpop.f32.mrf.mxu0
        %v4040 = vadd.f32 0.0, %v4039
        %v4041 = vpop.f32.mrf.mxu0
        %4042 = vmatprep.mubr.f32.mxu0 0.0
        %4043 = vmatmul.mubr.f32.gmra.mxu0 %v3827
        %v4044 = vpop.f32.mrf.mxu0
        %v4045 = vadd.f32 0.0, %v4044
        %v4046 = vpop.f32.mrf.mxu0
        %4047 = vmatprep.mubr.f32.mxu0 0.0
        %4048 = vmatmul.mubr.f32.gmra.mxu0 %v3830
        %v4049 = vpop.f32.mrf.mxu0
        %v4050 = vadd.f32 0.0, %v4049
        %v4051 = vpop.f32.mrf.mxu0
        %4052 = vmatprep.mubr.f32.mxu0 0.0
        %4053 = vmatmul.mubr.f32.gmra.mxu0 %v3833
        %v4054 = vpop.f32.mrf.mxu0
        %v4055 = vadd.f32 0.0, %v4054
        %v4056 = vpop.f32.mrf.mxu0
        %4057 = vmatprep.mubr.f32.mxu0 0.0
        %4058 = vmatmul.mubr.f32.gmra.mxu0 %v3836
        %v4059 = vpop.f32.mrf.mxu0
        %v4060 = vadd.f32 0.0, %v4059
        %v4061 = vpop.f32.mrf.mxu0
        %4062 = vdwg.mxu0
        %v4064 = vsel %vm2136, %v2056, 0
        %v4067 = vsel %vm2136, %v2057, 0
        %v4070 = vsel %vm2136, %v2058, 0
        %v4073 = vsel %vm2136, %v2059, 0
        %v4076 = vsel %vm2136, %v2060, 0
        %v4079 = vsel %vm2136, %v2061, 0
        %v4082 = vsel %vm2136, %v2062, 0
        %v4085 = vsel %vm2136, %v2063, 0
        %v4088 = vsel %vm2136, %v2064, 0
        %v4091 = vsel %vm2136, %v2065, 0
        %v4094 = vsel %vm2136, %v2066, 0
        %v4097 = vsel %vm2136, %v2067, 0
        %v4100 = vsel %vm2136, %v2068, 0
        %v4103 = vsel %vm2136, %v2069, 0
        %v4106 = vsel %vm2136, %v2070, 0
        %v4109 = vsel %vm2136, %v2071, 0
        %v4112 = vsel %vm2136, %v2072, 0
        %v4115 = vsel %vm2136, %v2073, 0
        %v4118 = vsel %vm2136, %v2074, 0
        %v4121 = vsel %vm2136, %v2075, 0
        %v4124 = vsel %vm2136, %v2076, 0
        %v4127 = vsel %vm2136, %v2077, 0
        %v4130 = vsel %vm2136, %v2078, 0
        %v4133 = vsel %vm2136, %v2079, 0
        %v4136 = vsel %vm2136, %v2080, 0
        %v4139 = vsel %vm2136, %v2081, 0
        %v4142 = vsel %vm2136, %v2082, 0
        %v4145 = vsel %vm2136, %v2083, 0
        %v4148 = vsel %vm2136, %v2084, 0
        %v4151 = vsel %vm2136, %v2085, 0
        %v4154 = vsel %vm2136, %v2086, 0
        %v4157 = vsel %vm2136, %v2087, 0
        %4159 = vmatprep.subr.mxu0 0.0
        %4160 = vmatpush1.msra.mxu0 0.0
        %4161 = vmatprep.subr.mxu0 0.0
        %4162 = vmatpush1.msra.mxu0 0.0
        %4163 = vmatprep.subr.mxu0 0.0
        %4164 = vmatpush1.msra.mxu0 0.0
        %4165 = vmatprep.subr.mxu0 0.0
        %4166 = vmatpush1.msra.mxu0 0.0
        %4167 = vmatprep.subr.mxu0 0.0
        %4168 = vmatpush1.msra.mxu0 0.0
        %4169 = vmatprep.subr.mxu0 0.0
        %4170 = vmatpush1.msra.mxu0 0.0
        %4171 = vmatprep.subr.mxu0 0.0
        %4172 = vmatpush1.msra.mxu0 0.0
        %4173 = vmatprep.subr.mxu0 0.0
        %4174 = vmatpush1.msra.mxu0 0.0
        %4175 = vmatprep.subr.mxu0 0.0
        %4176 = vmatpush1.msra.mxu0 0.0
        %4177 = vmatprep.subr.mxu0 0.0
        %4178 = vmatpush1.msra.mxu0 0.0
        %4179 = vmatprep.subr.mxu0 0.0
        %4180 = vmatpush1.msra.mxu0 0.0
        %4181 = vmatprep.subr.mxu0 0.0
        %4182 = vmatpush1.msra.mxu0 0.0
        %4183 = vmatprep.subr.mxu0 0.0
        %4184 = vmatpush1.msra.mxu0 0.0
        %4185 = vmatprep.subr.mxu0 0.0
        %4186 = vmatpush1.msra.mxu0 0.0
        %4187 = vmatprep.subr.mxu0 0.0
        %4188 = vmatpush1.msra.mxu0 %v2133
        %4189 = vmatprep.subr.mxu0 0.0
        %4190 = vmatpush1.msra.mxu0 %v2132
        %4191 = vmatprep.subr.mxu0 0.0
        %4192 = vmatpush2.msra.mxu0 0.0
        %4193 = vmatprep.subr.mxu0 0.0
        %4194 = vmatpush2.msra.mxu0 0.0
        %4195 = vmatprep.subr.mxu0 0.0
        %4196 = vmatpush2.msra.mxu0 0.0
        %4197 = vmatprep.subr.mxu0 0.0
        %4198 = vmatpush2.msra.mxu0 0.0
        %4199 = vmatprep.subr.mxu0 0.0
        %4200 = vmatpush2.msra.mxu0 0.0
        %4201 = vmatprep.subr.mxu0 0.0
        %4202 = vmatpush2.msra.mxu0 0.0
        %4203 = vmatprep.subr.mxu0 0.0
        %4204 = vmatpush2.msra.mxu0 0.0
        %4205 = vmatprep.subr.mxu0 0.0
        %4206 = vmatpush2.msra.mxu0 0.0
        %4207 = vmatprep.subr.mxu0 0.0
        %4208 = vmatpush2.msra.mxu0 0.0
        %4209 = vmatprep.subr.mxu0 0.0
        %4210 = vmatpush2.msra.mxu0 0.0
        %4211 = vmatprep.subr.mxu0 0.0
        %4212 = vmatpush2.msra.mxu0 0.0
        %4213 = vmatprep.subr.mxu0 0.0
        %4214 = vmatpush2.msra.mxu0 0.0
        %4215 = vmatprep.subr.mxu0 0.0
        %4216 = vmatpush2.msra.mxu0 0.0
        %4217 = vmatprep.subr.mxu0 0.0
        %4218 = vmatpush2.msra.mxu0 0.0
        %4219 = vmatprep.subr.mxu0 0.0
        %4220 = vmatpush2.msra.mxu0 0.0
        %4221 = vmatprep.subr.mxu0 0.0
        %4222 = vmatpush2.msra.mxu0 0.0
        %4223 = vmatprep.mubr.f32.mxu0 0.0
        %4224 = vmatmul.mubr.f32.gmra.mxu0 %v4064
        %v4225 = vpop.f32.mrf.mxu0
        %v4226 = vadd.f32 0.0, %v4225
        %v4227 = vpop.f32.mrf.mxu0
        %4228 = vmatprep.mubr.f32.mxu0 0.0
        %4229 = vmatmul.mubr.f32.gmra.mxu0 %v4067
        %v4230 = vpop.f32.mrf.mxu0
        %v4231 = vadd.f32 0.0, %v4230
        %v4232 = vpop.f32.mrf.mxu0
        %4233 = vmatprep.mubr.f32.mxu0 0.0
        %4234 = vmatmul.mubr.f32.gmra.mxu0 %v4070
        %v4235 = vpop.f32.mrf.mxu0
        %v4236 = vadd.f32 0.0, %v4235
        %v4237 = vpop.f32.mrf.mxu0
        %4238 = vmatprep.mubr.f32.mxu0 0.0
        %4239 = vmatmul.mubr.f32.gmra.mxu0 %v4073
        %v4240 = vpop.f32.mrf.mxu0
        %v4241 = vadd.f32 0.0, %v4240
        %v4242 = vpop.f32.mrf.mxu0
        %4243 = vmatprep.mubr.f32.mxu0 0.0
        %4244 = vmatmul.mubr.f32.gmra.mxu0 %v4076
        %v4245 = vpop.f32.mrf.mxu0
        %v4246 = vadd.f32 0.0, %v4245
        %v4247 = vpop.f32.mrf.mxu0
        %4248 = vmatprep.mubr.f32.mxu0 0.0
        %4249 = vmatmul.mubr.f32.gmra.mxu0 %v4079
        %v4250 = vpop.f32.mrf.mxu0
        %v4251 = vadd.f32 0.0, %v4250
        %v4252 = vpop.f32.mrf.mxu0
        %4253 = vmatprep.mubr.f32.mxu0 0.0
        %4254 = vmatmul.mubr.f32.gmra.mxu0 %v4082
        %v4255 = vpop.f32.mrf.mxu0
        %v4256 = vadd.f32 0.0, %v4255
        %v4257 = vpop.f32.mrf.mxu0
        %4258 = vmatprep.mubr.f32.mxu0 0.0
        %4259 = vmatmul.mubr.f32.gmra.mxu0 %v4085
        %v4260 = vpop.f32.mrf.mxu0
        %v4261 = vadd.f32 0.0, %v4260
        %v4262 = vpop.f32.mrf.mxu0
        %4263 = vmatprep.mubr.f32.mxu0 0.0
        %4264 = vmatmul.mubr.f32.gmra.mxu0 %v4088
        %v4265 = vpop.f32.mrf.mxu0
        %v4266 = vadd.f32 0.0, %v4265
        %v4267 = vpop.f32.mrf.mxu0
        %4268 = vmatprep.mubr.f32.mxu0 0.0
        %4269 = vmatmul.mubr.f32.gmra.mxu0 %v4091
        %v4270 = vpop.f32.mrf.mxu0
        %v4271 = vadd.f32 0.0, %v4270
        %v4272 = vpop.f32.mrf.mxu0
        %4273 = vmatprep.mubr.f32.mxu0 0.0
        %4274 = vmatmul.mubr.f32.gmra.mxu0 %v4094
        %v4275 = vpop.f32.mrf.mxu0
        %v4276 = vadd.f32 0.0, %v4275
        %v4277 = vpop.f32.mrf.mxu0
        %4278 = vmatprep.mubr.f32.mxu0 0.0
        %4279 = vmatmul.mubr.f32.gmra.mxu0 %v4097
        %v4280 = vpop.f32.mrf.mxu0
        %v4281 = vadd.f32 0.0, %v4280
        %v4282 = vpop.f32.mrf.mxu0
        %4283 = vmatprep.mubr.f32.mxu0 0.0
        %4284 = vmatmul.mubr.f32.gmra.mxu0 %v4100
        %v4285 = vpop.f32.mrf.mxu0
        %v4286 = vadd.f32 0.0, %v4285
        %v4287 = vpop.f32.mrf.mxu0
        %4288 = vmatprep.mubr.f32.mxu0 0.0
        %4289 = vmatmul.mubr.f32.gmra.mxu0 %v4103
        %v4290 = vpop.f32.mrf.mxu0
        %v4291 = vadd.f32 0.0, %v4290
        %v4292 = vpop.f32.mrf.mxu0
        %4293 = vmatprep.mubr.f32.mxu0 0.0
        %4294 = vmatmul.mubr.f32.gmra.mxu0 %v4106
        %v4295 = vpop.f32.mrf.mxu0
        %v4296 = vadd.f32 0.0, %v4295
        %v4297 = vpop.f32.mrf.mxu0
        %4298 = vmatprep.mubr.f32.mxu0 0.0
        %4299 = vmatmul.mubr.f32.gmra.mxu0 %v4109
        %v4300 = vpop.f32.mrf.mxu0
        %v4301 = vadd.f32 0.0, %v4300
        %v4302 = vpop.f32.mrf.mxu0
        %4303 = vmatprep.mubr.f32.mxu0 0.0
        %4304 = vmatmul.mubr.f32.gmra.mxu0 %v4112
        %v4305 = vpop.f32.mrf.mxu0
        %v4306 = vadd.f32 0.0, %v4305
        %v4307 = vpop.f32.mrf.mxu0
        %4308 = vmatprep.mubr.f32.mxu0 0.0
        %4309 = vmatmul.mubr.f32.gmra.mxu0 %v4115
        %v4310 = vpop.f32.mrf.mxu0
        %v4311 = vadd.f32 0.0, %v4310
        %v4312 = vpop.f32.mrf.mxu0
        %4313 = vmatprep.mubr.f32.mxu0 0.0
        %4314 = vmatmul.mubr.f32.gmra.mxu0 %v4118
        %v4315 = vpop.f32.mrf.mxu0
        %v4316 = vadd.f32 0.0, %v4315
        %v4317 = vpop.f32.mrf.mxu0
        %4318 = vmatprep.mubr.f32.mxu0 0.0
        %4319 = vmatmul.mubr.f32.gmra.mxu0 %v4121
        %v4320 = vpop.f32.mrf.mxu0
        %v4321 = vadd.f32 0.0, %v4320
        %v4322 = vpop.f32.mrf.mxu0
        %4323 = vmatprep.mubr.f32.mxu0 0.0
        %4324 = vmatmul.mubr.f32.gmra.mxu0 %v4124
        %v4325 = vpop.f32.mrf.mxu0
        %v4326 = vadd.f32 0.0, %v4325
        %v4327 = vpop.f32.mrf.mxu0
        %4328 = vmatprep.mubr.f32.mxu0 0.0
        %4329 = vmatmul.mubr.f32.gmra.mxu0 %v4127
        %v4330 = vpop.f32.mrf.mxu0
        %v4331 = vadd.f32 0.0, %v4330
        %v4332 = vpop.f32.mrf.mxu0
        %4333 = vmatprep.mubr.f32.mxu0 0.0
        %4334 = vmatmul.mubr.f32.gmra.mxu0 %v4130
        %v4335 = vpop.f32.mrf.mxu0
        %v4336 = vadd.f32 0.0, %v4335
        %v4337 = vpop.f32.mrf.mxu0
        %4338 = vmatprep.mubr.f32.mxu0 0.0
        %4339 = vmatmul.mubr.f32.gmra.mxu0 %v4133
        %v4340 = vpop.f32.mrf.mxu0
        %v4341 = vadd.f32 0.0, %v4340
        %v4342 = vpop.f32.mrf.mxu0
        %4343 = vmatprep.mubr.f32.mxu0 0.0
        %4344 = vmatmul.mubr.f32.gmra.mxu0 %v4136
        %v4345 = vpop.f32.mrf.mxu0
        %v4346 = vadd.f32 0.0, %v4345
        %v4347 = vpop.f32.mrf.mxu0
        %4348 = vmatprep.mubr.f32.mxu0 0.0
        %4349 = vmatmul.mubr.f32.gmra.mxu0 %v4139
        %v4350 = vpop.f32.mrf.mxu0
        %v4351 = vadd.f32 0.0, %v4350
        %v4352 = vpop.f32.mrf.mxu0
        %4353 = vmatprep.mubr.f32.mxu0 0.0
        %4354 = vmatmul.mubr.f32.gmra.mxu0 %v4142
        %v4355 = vpop.f32.mrf.mxu0
        %v4356 = vadd.f32 0.0, %v4355
        %v4357 = vpop.f32.mrf.mxu0
        %4358 = vmatprep.mubr.f32.mxu0 0.0
        %4359 = vmatmul.mubr.f32.gmra.mxu0 %v4145
        %v4360 = vpop.f32.mrf.mxu0
        %v4361 = vadd.f32 0.0, %v4360
        %v4362 = vpop.f32.mrf.mxu0
        %4363 = vmatprep.mubr.f32.mxu0 0.0
        %4364 = vmatmul.mubr.f32.gmra.mxu0 %v4148
        %v4365 = vpop.f32.mrf.mxu0
        %v4366 = vadd.f32 0.0, %v4365
        %v4367 = vpop.f32.mrf.mxu0
        %4368 = vmatprep.mubr.f32.mxu0 0.0
        %4369 = vmatmul.mubr.f32.gmra.mxu0 %v4151
        %v4370 = vpop.f32.mrf.mxu0
        %v4371 = vadd.f32 0.0, %v4370
        %v4372 = vpop.f32.mrf.mxu0
        %4373 = vmatprep.mubr.f32.mxu0 0.0
        %4374 = vmatmul.mubr.f32.gmra.mxu0 %v4154
        %v4375 = vpop.f32.mrf.mxu0
        %v4376 = vadd.f32 0.0, %v4375
        %v4377 = vpop.f32.mrf.mxu0
        %4378 = vmatprep.mubr.f32.mxu0 0.0
        %4379 = vmatmul.mubr.f32.gmra.mxu0 %v4157
        %v4380 = vpop.f32.mrf.mxu0
        %v4381 = vadd.f32 0.0, %v4380
        %v4382 = vpop.f32.mrf.mxu0
        %4383 = vdwg.mxu0
        %v4385 = vsel %vm2136, %v2088, 0
        %v4388 = vsel %vm2136, %v2089, 0
        %v4391 = vsel %vm2136, %v2090, 0
        %v4394 = vsel %vm2136, %v2091, 0
        %v4397 = vsel %vm2136, %v2092, 0
        %v4400 = vsel %vm2136, %v2093, 0
        %v4403 = vsel %vm2136, %v2094, 0
        %v4406 = vsel %vm2136, %v2095, 0
        %v4409 = vsel %vm2136, %v2096, 0
        %v4412 = vsel %vm2136, %v2097, 0
        %v4415 = vsel %vm2136, %v2098, 0
        %v4418 = vsel %vm2136, %v2099, 0
        %v4421 = vsel %vm2136, %v2100, 0
        %v4424 = vsel %vm2136, %v2101, 0
        %v4427 = vsel %vm2136, %v2102, 0
        %v4430 = vsel %vm2136, %v2103, 0
        %v4433 = vsel %vm2136, %v2104, 0
        %v4436 = vsel %vm2136, %v2105, 0
        %v4439 = vsel %vm2136, %v2106, 0
        %v4442 = vsel %vm2136, %v2107, 0
        %v4445 = vsel %vm2136, %v2108, 0
        %v4448 = vsel %vm2136, %v2109, 0
        %v4451 = vsel %vm2136, %v2110, 0
        %v4454 = vsel %vm2136, %v2111, 0
        %v4457 = vsel %vm2136, %v2112, 0
        %v4460 = vsel %vm2136, %v2113, 0
        %v4463 = vsel %vm2136, %v2114, 0
        %v4466 = vsel %vm2136, %v2115, 0
        %v4469 = vsel %vm2136, %v2116, 0
        %v4472 = vsel %vm2136, %v2117, 0
        %v4475 = vsel %vm2136, %v2118, 0
        %v4478 = vsel %vm2136, %v2119, 0
        %4480 = vmatprep.subr.mxu0 0.0
        %4481 = vmatpush1.msra.mxu0 0.0
        %4482 = vmatprep.subr.mxu0 0.0
        %4483 = vmatpush1.msra.mxu0 0.0
        %4484 = vmatprep.subr.mxu0 0.0
        %4485 = vmatpush1.msra.mxu0 0.0
        %4486 = vmatprep.subr.mxu0 0.0
        %4487 = vmatpush1.msra.mxu0 0.0
        %4488 = vmatprep.subr.mxu0 0.0
        %4489 = vmatpush1.msra.mxu0 0.0
        %4490 = vmatprep.subr.mxu0 0.0
        %4491 = vmatpush1.msra.mxu0 0.0
        %4492 = vmatprep.subr.mxu0 0.0
        %4493 = vmatpush1.msra.mxu0 0.0
        %4494 = vmatprep.subr.mxu0 0.0
        %4495 = vmatpush1.msra.mxu0 0.0
        %4496 = vmatprep.subr.mxu0 0.0
        %4497 = vmatpush1.msra.mxu0 0.0
        %4498 = vmatprep.subr.mxu0 0.0
        %4499 = vmatpush1.msra.mxu0 0.0
        %4500 = vmatprep.subr.mxu0 0.0
        %4501 = vmatpush1.msra.mxu0 0.0
        %4502 = vmatprep.subr.mxu0 0.0
        %4503 = vmatpush1.msra.mxu0 0.0
        %4504 = vmatprep.subr.mxu0 0.0
        %4505 = vmatpush1.msra.mxu0 0.0
        %4506 = vmatprep.subr.mxu0 0.0
        %4507 = vmatpush1.msra.mxu0 0.0
        %4508 = vmatprep.subr.mxu0 0.0
        %4509 = vmatpush1.msra.mxu0 %v2135
        %4510 = vmatprep.subr.mxu0 0.0
        %4511 = vmatpush1.msra.mxu0 %v2134
        %4512 = vmatprep.subr.mxu0 0.0
        %4513 = vmatpush2.msra.mxu0 0.0
        %4514 = vmatprep.subr.mxu0 0.0
        %4515 = vmatpush2.msra.mxu0 0.0
        %4516 = vmatprep.subr.mxu0 0.0
        %4517 = vmatpush2.msra.mxu0 0.0
        %4518 = vmatprep.subr.mxu0 0.0
        %4519 = vmatpush2.msra.mxu0 0.0
        %4520 = vmatprep.subr.mxu0 0.0
        %4521 = vmatpush2.msra.mxu0 0.0
        %4522 = vmatprep.subr.mxu0 0.0
        %4523 = vmatpush2.msra.mxu0 0.0
        %4524 = vmatprep.subr.mxu0 0.0
        %4525 = vmatpush2.msra.mxu0 0.0
        %4526 = vmatprep.subr.mxu0 0.0
        %4527 = vmatpush2.msra.mxu0 0.0
        %4528 = vmatprep.subr.mxu0 0.0
        %4529 = vmatpush2.msra.mxu0 0.0
        %4530 = vmatprep.subr.mxu0 0.0
        %4531 = vmatpush2.msra.mxu0 0.0
        %4532 = vmatprep.subr.mxu0 0.0
        %4533 = vmatpush2.msra.mxu0 0.0
        %4534 = vmatprep.subr.mxu0 0.0
        %4535 = vmatpush2.msra.mxu0 0.0
        %4536 = vmatprep.subr.mxu0 0.0
        %4537 = vmatpush2.msra.mxu0 0.0
        %4538 = vmatprep.subr.mxu0 0.0
        %4539 = vmatpush2.msra.mxu0 0.0
        %4540 = vmatprep.subr.mxu0 0.0
        %4541 = vmatpush2.msra.mxu0 0.0
        %4542 = vmatprep.subr.mxu0 0.0
        %4543 = vmatpush2.msra.mxu0 0.0
        %4544 = vmatprep.mubr.f32.mxu0 0.0
        %4545 = vmatmul.mubr.f32.gmra.mxu0 %v4385
        %v4546 = vpop.f32.mrf.mxu0
        %v4547 = vadd.f32 0.0, %v4546
        %v4548 = vpop.f32.mrf.mxu0
        %4549 = vmatprep.mubr.f32.mxu0 0.0
        %4550 = vmatmul.mubr.f32.gmra.mxu0 %v4388
        %v4551 = vpop.f32.mrf.mxu0
        %v4552 = vadd.f32 0.0, %v4551
        %v4553 = vpop.f32.mrf.mxu0
        %4554 = vmatprep.mubr.f32.mxu0 0.0
        %4555 = vmatmul.mubr.f32.gmra.mxu0 %v4391
        %v4556 = vpop.f32.mrf.mxu0
        %v4557 = vadd.f32 0.0, %v4556
        %v4558 = vpop.f32.mrf.mxu0
        %4559 = vmatprep.mubr.f32.mxu0 0.0
        %4560 = vmatmul.mubr.f32.gmra.mxu0 %v4394
        %v4561 = vpop.f32.mrf.mxu0
        %v4562 = vadd.f32 0.0, %v4561
        %v4563 = vpop.f32.mrf.mxu0
        %4564 = vmatprep.mubr.f32.mxu0 0.0
        %4565 = vmatmul.mubr.f32.gmra.mxu0 %v4397
        %v4566 = vpop.f32.mrf.mxu0
        %v4567 = vadd.f32 0.0, %v4566
        %v4568 = vpop.f32.mrf.mxu0
        %4569 = vmatprep.mubr.f32.mxu0 0.0
        %4570 = vmatmul.mubr.f32.gmra.mxu0 %v4400
        %v4571 = vpop.f32.mrf.mxu0
        %v4572 = vadd.f32 0.0, %v4571
        %v4573 = vpop.f32.mrf.mxu0
        %4574 = vmatprep.mubr.f32.mxu0 0.0
        %4575 = vmatmul.mubr.f32.gmra.mxu0 %v4403
        %v4576 = vpop.f32.mrf.mxu0
        %v4577 = vadd.f32 0.0, %v4576
        %v4578 = vpop.f32.mrf.mxu0
        %4579 = vmatprep.mubr.f32.mxu0 0.0
        %4580 = vmatmul.mubr.f32.gmra.mxu0 %v4406
        %v4581 = vpop.f32.mrf.mxu0
        %v4582 = vadd.f32 0.0, %v4581
        %v4583 = vpop.f32.mrf.mxu0
        %4584 = vmatprep.mubr.f32.mxu0 0.0
        %4585 = vmatmul.mubr.f32.gmra.mxu0 %v4409
        %v4586 = vpop.f32.mrf.mxu0
        %v4587 = vadd.f32 0.0, %v4586
        %v4588 = vpop.f32.mrf.mxu0
        %4589 = vmatprep.mubr.f32.mxu0 0.0
        %4590 = vmatmul.mubr.f32.gmra.mxu0 %v4412
        %v4591 = vpop.f32.mrf.mxu0
        %v4592 = vadd.f32 0.0, %v4591
        %v4593 = vpop.f32.mrf.mxu0
        %4594 = vmatprep.mubr.f32.mxu0 0.0
        %4595 = vmatmul.mubr.f32.gmra.mxu0 %v4415
        %v4596 = vpop.f32.mrf.mxu0
        %v4597 = vadd.f32 0.0, %v4596
        %v4598 = vpop.f32.mrf.mxu0
        %4599 = vmatprep.mubr.f32.mxu0 0.0
        %4600 = vmatmul.mubr.f32.gmra.mxu0 %v4418
        %v4601 = vpop.f32.mrf.mxu0
        %v4602 = vadd.f32 0.0, %v4601
        %v4603 = vpop.f32.mrf.mxu0
        %4604 = vmatprep.mubr.f32.mxu0 0.0
        %4605 = vmatmul.mubr.f32.gmra.mxu0 %v4421
        %v4606 = vpop.f32.mrf.mxu0
        %v4607 = vadd.f32 0.0, %v4606
        %v4608 = vpop.f32.mrf.mxu0
        %4609 = vmatprep.mubr.f32.mxu0 0.0
        %4610 = vmatmul.mubr.f32.gmra.mxu0 %v4424
        %v4611 = vpop.f32.mrf.mxu0
        %v4612 = vadd.f32 0.0, %v4611
        %v4613 = vpop.f32.mrf.mxu0
        %4614 = vmatprep.mubr.f32.mxu0 0.0
        %4615 = vmatmul.mubr.f32.gmra.mxu0 %v4427
        %v4616 = vpop.f32.mrf.mxu0
        %v4617 = vadd.f32 0.0, %v4616
        %v4618 = vpop.f32.mrf.mxu0
        %4619 = vmatprep.mubr.f32.mxu0 0.0
        %4620 = vmatmul.mubr.f32.gmra.mxu0 %v4430
        %v4621 = vpop.f32.mrf.mxu0
        %v4622 = vadd.f32 0.0, %v4621
        %v4623 = vpop.f32.mrf.mxu0
        %4624 = vmatprep.mubr.f32.mxu0 0.0
        %4625 = vmatmul.mubr.f32.gmra.mxu0 %v4433
        %v4626 = vpop.f32.mrf.mxu0
        %v4627 = vadd.f32 0.0, %v4626
        %v4628 = vpop.f32.mrf.mxu0
        %4629 = vmatprep.mubr.f32.mxu0 0.0
        %4630 = vmatmul.mubr.f32.gmra.mxu0 %v4436
        %v4631 = vpop.f32.mrf.mxu0
        %v4632 = vadd.f32 0.0, %v4631
        %v4633 = vpop.f32.mrf.mxu0
        %4634 = vmatprep.mubr.f32.mxu0 0.0
        %4635 = vmatmul.mubr.f32.gmra.mxu0 %v4439
        %v4636 = vpop.f32.mrf.mxu0
        %v4637 = vadd.f32 0.0, %v4636
        %v4638 = vpop.f32.mrf.mxu0
        %4639 = vmatprep.mubr.f32.mxu0 0.0
        %4640 = vmatmul.mubr.f32.gmra.mxu0 %v4442
        %v4641 = vpop.f32.mrf.mxu0
        %v4642 = vadd.f32 0.0, %v4641
        %v4643 = vpop.f32.mrf.mxu0
        %4644 = vmatprep.mubr.f32.mxu0 0.0
        %4645 = vmatmul.mubr.f32.gmra.mxu0 %v4445
        %v4646 = vpop.f32.mrf.mxu0
        %v4647 = vadd.f32 0.0, %v4646
        %v4648 = vpop.f32.mrf.mxu0
        %4649 = vmatprep.mubr.f32.mxu0 0.0
        %4650 = vmatmul.mubr.f32.gmra.mxu0 %v4448
        %v4651 = vpop.f32.mrf.mxu0
        %v4652 = vadd.f32 0.0, %v4651
        %v4653 = vpop.f32.mrf.mxu0
        %4654 = vmatprep.mubr.f32.mxu0 0.0
        %4655 = vmatmul.mubr.f32.gmra.mxu0 %v4451
        %v4656 = vpop.f32.mrf.mxu0
        %v4657 = vadd.f32 0.0, %v4656
        %v4658 = vpop.f32.mrf.mxu0
        %4659 = vmatprep.mubr.f32.mxu0 0.0
        %4660 = vmatmul.mubr.f32.gmra.mxu0 %v4454
        %v4661 = vpop.f32.mrf.mxu0
        %v4662 = vadd.f32 0.0, %v4661
        %v4663 = vpop.f32.mrf.mxu0
        %4664 = vmatprep.mubr.f32.mxu0 0.0
        %4665 = vmatmul.mubr.f32.gmra.mxu0 %v4457
        %v4666 = vpop.f32.mrf.mxu0
        %v4667 = vadd.f32 0.0, %v4666
        %v4668 = vpop.f32.mrf.mxu0
        %4669 = vmatprep.mubr.f32.mxu0 0.0
        %4670 = vmatmul.mubr.f32.gmra.mxu0 %v4460
        %v4671 = vpop.f32.mrf.mxu0
        %v4672 = vadd.f32 0.0, %v4671
        %v4673 = vpop.f32.mrf.mxu0
        %4674 = vmatprep.mubr.f32.mxu0 0.0
        %4675 = vmatmul.mubr.f32.gmra.mxu0 %v4463
        %v4676 = vpop.f32.mrf.mxu0
        %v4677 = vadd.f32 0.0, %v4676
        %v4678 = vpop.f32.mrf.mxu0
        %4679 = vmatprep.mubr.f32.mxu0 0.0
        %4680 = vmatmul.mubr.f32.gmra.mxu0 %v4466
        %v4681 = vpop.f32.mrf.mxu0
        %v4682 = vadd.f32 0.0, %v4681
        %v4683 = vpop.f32.mrf.mxu0
        %4684 = vmatprep.mubr.f32.mxu0 0.0
        %4685 = vmatmul.mubr.f32.gmra.mxu0 %v4469
        %v4686 = vpop.f32.mrf.mxu0
        %v4687 = vadd.f32 0.0, %v4686
        %v4688 = vpop.f32.mrf.mxu0
        %4689 = vmatprep.mubr.f32.mxu0 0.0
        %4690 = vmatmul.mubr.f32.gmra.mxu0 %v4472
        %v4691 = vpop.f32.mrf.mxu0
        %v4692 = vadd.f32 0.0, %v4691
        %v4693 = vpop.f32.mrf.mxu0
        %4694 = vmatprep.mubr.f32.mxu0 0.0
        %4695 = vmatmul.mubr.f32.gmra.mxu0 %v4475
        %v4696 = vpop.f32.mrf.mxu0
        %v4697 = vadd.f32 0.0, %v4696
        %v4698 = vpop.f32.mrf.mxu0
        %4699 = vmatprep.mubr.f32.mxu0 0.0
        %4700 = vmatmul.mubr.f32.gmra.mxu0 %v4478
        %v4701 = vpop.f32.mrf.mxu0
        %v4702 = vadd.f32 0.0, %v4701
        %v4703 = vpop.f32.mrf.mxu0
        %4704 = vdwg.mxu0
        %v4705 = vmul.f32 %v2300, %v1864
        %v4706 = vmul.f32 %v2305, %v1865
        %v4707 = vmul.f32 %v2310, %v1866
        %v4708 = vmul.f32 %v2315, %v1867
        %v4709 = vmul.f32 %v2320, %v1868
        %v4710 = vmul.f32 %v2325, %v1869
        %v4711 = vmul.f32 %v2330, %v1870
        %v4712 = vmul.f32 %v2335, %v1871
        %v4713 = vmul.f32 %v2340, %v1872
        %v4714 = vmul.f32 %v2345, %v1873
        %v4715 = vmul.f32 %v2350, %v1874
        %v4716 = vmul.f32 %v2355, %v1875
        %v4717 = vmul.f32 %v2360, %v1876
        %v4718 = vmul.f32 %v2365, %v1877
        %v4719 = vmul.f32 %v2370, %v1878
        %v4720 = vmul.f32 %v2375, %v1879
        %v4721 = vmul.f32 %v2380, %v1880
        %v4722 = vmul.f32 %v2385, %v1881
        %v4723 = vmul.f32 %v2390, %v1882
        %v4724 = vmul.f32 %v2395, %v1883
        %v4725 = vmul.f32 %v2400, %v1884
        %v4726 = vmul.f32 %v2405, %v1885
        %v4727 = vmul.f32 %v2410, %v1886
        %v4728 = vmul.f32 %v2415, %v1887
        %v4729 = vmul.f32 %v2420, %v1888
        %v4730 = vmul.f32 %v2425, %v1889
        %v4731 = vmul.f32 %v2430, %v1890
        %v4732 = vmul.f32 %v2435, %v1891
        %v4733 = vmul.f32 %v2440, %v1892
        %v4734 = vmul.f32 %v2445, %v1893
        %v4735 = vmul.f32 %v2450, %v1894
        %v4736 = vmul.f32 %v2455, %v1895
        %v4737 = vmul.f32 %v2621, %v1896
        %v4738 = vmul.f32 %v2626, %v1897
        %v4739 = vmul.f32 %v2631, %v1898
        %v4740 = vmul.f32 %v2636, %v1899
        %v4741 = vmul.f32 %v2641, %v1900
        %v4742 = vmul.f32 %v2646, %v1901
        %v4743 = vmul.f32 %v2651, %v1902
        %v4744 = vmul.f32 %v2656, %v1903
        %v4745 = vmul.f32 %v2661, %v1904
        %v4746 = vmul.f32 %v2666, %v1905
        %v4747 = vmul.f32 %v2671, %v1906
        %v4748 = vmul.f32 %v2676, %v1907
        %v4749 = vmul.f32 %v2681, %v1908
        %v4750 = vmul.f32 %v2686, %v1909
        %v4751 = vmul.f32 %v2691, %v1910
        %v4752 = vmul.f32 %v2696, %v1911
        %v4753 = vmul.f32 %v2701, %v1912
        %v4754 = vmul.f32 %v2706, %v1913
        %v4755 = vmul.f32 %v2711, %v1914
        %v4756 = vmul.f32 %v2716, %v1915
        %v4757 = vmul.f32 %v2721, %v1916
        %v4758 = vmul.f32 %v2726, %v1917
        %v4759 = vmul.f32 %v2731, %v1918
        %v4760 = vmul.f32 %v2736, %v1919
        %v4761 = vmul.f32 %v2741, %v1920
        %v4762 = vmul.f32 %v2746, %v1921
        %v4763 = vmul.f32 %v2751, %v1922
        %v4764 = vmul.f32 %v2756, %v1923
        %v4765 = vmul.f32 %v2761, %v1924
        %v4766 = vmul.f32 %v2766, %v1925
        %v4767 = vmul.f32 %v2771, %v1926
        %v4768 = vmul.f32 %v2776, %v1927
        %v4769 = vmul.f32 %v2942, %v1928
        %v4770 = vmul.f32 %v2947, %v1929
        %v4771 = vmul.f32 %v2952, %v1930
        %v4772 = vmul.f32 %v2957, %v1931
        %v4773 = vmul.f32 %v2962, %v1932
        %v4774 = vmul.f32 %v2967, %v1933
        %v4775 = vmul.f32 %v2972, %v1934
        %v4776 = vmul.f32 %v2977, %v1935
        %v4777 = vmul.f32 %v2982, %v1936
        %v4778 = vmul.f32 %v2987, %v1937
        %v4779 = vmul.f32 %v2992, %v1938
        %v4780 = vmul.f32 %v2997, %v1939
        %v4781 = vmul.f32 %v3002, %v1940
        %v4782 = vmul.f32 %v3007, %v1941
        %v4783 = vmul.f32 %v3012, %v1942
        %v4784 = vmul.f32 %v3017, %v1943
        %v4785 = vmul.f32 %v3022, %v1944
        %v4786 = vmul.f32 %v3027, %v1945
        %v4787 = vmul.f32 %v3032, %v1946
        %v4788 = vmul.f32 %v3037, %v1947
        %v4789 = vmul.f32 %v3042, %v1948
        %v4790 = vmul.f32 %v3047, %v1949
        %v4791 = vmul.f32 %v3052, %v1950
        %v4792 = vmul.f32 %v3057, %v1951
        %v4793 = vmul.f32 %v3062, %v1952
        %v4794 = vmul.f32 %v3067, %v1953
        %v4795 = vmul.f32 %v3072, %v1954
        %v4796 = vmul.f32 %v3077, %v1955
        %v4797 = vmul.f32 %v3082, %v1956
        %v4798 = vmul.f32 %v3087, %v1957
        %v4799 = vmul.f32 %v3092, %v1958
        %v4800 = vmul.f32 %v3097, %v1959
        %v4801 = vmul.f32 %v3263, %v1960
        %v4802 = vmul.f32 %v3268, %v1961
        %v4803 = vmul.f32 %v3273, %v1962
        %v4804 = vmul.f32 %v3278, %v1963
        %v4805 = vmul.f32 %v3283, %v1964
        %v4806 = vmul.f32 %v3288, %v1965
        %v4807 = vmul.f32 %v3293, %v1966
        %v4808 = vmul.f32 %v3298, %v1967
        %v4809 = vmul.f32 %v3303, %v1968
        %v4810 = vmul.f32 %v3308, %v1969
        %v4811 = vmul.f32 %v3313, %v1970
        %v4812 = vmul.f32 %v3318, %v1971
        %v4813 = vmul.f32 %v3323, %v1972
        %v4814 = vmul.f32 %v3328, %v1973
        %v4815 = vmul.f32 %v3333, %v1974
        %v4816 = vmul.f32 %v3338, %v1975
        %v4817 = vmul.f32 %v3343, %v1976
        %v4818 = vmul.f32 %v3348, %v1977
        %v4819 = vmul.f32 %v3353, %v1978
        %v4820 = vmul.f32 %v3358, %v1979
        %v4821 = vmul.f32 %v3363, %v1980
        %v4822 = vmul.f32 %v3368, %v1981
        %v4823 = vmul.f32 %v3373, %v1982
        %v4824 = vmul.f32 %v3378, %v1983
        %v4825 = vmul.f32 %v3383, %v1984
        %v4826 = vmul.f32 %v3388, %v1985
        %v4827 = vmul.f32 %v3393, %v1986
        %v4828 = vmul.f32 %v3398, %v1987
        %v4829 = vmul.f32 %v3403, %v1988
        %v4830 = vmul.f32 %v3408, %v1989
        %v4831 = vmul.f32 %v3413, %v1990
        %v4832 = vmul.f32 %v3418, %v1991
        %v4833 = vmul.f32 %v3584, %v1992
        %v4834 = vmul.f32 %v3589, %v1993
        %v4835 = vmul.f32 %v3594, %v1994
        %v4836 = vmul.f32 %v3599, %v1995
        %v4837 = vmul.f32 %v3604, %v1996
        %v4838 = vmul.f32 %v3609, %v1997
        %v4839 = vmul.f32 %v3614, %v1998
        %v4840 = vmul.f32 %v3619, %v1999
        %v4841 = vmul.f32 %v3624, %v2000
        %v4842 = vmul.f32 %v3629, %v2001
        %v4843 = vmul.f32 %v3634, %v2002
        %v4844 = vmul.f32 %v3639, %v2003
        %v4845 = vmul.f32 %v3644, %v2004
        %v4846 = vmul.f32 %v3649, %v2005
        %v4847 = vmul.f32 %v3654, %v2006
        %v4848 = vmul.f32 %v3659, %v2007
        %v4849 = vmul.f32 %v3664, %v2008
        %v4850 = vmul.f32 %v3669, %v2009
        %v4851 = vmul.f32 %v3674, %v2010
        %v4852 = vmul.f32 %v3679, %v2011
        %v4853 = vmul.f32 %v3684, %v2012
        %v4854 = vmul.f32 %v3689, %v2013
        %v4855 = vmul.f32 %v3694, %v2014
        %v4856 = vmul.f32 %v3699, %v2015
        %v4857 = vmul.f32 %v3704, %v2016
        %v4858 = vmul.f32 %v3709, %v2017
        %v4859 = vmul.f32 %v3714, %v2018
        %v4860 = vmul.f32 %v3719, %v2019
        %v4861 = vmul.f32 %v3724, %v2020
        %v4862 = vmul.f32 %v3729, %v2021
        %v4863 = vmul.f32 %v3734, %v2022
        %v4864 = vmul.f32 %v3739, %v2023
        %v4865 = vmul.f32 %v3905, %v2024
        %v4866 = vmul.f32 %v3910, %v2025
        %v4867 = vmul.f32 %v3915, %v2026
        %v4868 = vmul.f32 %v3920, %v2027
        %v4869 = vmul.f32 %v3925, %v2028
        %v4870 = vmul.f32 %v3930, %v2029
        %v4871 = vmul.f32 %v3935, %v2030
        %v4872 = vmul.f32 %v3940, %v2031
        %v4873 = vmul.f32 %v3945, %v2032
        %v4874 = vmul.f32 %v3950, %v2033
        %v4875 = vmul.f32 %v3955, %v2034
        %v4876 = vmul.f32 %v3960, %v2035
        %v4877 = vmul.f32 %v3965, %v2036
        %v4878 = vmul.f32 %v3970, %v2037
        %v4879 = vmul.f32 %v3975, %v2038
        %v4880 = vmul.f32 %v3980, %v2039
        %v4881 = vmul.f32 %v3985, %v2040
        %v4882 = vmul.f32 %v3990, %v2041
        %v4883 = vmul.f32 %v3995, %v2042
        %v4884 = vmul.f32 %v4000, %v2043
        %v4885 = vmul.f32 %v4005, %v2044
        %v4886 = vmul.f32 %v4010, %v2045
        %v4887 = vmul.f32 %v4015, %v2046
        %v4888 = vmul.f32 %v4020, %v2047
        %v4889 = vmul.f32 %v4025, %v2048
        %v4890 = vmul.f32 %v4030, %v2049
        %v4891 = vmul.f32 %v4035, %v2050
        %v4892 = vmul.f32 %v4040, %v2051
        %v4893 = vmul.f32 %v4045, %v2052
        %v4894 = vmul.f32 %v4050, %v2053
        %v4895 = vmul.f32 %v4055, %v2054
        %v4896 = vmul.f32 %v4060, %v2055
        %v4897 = vmul.f32 %v4226, %v2056
        %v4898 = vmul.f32 %v4231, %v2057
        %v4899 = vmul.f32 %v4236, %v2058
        %v4900 = vmul.f32 %v4241, %v2059
        %v4901 = vmul.f32 %v4246, %v2060
        %v4902 = vmul.f32 %v4251, %v2061
        %v4903 = vmul.f32 %v4256, %v2062
        %v4904 = vmul.f32 %v4261, %v2063
        %v4905 = vmul.f32 %v4266, %v2064
        %v4906 = vmul.f32 %v4271, %v2065
        %v4907 = vmul.f32 %v4276, %v2066
        %v4908 = vmul.f32 %v4281, %v2067
        %v4909 = vmul.f32 %v4286, %v2068
        %v4910 = vmul.f32 %v4291, %v2069
        %v4911 = vmul.f32 %v4296, %v2070
        %v4912 = vmul.f32 %v4301, %v2071
        %v4913 = vmul.f32 %v4306, %v2072
        %v4914 = vmul.f32 %v4311, %v2073
        %v4915 = vmul.f32 %v4316, %v2074
        %v4916 = vmul.f32 %v4321, %v2075
        %v4917 = vmul.f32 %v4326, %v2076
        %v4918 = vmul.f32 %v4331, %v2077
        %v4919 = vmul.f32 %v4336, %v2078
        %v4920 = vmul.f32 %v4341, %v2079
        %v4921 = vmul.f32 %v4346, %v2080
        %v4922 = vmul.f32 %v4351, %v2081
        %v4923 = vmul.f32 %v4356, %v2082
        %v4924 = vmul.f32 %v4361, %v2083
        %v4925 = vmul.f32 %v4366, %v2084
        %v4926 = vmul.f32 %v4371, %v2085
        %v4927 = vmul.f32 %v4376, %v2086
        %v4928 = vmul.f32 %v4381, %v2087
        %v4929 = vmul.f32 %v4547, %v2088
        %v4930 = vmul.f32 %v4552, %v2089
        %v4931 = vmul.f32 %v4557, %v2090
        %v4932 = vmul.f32 %v4562, %v2091
        %v4933 = vmul.f32 %v4567, %v2092
        %v4934 = vmul.f32 %v4572, %v2093
        %v4935 = vmul.f32 %v4577, %v2094
        %v4936 = vmul.f32 %v4582, %v2095
        %v4937 = vmul.f32 %v4587, %v2096
        %v4938 = vmul.f32 %v4592, %v2097
        %v4939 = vmul.f32 %v4597, %v2098
        %v4940 = vmul.f32 %v4602, %v2099
        %v4941 = vmul.f32 %v4607, %v2100
        %v4942 = vmul.f32 %v4612, %v2101
        %v4943 = vmul.f32 %v4617, %v2102
        %v4944 = vmul.f32 %v4622, %v2103
        %v4945 = vmul.f32 %v4627, %v2104
        %v4946 = vmul.f32 %v4632, %v2105
        %v4947 = vmul.f32 %v4637, %v2106
        %v4948 = vmul.f32 %v4642, %v2107
        %v4949 = vmul.f32 %v4647, %v2108
        %v4950 = vmul.f32 %v4652, %v2109
        %v4951 = vmul.f32 %v4657, %v2110
        %v4952 = vmul.f32 %v4662, %v2111
        %v4953 = vmul.f32 %v4667, %v2112
        %v4954 = vmul.f32 %v4672, %v2113
        %v4955 = vmul.f32 %v4677, %v2114
        %v4956 = vmul.f32 %v4682, %v2115
        %v4957 = vmul.f32 %v4687, %v2116
        %v4958 = vmul.f32 %v4692, %v2117
        %v4959 = vmul.f32 %v4697, %v2118
        %v4960 = vmul.f32 %v4702, %v2119
        %v4961 = vsel %vm2136, %v4705, 0.0
        %4962 = vadd.xlane.f32.xlu0 %v4961
        %v4963 = vpop.xlane.xlu0 %4962
        %v4964 = vsel %vm2136, %v4706, 0.0
        %4965 = vadd.xlane.f32.xlu0 %v4964
        %v4966 = vpop.xlane.xlu0 %4965
        %v4967 = vsel %vm2136, %v4707, 0.0
        %4968 = vadd.xlane.f32.xlu0 %v4967
        %v4969 = vpop.xlane.xlu0 %4968
        %v4970 = vsel %vm2136, %v4708, 0.0
        %4971 = vadd.xlane.f32.xlu0 %v4970
        %v4972 = vpop.xlane.xlu0 %4971
        %v4973 = vsel %vm2136, %v4709, 0.0
        %4974 = vadd.xlane.f32.xlu0 %v4973
        %v4975 = vpop.xlane.xlu0 %4974
        %v4976 = vsel %vm2136, %v4710, 0.0
        %4977 = vadd.xlane.f32.xlu0 %v4976
        %v4978 = vpop.xlane.xlu0 %4977
        %v4979 = vsel %vm2136, %v4711, 0.0
        %4980 = vadd.xlane.f32.xlu0 %v4979
        %v4981 = vpop.xlane.xlu0 %4980
        %v4982 = vsel %vm2136, %v4712, 0.0
        %4983 = vadd.xlane.f32.xlu0 %v4982
        %v4984 = vpop.xlane.xlu0 %4983
        %v4985 = vsel %vm2136, %v4713, 0.0
        %4986 = vadd.xlane.f32.xlu0 %v4985
        %v4987 = vpop.xlane.xlu0 %4986
        %v4988 = vsel %vm2136, %v4714, 0.0
        %4989 = vadd.xlane.f32.xlu0 %v4988
        %v4990 = vpop.xlane.xlu0 %4989
        %v4991 = vsel %vm2136, %v4715, 0.0
        %4992 = vadd.xlane.f32.xlu0 %v4991
        %v4993 = vpop.xlane.xlu0 %4992
        %v4994 = vsel %vm2136, %v4716, 0.0
        %4995 = vadd.xlane.f32.xlu0 %v4994
        %v4996 = vpop.xlane.xlu0 %4995
        %v4997 = vsel %vm2136, %v4717, 0.0
        %4998 = vadd.xlane.f32.xlu0 %v4997
        %v4999 = vpop.xlane.xlu0 %4998
        %v5000 = vsel %vm2136, %v4718, 0.0
        %5001 = vadd.xlane.f32.xlu0 %v5000
        %v5002 = vpop.xlane.xlu0 %5001
        %v5003 = vsel %vm2136, %v4719, 0.0
        %5004 = vadd.xlane.f32.xlu0 %v5003
        %v5005 = vpop.xlane.xlu0 %5004
        %v5006 = vsel %vm2136, %v4720, 0.0
        %5007 = vadd.xlane.f32.xlu0 %v5006
        %v5008 = vpop.xlane.xlu0 %5007
        %v5009 = vsel %vm2136, %v4721, 0.0
        %5010 = vadd.xlane.f32.xlu0 %v5009
        %v5011 = vpop.xlane.xlu0 %5010
        %v5012 = vsel %vm2136, %v4722, 0.0
        %5013 = vadd.xlane.f32.xlu0 %v5012
        %v5014 = vpop.xlane.xlu0 %5013
        %v5015 = vsel %vm2136, %v4723, 0.0
        %5016 = vadd.xlane.f32.xlu0 %v5015
        %v5017 = vpop.xlane.xlu0 %5016
        %v5018 = vsel %vm2136, %v4724, 0.0
        %5019 = vadd.xlane.f32.xlu0 %v5018
        %v5020 = vpop.xlane.xlu0 %5019
        %v5021 = vsel %vm2136, %v4725, 0.0
        %5022 = vadd.xlane.f32.xlu0 %v5021
        %v5023 = vpop.xlane.xlu0 %5022
        %v5024 = vsel %vm2136, %v4726, 0.0
        %5025 = vadd.xlane.f32.xlu0 %v5024
        %v5026 = vpop.xlane.xlu0 %5025
        %v5027 = vsel %vm2136, %v4727, 0.0
        %5028 = vadd.xlane.f32.xlu0 %v5027
        %v5029 = vpop.xlane.xlu0 %5028
        %v5030 = vsel %vm2136, %v4728, 0.0
        %5031 = vadd.xlane.f32.xlu0 %v5030
        %v5032 = vpop.xlane.xlu0 %5031
        %v5033 = vsel %vm2136, %v4729, 0.0
        %5034 = vadd.xlane.f32.xlu0 %v5033
        %v5035 = vpop.xlane.xlu0 %5034
        %v5036 = vsel %vm2136, %v4730, 0.0
        %5037 = vadd.xlane.f32.xlu0 %v5036
        %v5038 = vpop.xlane.xlu0 %5037
        %v5039 = vsel %vm2136, %v4731, 0.0
        %5040 = vadd.xlane.f32.xlu0 %v5039
        %v5041 = vpop.xlane.xlu0 %5040
        %v5042 = vsel %vm2136, %v4732, 0.0
        %5043 = vadd.xlane.f32.xlu0 %v5042
        %v5044 = vpop.xlane.xlu0 %5043
        %v5045 = vsel %vm2136, %v4733, 0.0
        %5046 = vadd.xlane.f32.xlu0 %v5045
        %v5047 = vpop.xlane.xlu0 %5046
        %v5048 = vsel %vm2136, %v4734, 0.0
        %5049 = vadd.xlane.f32.xlu0 %v5048
        %v5050 = vpop.xlane.xlu0 %5049
        %v5051 = vsel %vm2136, %v4735, 0.0
        %5052 = vadd.xlane.f32.xlu0 %v5051
        %v5053 = vpop.xlane.xlu0 %5052
        %v5054 = vsel %vm2136, %v4736, 0.0
        %5055 = vadd.xlane.f32.xlu0 %v5054
        %v5056 = vpop.xlane.xlu0 %5055
        %v5057 = vsel %vm2136, %v4737, 0.0
        %5058 = vadd.xlane.f32.xlu0 %v5057
        %v5059 = vpop.xlane.xlu0 %5058
        %v5060 = vsel %vm2136, %v4738, 0.0
        %5061 = vadd.xlane.f32.xlu0 %v5060
        %v5062 = vpop.xlane.xlu0 %5061
        %v5063 = vsel %vm2136, %v4739, 0.0
        %5064 = vadd.xlane.f32.xlu0 %v5063
        %v5065 = vpop.xlane.xlu0 %5064
        %v5066 = vsel %vm2136, %v4740, 0.0
        %5067 = vadd.xlane.f32.xlu0 %v5066
        %v5068 = vpop.xlane.xlu0 %5067
        %v5069 = vsel %vm2136, %v4741, 0.0
        %5070 = vadd.xlane.f32.xlu0 %v5069
        %v5071 = vpop.xlane.xlu0 %5070
        %v5072 = vsel %vm2136, %v4742, 0.0
        %5073 = vadd.xlane.f32.xlu0 %v5072
        %v5074 = vpop.xlane.xlu0 %5073
        %v5075 = vsel %vm2136, %v4743, 0.0
        %5076 = vadd.xlane.f32.xlu0 %v5075
        %v5077 = vpop.xlane.xlu0 %5076
        %v5078 = vsel %vm2136, %v4744, 0.0
        %5079 = vadd.xlane.f32.xlu0 %v5078
        %v5080 = vpop.xlane.xlu0 %5079
        %v5081 = vsel %vm2136, %v4745, 0.0
        %5082 = vadd.xlane.f32.xlu0 %v5081
        %v5083 = vpop.xlane.xlu0 %5082
        %v5084 = vsel %vm2136, %v4746, 0.0
        %5085 = vadd.xlane.f32.xlu0 %v5084
        %v5086 = vpop.xlane.xlu0 %5085
        %v5087 = vsel %vm2136, %v4747, 0.0
        %5088 = vadd.xlane.f32.xlu0 %v5087
        %v5089 = vpop.xlane.xlu0 %5088
        %v5090 = vsel %vm2136, %v4748, 0.0
        %5091 = vadd.xlane.f32.xlu0 %v5090
        %v5092 = vpop.xlane.xlu0 %5091
        %v5093 = vsel %vm2136, %v4749, 0.0
        %5094 = vadd.xlane.f32.xlu0 %v5093
        %v5095 = vpop.xlane.xlu0 %5094
        %v5096 = vsel %vm2136, %v4750, 0.0
        %5097 = vadd.xlane.f32.xlu0 %v5096
        %v5098 = vpop.xlane.xlu0 %5097
        %v5099 = vsel %vm2136, %v4751, 0.0
        %5100 = vadd.xlane.f32.xlu0 %v5099
        %v5101 = vpop.xlane.xlu0 %5100
        %v5102 = vsel %vm2136, %v4752, 0.0
        %5103 = vadd.xlane.f32.xlu0 %v5102
        %v5104 = vpop.xlane.xlu0 %5103
        %v5105 = vsel %vm2136, %v4753, 0.0
        %5106 = vadd.xlane.f32.xlu0 %v5105
        %v5107 = vpop.xlane.xlu0 %5106
        %v5108 = vsel %vm2136, %v4754, 0.0
        %5109 = vadd.xlane.f32.xlu0 %v5108
        %v5110 = vpop.xlane.xlu0 %5109
        %v5111 = vsel %vm2136, %v4755, 0.0
        %5112 = vadd.xlane.f32.xlu0 %v5111
        %v5113 = vpop.xlane.xlu0 %5112
        %v5114 = vsel %vm2136, %v4756, 0.0
        %5115 = vadd.xlane.f32.xlu0 %v5114
        %v5116 = vpop.xlane.xlu0 %5115
        %v5117 = vsel %vm2136, %v4757, 0.0
        %5118 = vadd.xlane.f32.xlu0 %v5117
        %v5119 = vpop.xlane.xlu0 %5118
        %v5120 = vsel %vm2136, %v4758, 0.0
        %5121 = vadd.xlane.f32.xlu0 %v5120
        %v5122 = vpop.xlane.xlu0 %5121
        %v5123 = vsel %vm2136, %v4759, 0.0
        %5124 = vadd.xlane.f32.xlu0 %v5123
        %v5125 = vpop.xlane.xlu0 %5124
        %v5126 = vsel %vm2136, %v4760, 0.0
        %5127 = vadd.xlane.f32.xlu0 %v5126
        %v5128 = vpop.xlane.xlu0 %5127
        %v5129 = vsel %vm2136, %v4761, 0.0
        %5130 = vadd.xlane.f32.xlu0 %v5129
        %v5131 = vpop.xlane.xlu0 %5130
        %v5132 = vsel %vm2136, %v4762, 0.0
        %5133 = vadd.xlane.f32.xlu0 %v5132
        %v5134 = vpop.xlane.xlu0 %5133
        %v5135 = vsel %vm2136, %v4763, 0.0
        %5136 = vadd.xlane.f32.xlu0 %v5135
        %v5137 = vpop.xlane.xlu0 %5136
        %v5138 = vsel %vm2136, %v4764, 0.0
        %5139 = vadd.xlane.f32.xlu0 %v5138
        %v5140 = vpop.xlane.xlu0 %5139
        %v5141 = vsel %vm2136, %v4765, 0.0
        %5142 = vadd.xlane.f32.xlu0 %v5141
        %v5143 = vpop.xlane.xlu0 %5142
        %v5144 = vsel %vm2136, %v4766, 0.0
        %5145 = vadd.xlane.f32.xlu0 %v5144
        %v5146 = vpop.xlane.xlu0 %5145
        %v5147 = vsel %vm2136, %v4767, 0.0
        %5148 = vadd.xlane.f32.xlu0 %v5147
        %v5149 = vpop.xlane.xlu0 %5148
        %v5150 = vsel %vm2136, %v4768, 0.0
        %5151 = vadd.xlane.f32.xlu0 %v5150
        %v5152 = vpop.xlane.xlu0 %5151
        %v5153 = vsel %vm2136, %v4769, 0.0
        %5154 = vadd.xlane.f32.xlu0 %v5153
        %v5155 = vpop.xlane.xlu0 %5154
        %v5156 = vsel %vm2136, %v4770, 0.0
        %5157 = vadd.xlane.f32.xlu0 %v5156
        %v5158 = vpop.xlane.xlu0 %5157
        %v5159 = vsel %vm2136, %v4771, 0.0
        %5160 = vadd.xlane.f32.xlu0 %v5159
        %v5161 = vpop.xlane.xlu0 %5160
        %v5162 = vsel %vm2136, %v4772, 0.0
        %5163 = vadd.xlane.f32.xlu0 %v5162
        %v5164 = vpop.xlane.xlu0 %5163
        %v5165 = vsel %vm2136, %v4773, 0.0
        %5166 = vadd.xlane.f32.xlu0 %v5165
        %v5167 = vpop.xlane.xlu0 %5166
        %v5168 = vsel %vm2136, %v4774, 0.0
        %5169 = vadd.xlane.f32.xlu0 %v5168
        %v5170 = vpop.xlane.xlu0 %5169
        %v5171 = vsel %vm2136, %v4775, 0.0
        %5172 = vadd.xlane.f32.xlu0 %v5171
        %v5173 = vpop.xlane.xlu0 %5172
        %v5174 = vsel %vm2136, %v4776, 0.0
        %5175 = vadd.xlane.f32.xlu0 %v5174
        %v5176 = vpop.xlane.xlu0 %5175
        %v5177 = vsel %vm2136, %v4777, 0.0
        %5178 = vadd.xlane.f32.xlu0 %v5177
        %v5179 = vpop.xlane.xlu0 %5178
        %v5180 = vsel %vm2136, %v4778, 0.0
        %5181 = vadd.xlane.f32.xlu0 %v5180
        %v5182 = vpop.xlane.xlu0 %5181
        %v5183 = vsel %vm2136, %v4779, 0.0
        %5184 = vadd.xlane.f32.xlu0 %v5183
        %v5185 = vpop.xlane.xlu0 %5184
        %v5186 = vsel %vm2136, %v4780, 0.0
        %5187 = vadd.xlane.f32.xlu0 %v5186
        %v5188 = vpop.xlane.xlu0 %5187
        %v5189 = vsel %vm2136, %v4781, 0.0
        %5190 = vadd.xlane.f32.xlu0 %v5189
        %v5191 = vpop.xlane.xlu0 %5190
        %v5192 = vsel %vm2136, %v4782, 0.0
        %5193 = vadd.xlane.f32.xlu0 %v5192
        %v5194 = vpop.xlane.xlu0 %5193
        %v5195 = vsel %vm2136, %v4783, 0.0
        %5196 = vadd.xlane.f32.xlu0 %v5195
        %v5197 = vpop.xlane.xlu0 %5196
        %v5198 = vsel %vm2136, %v4784, 0.0
        %5199 = vadd.xlane.f32.xlu0 %v5198
        %v5200 = vpop.xlane.xlu0 %5199
        %v5201 = vsel %vm2136, %v4785, 0.0
        %5202 = vadd.xlane.f32.xlu0 %v5201
        %v5203 = vpop.xlane.xlu0 %5202
        %v5204 = vsel %vm2136, %v4786, 0.0
        %5205 = vadd.xlane.f32.xlu0 %v5204
        %v5206 = vpop.xlane.xlu0 %5205
        %v5207 = vsel %vm2136, %v4787, 0.0
        %5208 = vadd.xlane.f32.xlu0 %v5207
        %v5209 = vpop.xlane.xlu0 %5208
        %v5210 = vsel %vm2136, %v4788, 0.0
        %5211 = vadd.xlane.f32.xlu0 %v5210
        %v5212 = vpop.xlane.xlu0 %5211
        %v5213 = vsel %vm2136, %v4789, 0.0
        %5214 = vadd.xlane.f32.xlu0 %v5213
        %v5215 = vpop.xlane.xlu0 %5214
        %v5216 = vsel %vm2136, %v4790, 0.0
        %5217 = vadd.xlane.f32.xlu0 %v5216
        %v5218 = vpop.xlane.xlu0 %5217
        %v5219 = vsel %vm2136, %v4791, 0.0
        %5220 = vadd.xlane.f32.xlu0 %v5219
        %v5221 = vpop.xlane.xlu0 %5220
        %v5222 = vsel %vm2136, %v4792, 0.0
        %5223 = vadd.xlane.f32.xlu0 %v5222
        %v5224 = vpop.xlane.xlu0 %5223
        %v5225 = vsel %vm2136, %v4793, 0.0
        %5226 = vadd.xlane.f32.xlu0 %v5225
        %v5227 = vpop.xlane.xlu0 %5226
        %v5228 = vsel %vm2136, %v4794, 0.0
        %5229 = vadd.xlane.f32.xlu0 %v5228
        %v5230 = vpop.xlane.xlu0 %5229
        %v5231 = vsel %vm2136, %v4795, 0.0
        %5232 = vadd.xlane.f32.xlu0 %v5231
        %v5233 = vpop.xlane.xlu0 %5232
        %v5234 = vsel %vm2136, %v4796, 0.0
        %5235 = vadd.xlane.f32.xlu0 %v5234
        %v5236 = vpop.xlane.xlu0 %5235
        %v5237 = vsel %vm2136, %v4797, 0.0
        %5238 = vadd.xlane.f32.xlu0 %v5237
        %v5239 = vpop.xlane.xlu0 %5238
        %v5240 = vsel %vm2136, %v4798, 0.0
        %5241 = vadd.xlane.f32.xlu0 %v5240
        %v5242 = vpop.xlane.xlu0 %5241
        %v5243 = vsel %vm2136, %v4799, 0.0
        %5244 = vadd.xlane.f32.xlu0 %v5243
        %v5245 = vpop.xlane.xlu0 %5244
        %v5246 = vsel %vm2136, %v4800, 0.0
        %5247 = vadd.xlane.f32.xlu0 %v5246
        %v5248 = vpop.xlane.xlu0 %5247
        %v5249 = vsel %vm2136, %v4801, 0.0
        %5250 = vadd.xlane.f32.xlu0 %v5249
        %v5251 = vpop.xlane.xlu0 %5250
        %v5252 = vsel %vm2136, %v4802, 0.0
        %5253 = vadd.xlane.f32.xlu0 %v5252
        %v5254 = vpop.xlane.xlu0 %5253
        %v5255 = vsel %vm2136, %v4803, 0.0
        %5256 = vadd.xlane.f32.xlu0 %v5255
        %v5257 = vpop.xlane.xlu0 %5256
        %v5258 = vsel %vm2136, %v4804, 0.0
        %5259 = vadd.xlane.f32.xlu0 %v5258
        %v5260 = vpop.xlane.xlu0 %5259
        %v5261 = vsel %vm2136, %v4805, 0.0
        %5262 = vadd.xlane.f32.xlu0 %v5261
        %v5263 = vpop.xlane.xlu0 %5262
        %v5264 = vsel %vm2136, %v4806, 0.0
        %5265 = vadd.xlane.f32.xlu0 %v5264
        %v5266 = vpop.xlane.xlu0 %5265
        %v5267 = vsel %vm2136, %v4807, 0.0
        %5268 = vadd.xlane.f32.xlu0 %v5267
        %v5269 = vpop.xlane.xlu0 %5268
        %v5270 = vsel %vm2136, %v4808, 0.0
        %5271 = vadd.xlane.f32.xlu0 %v5270
        %v5272 = vpop.xlane.xlu0 %5271
        %v5273 = vsel %vm2136, %v4809, 0.0
        %5274 = vadd.xlane.f32.xlu0 %v5273
        %v5275 = vpop.xlane.xlu0 %5274
        %v5276 = vsel %vm2136, %v4810, 0.0
        %5277 = vadd.xlane.f32.xlu0 %v5276
        %v5278 = vpop.xlane.xlu0 %5277
        %v5279 = vsel %vm2136, %v4811, 0.0
        %5280 = vadd.xlane.f32.xlu0 %v5279
        %v5281 = vpop.xlane.xlu0 %5280
        %v5282 = vsel %vm2136, %v4812, 0.0
        %5283 = vadd.xlane.f32.xlu0 %v5282
        %v5284 = vpop.xlane.xlu0 %5283
        %v5285 = vsel %vm2136, %v4813, 0.0
        %5286 = vadd.xlane.f32.xlu0 %v5285
        %v5287 = vpop.xlane.xlu0 %5286
        %v5288 = vsel %vm2136, %v4814, 0.0
        %5289 = vadd.xlane.f32.xlu0 %v5288
        %v5290 = vpop.xlane.xlu0 %5289
        %v5291 = vsel %vm2136, %v4815, 0.0
        %5292 = vadd.xlane.f32.xlu0 %v5291
        %v5293 = vpop.xlane.xlu0 %5292
        %v5294 = vsel %vm2136, %v4816, 0.0
        %5295 = vadd.xlane.f32.xlu0 %v5294
        %v5296 = vpop.xlane.xlu0 %5295
        %v5297 = vsel %vm2136, %v4817, 0.0
        %5298 = vadd.xlane.f32.xlu0 %v5297
        %v5299 = vpop.xlane.xlu0 %5298
        %v5300 = vsel %vm2136, %v4818, 0.0
        %5301 = vadd.xlane.f32.xlu0 %v5300
        %v5302 = vpop.xlane.xlu0 %5301
        %v5303 = vsel %vm2136, %v4819, 0.0
        %5304 = vadd.xlane.f32.xlu0 %v5303
        %v5305 = vpop.xlane.xlu0 %5304
        %v5306 = vsel %vm2136, %v4820, 0.0
        %5307 = vadd.xlane.f32.xlu0 %v5306
        %v5308 = vpop.xlane.xlu0 %5307
        %v5309 = vsel %vm2136, %v4821, 0.0
        %5310 = vadd.xlane.f32.xlu0 %v5309
        %v5311 = vpop.xlane.xlu0 %5310
        %v5312 = vsel %vm2136, %v4822, 0.0
        %5313 = vadd.xlane.f32.xlu0 %v5312
        %v5314 = vpop.xlane.xlu0 %5313
        %v5315 = vsel %vm2136, %v4823, 0.0
        %5316 = vadd.xlane.f32.xlu0 %v5315
        %v5317 = vpop.xlane.xlu0 %5316
        %v5318 = vsel %vm2136, %v4824, 0.0
        %5319 = vadd.xlane.f32.xlu0 %v5318
        %v5320 = vpop.xlane.xlu0 %5319
        %v5321 = vsel %vm2136, %v4825, 0.0
        %5322 = vadd.xlane.f32.xlu0 %v5321
        %v5323 = vpop.xlane.xlu0 %5322
        %v5324 = vsel %vm2136, %v4826, 0.0
        %5325 = vadd.xlane.f32.xlu0 %v5324
        %v5326 = vpop.xlane.xlu0 %5325
        %v5327 = vsel %vm2136, %v4827, 0.0
        %5328 = vadd.xlane.f32.xlu0 %v5327
        %v5329 = vpop.xlane.xlu0 %5328
        %v5330 = vsel %vm2136, %v4828, 0.0
        %5331 = vadd.xlane.f32.xlu0 %v5330
        %v5332 = vpop.xlane.xlu0 %5331
        %v5333 = vsel %vm2136, %v4829, 0.0
        %5334 = vadd.xlane.f32.xlu0 %v5333
        %v5335 = vpop.xlane.xlu0 %5334
        %v5336 = vsel %vm2136, %v4830, 0.0
        %5337 = vadd.xlane.f32.xlu0 %v5336
        %v5338 = vpop.xlane.xlu0 %5337
        %v5339 = vsel %vm2136, %v4831, 0.0
        %5340 = vadd.xlane.f32.xlu0 %v5339
        %v5341 = vpop.xlane.xlu0 %5340
        %v5342 = vsel %vm2136, %v4832, 0.0
        %5343 = vadd.xlane.f32.xlu0 %v5342
        %v5344 = vpop.xlane.xlu0 %5343
        %v5345 = vsel %vm2136, %v4833, 0.0
        %5346 = vadd.xlane.f32.xlu0 %v5345
        %v5347 = vpop.xlane.xlu0 %5346
        %v5348 = vsel %vm2136, %v4834, 0.0
        %5349 = vadd.xlane.f32.xlu0 %v5348
        %v5350 = vpop.xlane.xlu0 %5349
        %v5351 = vsel %vm2136, %v4835, 0.0
        %5352 = vadd.xlane.f32.xlu0 %v5351
        %v5353 = vpop.xlane.xlu0 %5352
        %v5354 = vsel %vm2136, %v4836, 0.0
        %5355 = vadd.xlane.f32.xlu0 %v5354
        %v5356 = vpop.xlane.xlu0 %5355
        %v5357 = vsel %vm2136, %v4837, 0.0
        %5358 = vadd.xlane.f32.xlu0 %v5357
        %v5359 = vpop.xlane.xlu0 %5358
        %v5360 = vsel %vm2136, %v4838, 0.0
        %5361 = vadd.xlane.f32.xlu0 %v5360
        %v5362 = vpop.xlane.xlu0 %5361
        %v5363 = vsel %vm2136, %v4839, 0.0
        %5364 = vadd.xlane.f32.xlu0 %v5363
        %v5365 = vpop.xlane.xlu0 %5364
        %v5366 = vsel %vm2136, %v4840, 0.0
        %5367 = vadd.xlane.f32.xlu0 %v5366
        %v5368 = vpop.xlane.xlu0 %5367
        %v5369 = vsel %vm2136, %v4841, 0.0
        %5370 = vadd.xlane.f32.xlu0 %v5369
        %v5371 = vpop.xlane.xlu0 %5370
        %v5372 = vsel %vm2136, %v4842, 0.0
        %5373 = vadd.xlane.f32.xlu0 %v5372
        %v5374 = vpop.xlane.xlu0 %5373
        %v5375 = vsel %vm2136, %v4843, 0.0
        %5376 = vadd.xlane.f32.xlu0 %v5375
        %v5377 = vpop.xlane.xlu0 %5376
        %v5378 = vsel %vm2136, %v4844, 0.0
        %5379 = vadd.xlane.f32.xlu0 %v5378
        %v5380 = vpop.xlane.xlu0 %5379
        %v5381 = vsel %vm2136, %v4845, 0.0
        %5382 = vadd.xlane.f32.xlu0 %v5381
        %v5383 = vpop.xlane.xlu0 %5382
        %v5384 = vsel %vm2136, %v4846, 0.0
        %5385 = vadd.xlane.f32.xlu0 %v5384
        %v5386 = vpop.xlane.xlu0 %5385
        %v5387 = vsel %vm2136, %v4847, 0.0
        %5388 = vadd.xlane.f32.xlu0 %v5387
        %v5389 = vpop.xlane.xlu0 %5388
        %v5390 = vsel %vm2136, %v4848, 0.0
        %5391 = vadd.xlane.f32.xlu0 %v5390
        %v5392 = vpop.xlane.xlu0 %5391
        %v5393 = vsel %vm2136, %v4849, 0.0
        %5394 = vadd.xlane.f32.xlu0 %v5393
        %v5395 = vpop.xlane.xlu0 %5394
        %v5396 = vsel %vm2136, %v4850, 0.0
        %5397 = vadd.xlane.f32.xlu0 %v5396
        %v5398 = vpop.xlane.xlu0 %5397
        %v5399 = vsel %vm2136, %v4851, 0.0
        %5400 = vadd.xlane.f32.xlu0 %v5399
        %v5401 = vpop.xlane.xlu0 %5400
        %v5402 = vsel %vm2136, %v4852, 0.0
        %5403 = vadd.xlane.f32.xlu0 %v5402
        %v5404 = vpop.xlane.xlu0 %5403
        %v5405 = vsel %vm2136, %v4853, 0.0
        %5406 = vadd.xlane.f32.xlu0 %v5405
        %v5407 = vpop.xlane.xlu0 %5406
        %v5408 = vsel %vm2136, %v4854, 0.0
        %5409 = vadd.xlane.f32.xlu0 %v5408
        %v5410 = vpop.xlane.xlu0 %5409
        %v5411 = vsel %vm2136, %v4855, 0.0
        %5412 = vadd.xlane.f32.xlu0 %v5411
        %v5413 = vpop.xlane.xlu0 %5412
        %v5414 = vsel %vm2136, %v4856, 0.0
        %5415 = vadd.xlane.f32.xlu0 %v5414
        %v5416 = vpop.xlane.xlu0 %5415
        %v5417 = vsel %vm2136, %v4857, 0.0
        %5418 = vadd.xlane.f32.xlu0 %v5417
        %v5419 = vpop.xlane.xlu0 %5418
        %v5420 = vsel %vm2136, %v4858, 0.0
        %5421 = vadd.xlane.f32.xlu0 %v5420
        %v5422 = vpop.xlane.xlu0 %5421
        %v5423 = vsel %vm2136, %v4859, 0.0
        %5424 = vadd.xlane.f32.xlu0 %v5423
        %v5425 = vpop.xlane.xlu0 %5424
        %v5426 = vsel %vm2136, %v4860, 0.0
        %5427 = vadd.xlane.f32.xlu0 %v5426
        %v5428 = vpop.xlane.xlu0 %5427
        %v5429 = vsel %vm2136, %v4861, 0.0
        %5430 = vadd.xlane.f32.xlu0 %v5429
        %v5431 = vpop.xlane.xlu0 %5430
        %v5432 = vsel %vm2136, %v4862, 0.0
        %5433 = vadd.xlane.f32.xlu0 %v5432
        %v5434 = vpop.xlane.xlu0 %5433
        %v5435 = vsel %vm2136, %v4863, 0.0
        %5436 = vadd.xlane.f32.xlu0 %v5435
        %v5437 = vpop.xlane.xlu0 %5436
        %v5438 = vsel %vm2136, %v4864, 0.0
        %5439 = vadd.xlane.f32.xlu0 %v5438
        %v5440 = vpop.xlane.xlu0 %5439
        %v5441 = vsel %vm2136, %v4865, 0.0
        %5442 = vadd.xlane.f32.xlu0 %v5441
        %v5443 = vpop.xlane.xlu0 %5442
        %v5444 = vsel %vm2136, %v4866, 0.0
        %5445 = vadd.xlane.f32.xlu0 %v5444
        %v5446 = vpop.xlane.xlu0 %5445
        %v5447 = vsel %vm2136, %v4867, 0.0
        %5448 = vadd.xlane.f32.xlu0 %v5447
        %v5449 = vpop.xlane.xlu0 %5448
        %v5450 = vsel %vm2136, %v4868, 0.0
        %5451 = vadd.xlane.f32.xlu0 %v5450
        %v5452 = vpop.xlane.xlu0 %5451
        %v5453 = vsel %vm2136, %v4869, 0.0
        %5454 = vadd.xlane.f32.xlu0 %v5453
        %v5455 = vpop.xlane.xlu0 %5454
        %v5456 = vsel %vm2136, %v4870, 0.0
        %5457 = vadd.xlane.f32.xlu0 %v5456
        %v5458 = vpop.xlane.xlu0 %5457
        %v5459 = vsel %vm2136, %v4871, 0.0
        %5460 = vadd.xlane.f32.xlu0 %v5459
        %v5461 = vpop.xlane.xlu0 %5460
        %v5462 = vsel %vm2136, %v4872, 0.0
        %5463 = vadd.xlane.f32.xlu0 %v5462
        %v5464 = vpop.xlane.xlu0 %5463
        %v5465 = vsel %vm2136, %v4873, 0.0
        %5466 = vadd.xlane.f32.xlu0 %v5465
        %v5467 = vpop.xlane.xlu0 %5466
        %v5468 = vsel %vm2136, %v4874, 0.0
        %5469 = vadd.xlane.f32.xlu0 %v5468
        %v5470 = vpop.xlane.xlu0 %5469
        %v5471 = vsel %vm2136, %v4875, 0.0
        %5472 = vadd.xlane.f32.xlu0 %v5471
        %v5473 = vpop.xlane.xlu0 %5472
        %v5474 = vsel %vm2136, %v4876, 0.0
        %5475 = vadd.xlane.f32.xlu0 %v5474
        %v5476 = vpop.xlane.xlu0 %5475
        %v5477 = vsel %vm2136, %v4877, 0.0
        %5478 = vadd.xlane.f32.xlu0 %v5477
        %v5479 = vpop.xlane.xlu0 %5478
        %v5480 = vsel %vm2136, %v4878, 0.0
        %5481 = vadd.xlane.f32.xlu0 %v5480
        %v5482 = vpop.xlane.xlu0 %5481
        %v5483 = vsel %vm2136, %v4879, 0.0
        %5484 = vadd.xlane.f32.xlu0 %v5483
        %v5485 = vpop.xlane.xlu0 %5484
        %v5486 = vsel %vm2136, %v4880, 0.0
        %5487 = vadd.xlane.f32.xlu0 %v5486
        %v5488 = vpop.xlane.xlu0 %5487
        %v5489 = vsel %vm2136, %v4881, 0.0
        %5490 = vadd.xlane.f32.xlu0 %v5489
        %v5491 = vpop.xlane.xlu0 %5490
        %v5492 = vsel %vm2136, %v4882, 0.0
        %5493 = vadd.xlane.f32.xlu0 %v5492
        %v5494 = vpop.xlane.xlu0 %5493
        %v5495 = vsel %vm2136, %v4883, 0.0
        %5496 = vadd.xlane.f32.xlu0 %v5495
        %v5497 = vpop.xlane.xlu0 %5496
        %v5498 = vsel %vm2136, %v4884, 0.0
        %5499 = vadd.xlane.f32.xlu0 %v5498
        %v5500 = vpop.xlane.xlu0 %5499
        %v5501 = vsel %vm2136, %v4885, 0.0
        %5502 = vadd.xlane.f32.xlu0 %v5501
        %v5503 = vpop.xlane.xlu0 %5502
        %v5504 = vsel %vm2136, %v4886, 0.0
        %5505 = vadd.xlane.f32.xlu0 %v5504
        %v5506 = vpop.xlane.xlu0 %5505
        %v5507 = vsel %vm2136, %v4887, 0.0
        %5508 = vadd.xlane.f32.xlu0 %v5507
        %v5509 = vpop.xlane.xlu0 %5508
        %v5510 = vsel %vm2136, %v4888, 0.0
        %5511 = vadd.xlane.f32.xlu0 %v5510
        %v5512 = vpop.xlane.xlu0 %5511
        %v5513 = vsel %vm2136, %v4889, 0.0
        %5514 = vadd.xlane.f32.xlu0 %v5513
        %v5515 = vpop.xlane.xlu0 %5514
        %v5516 = vsel %vm2136, %v4890, 0.0
        %5517 = vadd.xlane.f32.xlu0 %v5516
        %v5518 = vpop.xlane.xlu0 %5517
        %v5519 = vsel %vm2136, %v4891, 0.0
        %5520 = vadd.xlane.f32.xlu0 %v5519
        %v5521 = vpop.xlane.xlu0 %5520
        %v5522 = vsel %vm2136, %v4892, 0.0
        %5523 = vadd.xlane.f32.xlu0 %v5522
        %v5524 = vpop.xlane.xlu0 %5523
        %v5525 = vsel %vm2136, %v4893, 0.0
        %5526 = vadd.xlane.f32.xlu0 %v5525
        %v5527 = vpop.xlane.xlu0 %5526
        %v5528 = vsel %vm2136, %v4894, 0.0
        %5529 = vadd.xlane.f32.xlu0 %v5528
        %v5530 = vpop.xlane.xlu0 %5529
        %v5531 = vsel %vm2136, %v4895, 0.0
        %5532 = vadd.xlane.f32.xlu0 %v5531
        %v5533 = vpop.xlane.xlu0 %5532
        %v5534 = vsel %vm2136, %v4896, 0.0
        %5535 = vadd.xlane.f32.xlu0 %v5534
        %v5536 = vpop.xlane.xlu0 %5535
        %v5537 = vsel %vm2136, %v4897, 0.0
        %5538 = vadd.xlane.f32.xlu0 %v5537
        %v5539 = vpop.xlane.xlu0 %5538
        %v5540 = vsel %vm2136, %v4898, 0.0
        %5541 = vadd.xlane.f32.xlu0 %v5540
        %v5542 = vpop.xlane.xlu0 %5541
        %v5543 = vsel %vm2136, %v4899, 0.0
        %5544 = vadd.xlane.f32.xlu0 %v5543
        %v5545 = vpop.xlane.xlu0 %5544
        %v5546 = vsel %vm2136, %v4900, 0.0
        %5547 = vadd.xlane.f32.xlu0 %v5546
        %v5548 = vpop.xlane.xlu0 %5547
        %v5549 = vsel %vm2136, %v4901, 0.0
        %5550 = vadd.xlane.f32.xlu0 %v5549
        %v5551 = vpop.xlane.xlu0 %5550
        %v5552 = vsel %vm2136, %v4902, 0.0
        %5553 = vadd.xlane.f32.xlu0 %v5552
        %v5554 = vpop.xlane.xlu0 %5553
        %v5555 = vsel %vm2136, %v4903, 0.0
        %5556 = vadd.xlane.f32.xlu0 %v5555
        %v5557 = vpop.xlane.xlu0 %5556
        %v5558 = vsel %vm2136, %v4904, 0.0
        %5559 = vadd.xlane.f32.xlu0 %v5558
        %v5560 = vpop.xlane.xlu0 %5559
        %v5561 = vsel %vm2136, %v4905, 0.0
        %5562 = vadd.xlane.f32.xlu0 %v5561
        %v5563 = vpop.xlane.xlu0 %5562
        %v5564 = vsel %vm2136, %v4906, 0.0
        %5565 = vadd.xlane.f32.xlu0 %v5564
        %v5566 = vpop.xlane.xlu0 %5565
        %v5567 = vsel %vm2136, %v4907, 0.0
        %5568 = vadd.xlane.f32.xlu0 %v5567
        %v5569 = vpop.xlane.xlu0 %5568
        %v5570 = vsel %vm2136, %v4908, 0.0
        %5571 = vadd.xlane.f32.xlu0 %v5570
        %v5572 = vpop.xlane.xlu0 %5571
        %v5573 = vsel %vm2136, %v4909, 0.0
        %5574 = vadd.xlane.f32.xlu0 %v5573
        %v5575 = vpop.xlane.xlu0 %5574
        %v5576 = vsel %vm2136, %v4910, 0.0
        %5577 = vadd.xlane.f32.xlu0 %v5576
        %v5578 = vpop.xlane.xlu0 %5577
        %v5579 = vsel %vm2136, %v4911, 0.0
        %5580 = vadd.xlane.f32.xlu0 %v5579
        %v5581 = vpop.xlane.xlu0 %5580
        %v5582 = vsel %vm2136, %v4912, 0.0
        %5583 = vadd.xlane.f32.xlu0 %v5582
        %v5584 = vpop.xlane.xlu0 %5583
        %v5585 = vsel %vm2136, %v4913, 0.0
        %5586 = vadd.xlane.f32.xlu0 %v5585
        %v5587 = vpop.xlane.xlu0 %5586
        %v5588 = vsel %vm2136, %v4914, 0.0
        %5589 = vadd.xlane.f32.xlu0 %v5588
        %v5590 = vpop.xlane.xlu0 %5589
        %v5591 = vsel %vm2136, %v4915, 0.0
        %5592 = vadd.xlane.f32.xlu0 %v5591
        %v5593 = vpop.xlane.xlu0 %5592
        %v5594 = vsel %vm2136, %v4916, 0.0
        %5595 = vadd.xlane.f32.xlu0 %v5594
        %v5596 = vpop.xlane.xlu0 %5595
        %v5597 = vsel %vm2136, %v4917, 0.0
        %5598 = vadd.xlane.f32.xlu0 %v5597
        %v5599 = vpop.xlane.xlu0 %5598
        %v5600 = vsel %vm2136, %v4918, 0.0
        %5601 = vadd.xlane.f32.xlu0 %v5600
        %v5602 = vpop.xlane.xlu0 %5601
        %v5603 = vsel %vm2136, %v4919, 0.0
        %5604 = vadd.xlane.f32.xlu0 %v5603
        %v5605 = vpop.xlane.xlu0 %5604
        %v5606 = vsel %vm2136, %v4920, 0.0
        %5607 = vadd.xlane.f32.xlu0 %v5606
        %v5608 = vpop.xlane.xlu0 %5607
        %v5609 = vsel %vm2136, %v4921, 0.0
        %5610 = vadd.xlane.f32.xlu0 %v5609
        %v5611 = vpop.xlane.xlu0 %5610
        %v5612 = vsel %vm2136, %v4922, 0.0
        %5613 = vadd.xlane.f32.xlu0 %v5612
        %v5614 = vpop.xlane.xlu0 %5613
        %v5615 = vsel %vm2136, %v4923, 0.0
        %5616 = vadd.xlane.f32.xlu0 %v5615
        %v5617 = vpop.xlane.xlu0 %5616
        %v5618 = vsel %vm2136, %v4924, 0.0
        %5619 = vadd.xlane.f32.xlu0 %v5618
        %v5620 = vpop.xlane.xlu0 %5619
        %v5621 = vsel %vm2136, %v4925, 0.0
        %5622 = vadd.xlane.f32.xlu0 %v5621
        %v5623 = vpop.xlane.xlu0 %5622
        %v5624 = vsel %vm2136, %v4926, 0.0
        %5625 = vadd.xlane.f32.xlu0 %v5624
        %v5626 = vpop.xlane.xlu0 %5625
        %v5627 = vsel %vm2136, %v4927, 0.0
        %5628 = vadd.xlane.f32.xlu0 %v5627
        %v5629 = vpop.xlane.xlu0 %5628
        %v5630 = vsel %vm2136, %v4928, 0.0
        %5631 = vadd.xlane.f32.xlu0 %v5630
        %v5632 = vpop.xlane.xlu0 %5631
        %v5633 = vsel %vm2136, %v4929, 0.0
        %5634 = vadd.xlane.f32.xlu0 %v5633
        %v5635 = vpop.xlane.xlu0 %5634
        %v5636 = vsel %vm2136, %v4930, 0.0
        %5637 = vadd.xlane.f32.xlu0 %v5636
        %v5638 = vpop.xlane.xlu0 %5637
        %v5639 = vsel %vm2136, %v4931, 0.0
        %5640 = vadd.xlane.f32.xlu0 %v5639
        %v5641 = vpop.xlane.xlu0 %5640
        %v5642 = vsel %vm2136, %v4932, 0.0
        %5643 = vadd.xlane.f32.xlu0 %v5642
        %v5644 = vpop.xlane.xlu0 %5643
        %v5645 = vsel %vm2136, %v4933, 0.0
        %5646 = vadd.xlane.f32.xlu0 %v5645
        %v5647 = vpop.xlane.xlu0 %5646
        %v5648 = vsel %vm2136, %v4934, 0.0
        %5649 = vadd.xlane.f32.xlu0 %v5648
        %v5650 = vpop.xlane.xlu0 %5649
        %v5651 = vsel %vm2136, %v4935, 0.0
        %5652 = vadd.xlane.f32.xlu0 %v5651
        %v5653 = vpop.xlane.xlu0 %5652
        %v5654 = vsel %vm2136, %v4936, 0.0
        %5655 = vadd.xlane.f32.xlu0 %v5654
        %v5656 = vpop.xlane.xlu0 %5655
        %v5657 = vsel %vm2136, %v4937, 0.0
        %5658 = vadd.xlane.f32.xlu0 %v5657
        %v5659 = vpop.xlane.xlu0 %5658
        %v5660 = vsel %vm2136, %v4938, 0.0
        %5661 = vadd.xlane.f32.xlu0 %v5660
        %v5662 = vpop.xlane.xlu0 %5661
        %v5663 = vsel %vm2136, %v4939, 0.0
        %5664 = vadd.xlane.f32.xlu0 %v5663
        %v5665 = vpop.xlane.xlu0 %5664
        %v5666 = vsel %vm2136, %v4940, 0.0
        %5667 = vadd.xlane.f32.xlu0 %v5666
        %v5668 = vpop.xlane.xlu0 %5667
        %v5669 = vsel %vm2136, %v4941, 0.0
        %5670 = vadd.xlane.f32.xlu0 %v5669
        %v5671 = vpop.xlane.xlu0 %5670
        %v5672 = vsel %vm2136, %v4942, 0.0
        %5673 = vadd.xlane.f32.xlu0 %v5672
        %v5674 = vpop.xlane.xlu0 %5673
        %v5675 = vsel %vm2136, %v4943, 0.0
        %5676 = vadd.xlane.f32.xlu0 %v5675
        %v5677 = vpop.xlane.xlu0 %5676
        %v5678 = vsel %vm2136, %v4944, 0.0
        %5679 = vadd.xlane.f32.xlu0 %v5678
        %v5680 = vpop.xlane.xlu0 %5679
        %v5681 = vsel %vm2136, %v4945, 0.0
        %5682 = vadd.xlane.f32.xlu0 %v5681
        %v5683 = vpop.xlane.xlu0 %5682
        %v5684 = vsel %vm2136, %v4946, 0.0
        %5685 = vadd.xlane.f32.xlu0 %v5684
        %v5686 = vpop.xlane.xlu0 %5685
        %v5687 = vsel %vm2136, %v4947, 0.0
        %5688 = vadd.xlane.f32.xlu0 %v5687
        %v5689 = vpop.xlane.xlu0 %5688
        %v5690 = vsel %vm2136, %v4948, 0.0
        %5691 = vadd.xlane.f32.xlu0 %v5690
        %v5692 = vpop.xlane.xlu0 %5691
        %v5693 = vsel %vm2136, %v4949, 0.0
        %5694 = vadd.xlane.f32.xlu0 %v5693
        %v5695 = vpop.xlane.xlu0 %5694
        %v5696 = vsel %vm2136, %v4950, 0.0
        %5697 = vadd.xlane.f32.xlu0 %v5696
        %v5698 = vpop.xlane.xlu0 %5697
        %v5699 = vsel %vm2136, %v4951, 0.0
        %5700 = vadd.xlane.f32.xlu0 %v5699
        %v5701 = vpop.xlane.xlu0 %5700
        %v5702 = vsel %vm2136, %v4952, 0.0
        %5703 = vadd.xlane.f32.xlu0 %v5702
        %v5704 = vpop.xlane.xlu0 %5703
        %v5705 = vsel %vm2136, %v4953, 0.0
        %5706 = vadd.xlane.f32.xlu0 %v5705
        %v5707 = vpop.xlane.xlu0 %5706
        %v5708 = vsel %vm2136, %v4954, 0.0
        %5709 = vadd.xlane.f32.xlu0 %v5708
        %v5710 = vpop.xlane.xlu0 %5709
        %v5711 = vsel %vm2136, %v4955, 0.0
        %5712 = vadd.xlane.f32.xlu0 %v5711
        %v5713 = vpop.xlane.xlu0 %5712
        %v5714 = vsel %vm2136, %v4956, 0.0
        %5715 = vadd.xlane.f32.xlu0 %v5714
        %v5716 = vpop.xlane.xlu0 %5715
        %v5717 = vsel %vm2136, %v4957, 0.0
        %5718 = vadd.xlane.f32.xlu0 %v5717
        %v5719 = vpop.xlane.xlu0 %5718
        %v5720 = vsel %vm2136, %v4958, 0.0
        %5721 = vadd.xlane.f32.xlu0 %v5720
        %v5722 = vpop.xlane.xlu0 %5721
        %v5723 = vsel %vm2136, %v4959, 0.0
        %5724 = vadd.xlane.f32.xlu0 %v5723
        %v5725 = vpop.xlane.xlu0 %5724
        %v5726 = vsel %vm2136, %v4960, 0.0
        %5727 = vadd.xlane.f32.xlu0 %v5726
        %v5728 = vpop.xlane.xlu0 %5727
        %v5729 = vrsqrt.pop %v4963
        %v5730 = vrsqrt.pop %v4966
        %v5731 = vrsqrt.pop %v4969
        %v5732 = vrsqrt.pop %v4972
        %v5733 = vrsqrt.pop %v4975
        %v5734 = vrsqrt.pop %v4978
        %v5735 = vrsqrt.pop %v4981
        %v5736 = vrsqrt.pop %v4984
        %v5737 = vrsqrt.pop %v4987
        %v5738 = vrsqrt.pop %v4990
        %v5739 = vrsqrt.pop %v4993
        %v5740 = vrsqrt.pop %v4996
        %v5741 = vrsqrt.pop %v4999
        %v5742 = vrsqrt.pop %v5002
        %v5743 = vrsqrt.pop %v5005
        %v5744 = vrsqrt.pop %v5008
        %v5745 = vrsqrt.pop %v5011
        %v5746 = vrsqrt.pop %v5014
        %v5747 = vrsqrt.pop %v5017
        %v5748 = vrsqrt.pop %v5020
        %v5749 = vrsqrt.pop %v5023
        %v5750 = vrsqrt.pop %v5026
        %v5751 = vrsqrt.pop %v5029
        %v5752 = vrsqrt.pop %v5032
        %v5753 = vrsqrt.pop %v5035
        %v5754 = vrsqrt.pop %v5038
        %v5755 = vrsqrt.pop %v5041
        %v5756 = vrsqrt.pop %v5044
        %v5757 = vrsqrt.pop %v5047
        %v5758 = vrsqrt.pop %v5050
        %v5759 = vrsqrt.pop %v5053
        %v5760 = vrsqrt.pop %v5056
        %v5761 = vrsqrt.pop %v5059
        %v5762 = vrsqrt.pop %v5062
        %v5763 = vrsqrt.pop %v5065
        %v5764 = vrsqrt.pop %v5068
        %v5765 = vrsqrt.pop %v5071
        %v5766 = vrsqrt.pop %v5074
        %v5767 = vrsqrt.pop %v5077
        %v5768 = vrsqrt.pop %v5080
        %v5769 = vrsqrt.pop %v5083
        %v5770 = vrsqrt.pop %v5086
        %v5771 = vrsqrt.pop %v5089
        %v5772 = vrsqrt.pop %v5092
        %v5773 = vrsqrt.pop %v5095
        %v5774 = vrsqrt.pop %v5098
        %v5775 = vrsqrt.pop %v5101
        %v5776 = vrsqrt.pop %v5104
        %v5777 = vrsqrt.pop %v5107
        %v5778 = vrsqrt.pop %v5110
        %v5779 = vrsqrt.pop %v5113
        %v5780 = vrsqrt.pop %v5116
        %v5781 = vrsqrt.pop %v5119
        %v5782 = vrsqrt.pop %v5122
        %v5783 = vrsqrt.pop %v5125
        %v5784 = vrsqrt.pop %v5128
        %v5785 = vrsqrt.pop %v5131
        %v5786 = vrsqrt.pop %v5134
        %v5787 = vrsqrt.pop %v5137
        %v5788 = vrsqrt.pop %v5140
        %v5789 = vrsqrt.pop %v5143
        %v5790 = vrsqrt.pop %v5146
        %v5791 = vrsqrt.pop %v5149
        %v5792 = vrsqrt.pop %v5152
        %v5793 = vrsqrt.pop %v5155
        %v5794 = vrsqrt.pop %v5158
        %v5795 = vrsqrt.pop %v5161
        %v5796 = vrsqrt.pop %v5164
        %v5797 = vrsqrt.pop %v5167
        %v5798 = vrsqrt.pop %v5170
        %v5799 = vrsqrt.pop %v5173
        %v5800 = vrsqrt.pop %v5176
        %v5801 = vrsqrt.pop %v5179
        %v5802 = vrsqrt.pop %v5182
        %v5803 = vrsqrt.pop %v5185
        %v5804 = vrsqrt.pop %v5188
        %v5805 = vrsqrt.pop %v5191
        %v5806 = vrsqrt.pop %v5194
        %v5807 = vrsqrt.pop %v5197
        %v5808 = vrsqrt.pop %v5200
        %v5809 = vrsqrt.pop %v5203
        %v5810 = vrsqrt.pop %v5206
        %v5811 = vrsqrt.pop %v5209
        %v5812 = vrsqrt.pop %v5212
        %v5813 = vrsqrt.pop %v5215
        %v5814 = vrsqrt.pop %v5218
        %v5815 = vrsqrt.pop %v5221
        %v5816 = vrsqrt.pop %v5224
        %v5817 = vrsqrt.pop %v5227
        %v5818 = vrsqrt.pop %v5230
        %v5819 = vrsqrt.pop %v5233
        %v5820 = vrsqrt.pop %v5236
        %v5821 = vrsqrt.pop %v5239
        %v5822 = vrsqrt.pop %v5242
        %v5823 = vrsqrt.pop %v5245
        %v5824 = vrsqrt.pop %v5248
        %v5825 = vrsqrt.pop %v5251
        %v5826 = vrsqrt.pop %v5254
        %v5827 = vrsqrt.pop %v5257
        %v5828 = vrsqrt.pop %v5260
        %v5829 = vrsqrt.pop %v5263
        %v5830 = vrsqrt.pop %v5266
        %v5831 = vrsqrt.pop %v5269
        %v5832 = vrsqrt.pop %v5272
        %v5833 = vrsqrt.pop %v5275
        %v5834 = vrsqrt.pop %v5278
        %v5835 = vrsqrt.pop %v5281
        %v5836 = vrsqrt.pop %v5284
        %v5837 = vrsqrt.pop %v5287
        %v5838 = vrsqrt.pop %v5290
        %v5839 = vrsqrt.pop %v5293
        %v5840 = vrsqrt.pop %v5296
        %v5841 = vrsqrt.pop %v5299
        %v5842 = vrsqrt.pop %v5302
        %v5843 = vrsqrt.pop %v5305
        %v5844 = vrsqrt.pop %v5308
        %v5845 = vrsqrt.pop %v5311
        %v5846 = vrsqrt.pop %v5314
        %v5847 = vrsqrt.pop %v5317
        %v5848 = vrsqrt.pop %v5320
        %v5849 = vrsqrt.pop %v5323
        %v5850 = vrsqrt.pop %v5326
        %v5851 = vrsqrt.pop %v5329
        %v5852 = vrsqrt.pop %v5332
        %v5853 = vrsqrt.pop %v5335
        %v5854 = vrsqrt.pop %v5338
        %v5855 = vrsqrt.pop %v5341
        %v5856 = vrsqrt.pop %v5344
        %v5857 = vrsqrt.pop %v5347
        %v5858 = vrsqrt.pop %v5350
        %v5859 = vrsqrt.pop %v5353
        %v5860 = vrsqrt.pop %v5356
        %v5861 = vrsqrt.pop %v5359
        %v5862 = vrsqrt.pop %v5362
        %v5863 = vrsqrt.pop %v5365
        %v5864 = vrsqrt.pop %v5368
        %v5865 = vrsqrt.pop %v5371
        %v5866 = vrsqrt.pop %v5374
        %v5867 = vrsqrt.pop %v5377
        %v5868 = vrsqrt.pop %v5380
        %v5869 = vrsqrt.pop %v5383
        %v5870 = vrsqrt.pop %v5386
        %v5871 = vrsqrt.pop %v5389
        %v5872 = vrsqrt.pop %v5392
        %v5873 = vrsqrt.pop %v5395
        %v5874 = vrsqrt.pop %v5398
        %v5875 = vrsqrt.pop %v5401
        %v5876 = vrsqrt.pop %v5404
        %v5877 = vrsqrt.pop %v5407
        %v5878 = vrsqrt.pop %v5410
        %v5879 = vrsqrt.pop %v5413
        %v5880 = vrsqrt.pop %v5416
        %v5881 = vrsqrt.pop %v5419
        %v5882 = vrsqrt.pop %v5422
        %v5883 = vrsqrt.pop %v5425
        %v5884 = vrsqrt.pop %v5428
        %v5885 = vrsqrt.pop %v5431
        %v5886 = vrsqrt.pop %v5434
        %v5887 = vrsqrt.pop %v5437
        %v5888 = vrsqrt.pop %v5440
        %v5889 = vrsqrt.pop %v5443
        %v5890 = vrsqrt.pop %v5446
        %v5891 = vrsqrt.pop %v5449
        %v5892 = vrsqrt.pop %v5452
        %v5893 = vrsqrt.pop %v5455
        %v5894 = vrsqrt.pop %v5458
        %v5895 = vrsqrt.pop %v5461
        %v5896 = vrsqrt.pop %v5464
        %v5897 = vrsqrt.pop %v5467
        %v5898 = vrsqrt.pop %v5470
        %v5899 = vrsqrt.pop %v5473
        %v5900 = vrsqrt.pop %v5476
        %v5901 = vrsqrt.pop %v5479
        %v5902 = vrsqrt.pop %v5482
        %v5903 = vrsqrt.pop %v5485
        %v5904 = vrsqrt.pop %v5488
        %v5905 = vrsqrt.pop %v5491
        %v5906 = vrsqrt.pop %v5494
        %v5907 = vrsqrt.pop %v5497
        %v5908 = vrsqrt.pop %v5500
        %v5909 = vrsqrt.pop %v5503
        %v5910 = vrsqrt.pop %v5506
        %v5911 = vrsqrt.pop %v5509
        %v5912 = vrsqrt.pop %v5512
        %v5913 = vrsqrt.pop %v5515
        %v5914 = vrsqrt.pop %v5518
        %v5915 = vrsqrt.pop %v5521
        %v5916 = vrsqrt.pop %v5524
        %v5917 = vrsqrt.pop %v5527
        %v5918 = vrsqrt.pop %v5530
        %v5919 = vrsqrt.pop %v5533
        %v5920 = vrsqrt.pop %v5536
        %v5921 = vrsqrt.pop %v5539
        %v5922 = vrsqrt.pop %v5542
        %v5923 = vrsqrt.pop %v5545
        %v5924 = vrsqrt.pop %v5548
        %v5925 = vrsqrt.pop %v5551
        %v5926 = vrsqrt.pop %v5554
        %v5927 = vrsqrt.pop %v5557
        %v5928 = vrsqrt.pop %v5560
        %v5929 = vrsqrt.pop %v5563
        %v5930 = vrsqrt.pop %v5566
        %v5931 = vrsqrt.pop %v5569
        %v5932 = vrsqrt.pop %v5572
        %v5933 = vrsqrt.pop %v5575
        %v5934 = vrsqrt.pop %v5578
        %v5935 = vrsqrt.pop %v5581
        %v5936 = vrsqrt.pop %v5584
        %v5937 = vrsqrt.pop %v5587
        %v5938 = vrsqrt.pop %v5590
        %v5939 = vrsqrt.pop %v5593
        %v5940 = vrsqrt.pop %v5596
        %v5941 = vrsqrt.pop %v5599
        %v5942 = vrsqrt.pop %v5602
        %v5943 = vrsqrt.pop %v5605
        %v5944 = vrsqrt.pop %v5608
        %v5945 = vrsqrt.pop %v5611
        %v5946 = vrsqrt.pop %v5614
        %v5947 = vrsqrt.pop %v5617
        %v5948 = vrsqrt.pop %v5620
        %v5949 = vrsqrt.pop %v5623
        %v5950 = vrsqrt.pop %v5626
        %v5951 = vrsqrt.pop %v5629
        %v5952 = vrsqrt.pop %v5632
        %v5953 = vrsqrt.pop %v5635
        %v5954 = vrsqrt.pop %v5638
        %v5955 = vrsqrt.pop %v5641
        %v5956 = vrsqrt.pop %v5644
        %v5957 = vrsqrt.pop %v5647
        %v5958 = vrsqrt.pop %v5650
        %v5959 = vrsqrt.pop %v5653
        %v5960 = vrsqrt.pop %v5656
        %v5961 = vrsqrt.pop %v5659
        %v5962 = vrsqrt.pop %v5662
        %v5963 = vrsqrt.pop %v5665
        %v5964 = vrsqrt.pop %v5668
        %v5965 = vrsqrt.pop %v5671
        %v5966 = vrsqrt.pop %v5674
        %v5967 = vrsqrt.pop %v5677
        %v5968 = vrsqrt.pop %v5680
        %v5969 = vrsqrt.pop %v5683
        %v5970 = vrsqrt.pop %v5686
        %v5971 = vrsqrt.pop %v5689
        %v5972 = vrsqrt.pop %v5692
        %v5973 = vrsqrt.pop %v5695
        %v5974 = vrsqrt.pop %v5698
        %v5975 = vrsqrt.pop %v5701
        %v5976 = vrsqrt.pop %v5704
        %v5977 = vrsqrt.pop %v5707
        %v5978 = vrsqrt.pop %v5710
        %v5979 = vrsqrt.pop %v5713
        %v5980 = vrsqrt.pop %v5716
        %v5981 = vrsqrt.pop %v5719
        %v5982 = vrsqrt.pop %v5722
        %v5983 = vrsqrt.pop %v5725
        %v5984 = vrsqrt.pop %v5728
        %v5985 = vmul.f32 %v5729, 0.125
        %v5986 = vmul.f32 %v5730, 0.125
        %v5987 = vmul.f32 %v5731, 0.125
        %v5988 = vmul.f32 %v5732, 0.125
        %v5989 = vmul.f32 %v5733, 0.125
        %v5990 = vmul.f32 %v5734, 0.125
        %v5991 = vmul.f32 %v5735, 0.125
        %v5992 = vmul.f32 %v5736, 0.125
        %v5993 = vmul.f32 %v5737, 0.125
        %v5994 = vmul.f32 %v5738, 0.125
        %v5995 = vmul.f32 %v5739, 0.125
        %v5996 = vmul.f32 %v5740, 0.125
        %v5997 = vmul.f32 %v5741, 0.125
        %v5998 = vmul.f32 %v5742, 0.125
        %v5999 = vmul.f32 %v5743, 0.125
        %v6000 = vmul.f32 %v5744, 0.125
        %v6001 = vmul.f32 %v5745, 0.125
        %v6002 = vmul.f32 %v5746, 0.125
        %v6003 = vmul.f32 %v5747, 0.125
        %v6004 = vmul.f32 %v5748, 0.125
        %v6005 = vmul.f32 %v5749, 0.125
        %v6006 = vmul.f32 %v5750, 0.125
        %v6007 = vmul.f32 %v5751, 0.125
        %v6008 = vmul.f32 %v5752, 0.125
        %v6009 = vmul.f32 %v5753, 0.125
        %v6010 = vmul.f32 %v5754, 0.125
        %v6011 = vmul.f32 %v5755, 0.125
        %v6012 = vmul.f32 %v5756, 0.125
        %v6013 = vmul.f32 %v5757, 0.125
        %v6014 = vmul.f32 %v5758, 0.125
        %v6015 = vmul.f32 %v5759, 0.125
        %v6016 = vmul.f32 %v5760, 0.125
        %v6017 = vmul.f32 %v5761, 0.125
        %v6018 = vmul.f32 %v5762, 0.125
        %v6019 = vmul.f32 %v5763, 0.125
        %v6020 = vmul.f32 %v5764, 0.125
        %v6021 = vmul.f32 %v5765, 0.125
        %v6022 = vmul.f32 %v5766, 0.125
        %v6023 = vmul.f32 %v5767, 0.125
        %v6024 = vmul.f32 %v5768, 0.125
        %v6025 = vmul.f32 %v5769, 0.125
        %v6026 = vmul.f32 %v5770, 0.125
        %v6027 = vmul.f32 %v5771, 0.125
        %v6028 = vmul.f32 %v5772, 0.125
        %v6029 = vmul.f32 %v5773, 0.125
        %v6030 = vmul.f32 %v5774, 0.125
        %v6031 = vmul.f32 %v5775, 0.125
        %v6032 = vmul.f32 %v5776, 0.125
        %v6033 = vmul.f32 %v5777, 0.125
        %v6034 = vmul.f32 %v5778, 0.125
        %v6035 = vmul.f32 %v5779, 0.125
        %v6036 = vmul.f32 %v5780, 0.125
        %v6037 = vmul.f32 %v5781, 0.125
        %v6038 = vmul.f32 %v5782, 0.125
        %v6039 = vmul.f32 %v5783, 0.125
        %v6040 = vmul.f32 %v5784, 0.125
        %v6041 = vmul.f32 %v5785, 0.125
        %v6042 = vmul.f32 %v5786, 0.125
        %v6043 = vmul.f32 %v5787, 0.125
        %v6044 = vmul.f32 %v5788, 0.125
        %v6045 = vmul.f32 %v5789, 0.125
        %v6046 = vmul.f32 %v5790, 0.125
        %v6047 = vmul.f32 %v5791, 0.125
        %v6048 = vmul.f32 %v5792, 0.125
        %v6049 = vmul.f32 %v5793, 0.125
        %v6050 = vmul.f32 %v5794, 0.125
        %v6051 = vmul.f32 %v5795, 0.125
        %v6052 = vmul.f32 %v5796, 0.125
        %v6053 = vmul.f32 %v5797, 0.125
        %v6054 = vmul.f32 %v5798, 0.125
        %v6055 = vmul.f32 %v5799, 0.125
        %v6056 = vmul.f32 %v5800, 0.125
        %v6057 = vmul.f32 %v5801, 0.125
        %v6058 = vmul.f32 %v5802, 0.125
        %v6059 = vmul.f32 %v5803, 0.125
        %v6060 = vmul.f32 %v5804, 0.125
        %v6061 = vmul.f32 %v5805, 0.125
        %v6062 = vmul.f32 %v5806, 0.125
        %v6063 = vmul.f32 %v5807, 0.125
        %v6064 = vmul.f32 %v5808, 0.125
        %v6065 = vmul.f32 %v5809, 0.125
        %v6066 = vmul.f32 %v5810, 0.125
        %v6067 = vmul.f32 %v5811, 0.125
        %v6068 = vmul.f32 %v5812, 0.125
        %v6069 = vmul.f32 %v5813, 0.125
        %v6070 = vmul.f32 %v5814, 0.125
        %v6071 = vmul.f32 %v5815, 0.125
        %v6072 = vmul.f32 %v5816, 0.125
        %v6073 = vmul.f32 %v5817, 0.125
        %v6074 = vmul.f32 %v5818, 0.125
        %v6075 = vmul.f32 %v5819, 0.125
        %v6076 = vmul.f32 %v5820, 0.125
        %v6077 = vmul.f32 %v5821, 0.125
        %v6078 = vmul.f32 %v5822, 0.125
        %v6079 = vmul.f32 %v5823, 0.125
        %v6080 = vmul.f32 %v5824, 0.125
        %v6081 = vmul.f32 %v5825, 0.125
        %v6082 = vmul.f32 %v5826, 0.125
        %v6083 = vmul.f32 %v5827, 0.125
        %v6084 = vmul.f32 %v5828, 0.125
        %v6085 = vmul.f32 %v5829, 0.125
        %v6086 = vmul.f32 %v5830, 0.125
        %v6087 = vmul.f32 %v5831, 0.125
        %v6088 = vmul.f32 %v5832, 0.125
        %v6089 = vmul.f32 %v5833, 0.125
        %v6090 = vmul.f32 %v5834, 0.125
        %v6091 = vmul.f32 %v5835, 0.125
        %v6092 = vmul.f32 %v5836, 0.125
        %v6093 = vmul.f32 %v5837, 0.125
        %v6094 = vmul.f32 %v5838, 0.125
        %v6095 = vmul.f32 %v5839, 0.125
        %v6096 = vmul.f32 %v5840, 0.125
        %v6097 = vmul.f32 %v5841, 0.125
        %v6098 = vmul.f32 %v5842, 0.125
        %v6099 = vmul.f32 %v5843, 0.125
        %v6100 = vmul.f32 %v5844, 0.125
        %v6101 = vmul.f32 %v5845, 0.125
        %v6102 = vmul.f32 %v5846, 0.125
        %v6103 = vmul.f32 %v5847, 0.125
        %v6104 = vmul.f32 %v5848, 0.125
        %v6105 = vmul.f32 %v5849, 0.125
        %v6106 = vmul.f32 %v5850, 0.125
        %v6107 = vmul.f32 %v5851, 0.125
        %v6108 = vmul.f32 %v5852, 0.125
        %v6109 = vmul.f32 %v5853, 0.125
        %v6110 = vmul.f32 %v5854, 0.125
        %v6111 = vmul.f32 %v5855, 0.125
        %v6112 = vmul.f32 %v5856, 0.125
        %v6113 = vmul.f32 %v5857, 0.125
        %v6114 = vmul.f32 %v5858, 0.125
        %v6115 = vmul.f32 %v5859, 0.125
        %v6116 = vmul.f32 %v5860, 0.125
        %v6117 = vmul.f32 %v5861, 0.125
        %v6118 = vmul.f32 %v5862, 0.125
        %v6119 = vmul.f32 %v5863, 0.125
        %v6120 = vmul.f32 %v5864, 0.125
        %v6121 = vmul.f32 %v5865, 0.125
        %v6122 = vmul.f32 %v5866, 0.125
        %v6123 = vmul.f32 %v5867, 0.125
        %v6124 = vmul.f32 %v5868, 0.125
        %v6125 = vmul.f32 %v5869, 0.125
        %v6126 = vmul.f32 %v5870, 0.125
        %v6127 = vmul.f32 %v5871, 0.125
        %v6128 = vmul.f32 %v5872, 0.125
        %v6129 = vmul.f32 %v5873, 0.125
        %v6130 = vmul.f32 %v5874, 0.125
        %v6131 = vmul.f32 %v5875, 0.125
        %v6132 = vmul.f32 %v5876, 0.125
        %v6133 = vmul.f32 %v5877, 0.125
        %v6134 = vmul.f32 %v5878, 0.125
        %v6135 = vmul.f32 %v5879, 0.125
        %v6136 = vmul.f32 %v5880, 0.125
        %v6137 = vmul.f32 %v5881, 0.125
        %v6138 = vmul.f32 %v5882, 0.125
        %v6139 = vmul.f32 %v5883, 0.125
        %v6140 = vmul.f32 %v5884, 0.125
        %v6141 = vmul.f32 %v5885, 0.125
        %v6142 = vmul.f32 %v5886, 0.125
        %v6143 = vmul.f32 %v5887, 0.125
        %v6144 = vmul.f32 %v5888, 0.125
        %v6145 = vmul.f32 %v5889, 0.125
        %v6146 = vmul.f32 %v5890, 0.125
        %v6147 = vmul.f32 %v5891, 0.125
        %v6148 = vmul.f32 %v5892, 0.125
        %v6149 = vmul.f32 %v5893, 0.125
        %v6150 = vmul.f32 %v5894, 0.125
        %v6151 = vmul.f32 %v5895, 0.125
        %v6152 = vmul.f32 %v5896, 0.125
        %v6153 = vmul.f32 %v5897, 0.125
        %v6154 = vmul.f32 %v5898, 0.125
        %v6155 = vmul.f32 %v5899, 0.125
        %v6156 = vmul.f32 %v5900, 0.125
        %v6157 = vmul.f32 %v5901, 0.125
        %v6158 = vmul.f32 %v5902, 0.125
        %v6159 = vmul.f32 %v5903, 0.125
        %v6160 = vmul.f32 %v5904, 0.125
        %v6161 = vmul.f32 %v5905, 0.125
        %v6162 = vmul.f32 %v5906, 0.125
        %v6163 = vmul.f32 %v5907, 0.125
        %v6164 = vmul.f32 %v5908, 0.125
        %v6165 = vmul.f32 %v5909, 0.125
        %v6166 = vmul.f32 %v5910, 0.125
        %v6167 = vmul.f32 %v5911, 0.125
        %v6168 = vmul.f32 %v5912, 0.125
        %v6169 = vmul.f32 %v5913, 0.125
        %v6170 = vmul.f32 %v5914, 0.125
        %v6171 = vmul.f32 %v5915, 0.125
        %v6172 = vmul.f32 %v5916, 0.125
        %v6173 = vmul.f32 %v5917, 0.125
        %v6174 = vmul.f32 %v5918, 0.125
        %v6175 = vmul.f32 %v5919, 0.125
        %v6176 = vmul.f32 %v5920, 0.125
        %v6177 = vmul.f32 %v5921, 0.125
        %v6178 = vmul.f32 %v5922, 0.125
        %v6179 = vmul.f32 %v5923, 0.125
        %v6180 = vmul.f32 %v5924, 0.125
        %v6181 = vmul.f32 %v5925, 0.125
        %v6182 = vmul.f32 %v5926, 0.125
        %v6183 = vmul.f32 %v5927, 0.125
        %v6184 = vmul.f32 %v5928, 0.125
        %v6185 = vmul.f32 %v5929, 0.125
        %v6186 = vmul.f32 %v5930, 0.125
        %v6187 = vmul.f32 %v5931, 0.125
        %v6188 = vmul.f32 %v5932, 0.125
        %v6189 = vmul.f32 %v5933, 0.125
        %v6190 = vmul.f32 %v5934, 0.125
        %v6191 = vmul.f32 %v5935, 0.125
        %v6192 = vmul.f32 %v5936, 0.125
        %v6193 = vmul.f32 %v5937, 0.125
        %v6194 = vmul.f32 %v5938, 0.125
        %v6195 = vmul.f32 %v5939, 0.125
        %v6196 = vmul.f32 %v5940, 0.125
        %v6197 = vmul.f32 %v5941, 0.125
        %v6198 = vmul.f32 %v5942, 0.125
        %v6199 = vmul.f32 %v5943, 0.125
        %v6200 = vmul.f32 %v5944, 0.125
        %v6201 = vmul.f32 %v5945, 0.125
        %v6202 = vmul.f32 %v5946, 0.125
        %v6203 = vmul.f32 %v5947, 0.125
        %v6204 = vmul.f32 %v5948, 0.125
        %v6205 = vmul.f32 %v5949, 0.125
        %v6206 = vmul.f32 %v5950, 0.125
        %v6207 = vmul.f32 %v5951, 0.125
        %v6208 = vmul.f32 %v5952, 0.125
        %v6209 = vmul.f32 %v5953, 0.125
        %v6210 = vmul.f32 %v5954, 0.125
        %v6211 = vmul.f32 %v5955, 0.125
        %v6212 = vmul.f32 %v5956, 0.125
        %v6213 = vmul.f32 %v5957, 0.125
        %v6214 = vmul.f32 %v5958, 0.125
        %v6215 = vmul.f32 %v5959, 0.125
        %v6216 = vmul.f32 %v5960, 0.125
        %v6217 = vmul.f32 %v5961, 0.125
        %v6218 = vmul.f32 %v5962, 0.125
        %v6219 = vmul.f32 %v5963, 0.125
        %v6220 = vmul.f32 %v5964, 0.125
        %v6221 = vmul.f32 %v5965, 0.125
        %v6222 = vmul.f32 %v5966, 0.125
        %v6223 = vmul.f32 %v5967, 0.125
        %v6224 = vmul.f32 %v5968, 0.125
        %v6225 = vmul.f32 %v5969, 0.125
        %v6226 = vmul.f32 %v5970, 0.125
        %v6227 = vmul.f32 %v5971, 0.125
        %v6228 = vmul.f32 %v5972, 0.125
        %v6229 = vmul.f32 %v5973, 0.125
        %v6230 = vmul.f32 %v5974, 0.125
        %v6231 = vmul.f32 %v5975, 0.125
        %v6232 = vmul.f32 %v5976, 0.125
        %v6233 = vmul.f32 %v5977, 0.125
        %v6234 = vmul.f32 %v5978, 0.125
        %v6235 = vmul.f32 %v5979, 0.125
        %v6236 = vmul.f32 %v5980, 0.125
        %v6237 = vmul.f32 %v5981, 0.125
        %v6238 = vmul.f32 %v5982, 0.125
        %v6239 = vmul.f32 %v5983, 0.125
        %v6240 = vmul.f32 %v5984, 0.125
        %6241 = vst.msk [vmem:[%s1298] sm:$0xff] %vm1831, %v5985
        %6242 = vst.msk [vmem:[%s1298 + $0x8] sm:$0xff] %vm1831, %v5986
        %6243 = vst.msk [vmem:[%s1298 + $0x10] sm:$0xff] %vm1831, %v5987
        %6244 = vst.msk [vmem:[%s1298 + $0x18] sm:$0xff] %vm1831, %v5988
        %6245 = vst.msk [vmem:[%s1298 + $0x20] sm:$0xff] %vm1831, %v5989
        %6246 = vst.msk [vmem:[%s1298 + $0x28] sm:$0xff] %vm1831, %v5990
        %6247 = vst.msk [vmem:[%s1298 + $0x30] sm:$0xff] %vm1831, %v5991
        %6248 = vst.msk [vmem:[%s1298 + $0x38] sm:$0xff] %vm1831, %v5992
        %6249 = vst.msk [vmem:[%s1298 + $0x40] sm:$0xff] %vm1831, %v5993
        %6250 = vst.msk [vmem:[%s1298 + $0x48] sm:$0xff] %vm1831, %v5994
        %6251 = vst.msk [vmem:[%s1298 + $0x50] sm:$0xff] %vm1831, %v5995
        %6252 = vst.msk [vmem:[%s1298 + $0x58] sm:$0xff] %vm1831, %v5996
        %6253 = vst.msk [vmem:[%s1298 + $0x60] sm:$0xff] %vm1831, %v5997
        %6254 = vst.msk [vmem:[%s1298 + $0x68] sm:$0xff] %vm1831, %v5998
        %6255 = vst.msk [vmem:[%s1298 + $0x70] sm:$0xff] %vm1831, %v5999
        %6256 = vst.msk [vmem:[%s1298 + $0x78] sm:$0xff] %vm1831, %v6000
        %6257 = vst.msk [vmem:[%s1298 + $0x80] sm:$0xff] %vm1831, %v6001
        %6258 = vst.msk [vmem:[%s1298 + $0x88] sm:$0xff] %vm1831, %v6002
        %6259 = vst.msk [vmem:[%s1298 + $0x90] sm:$0xff] %vm1831, %v6003
        %6260 = vst.msk [vmem:[%s1298 + $0x98] sm:$0xff] %vm1831, %v6004
        %6261 = vst.msk [vmem:[%s1298 + $0xa0] sm:$0xff] %vm1831, %v6005
        %6262 = vst.msk [vmem:[%s1298 + $0xa8] sm:$0xff] %vm1831, %v6006
        %6263 = vst.msk [vmem:[%s1298 + $0xb0] sm:$0xff] %vm1831, %v6007
        %6264 = vst.msk [vmem:[%s1298 + $0xb8] sm:$0xff] %vm1831, %v6008
        %6265 = vst.msk [vmem:[%s1298 + $0xc0] sm:$0xff] %vm1831, %v6009
        %6266 = vst.msk [vmem:[%s1298 + $0xc8] sm:$0xff] %vm1831, %v6010
        %6267 = vst.msk [vmem:[%s1298 + $0xd0] sm:$0xff] %vm1831, %v6011
        %6268 = vst.msk [vmem:[%s1298 + $0xd8] sm:$0xff] %vm1831, %v6012
        %6269 = vst.msk [vmem:[%s1298 + $0xe0] sm:$0xff] %vm1831, %v6013
        %6270 = vst.msk [vmem:[%s1298 + $0xe8] sm:$0xff] %vm1831, %v6014
        %6271 = vst.msk [vmem:[%s1298 + $0xf0] sm:$0xff] %vm1831, %v6015
        %6272 = vst.msk [vmem:[%s1298 + $0xf8] sm:$0xff] %vm1831, %v6016
        %6273 = vst.msk [vmem:[%s1298 + $0x100] sm:$0xff] %vm1831, %v6017
        %6274 = vst.msk [vmem:[%s1298 + $0x108] sm:$0xff] %vm1831, %v6018
        %6275 = vst.msk [vmem:[%s1298 + $0x110] sm:$0xff] %vm1831, %v6019
        %6276 = vst.msk [vmem:[%s1298 + $0x118] sm:$0xff] %vm1831, %v6020
        %6277 = vst.msk [vmem:[%s1298 + $0x120] sm:$0xff] %vm1831, %v6021
        %6278 = vst.msk [vmem:[%s1298 + $0x128] sm:$0xff] %vm1831, %v6022
        %6279 = vst.msk [vmem:[%s1298 + $0x130] sm:$0xff] %vm1831, %v6023
        %6280 = vst.msk [vmem:[%s1298 + $0x138] sm:$0xff] %vm1831, %v6024
        %6281 = vst.msk [vmem:[%s1298 + $0x140] sm:$0xff] %vm1831, %v6025
        %6282 = vst.msk [vmem:[%s1298 + $0x148] sm:$0xff] %vm1831, %v6026
        %6283 = vst.msk [vmem:[%s1298 + $0x150] sm:$0xff] %vm1831, %v6027
        %6284 = vst.msk [vmem:[%s1298 + $0x158] sm:$0xff] %vm1831, %v6028
        %6285 = vst.msk [vmem:[%s1298 + $0x160] sm:$0xff] %vm1831, %v6029
        %6286 = vst.msk [vmem:[%s1298 + $0x168] sm:$0xff] %vm1831, %v6030
        %6287 = vst.msk [vmem:[%s1298 + $0x170] sm:$0xff] %vm1831, %v6031
        %6288 = vst.msk [vmem:[%s1298 + $0x178] sm:$0xff] %vm1831, %v6032
        %6289 = vst.msk [vmem:[%s1298 + $0x180] sm:$0xff] %vm1831, %v6033
        %6290 = vst.msk [vmem:[%s1298 + $0x188] sm:$0xff] %vm1831, %v6034
        %6291 = vst.msk [vmem:[%s1298 + $0x190] sm:$0xff] %vm1831, %v6035
        %6292 = vst.msk [vmem:[%s1298 + $0x198] sm:$0xff] %vm1831, %v6036
        %6293 = vst.msk [vmem:[%s1298 + $0x1a0] sm:$0xff] %vm1831, %v6037
        %6294 = vst.msk [vmem:[%s1298 + $0x1a8] sm:$0xff] %vm1831, %v6038
        %6295 = vst.msk [vmem:[%s1298 + $0x1b0] sm:$0xff] %vm1831, %v6039
        %6296 = vst.msk [vmem:[%s1298 + $0x1b8] sm:$0xff] %vm1831, %v6040
        %6297 = vst.msk [vmem:[%s1298 + $0x1c0] sm:$0xff] %vm1831, %v6041
        %6298 = vst.msk [vmem:[%s1298 + $0x1c8] sm:$0xff] %vm1831, %v6042
        %6299 = vst.msk [vmem:[%s1298 + $0x1d0] sm:$0xff] %vm1831, %v6043
        %6300 = vst.msk [vmem:[%s1298 + $0x1d8] sm:$0xff] %vm1831, %v6044
        %6301 = vst.msk [vmem:[%s1298 + $0x1e0] sm:$0xff] %vm1831, %v6045
        %6302 = vst.msk [vmem:[%s1298 + $0x1e8] sm:$0xff] %vm1831, %v6046
        %6303 = vst.msk [vmem:[%s1298 + $0x1f0] sm:$0xff] %vm1831, %v6047
        %6304 = vst.msk [vmem:[%s1298 + $0x1f8] sm:$0xff] %vm1831, %v6048
        %6305 = vst.msk [vmem:[%s1298 + $0x200] sm:$0xff] %vm1831, %v6049
        %6306 = vst.msk [vmem:[%s1298 + $0x208] sm:$0xff] %vm1831, %v6050
        %6307 = vst.msk [vmem:[%s1298 + $0x210] sm:$0xff] %vm1831, %v6051
        %6308 = vst.msk [vmem:[%s1298 + $0x218] sm:$0xff] %vm1831, %v6052
        %6309 = vst.msk [vmem:[%s1298 + $0x220] sm:$0xff] %vm1831, %v6053
        %6310 = vst.msk [vmem:[%s1298 + $0x228] sm:$0xff] %vm1831, %v6054
        %6311 = vst.msk [vmem:[%s1298 + $0x230] sm:$0xff] %vm1831, %v6055
        %6312 = vst.msk [vmem:[%s1298 + $0x238] sm:$0xff] %vm1831, %v6056
        %6313 = vst.msk [vmem:[%s1298 + $0x240] sm:$0xff] %vm1831, %v6057
        %6314 = vst.msk [vmem:[%s1298 + $0x248] sm:$0xff] %vm1831, %v6058
        %6315 = vst.msk [vmem:[%s1298 + $0x250] sm:$0xff] %vm1831, %v6059
        %6316 = vst.msk [vmem:[%s1298 + $0x258] sm:$0xff] %vm1831, %v6060
        %6317 = vst.msk [vmem:[%s1298 + $0x260] sm:$0xff] %vm1831, %v6061
        %6318 = vst.msk [vmem:[%s1298 + $0x268] sm:$0xff] %vm1831, %v6062
        %6319 = vst.msk [vmem:[%s1298 + $0x270] sm:$0xff] %vm1831, %v6063
        %6320 = vst.msk [vmem:[%s1298 + $0x278] sm:$0xff] %vm1831, %v6064
        %6321 = vst.msk [vmem:[%s1298 + $0x280] sm:$0xff] %vm1831, %v6065
        %6322 = vst.msk [vmem:[%s1298 + $0x288] sm:$0xff] %vm1831, %v6066
        %6323 = vst.msk [vmem:[%s1298 + $0x290] sm:$0xff] %vm1831, %v6067
        %6324 = vst.msk [vmem:[%s1298 + $0x298] sm:$0xff] %vm1831, %v6068
        %6325 = vst.msk [vmem:[%s1298 + $0x2a0] sm:$0xff] %vm1831, %v6069
        %6326 = vst.msk [vmem:[%s1298 + $0x2a8] sm:$0xff] %vm1831, %v6070
        %6327 = vst.msk [vmem:[%s1298 + $0x2b0] sm:$0xff] %vm1831, %v6071
        %6328 = vst.msk [vmem:[%s1298 + $0x2b8] sm:$0xff] %vm1831, %v6072
        %6329 = vst.msk [vmem:[%s1298 + $0x2c0] sm:$0xff] %vm1831, %v6073
        %6330 = vst.msk [vmem:[%s1298 + $0x2c8] sm:$0xff] %vm1831, %v6074
        %6331 = vst.msk [vmem:[%s1298 + $0x2d0] sm:$0xff] %vm1831, %v6075
        %6332 = vst.msk [vmem:[%s1298 + $0x2d8] sm:$0xff] %vm1831, %v6076
        %6333 = vst.msk [vmem:[%s1298 + $0x2e0] sm:$0xff] %vm1831, %v6077
        %6334 = vst.msk [vmem:[%s1298 + $0x2e8] sm:$0xff] %vm1831, %v6078
        %6335 = vst.msk [vmem:[%s1298 + $0x2f0] sm:$0xff] %vm1831, %v6079
        %6336 = vst.msk [vmem:[%s1298 + $0x2f8] sm:$0xff] %vm1831, %v6080
        %6337 = vst.msk [vmem:[%s1298 + $0x300] sm:$0xff] %vm1831, %v6081
        %6338 = vst.msk [vmem:[%s1298 + $0x308] sm:$0xff] %vm1831, %v6082
        %6339 = vst.msk [vmem:[%s1298 + $0x310] sm:$0xff] %vm1831, %v6083
        %6340 = vst.msk [vmem:[%s1298 + $0x318] sm:$0xff] %vm1831, %v6084
        %6341 = vst.msk [vmem:[%s1298 + $0x320] sm:$0xff] %vm1831, %v6085
        %6342 = vst.msk [vmem:[%s1298 + $0x328] sm:$0xff] %vm1831, %v6086
        %6343 = vst.msk [vmem:[%s1298 + $0x330] sm:$0xff] %vm1831, %v6087
        %6344 = vst.msk [vmem:[%s1298 + $0x338] sm:$0xff] %vm1831, %v6088
        %6345 = vst.msk [vmem:[%s1298 + $0x340] sm:$0xff] %vm1831, %v6089
        %6346 = vst.msk [vmem:[%s1298 + $0x348] sm:$0xff] %vm1831, %v6090
        %6347 = vst.msk [vmem:[%s1298 + $0x350] sm:$0xff] %vm1831, %v6091
        %6348 = vst.msk [vmem:[%s1298 + $0x358] sm:$0xff] %vm1831, %v6092
        %6349 = vst.msk [vmem:[%s1298 + $0x360] sm:$0xff] %vm1831, %v6093
        %6350 = vst.msk [vmem:[%s1298 + $0x368] sm:$0xff] %vm1831, %v6094
        %6351 = vst.msk [vmem:[%s1298 + $0x370] sm:$0xff] %vm1831, %v6095
        %6352 = vst.msk [vmem:[%s1298 + $0x378] sm:$0xff] %vm1831, %v6096
        %6353 = vst.msk [vmem:[%s1298 + $0x380] sm:$0xff] %vm1831, %v6097
        %6354 = vst.msk [vmem:[%s1298 + $0x388] sm:$0xff] %vm1831, %v6098
        %6355 = vst.msk [vmem:[%s1298 + $0x390] sm:$0xff] %vm1831, %v6099
        %6356 = vst.msk [vmem:[%s1298 + $0x398] sm:$0xff] %vm1831, %v6100
        %6357 = vst.msk [vmem:[%s1298 + $0x3a0] sm:$0xff] %vm1831, %v6101
        %6358 = vst.msk [vmem:[%s1298 + $0x3a8] sm:$0xff] %vm1831, %v6102
        %6359 = vst.msk [vmem:[%s1298 + $0x3b0] sm:$0xff] %vm1831, %v6103
        %6360 = vst.msk [vmem:[%s1298 + $0x3b8] sm:$0xff] %vm1831, %v6104
        %6361 = vst.msk [vmem:[%s1298 + $0x3c0] sm:$0xff] %vm1831, %v6105
        %6362 = vst.msk [vmem:[%s1298 + $0x3c8] sm:$0xff] %vm1831, %v6106
        %6363 = vst.msk [vmem:[%s1298 + $0x3d0] sm:$0xff] %vm1831, %v6107
        %6364 = vst.msk [vmem:[%s1298 + $0x3d8] sm:$0xff] %vm1831, %v6108
        %6365 = vst.msk [vmem:[%s1298 + $0x3e0] sm:$0xff] %vm1831, %v6109
        %6366 = vst.msk [vmem:[%s1298 + $0x3e8] sm:$0xff] %vm1831, %v6110
        %6367 = vst.msk [vmem:[%s1298 + $0x3f0] sm:$0xff] %vm1831, %v6111
        %6368 = vst.msk [vmem:[%s1298 + $0x3f8] sm:$0xff] %vm1831, %v6112
        %6369 = vst.msk [vmem:[%s1298 + $0x400] sm:$0xff] %vm1831, %v6113
        %6370 = vst.msk [vmem:[%s1298 + $0x408] sm:$0xff] %vm1831, %v6114
        %6371 = vst.msk [vmem:[%s1298 + $0x410] sm:$0xff] %vm1831, %v6115
        %6372 = vst.msk [vmem:[%s1298 + $0x418] sm:$0xff] %vm1831, %v6116
        %6373 = vst.msk [vmem:[%s1298 + $0x420] sm:$0xff] %vm1831, %v6117
        %6374 = vst.msk [vmem:[%s1298 + $0x428] sm:$0xff] %vm1831, %v6118
        %6375 = vst.msk [vmem:[%s1298 + $0x430] sm:$0xff] %vm1831, %v6119
        %6376 = vst.msk [vmem:[%s1298 + $0x438] sm:$0xff] %vm1831, %v6120
        %6377 = vst.msk [vmem:[%s1298 + $0x440] sm:$0xff] %vm1831, %v6121
        %6378 = vst.msk [vmem:[%s1298 + $0x448] sm:$0xff] %vm1831, %v6122
        %6379 = vst.msk [vmem:[%s1298 + $0x450] sm:$0xff] %vm1831, %v6123
        %6380 = vst.msk [vmem:[%s1298 + $0x458] sm:$0xff] %vm1831, %v6124
        %6381 = vst.msk [vmem:[%s1298 + $0x460] sm:$0xff] %vm1831, %v6125
        %6382 = vst.msk [vmem:[%s1298 + $0x468] sm:$0xff] %vm1831, %v6126
        %6383 = vst.msk [vmem:[%s1298 + $0x470] sm:$0xff] %vm1831, %v6127
        %6384 = vst.msk [vmem:[%s1298 + $0x478] sm:$0xff] %vm1831, %v6128
        %6385 = vst.msk [vmem:[%s1298 + $0x480] sm:$0xff] %vm1831, %v6129
        %6386 = vst.msk [vmem:[%s1298 + $0x488] sm:$0xff] %vm1831, %v6130
        %6387 = vst.msk [vmem:[%s1298 + $0x490] sm:$0xff] %vm1831, %v6131
        %6388 = vst.msk [vmem:[%s1298 + $0x498] sm:$0xff] %vm1831, %v6132
        %6389 = vst.msk [vmem:[%s1298 + $0x4a0] sm:$0xff] %vm1831, %v6133
        %6390 = vst.msk [vmem:[%s1298 + $0x4a8] sm:$0xff] %vm1831, %v6134
        %6391 = vst.msk [vmem:[%s1298 + $0x4b0] sm:$0xff] %vm1831, %v6135
        %6392 = vst.msk [vmem:[%s1298 + $0x4b8] sm:$0xff] %vm1831, %v6136
        %6393 = vst.msk [vmem:[%s1298 + $0x4c0] sm:$0xff] %vm1831, %v6137
        %6394 = vst.msk [vmem:[%s1298 + $0x4c8] sm:$0xff] %vm1831, %v6138
        %6395 = vst.msk [vmem:[%s1298 + $0x4d0] sm:$0xff] %vm1831, %v6139
        %6396 = vst.msk [vmem:[%s1298 + $0x4d8] sm:$0xff] %vm1831, %v6140
        %6397 = vst.msk [vmem:[%s1298 + $0x4e0] sm:$0xff] %vm1831, %v6141
        %6398 = vst.msk [vmem:[%s1298 + $0x4e8] sm:$0xff] %vm1831, %v6142
        %6399 = vst.msk [vmem:[%s1298 + $0x4f0] sm:$0xff] %vm1831, %v6143
        %6400 = vst.msk [vmem:[%s1298 + $0x4f8] sm:$0xff] %vm1831, %v6144
        %6401 = vst.msk [vmem:[%s1298 + $0x500] sm:$0xff] %vm1831, %v6145
        %6402 = vst.msk [vmem:[%s1298 + $0x508] sm:$0xff] %vm1831, %v6146
        %6403 = vst.msk [vmem:[%s1298 + $0x510] sm:$0xff] %vm1831, %v6147
        %6404 = vst.msk [vmem:[%s1298 + $0x518] sm:$0xff] %vm1831, %v6148
        %6405 = vst.msk [vmem:[%s1298 + $0x520] sm:$0xff] %vm1831, %v6149
        %6406 = vst.msk [vmem:[%s1298 + $0x528] sm:$0xff] %vm1831, %v6150
        %6407 = vst.msk [vmem:[%s1298 + $0x530] sm:$0xff] %vm1831, %v6151
        %6408 = vst.msk [vmem:[%s1298 + $0x538] sm:$0xff] %vm1831, %v6152
        %6409 = vst.msk [vmem:[%s1298 + $0x540] sm:$0xff] %vm1831, %v6153
        %6410 = vst.msk [vmem:[%s1298 + $0x548] sm:$0xff] %vm1831, %v6154
        %6411 = vst.msk [vmem:[%s1298 + $0x550] sm:$0xff] %vm1831, %v6155
        %6412 = vst.msk [vmem:[%s1298 + $0x558] sm:$0xff] %vm1831, %v6156
        %6413 = vst.msk [vmem:[%s1298 + $0x560] sm:$0xff] %vm1831, %v6157
        %6414 = vst.msk [vmem:[%s1298 + $0x568] sm:$0xff] %vm1831, %v6158
        %6415 = vst.msk [vmem:[%s1298 + $0x570] sm:$0xff] %vm1831, %v6159
        %6416 = vst.msk [vmem:[%s1298 + $0x578] sm:$0xff] %vm1831, %v6160
        %6417 = vst.msk [vmem:[%s1298 + $0x580] sm:$0xff] %vm1831, %v6161
        %6418 = vst.msk [vmem:[%s1298 + $0x588] sm:$0xff] %vm1831, %v6162
        %6419 = vst.msk [vmem:[%s1298 + $0x590] sm:$0xff] %vm1831, %v6163
        %6420 = vst.msk [vmem:[%s1298 + $0x598] sm:$0xff] %vm1831, %v6164
        %6421 = vst.msk [vmem:[%s1298 + $0x5a0] sm:$0xff] %vm1831, %v6165
        %6422 = vst.msk [vmem:[%s1298 + $0x5a8] sm:$0xff] %vm1831, %v6166
        %6423 = vst.msk [vmem:[%s1298 + $0x5b0] sm:$0xff] %vm1831, %v6167
        %6424 = vst.msk [vmem:[%s1298 + $0x5b8] sm:$0xff] %vm1831, %v6168
        %6425 = vst.msk [vmem:[%s1298 + $0x5c0] sm:$0xff] %vm1831, %v6169
        %6426 = vst.msk [vmem:[%s1298 + $0x5c8] sm:$0xff] %vm1831, %v6170
        %6427 = vst.msk [vmem:[%s1298 + $0x5d0] sm:$0xff] %vm1831, %v6171
        %6428 = vst.msk [vmem:[%s1298 + $0x5d8] sm:$0xff] %vm1831, %v6172
        %6429 = vst.msk [vmem:[%s1298 + $0x5e0] sm:$0xff] %vm1831, %v6173
        %6430 = vst.msk [vmem:[%s1298 + $0x5e8] sm:$0xff] %vm1831, %v6174
        %6431 = vst.msk [vmem:[%s1298 + $0x5f0] sm:$0xff] %vm1831, %v6175
        %6432 = vst.msk [vmem:[%s1298 + $0x5f8] sm:$0xff] %vm1831, %v6176
        %6433 = vst.msk [vmem:[%s1298 + $0x600] sm:$0xff] %vm1831, %v6177
        %6434 = vst.msk [vmem:[%s1298 + $0x608] sm:$0xff] %vm1831, %v6178
        %6435 = vst.msk [vmem:[%s1298 + $0x610] sm:$0xff] %vm1831, %v6179
        %6436 = vst.msk [vmem:[%s1298 + $0x618] sm:$0xff] %vm1831, %v6180
        %6437 = vst.msk [vmem:[%s1298 + $0x620] sm:$0xff] %vm1831, %v6181
        %6438 = vst.msk [vmem:[%s1298 + $0x628] sm:$0xff] %vm1831, %v6182
        %6439 = vst.msk [vmem:[%s1298 + $0x630] sm:$0xff] %vm1831, %v6183
        %6440 = vst.msk [vmem:[%s1298 + $0x638] sm:$0xff] %vm1831, %v6184
        %6441 = vst.msk [vmem:[%s1298 + $0x640] sm:$0xff] %vm1831, %v6185
        %6442 = vst.msk [vmem:[%s1298 + $0x648] sm:$0xff] %vm1831, %v6186
        %6443 = vst.msk [vmem:[%s1298 + $0x650] sm:$0xff] %vm1831, %v6187
        %6444 = vst.msk [vmem:[%s1298 + $0x658] sm:$0xff] %vm1831, %v6188
        %6445 = vst.msk [vmem:[%s1298 + $0x660] sm:$0xff] %vm1831, %v6189
        %6446 = vst.msk [vmem:[%s1298 + $0x668] sm:$0xff] %vm1831, %v6190
        %6447 = vst.msk [vmem:[%s1298 + $0x670] sm:$0xff] %vm1831, %v6191
        %6448 = vst.msk [vmem:[%s1298 + $0x678] sm:$0xff] %vm1831, %v6192
        %6449 = vst.msk [vmem:[%s1298 + $0x680] sm:$0xff] %vm1831, %v6193
        %6450 = vst.msk [vmem:[%s1298 + $0x688] sm:$0xff] %vm1831, %v6194
        %6451 = vst.msk [vmem:[%s1298 + $0x690] sm:$0xff] %vm1831, %v6195
        %6452 = vst.msk [vmem:[%s1298 + $0x698] sm:$0xff] %vm1831, %v6196
        %6453 = vst.msk [vmem:[%s1298 + $0x6a0] sm:$0xff] %vm1831, %v6197
        %6454 = vst.msk [vmem:[%s1298 + $0x6a8] sm:$0xff] %vm1831, %v6198
        %6455 = vst.msk [vmem:[%s1298 + $0x6b0] sm:$0xff] %vm1831, %v6199
        %6456 = vst.msk [vmem:[%s1298 + $0x6b8] sm:$0xff] %vm1831, %v6200
        %6457 = vst.msk [vmem:[%s1298 + $0x6c0] sm:$0xff] %vm1831, %v6201
        %6458 = vst.msk [vmem:[%s1298 + $0x6c8] sm:$0xff] %vm1831, %v6202
        %6459 = vst.msk [vmem:[%s1298 + $0x6d0] sm:$0xff] %vm1831, %v6203
        %6460 = vst.msk [vmem:[%s1298 + $0x6d8] sm:$0xff] %vm1831, %v6204
        %6461 = vst.msk [vmem:[%s1298 + $0x6e0] sm:$0xff] %vm1831, %v6205
        %6462 = vst.msk [vmem:[%s1298 + $0x6e8] sm:$0xff] %vm1831, %v6206
        %6463 = vst.msk [vmem:[%s1298 + $0x6f0] sm:$0xff] %vm1831, %v6207
        %6464 = vst.msk [vmem:[%s1298 + $0x6f8] sm:$0xff] %vm1831, %v6208
        %6465 = vst.msk [vmem:[%s1298 + $0x700] sm:$0xff] %vm1831, %v6209
        %6466 = vst.msk [vmem:[%s1298 + $0x708] sm:$0xff] %vm1831, %v6210
        %6467 = vst.msk [vmem:[%s1298 + $0x710] sm:$0xff] %vm1831, %v6211
        %6468 = vst.msk [vmem:[%s1298 + $0x718] sm:$0xff] %vm1831, %v6212
        %6469 = vst.msk [vmem:[%s1298 + $0x720] sm:$0xff] %vm1831, %v6213
        %6470 = vst.msk [vmem:[%s1298 + $0x728] sm:$0xff] %vm1831, %v6214
        %6471 = vst.msk [vmem:[%s1298 + $0x730] sm:$0xff] %vm1831, %v6215
        %6472 = vst.msk [vmem:[%s1298 + $0x738] sm:$0xff] %vm1831, %v6216
        %6473 = vst.msk [vmem:[%s1298 + $0x740] sm:$0xff] %vm1831, %v6217
        %6474 = vst.msk [vmem:[%s1298 + $0x748] sm:$0xff] %vm1831, %v6218
        %6475 = vst.msk [vmem:[%s1298 + $0x750] sm:$0xff] %vm1831, %v6219
        %6476 = vst.msk [vmem:[%s1298 + $0x758] sm:$0xff] %vm1831, %v6220
        %6477 = vst.msk [vmem:[%s1298 + $0x760] sm:$0xff] %vm1831, %v6221
        %6478 = vst.msk [vmem:[%s1298 + $0x768] sm:$0xff] %vm1831, %v6222
        %6479 = vst.msk [vmem:[%s1298 + $0x770] sm:$0xff] %vm1831, %v6223
        %6480 = vst.msk [vmem:[%s1298 + $0x778] sm:$0xff] %vm1831, %v6224
        %6481 = vst.msk [vmem:[%s1298 + $0x780] sm:$0xff] %vm1831, %v6225
        %6482 = vst.msk [vmem:[%s1298 + $0x788] sm:$0xff] %vm1831, %v6226
        %6483 = vst.msk [vmem:[%s1298 + $0x790] sm:$0xff] %vm1831, %v6227
        %6484 = vst.msk [vmem:[%s1298 + $0x798] sm:$0xff] %vm1831, %v6228
        %6485 = vst.msk [vmem:[%s1298 + $0x7a0] sm:$0xff] %vm1831, %v6229
        %6486 = vst.msk [vmem:[%s1298 + $0x7a8] sm:$0xff] %vm1831, %v6230
        %6487 = vst.msk [vmem:[%s1298 + $0x7b0] sm:$0xff] %vm1831, %v6231
        %6488 = vst.msk [vmem:[%s1298 + $0x7b8] sm:$0xff] %vm1831, %v6232
        %6489 = vst.msk [vmem:[%s1298 + $0x7c0] sm:$0xff] %vm1831, %v6233
        %6490 = vst.msk [vmem:[%s1298 + $0x7c8] sm:$0xff] %vm1831, %v6234
        %6491 = vst.msk [vmem:[%s1298 + $0x7d0] sm:$0xff] %vm1831, %v6235
        %6492 = vst.msk [vmem:[%s1298 + $0x7d8] sm:$0xff] %vm1831, %v6236
        %6493 = vst.msk [vmem:[%s1298 + $0x7e0] sm:$0xff] %vm1831, %v6237
        %6494 = vst.msk [vmem:[%s1298 + $0x7e8] sm:$0xff] %vm1831, %v6238
        %6495 = vst.msk [vmem:[%s1298 + $0x7f0] sm:$0xff] %vm1831, %v6239
        %6496 = vst.msk [vmem:[%s1298 + $0x7f8] sm:$0xff] %vm1831, %v6240
        %s6497 = smul.u32 32, %s17
        %p6498 = scmp.lt.s32.totalorder %s6497, 63
        %s6499 = scalar_select %p6498, %s6497, 63
        %s6500 = smul.addr %s6499, 8
        %s6501 = scalar_lea.vmem %s4, %s6500
        %s6502 = sand.u32 %s145, 1
        %s6503 = sand.u32 %s145, 1
        %s6504 = smul.addr %s6503, 2048
        %s6505 = scalar_lea.vmem [#allocation3], %s6504
        // Predicated region
        $region75: #{tpu_custom_call.1} parent=69 // pred_check
          %p6506 = pneg %p129
        $region76: #{tpu_custom_call.1} parent=69 // pred_check_branch
          %6508 = sbr.rel (%p6506) target = $region78
        $region77: #{tpu_custom_call.1} parent=69 // pred_region
          %s6509 = smul.u32 32, %s17
        $region78: #{tpu_custom_call.1} parent=69 // pred_fallthru
          _
        // Predicated region
        $region79: #{tpu_custom_call.1} parent=69 // pred_check
          %p6510 = pneg %p155
        $region80: #{tpu_custom_call.1} parent=69 // pred_check_branch
          %6512 = sbr.rel (%p6510) target = $region82
        $region81: #{tpu_custom_call.1} parent=69 // pred_region
          %s6513 = smul.u32 32, %s17
          %s6514 = smul.addr %s6513, 8
          %s6515 = scalar_lea.vmem %s5, %s6514
          // Predicated region
          $region83: #{tpu_custom_call.1} parent=81 // pred_check
            _
          $region84: #{tpu_custom_call.1} parent=81 // pred_check_branch
            %6517 = sbr.rel (0) target = $region86
          $region85: #{tpu_custom_call.1} parent=81 // pred_region
            // Predicated region
            $region87: #{tpu_custom_call.1} parent=85 // pred_check
              _
            $region88: #{tpu_custom_call.1} parent=85 // pred_check_branch
              %6519 = sbr.rel (0) target = $region90
            $region89: #{tpu_custom_call.1} parent=85 // pred_region
              // Predicated region
              $region102: #{tpu_custom_call.1} parent=89 // pred_check
                _
              $region103: #{tpu_custom_call.1} parent=89 // pred_check_branch
                %7045 = sbr.rel (0) target = $region105
              $region104: #{tpu_custom_call.1} parent=89 // pred_region
                loop: start=0, step=1, limit=1
                $region106: #{tpu_custom_call.1} parent=104 // loop_pre_header
                  _
                $region107: #{tpu_custom_call.1} parent=104 // loop_header
                  %s7047 = sphi 0, %s7051
                  %p7048 = scmp.ge.s32.totalorder %s7047, 1
                  %s7052 = sphi %s6505, %s6505
                  %s7053 = sphi %s6515, %s6515
                $region108: #{tpu_custom_call.1} parent=104 // loop_header_branch
                  %7050 = sbr.rel (%p7048) target = $region112
                $region109: #{tpu_custom_call.1} parent=104 // loop_body
                  %v7054 = vld [vmem:[%s7052] sm:$0xff]
                  %7055 = vst [vmem:[%s7053] sm:$0xff] %v7054
                  %v7056 = vld [vmem:[%s7052 + $0x8] sm:$0xff]
                  %7057 = vst [vmem:[%s7053 + $0x8] sm:$0xff] %v7056
                  %v7058 = vld [vmem:[%s7052 + $0x10] sm:$0xff]
                  %7059 = vst [vmem:[%s7053 + $0x10] sm:$0xff] %v7058
                  %v7060 = vld [vmem:[%s7052 + $0x18] sm:$0xff]
                  %7061 = vst [vmem:[%s7053 + $0x18] sm:$0xff] %v7060
                  %v7062 = vld [vmem:[%s7052 + $0x20] sm:$0xff]
                  %7063 = vst [vmem:[%s7053 + $0x20] sm:$0xff] %v7062
                  %v7064 = vld [vmem:[%s7052 + $0x28] sm:$0xff]
                  %7065 = vst [vmem:[%s7053 + $0x28] sm:$0xff] %v7064
                  %v7066 = vld [vmem:[%s7052 + $0x30] sm:$0xff]
                  %7067 = vst [vmem:[%s7053 + $0x30] sm:$0xff] %v7066
                  %v7068 = vld [vmem:[%s7052 + $0x38] sm:$0xff]
                  %7069 = vst [vmem:[%s7053 + $0x38] sm:$0xff] %v7068
                  %v7070 = vld [vmem:[%s7052 + $0x40] sm:$0xff]
                  %7071 = vst [vmem:[%s7053 + $0x40] sm:$0xff] %v7070
                  %v7072 = vld [vmem:[%s7052 + $0x48] sm:$0xff]
                  %7073 = vst [vmem:[%s7053 + $0x48] sm:$0xff] %v7072
                  %v7074 = vld [vmem:[%s7052 + $0x50] sm:$0xff]
                  %7075 = vst [vmem:[%s7053 + $0x50] sm:$0xff] %v7074
                  %v7076 = vld [vmem:[%s7052 + $0x58] sm:$0xff]
                  %7077 = vst [vmem:[%s7053 + $0x58] sm:$0xff] %v7076
                  %v7078 = vld [vmem:[%s7052 + $0x60] sm:$0xff]
                  %7079 = vst [vmem:[%s7053 + $0x60] sm:$0xff] %v7078
                  %v7080 = vld [vmem:[%s7052 + $0x68] sm:$0xff]
                  %7081 = vst [vmem:[%s7053 + $0x68] sm:$0xff] %v7080
                  %v7082 = vld [vmem:[%s7052 + $0x70] sm:$0xff]
                  %7083 = vst [vmem:[%s7053 + $0x70] sm:$0xff] %v7082
                  %v7084 = vld [vmem:[%s7052 + $0x78] sm:$0xff]
                  %7085 = vst [vmem:[%s7053 + $0x78] sm:$0xff] %v7084
                  %v7086 = vld [vmem:[%s7052 + $0x80] sm:$0xff]
                  %7087 = vst [vmem:[%s7053 + $0x80] sm:$0xff] %v7086
                  %v7088 = vld [vmem:[%s7052 + $0x88] sm:$0xff]
                  %7089 = vst [vmem:[%s7053 + $0x88] sm:$0xff] %v7088
                  %v7090 = vld [vmem:[%s7052 + $0x90] sm:$0xff]
                  %7091 = vst [vmem:[%s7053 + $0x90] sm:$0xff] %v7090
                  %v7092 = vld [vmem:[%s7052 + $0x98] sm:$0xff]
                  %7093 = vst [vmem:[%s7053 + $0x98] sm:$0xff] %v7092
                  %v7094 = vld [vmem:[%s7052 + $0xa0] sm:$0xff]
                  %7095 = vst [vmem:[%s7053 + $0xa0] sm:$0xff] %v7094
                  %v7096 = vld [vmem:[%s7052 + $0xa8] sm:$0xff]
                  %7097 = vst [vmem:[%s7053 + $0xa8] sm:$0xff] %v7096
                  %v7098 = vld [vmem:[%s7052 + $0xb0] sm:$0xff]
                  %7099 = vst [vmem:[%s7053 + $0xb0] sm:$0xff] %v7098
                  %v7100 = vld [vmem:[%s7052 + $0xb8] sm:$0xff]
                  %7101 = vst [vmem:[%s7053 + $0xb8] sm:$0xff] %v7100
                  %v7102 = vld [vmem:[%s7052 + $0xc0] sm:$0xff]
                  %7103 = vst [vmem:[%s7053 + $0xc0] sm:$0xff] %v7102
                  %v7104 = vld [vmem:[%s7052 + $0xc8] sm:$0xff]
                  %7105 = vst [vmem:[%s7053 + $0xc8] sm:$0xff] %v7104
                  %v7106 = vld [vmem:[%s7052 + $0xd0] sm:$0xff]
                  %7107 = vst [vmem:[%s7053 + $0xd0] sm:$0xff] %v7106
                  %v7108 = vld [vmem:[%s7052 + $0xd8] sm:$0xff]
                  %7109 = vst [vmem:[%s7053 + $0xd8] sm:$0xff] %v7108
                  %v7110 = vld [vmem:[%s7052 + $0xe0] sm:$0xff]
                  %7111 = vst [vmem:[%s7053 + $0xe0] sm:$0xff] %v7110
                  %v7112 = vld [vmem:[%s7052 + $0xe8] sm:$0xff]
                  %7113 = vst [vmem:[%s7053 + $0xe8] sm:$0xff] %v7112
                  %v7114 = vld [vmem:[%s7052 + $0xf0] sm:$0xff]
                  %7115 = vst [vmem:[%s7053 + $0xf0] sm:$0xff] %v7114
                  %v7116 = vld [vmem:[%s7052 + $0xf8] sm:$0xff]
                  %7117 = vst [vmem:[%s7053 + $0xf8] sm:$0xff] %v7116
                  %v7118 = vld [vmem:[%s7052 + $0x100] sm:$0xff]
                  %7119 = vst [vmem:[%s7053 + $0x200] sm:$0xff] %v7118
                  %v7120 = vld [vmem:[%s7052 + $0x108] sm:$0xff]
                  %7121 = vst [vmem:[%s7053 + $0x208] sm:$0xff] %v7120
                  %v7122 = vld [vmem:[%s7052 + $0x110] sm:$0xff]
                  %7123 = vst [vmem:[%s7053 + $0x210] sm:$0xff] %v7122
                  %v7124 = vld [vmem:[%s7052 + $0x118] sm:$0xff]
                  %7125 = vst [vmem:[%s7053 + $0x218] sm:$0xff] %v7124
                  %v7126 = vld [vmem:[%s7052 + $0x120] sm:$0xff]
                  %7127 = vst [vmem:[%s7053 + $0x220] sm:$0xff] %v7126
                  %v7128 = vld [vmem:[%s7052 + $0x128] sm:$0xff]
                  %7129 = vst [vmem:[%s7053 + $0x228] sm:$0xff] %v7128
                  %v7130 = vld [vmem:[%s7052 + $0x130] sm:$0xff]
                  %7131 = vst [vmem:[%s7053 + $0x230] sm:$0xff] %v7130
                  %v7132 = vld [vmem:[%s7052 + $0x138] sm:$0xff]
                  %7133 = vst [vmem:[%s7053 + $0x238] sm:$0xff] %v7132
                  %v7134 = vld [vmem:[%s7052 + $0x140] sm:$0xff]
                  %7135 = vst [vmem:[%s7053 + $0x240] sm:$0xff] %v7134
                  %v7136 = vld [vmem:[%s7052 + $0x148] sm:$0xff]
                  %7137 = vst [vmem:[%s7053 + $0x248] sm:$0xff] %v7136
                  %v7138 = vld [vmem:[%s7052 + $0x150] sm:$0xff]
                  %7139 = vst [vmem:[%s7053 + $0x250] sm:$0xff] %v7138
                  %v7140 = vld [vmem:[%s7052 + $0x158] sm:$0xff]
                  %7141 = vst [vmem:[%s7053 + $0x258] sm:$0xff] %v7140
                  %v7142 = vld [vmem:[%s7052 + $0x160] sm:$0xff]
                  %7143 = vst [vmem:[%s7053 + $0x260] sm:$0xff] %v7142
                  %v7144 = vld [vmem:[%s7052 + $0x168] sm:$0xff]
                  %7145 = vst [vmem:[%s7053 + $0x268] sm:$0xff] %v7144
                  %v7146 = vld [vmem:[%s7052 + $0x170] sm:$0xff]
                  %7147 = vst [vmem:[%s7053 + $0x270] sm:$0xff] %v7146
                  %v7148 = vld [vmem:[%s7052 + $0x178] sm:$0xff]
                  %7149 = vst [vmem:[%s7053 + $0x278] sm:$0xff] %v7148
                  %v7150 = vld [vmem:[%s7052 + $0x180] sm:$0xff]
                  %7151 = vst [vmem:[%s7053 + $0x280] sm:$0xff] %v7150
                  %v7152 = vld [vmem:[%s7052 + $0x188] sm:$0xff]
                  %7153 = vst [vmem:[%s7053 + $0x288] sm:$0xff] %v7152
                  %v7154 = vld [vmem:[%s7052 + $0x190] sm:$0xff]
                  %7155 = vst [vmem:[%s7053 + $0x290] sm:$0xff] %v7154
                  %v7156 = vld [vmem:[%s7052 + $0x198] sm:$0xff]
                  %7157 = vst [vmem:[%s7053 + $0x298] sm:$0xff] %v7156
                  %v7158 = vld [vmem:[%s7052 + $0x1a0] sm:$0xff]
                  %7159 = vst [vmem:[%s7053 + $0x2a0] sm:$0xff] %v7158
                  %v7160 = vld [vmem:[%s7052 + $0x1a8] sm:$0xff]
                  %7161 = vst [vmem:[%s7053 + $0x2a8] sm:$0xff] %v7160
                  %v7162 = vld [vmem:[%s7052 + $0x1b0] sm:$0xff]
                  %7163 = vst [vmem:[%s7053 + $0x2b0] sm:$0xff] %v7162
                  %v7164 = vld [vmem:[%s7052 + $0x1b8] sm:$0xff]
                  %7165 = vst [vmem:[%s7053 + $0x2b8] sm:$0xff] %v7164
                  %v7166 = vld [vmem:[%s7052 + $0x1c0] sm:$0xff]
                  %7167 = vst [vmem:[%s7053 + $0x2c0] sm:$0xff] %v7166
                  %v7168 = vld [vmem:[%s7052 + $0x1c8] sm:$0xff]
                  %7169 = vst [vmem:[%s7053 + $0x2c8] sm:$0xff] %v7168
                  %v7170 = vld [vmem:[%s7052 + $0x1d0] sm:$0xff]
                  %7171 = vst [vmem:[%s7053 + $0x2d0] sm:$0xff] %v7170
                  %v7172 = vld [vmem:[%s7052 + $0x1d8] sm:$0xff]
                  %7173 = vst [vmem:[%s7053 + $0x2d8] sm:$0xff] %v7172
                  %v7174 = vld [vmem:[%s7052 + $0x1e0] sm:$0xff]
                  %7175 = vst [vmem:[%s7053 + $0x2e0] sm:$0xff] %v7174
                  %v7176 = vld [vmem:[%s7052 + $0x1e8] sm:$0xff]
                  %7177 = vst [vmem:[%s7053 + $0x2e8] sm:$0xff] %v7176
                  %v7178 = vld [vmem:[%s7052 + $0x1f0] sm:$0xff]
                  %7179 = vst [vmem:[%s7053 + $0x2f0] sm:$0xff] %v7178
                  %v7180 = vld [vmem:[%s7052 + $0x1f8] sm:$0xff]
                  %7181 = vst [vmem:[%s7053 + $0x2f8] sm:$0xff] %v7180
                  %v7182 = vld [vmem:[%s7052 + $0x200] sm:$0xff]
                  %7183 = vst [vmem:[%s7053 + $0x400] sm:$0xff] %v7182
                  %v7184 = vld [vmem:[%s7052 + $0x208] sm:$0xff]
                  %7185 = vst [vmem:[%s7053 + $0x408] sm:$0xff] %v7184
                  %v7186 = vld [vmem:[%s7052 + $0x210] sm:$0xff]
                  %7187 = vst [vmem:[%s7053 + $0x410] sm:$0xff] %v7186
                  %v7188 = vld [vmem:[%s7052 + $0x218] sm:$0xff]
                  %7189 = vst [vmem:[%s7053 + $0x418] sm:$0xff] %v7188
                  %v7190 = vld [vmem:[%s7052 + $0x220] sm:$0xff]
                  %7191 = vst [vmem:[%s7053 + $0x420] sm:$0xff] %v7190
                  %v7192 = vld [vmem:[%s7052 + $0x228] sm:$0xff]
                  %7193 = vst [vmem:[%s7053 + $0x428] sm:$0xff] %v7192
                  %v7194 = vld [vmem:[%s7052 + $0x230] sm:$0xff]
                  %7195 = vst [vmem:[%s7053 + $0x430] sm:$0xff] %v7194
                  %v7196 = vld [vmem:[%s7052 + $0x238] sm:$0xff]
                  %7197 = vst [vmem:[%s7053 + $0x438] sm:$0xff] %v7196
                  %v7198 = vld [vmem:[%s7052 + $0x240] sm:$0xff]
                  %7199 = vst [vmem:[%s7053 + $0x440] sm:$0xff] %v7198
                  %v7200 = vld [vmem:[%s7052 + $0x248] sm:$0xff]
                  %7201 = vst [vmem:[%s7053 + $0x448] sm:$0xff] %v7200
                  %v7202 = vld [vmem:[%s7052 + $0x250] sm:$0xff]
                  %7203 = vst [vmem:[%s7053 + $0x450] sm:$0xff] %v7202
                  %v7204 = vld [vmem:[%s7052 + $0x258] sm:$0xff]
                  %7205 = vst [vmem:[%s7053 + $0x458] sm:$0xff] %v7204
                  %v7206 = vld [vmem:[%s7052 + $0x260] sm:$0xff]
                  %7207 = vst [vmem:[%s7053 + $0x460] sm:$0xff] %v7206
                  %v7208 = vld [vmem:[%s7052 + $0x268] sm:$0xff]
                  %7209 = vst [vmem:[%s7053 + $0x468] sm:$0xff] %v7208
                  %v7210 = vld [vmem:[%s7052 + $0x270] sm:$0xff]
                  %7211 = vst [vmem:[%s7053 + $0x470] sm:$0xff] %v7210
                  %v7212 = vld [vmem:[%s7052 + $0x278] sm:$0xff]
                  %7213 = vst [vmem:[%s7053 + $0x478] sm:$0xff] %v7212
                  %v7214 = vld [vmem:[%s7052 + $0x280] sm:$0xff]
                  %7215 = vst [vmem:[%s7053 + $0x480] sm:$0xff] %v7214
                  %v7216 = vld [vmem:[%s7052 + $0x288] sm:$0xff]
                  %7217 = vst [vmem:[%s7053 + $0x488] sm:$0xff] %v7216
                  %v7218 = vld [vmem:[%s7052 + $0x290] sm:$0xff]
                  %7219 = vst [vmem:[%s7053 + $0x490] sm:$0xff] %v7218
                  %v7220 = vld [vmem:[%s7052 + $0x298] sm:$0xff]
                  %7221 = vst [vmem:[%s7053 + $0x498] sm:$0xff] %v7220
                  %v7222 = vld [vmem:[%s7052 + $0x2a0] sm:$0xff]
                  %7223 = vst [vmem:[%s7053 + $0x4a0] sm:$0xff] %v7222
                  %v7224 = vld [vmem:[%s7052 + $0x2a8] sm:$0xff]
                  %7225 = vst [vmem:[%s7053 + $0x4a8] sm:$0xff] %v7224
                  %v7226 = vld [vmem:[%s7052 + $0x2b0] sm:$0xff]
                  %7227 = vst [vmem:[%s7053 + $0x4b0] sm:$0xff] %v7226
                  %v7228 = vld [vmem:[%s7052 + $0x2b8] sm:$0xff]
                  %7229 = vst [vmem:[%s7053 + $0x4b8] sm:$0xff] %v7228
                  %v7230 = vld [vmem:[%s7052 + $0x2c0] sm:$0xff]
                  %7231 = vst [vmem:[%s7053 + $0x4c0] sm:$0xff] %v7230
                  %v7232 = vld [vmem:[%s7052 + $0x2c8] sm:$0xff]
                  %7233 = vst [vmem:[%s7053 + $0x4c8] sm:$0xff] %v7232
                  %v7234 = vld [vmem:[%s7052 + $0x2d0] sm:$0xff]
                  %7235 = vst [vmem:[%s7053 + $0x4d0] sm:$0xff] %v7234
                  %v7236 = vld [vmem:[%s7052 + $0x2d8] sm:$0xff]
                  %7237 = vst [vmem:[%s7053 + $0x4d8] sm:$0xff] %v7236
                  %v7238 = vld [vmem:[%s7052 + $0x2e0] sm:$0xff]
                  %7239 = vst [vmem:[%s7053 + $0x4e0] sm:$0xff] %v7238
                  %v7240 = vld [vmem:[%s7052 + $0x2e8] sm:$0xff]
                  %7241 = vst [vmem:[%s7053 + $0x4e8] sm:$0xff] %v7240
                  %v7242 = vld [vmem:[%s7052 + $0x2f0] sm:$0xff]
                  %7243 = vst [vmem:[%s7053 + $0x4f0] sm:$0xff] %v7242
                  %v7244 = vld [vmem:[%s7052 + $0x2f8] sm:$0xff]
                  %7245 = vst [vmem:[%s7053 + $0x4f8] sm:$0xff] %v7244
                  %v7246 = vld [vmem:[%s7052 + $0x300] sm:$0xff]
                  %7247 = vst [vmem:[%s7053 + $0x600] sm:$0xff] %v7246
                  %v7248 = vld [vmem:[%s7052 + $0x308] sm:$0xff]
                  %7249 = vst [vmem:[%s7053 + $0x608] sm:$0xff] %v7248
                  %v7250 = vld [vmem:[%s7052 + $0x310] sm:$0xff]
                  %7251 = vst [vmem:[%s7053 + $0x610] sm:$0xff] %v7250
                  %v7252 = vld [vmem:[%s7052 + $0x318] sm:$0xff]
                  %7253 = vst [vmem:[%s7053 + $0x618] sm:$0xff] %v7252
                  %v7254 = vld [vmem:[%s7052 + $0x320] sm:$0xff]
                  %7255 = vst [vmem:[%s7053 + $0x620] sm:$0xff] %v7254
                  %v7256 = vld [vmem:[%s7052 + $0x328] sm:$0xff]
                  %7257 = vst [vmem:[%s7053 + $0x628] sm:$0xff] %v7256
                  %v7258 = vld [vmem:[%s7052 + $0x330] sm:$0xff]
                  %7259 = vst [vmem:[%s7053 + $0x630] sm:$0xff] %v7258
                  %v7260 = vld [vmem:[%s7052 + $0x338] sm:$0xff]
                  %7261 = vst [vmem:[%s7053 + $0x638] sm:$0xff] %v7260
                  %v7262 = vld [vmem:[%s7052 + $0x340] sm:$0xff]
                  %7263 = vst [vmem:[%s7053 + $0x640] sm:$0xff] %v7262
                  %v7264 = vld [vmem:[%s7052 + $0x348] sm:$0xff]
                  %7265 = vst [vmem:[%s7053 + $0x648] sm:$0xff] %v7264
                  %v7266 = vld [vmem:[%s7052 + $0x350] sm:$0xff]
                  %7267 = vst [vmem:[%s7053 + $0x650] sm:$0xff] %v7266
                  %v7268 = vld [vmem:[%s7052 + $0x358] sm:$0xff]
                  %7269 = vst [vmem:[%s7053 + $0x658] sm:$0xff] %v7268
                  %v7270 = vld [vmem:[%s7052 + $0x360] sm:$0xff]
                  %7271 = vst [vmem:[%s7053 + $0x660] sm:$0xff] %v7270
                  %v7272 = vld [vmem:[%s7052 + $0x368] sm:$0xff]
                  %7273 = vst [vmem:[%s7053 + $0x668] sm:$0xff] %v7272
                  %v7274 = vld [vmem:[%s7052 + $0x370] sm:$0xff]
                  %7275 = vst [vmem:[%s7053 + $0x670] sm:$0xff] %v7274
                  %v7276 = vld [vmem:[%s7052 + $0x378] sm:$0xff]
                  %7277 = vst [vmem:[%s7053 + $0x678] sm:$0xff] %v7276
                  %v7278 = vld [vmem:[%s7052 + $0x380] sm:$0xff]
                  %7279 = vst [vmem:[%s7053 + $0x680] sm:$0xff] %v7278
                  %v7280 = vld [vmem:[%s7052 + $0x388] sm:$0xff]
                  %7281 = vst [vmem:[%s7053 + $0x688] sm:$0xff] %v7280
                  %v7282 = vld [vmem:[%s7052 + $0x390] sm:$0xff]
                  %7283 = vst [vmem:[%s7053 + $0x690] sm:$0xff] %v7282
                  %v7284 = vld [vmem:[%s7052 + $0x398] sm:$0xff]
                  %7285 = vst [vmem:[%s7053 + $0x698] sm:$0xff] %v7284
                  %v7286 = vld [vmem:[%s7052 + $0x3a0] sm:$0xff]
                  %7287 = vst [vmem:[%s7053 + $0x6a0] sm:$0xff] %v7286
                  %v7288 = vld [vmem:[%s7052 + $0x3a8] sm:$0xff]
                  %7289 = vst [vmem:[%s7053 + $0x6a8] sm:$0xff] %v7288
                  %v7290 = vld [vmem:[%s7052 + $0x3b0] sm:$0xff]
                  %7291 = vst [vmem:[%s7053 + $0x6b0] sm:$0xff] %v7290
                  %v7292 = vld [vmem:[%s7052 + $0x3b8] sm:$0xff]
                  %7293 = vst [vmem:[%s7053 + $0x6b8] sm:$0xff] %v7292
                  %v7294 = vld [vmem:[%s7052 + $0x3c0] sm:$0xff]
                  %7295 = vst [vmem:[%s7053 + $0x6c0] sm:$0xff] %v7294
                  %v7296 = vld [vmem:[%s7052 + $0x3c8] sm:$0xff]
                  %7297 = vst [vmem:[%s7053 + $0x6c8] sm:$0xff] %v7296
                  %v7298 = vld [vmem:[%s7052 + $0x3d0] sm:$0xff]
                  %7299 = vst [vmem:[%s7053 + $0x6d0] sm:$0xff] %v7298
                  %v7300 = vld [vmem:[%s7052 + $0x3d8] sm:$0xff]
                  %7301 = vst [vmem:[%s7053 + $0x6d8] sm:$0xff] %v7300
                  %v7302 = vld [vmem:[%s7052 + $0x3e0] sm:$0xff]
                  %7303 = vst [vmem:[%s7053 + $0x6e0] sm:$0xff] %v7302
                  %v7304 = vld [vmem:[%s7052 + $0x3e8] sm:$0xff]
                  %7305 = vst [vmem:[%s7053 + $0x6e8] sm:$0xff] %v7304
                  %v7306 = vld [vmem:[%s7052 + $0x3f0] sm:$0xff]
                  %7307 = vst [vmem:[%s7053 + $0x6f0] sm:$0xff] %v7306
                  %v7308 = vld [vmem:[%s7052 + $0x3f8] sm:$0xff]
                  %7309 = vst [vmem:[%s7053 + $0x6f8] sm:$0xff] %v7308
                  %v7310 = vld [vmem:[%s7052 + $0x400] sm:$0xff]
                  %7311 = vst [vmem:[%s7053 + $0x800] sm:$0xff] %v7310
                  %v7312 = vld [vmem:[%s7052 + $0x408] sm:$0xff]
                  %7313 = vst [vmem:[%s7053 + $0x808] sm:$0xff] %v7312
                  %v7314 = vld [vmem:[%s7052 + $0x410] sm:$0xff]
                  %7315 = vst [vmem:[%s7053 + $0x810] sm:$0xff] %v7314
                  %v7316 = vld [vmem:[%s7052 + $0x418] sm:$0xff]
                  %7317 = vst [vmem:[%s7053 + $0x818] sm:$0xff] %v7316
                  %v7318 = vld [vmem:[%s7052 + $0x420] sm:$0xff]
                  %7319 = vst [vmem:[%s7053 + $0x820] sm:$0xff] %v7318
                  %v7320 = vld [vmem:[%s7052 + $0x428] sm:$0xff]
                  %7321 = vst [vmem:[%s7053 + $0x828] sm:$0xff] %v7320
                  %v7322 = vld [vmem:[%s7052 + $0x430] sm:$0xff]
                  %7323 = vst [vmem:[%s7053 + $0x830] sm:$0xff] %v7322
                  %v7324 = vld [vmem:[%s7052 + $0x438] sm:$0xff]
                  %7325 = vst [vmem:[%s7053 + $0x838] sm:$0xff] %v7324
                  %v7326 = vld [vmem:[%s7052 + $0x440] sm:$0xff]
                  %7327 = vst [vmem:[%s7053 + $0x840] sm:$0xff] %v7326
                  %v7328 = vld [vmem:[%s7052 + $0x448] sm:$0xff]
                  %7329 = vst [vmem:[%s7053 + $0x848] sm:$0xff] %v7328
                  %v7330 = vld [vmem:[%s7052 + $0x450] sm:$0xff]
                  %7331 = vst [vmem:[%s7053 + $0x850] sm:$0xff] %v7330
                  %v7332 = vld [vmem:[%s7052 + $0x458] sm:$0xff]
                  %7333 = vst [vmem:[%s7053 + $0x858] sm:$0xff] %v7332
                  %v7334 = vld [vmem:[%s7052 + $0x460] sm:$0xff]
                  %7335 = vst [vmem:[%s7053 + $0x860] sm:$0xff] %v7334
                  %v7336 = vld [vmem:[%s7052 + $0x468] sm:$0xff]
                  %7337 = vst [vmem:[%s7053 + $0x868] sm:$0xff] %v7336
                  %v7338 = vld [vmem:[%s7052 + $0x470] sm:$0xff]
                  %7339 = vst [vmem:[%s7053 + $0x870] sm:$0xff] %v7338
                  %v7340 = vld [vmem:[%s7052 + $0x478] sm:$0xff]
                  %7341 = vst [vmem:[%s7053 + $0x878] sm:$0xff] %v7340
                  %v7342 = vld [vmem:[%s7052 + $0x480] sm:$0xff]
                  %7343 = vst [vmem:[%s7053 + $0x880] sm:$0xff] %v7342
                  %v7344 = vld [vmem:[%s7052 + $0x488] sm:$0xff]
                  %7345 = vst [vmem:[%s7053 + $0x888] sm:$0xff] %v7344
                  %v7346 = vld [vmem:[%s7052 + $0x490] sm:$0xff]
                  %7347 = vst [vmem:[%s7053 + $0x890] sm:$0xff] %v7346
                  %v7348 = vld [vmem:[%s7052 + $0x498] sm:$0xff]
                  %7349 = vst [vmem:[%s7053 + $0x898] sm:$0xff] %v7348
                  %v7350 = vld [vmem:[%s7052 + $0x4a0] sm:$0xff]
                  %7351 = vst [vmem:[%s7053 + $0x8a0] sm:$0xff] %v7350
                  %v7352 = vld [vmem:[%s7052 + $0x4a8] sm:$0xff]
                  %7353 = vst [vmem:[%s7053 + $0x8a8] sm:$0xff] %v7352
                  %v7354 = vld [vmem:[%s7052 + $0x4b0] sm:$0xff]
                  %7355 = vst [vmem:[%s7053 + $0x8b0] sm:$0xff] %v7354
                  %v7356 = vld [vmem:[%s7052 + $0x4b8] sm:$0xff]
                  %7357 = vst [vmem:[%s7053 + $0x8b8] sm:$0xff] %v7356
                  %v7358 = vld [vmem:[%s7052 + $0x4c0] sm:$0xff]
                  %7359 = vst [vmem:[%s7053 + $0x8c0] sm:$0xff] %v7358
                  %v7360 = vld [vmem:[%s7052 + $0x4c8] sm:$0xff]
                  %7361 = vst [vmem:[%s7053 + $0x8c8] sm:$0xff] %v7360
                  %v7362 = vld [vmem:[%s7052 + $0x4d0] sm:$0xff]
                  %7363 = vst [vmem:[%s7053 + $0x8d0] sm:$0xff] %v7362
                  %v7364 = vld [vmem:[%s7052 + $0x4d8] sm:$0xff]
                  %7365 = vst [vmem:[%s7053 + $0x8d8] sm:$0xff] %v7364
                  %v7366 = vld [vmem:[%s7052 + $0x4e0] sm:$0xff]
                  %7367 = vst [vmem:[%s7053 + $0x8e0] sm:$0xff] %v7366
                  %v7368 = vld [vmem:[%s7052 + $0x4e8] sm:$0xff]
                  %7369 = vst [vmem:[%s7053 + $0x8e8] sm:$0xff] %v7368
                  %v7370 = vld [vmem:[%s7052 + $0x4f0] sm:$0xff]
                  %7371 = vst [vmem:[%s7053 + $0x8f0] sm:$0xff] %v7370
                  %v7372 = vld [vmem:[%s7052 + $0x4f8] sm:$0xff]
                  %7373 = vst [vmem:[%s7053 + $0x8f8] sm:$0xff] %v7372
                  %v7374 = vld [vmem:[%s7052 + $0x500] sm:$0xff]
                  %7375 = vst [vmem:[%s7053 + $0xa00] sm:$0xff] %v7374
                  %v7376 = vld [vmem:[%s7052 + $0x508] sm:$0xff]
                  %7377 = vst [vmem:[%s7053 + $0xa08] sm:$0xff] %v7376
                  %v7378 = vld [vmem:[%s7052 + $0x510] sm:$0xff]
                  %7379 = vst [vmem:[%s7053 + $0xa10] sm:$0xff] %v7378
                  %v7380 = vld [vmem:[%s7052 + $0x518] sm:$0xff]
                  %7381 = vst [vmem:[%s7053 + $0xa18] sm:$0xff] %v7380
                  %v7382 = vld [vmem:[%s7052 + $0x520] sm:$0xff]
                  %7383 = vst [vmem:[%s7053 + $0xa20] sm:$0xff] %v7382
                  %v7384 = vld [vmem:[%s7052 + $0x528] sm:$0xff]
                  %7385 = vst [vmem:[%s7053 + $0xa28] sm:$0xff] %v7384
                  %v7386 = vld [vmem:[%s7052 + $0x530] sm:$0xff]
                  %7387 = vst [vmem:[%s7053 + $0xa30] sm:$0xff] %v7386
                  %v7388 = vld [vmem:[%s7052 + $0x538] sm:$0xff]
                  %7389 = vst [vmem:[%s7053 + $0xa38] sm:$0xff] %v7388
                  %v7390 = vld [vmem:[%s7052 + $0x540] sm:$0xff]
                  %7391 = vst [vmem:[%s7053 + $0xa40] sm:$0xff] %v7390
                  %v7392 = vld [vmem:[%s7052 + $0x548] sm:$0xff]
                  %7393 = vst [vmem:[%s7053 + $0xa48] sm:$0xff] %v7392
                  %v7394 = vld [vmem:[%s7052 + $0x550] sm:$0xff]
                  %7395 = vst [vmem:[%s7053 + $0xa50] sm:$0xff] %v7394
                  %v7396 = vld [vmem:[%s7052 + $0x558] sm:$0xff]
                  %7397 = vst [vmem:[%s7053 + $0xa58] sm:$0xff] %v7396
                  %v7398 = vld [vmem:[%s7052 + $0x560] sm:$0xff]
                  %7399 = vst [vmem:[%s7053 + $0xa60] sm:$0xff] %v7398
                  %v7400 = vld [vmem:[%s7052 + $0x568] sm:$0xff]
                  %7401 = vst [vmem:[%s7053 + $0xa68] sm:$0xff] %v7400
                  %v7402 = vld [vmem:[%s7052 + $0x570] sm:$0xff]
                  %7403 = vst [vmem:[%s7053 + $0xa70] sm:$0xff] %v7402
                  %v7404 = vld [vmem:[%s7052 + $0x578] sm:$0xff]
                  %7405 = vst [vmem:[%s7053 + $0xa78] sm:$0xff] %v7404
                  %v7406 = vld [vmem:[%s7052 + $0x580] sm:$0xff]
                  %7407 = vst [vmem:[%s7053 + $0xa80] sm:$0xff] %v7406
                  %v7408 = vld [vmem:[%s7052 + $0x588] sm:$0xff]
                  %7409 = vst [vmem:[%s7053 + $0xa88] sm:$0xff] %v7408
                  %v7410 = vld [vmem:[%s7052 + $0x590] sm:$0xff]
                  %7411 = vst [vmem:[%s7053 + $0xa90] sm:$0xff] %v7410
                  %v7412 = vld [vmem:[%s7052 + $0x598] sm:$0xff]
                  %7413 = vst [vmem:[%s7053 + $0xa98] sm:$0xff] %v7412
                  %v7414 = vld [vmem:[%s7052 + $0x5a0] sm:$0xff]
                  %7415 = vst [vmem:[%s7053 + $0xaa0] sm:$0xff] %v7414
                  %v7416 = vld [vmem:[%s7052 + $0x5a8] sm:$0xff]
                  %7417 = vst [vmem:[%s7053 + $0xaa8] sm:$0xff] %v7416
                  %v7418 = vld [vmem:[%s7052 + $0x5b0] sm:$0xff]
                  %7419 = vst [vmem:[%s7053 + $0xab0] sm:$0xff] %v7418
                  %v7420 = vld [vmem:[%s7052 + $0x5b8] sm:$0xff]
                  %7421 = vst [vmem:[%s7053 + $0xab8] sm:$0xff] %v7420
                  %v7422 = vld [vmem:[%s7052 + $0x5c0] sm:$0xff]
                  %7423 = vst [vmem:[%s7053 + $0xac0] sm:$0xff] %v7422
                  %v7424 = vld [vmem:[%s7052 + $0x5c8] sm:$0xff]
                  %7425 = vst [vmem:[%s7053 + $0xac8] sm:$0xff] %v7424
                  %v7426 = vld [vmem:[%s7052 + $0x5d0] sm:$0xff]
                  %7427 = vst [vmem:[%s7053 + $0xad0] sm:$0xff] %v7426
                  %v7428 = vld [vmem:[%s7052 + $0x5d8] sm:$0xff]
                  %7429 = vst [vmem:[%s7053 + $0xad8] sm:$0xff] %v7428
                  %v7430 = vld [vmem:[%s7052 + $0x5e0] sm:$0xff]
                  %7431 = vst [vmem:[%s7053 + $0xae0] sm:$0xff] %v7430
                  %v7432 = vld [vmem:[%s7052 + $0x5e8] sm:$0xff]
                  %7433 = vst [vmem:[%s7053 + $0xae8] sm:$0xff] %v7432
                  %v7434 = vld [vmem:[%s7052 + $0x5f0] sm:$0xff]
                  %7435 = vst [vmem:[%s7053 + $0xaf0] sm:$0xff] %v7434
                  %v7436 = vld [vmem:[%s7052 + $0x5f8] sm:$0xff]
                  %7437 = vst [vmem:[%s7053 + $0xaf8] sm:$0xff] %v7436
                  %v7438 = vld [vmem:[%s7052 + $0x600] sm:$0xff]
                  %7439 = vst [vmem:[%s7053 + $0xc00] sm:$0xff] %v7438
                  %v7440 = vld [vmem:[%s7052 + $0x608] sm:$0xff]
                  %7441 = vst [vmem:[%s7053 + $0xc08] sm:$0xff] %v7440
                  %v7442 = vld [vmem:[%s7052 + $0x610] sm:$0xff]
                  %7443 = vst [vmem:[%s7053 + $0xc10] sm:$0xff] %v7442
                  %v7444 = vld [vmem:[%s7052 + $0x618] sm:$0xff]
                  %7445 = vst [vmem:[%s7053 + $0xc18] sm:$0xff] %v7444
                  %v7446 = vld [vmem:[%s7052 + $0x620] sm:$0xff]
                  %7447 = vst [vmem:[%s7053 + $0xc20] sm:$0xff] %v7446
                  %v7448 = vld [vmem:[%s7052 + $0x628] sm:$0xff]
                  %7449 = vst [vmem:[%s7053 + $0xc28] sm:$0xff] %v7448
                  %v7450 = vld [vmem:[%s7052 + $0x630] sm:$0xff]
                  %7451 = vst [vmem:[%s7053 + $0xc30] sm:$0xff] %v7450
                  %v7452 = vld [vmem:[%s7052 + $0x638] sm:$0xff]
                  %7453 = vst [vmem:[%s7053 + $0xc38] sm:$0xff] %v7452
                  %v7454 = vld [vmem:[%s7052 + $0x640] sm:$0xff]
                  %7455 = vst [vmem:[%s7053 + $0xc40] sm:$0xff] %v7454
                  %v7456 = vld [vmem:[%s7052 + $0x648] sm:$0xff]
                  %7457 = vst [vmem:[%s7053 + $0xc48] sm:$0xff] %v7456
                  %v7458 = vld [vmem:[%s7052 + $0x650] sm:$0xff]
                  %7459 = vst [vmem:[%s7053 + $0xc50] sm:$0xff] %v7458
                  %v7460 = vld [vmem:[%s7052 + $0x658] sm:$0xff]
                  %7461 = vst [vmem:[%s7053 + $0xc58] sm:$0xff] %v7460
                  %v7462 = vld [vmem:[%s7052 + $0x660] sm:$0xff]
                  %7463 = vst [vmem:[%s7053 + $0xc60] sm:$0xff] %v7462
                  %v7464 = vld [vmem:[%s7052 + $0x668] sm:$0xff]
                  %7465 = vst [vmem:[%s7053 + $0xc68] sm:$0xff] %v7464
                  %v7466 = vld [vmem:[%s7052 + $0x670] sm:$0xff]
                  %7467 = vst [vmem:[%s7053 + $0xc70] sm:$0xff] %v7466
                  %v7468 = vld [vmem:[%s7052 + $0x678] sm:$0xff]
                  %7469 = vst [vmem:[%s7053 + $0xc78] sm:$0xff] %v7468
                  %v7470 = vld [vmem:[%s7052 + $0x680] sm:$0xff]
                  %7471 = vst [vmem:[%s7053 + $0xc80] sm:$0xff] %v7470
                  %v7472 = vld [vmem:[%s7052 + $0x688] sm:$0xff]
                  %7473 = vst [vmem:[%s7053 + $0xc88] sm:$0xff] %v7472
                  %v7474 = vld [vmem:[%s7052 + $0x690] sm:$0xff]
                  %7475 = vst [vmem:[%s7053 + $0xc90] sm:$0xff] %v7474
                  %v7476 = vld [vmem:[%s7052 + $0x698] sm:$0xff]
                  %7477 = vst [vmem:[%s7053 + $0xc98] sm:$0xff] %v7476
                  %v7478 = vld [vmem:[%s7052 + $0x6a0] sm:$0xff]
                  %7479 = vst [vmem:[%s7053 + $0xca0] sm:$0xff] %v7478
                  %v7480 = vld [vmem:[%s7052 + $0x6a8] sm:$0xff]
                  %7481 = vst [vmem:[%s7053 + $0xca8] sm:$0xff] %v7480
                  %v7482 = vld [vmem:[%s7052 + $0x6b0] sm:$0xff]
                  %7483 = vst [vmem:[%s7053 + $0xcb0] sm:$0xff] %v7482
                  %v7484 = vld [vmem:[%s7052 + $0x6b8] sm:$0xff]
                  %7485 = vst [vmem:[%s7053 + $0xcb8] sm:$0xff] %v7484
                  %v7486 = vld [vmem:[%s7052 + $0x6c0] sm:$0xff]
                  %7487 = vst [vmem:[%s7053 + $0xcc0] sm:$0xff] %v7486
                  %v7488 = vld [vmem:[%s7052 + $0x6c8] sm:$0xff]
                  %7489 = vst [vmem:[%s7053 + $0xcc8] sm:$0xff] %v7488
                  %v7490 = vld [vmem:[%s7052 + $0x6d0] sm:$0xff]
                  %7491 = vst [vmem:[%s7053 + $0xcd0] sm:$0xff] %v7490
                  %v7492 = vld [vmem:[%s7052 + $0x6d8] sm:$0xff]
                  %7493 = vst [vmem:[%s7053 + $0xcd8] sm:$0xff] %v7492
                  %v7494 = vld [vmem:[%s7052 + $0x6e0] sm:$0xff]
                  %7495 = vst [vmem:[%s7053 + $0xce0] sm:$0xff] %v7494
                  %v7496 = vld [vmem:[%s7052 + $0x6e8] sm:$0xff]
                  %7497 = vst [vmem:[%s7053 + $0xce8] sm:$0xff] %v7496
                  %v7498 = vld [vmem:[%s7052 + $0x6f0] sm:$0xff]
                  %7499 = vst [vmem:[%s7053 + $0xcf0] sm:$0xff] %v7498
                  %v7500 = vld [vmem:[%s7052 + $0x6f8] sm:$0xff]
                  %7501 = vst [vmem:[%s7053 + $0xcf8] sm:$0xff] %v7500
                  %v7502 = vld [vmem:[%s7052 + $0x700] sm:$0xff]
                  %7503 = vst [vmem:[%s7053 + $0xe00] sm:$0xff] %v7502
                  %v7504 = vld [vmem:[%s7052 + $0x708] sm:$0xff]
                  %7505 = vst [vmem:[%s7053 + $0xe08] sm:$0xff] %v7504
                  %v7506 = vld [vmem:[%s7052 + $0x710] sm:$0xff]
                  %7507 = vst [vmem:[%s7053 + $0xe10] sm:$0xff] %v7506
                  %v7508 = vld [vmem:[%s7052 + $0x718] sm:$0xff]
                  %7509 = vst [vmem:[%s7053 + $0xe18] sm:$0xff] %v7508
                  %v7510 = vld [vmem:[%s7052 + $0x720] sm:$0xff]
                  %7511 = vst [vmem:[%s7053 + $0xe20] sm:$0xff] %v7510
                  %v7512 = vld [vmem:[%s7052 + $0x728] sm:$0xff]
                  %7513 = vst [vmem:[%s7053 + $0xe28] sm:$0xff] %v7512
                  %v7514 = vld [vmem:[%s7052 + $0x730] sm:$0xff]
                  %7515 = vst [vmem:[%s7053 + $0xe30] sm:$0xff] %v7514
                  %v7516 = vld [vmem:[%s7052 + $0x738] sm:$0xff]
                  %7517 = vst [vmem:[%s7053 + $0xe38] sm:$0xff] %v7516
                  %v7518 = vld [vmem:[%s7052 + $0x740] sm:$0xff]
                  %7519 = vst [vmem:[%s7053 + $0xe40] sm:$0xff] %v7518
                  %v7520 = vld [vmem:[%s7052 + $0x748] sm:$0xff]
                  %7521 = vst [vmem:[%s7053 + $0xe48] sm:$0xff] %v7520
                  %v7522 = vld [vmem:[%s7052 + $0x750] sm:$0xff]
                  %7523 = vst [vmem:[%s7053 + $0xe50] sm:$0xff] %v7522
                  %v7524 = vld [vmem:[%s7052 + $0x758] sm:$0xff]
                  %7525 = vst [vmem:[%s7053 + $0xe58] sm:$0xff] %v7524
                  %v7526 = vld [vmem:[%s7052 + $0x760] sm:$0xff]
                  %7527 = vst [vmem:[%s7053 + $0xe60] sm:$0xff] %v7526
                  %v7528 = vld [vmem:[%s7052 + $0x768] sm:$0xff]
                  %7529 = vst [vmem:[%s7053 + $0xe68] sm:$0xff] %v7528
                  %v7530 = vld [vmem:[%s7052 + $0x770] sm:$0xff]
                  %7531 = vst [vmem:[%s7053 + $0xe70] sm:$0xff] %v7530
                  %v7532 = vld [vmem:[%s7052 + $0x778] sm:$0xff]
                  %7533 = vst [vmem:[%s7053 + $0xe78] sm:$0xff] %v7532
                  %v7534 = vld [vmem:[%s7052 + $0x780] sm:$0xff]
                  %7535 = vst [vmem:[%s7053 + $0xe80] sm:$0xff] %v7534
                  %v7536 = vld [vmem:[%s7052 + $0x788] sm:$0xff]
                  %7537 = vst [vmem:[%s7053 + $0xe88] sm:$0xff] %v7536
                  %v7538 = vld [vmem:[%s7052 + $0x790] sm:$0xff]
                  %7539 = vst [vmem:[%s7053 + $0xe90] sm:$0xff] %v7538
                  %v7540 = vld [vmem:[%s7052 + $0x798] sm:$0xff]
                  %7541 = vst [vmem:[%s7053 + $0xe98] sm:$0xff] %v7540
                  %v7542 = vld [vmem:[%s7052 + $0x7a0] sm:$0xff]
                  %7543 = vst [vmem:[%s7053 + $0xea0] sm:$0xff] %v7542
                  %v7544 = vld [vmem:[%s7052 + $0x7a8] sm:$0xff]
                  %7545 = vst [vmem:[%s7053 + $0xea8] sm:$0xff] %v7544
                  %v7546 = vld [vmem:[%s7052 + $0x7b0] sm:$0xff]
                  %7547 = vst [vmem:[%s7053 + $0xeb0] sm:$0xff] %v7546
                  %v7548 = vld [vmem:[%s7052 + $0x7b8] sm:$0xff]
                  %7549 = vst [vmem:[%s7053 + $0xeb8] sm:$0xff] %v7548
                  %v7550 = vld [vmem:[%s7052 + $0x7c0] sm:$0xff]
                  %7551 = vst [vmem:[%s7053 + $0xec0] sm:$0xff] %v7550
                  %v7552 = vld [vmem:[%s7052 + $0x7c8] sm:$0xff]
                  %7553 = vst [vmem:[%s7053 + $0xec8] sm:$0xff] %v7552
                  %v7554 = vld [vmem:[%s7052 + $0x7d0] sm:$0xff]
                  %7555 = vst [vmem:[%s7053 + $0xed0] sm:$0xff] %v7554
                  %v7556 = vld [vmem:[%s7052 + $0x7d8] sm:$0xff]
                  %7557 = vst [vmem:[%s7053 + $0xed8] sm:$0xff] %v7556
                  %v7558 = vld [vmem:[%s7052 + $0x7e0] sm:$0xff]
                  %7559 = vst [vmem:[%s7053 + $0xee0] sm:$0xff] %v7558
                  %v7560 = vld [vmem:[%s7052 + $0x7e8] sm:$0xff]
                  %7561 = vst [vmem:[%s7053 + $0xee8] sm:$0xff] %v7560
                  %v7562 = vld [vmem:[%s7052 + $0x7f0] sm:$0xff]
                  %7563 = vst [vmem:[%s7053 + $0xef0] sm:$0xff] %v7562
                  %v7564 = vld [vmem:[%s7052 + $0x7f8] sm:$0xff]
                  %7565 = vst [vmem:[%s7053 + $0xef8] sm:$0xff] %v7564
                $region110: #{tpu_custom_call.1} parent=104 // loop_footer
                  %s7051 = sadd.s32 1, %s7047
                $region111: #{tpu_custom_call.1} parent=104 // loop_footer_branch
                  %7046 = sbr.rel target = $region107
                $region112: #{tpu_custom_call.1} parent=104 // loop_exit
                  _
              $region105: #{tpu_custom_call.1} parent=89 // pred_fallthru
                _
              // Predicated region
              $region113: #{tpu_custom_call.1} parent=89 // pred_check
                _
              $region114: #{tpu_custom_call.1} parent=89 // pred_check_branch
                %7567 = sbr.rel target = $region116
              $region115: #{tpu_custom_call.1} parent=89 // pred_region
                _
              $region116: #{tpu_custom_call.1} parent=89 // pred_fallthru
                _
            $region90: #{tpu_custom_call.1} parent=85 // pred_fallthru
              _
            // Predicated region
            $region91: #{tpu_custom_call.1} parent=85 // pred_check
              _
            $region92: #{tpu_custom_call.1} parent=85 // pred_check_branch
              %6521 = sbr.rel target = $region94
            $region93: #{tpu_custom_call.1} parent=85 // pred_region
              %s6523 = ssub.s32 256, 1
              loop: start=0, step=1, limit=1
              $region95: #{tpu_custom_call.1} parent=93 // loop_pre_header
                _
              $region96: #{tpu_custom_call.1} parent=93 // loop_header
                %s6525 = sphi 0, %s6529
                %p6526 = scmp.ge.s32.totalorder %s6525, 1
                %s6530 = sphi %s6505, %s6505
                %s6531 = sphi %s6515, %s6515
              $region97: #{tpu_custom_call.1} parent=93 // loop_header_branch
                %6528 = sbr.rel (%p6526) target = $region101
              $region98: #{tpu_custom_call.1} parent=93 // loop_body
                %v6532 = vld [vmem:[%s6530] sm:%s6523]
                %6533 = vst [vmem:[%s6531] sm:%s6523] %v6532
                %v6534 = vld [vmem:[%s6530 + $0x8] sm:%s6523]
                %6535 = vst [vmem:[%s6531 + $0x8] sm:%s6523] %v6534
                %v6536 = vld [vmem:[%s6530 + $0x10] sm:%s6523]
                %6537 = vst [vmem:[%s6531 + $0x10] sm:%s6523] %v6536
                %v6538 = vld [vmem:[%s6530 + $0x18] sm:%s6523]
                %6539 = vst [vmem:[%s6531 + $0x18] sm:%s6523] %v6538
                %v6540 = vld [vmem:[%s6530 + $0x20] sm:%s6523]
                %6541 = vst [vmem:[%s6531 + $0x20] sm:%s6523] %v6540
                %v6542 = vld [vmem:[%s6530 + $0x28] sm:%s6523]
                %6543 = vst [vmem:[%s6531 + $0x28] sm:%s6523] %v6542
                %v6544 = vld [vmem:[%s6530 + $0x30] sm:%s6523]
                %6545 = vst [vmem:[%s6531 + $0x30] sm:%s6523] %v6544
                %v6546 = vld [vmem:[%s6530 + $0x38] sm:%s6523]
                %6547 = vst [vmem:[%s6531 + $0x38] sm:%s6523] %v6546
                %v6548 = vld [vmem:[%s6530 + $0x40] sm:%s6523]
                %6549 = vst [vmem:[%s6531 + $0x40] sm:%s6523] %v6548
                %v6550 = vld [vmem:[%s6530 + $0x48] sm:%s6523]
                %6551 = vst [vmem:[%s6531 + $0x48] sm:%s6523] %v6550
                %v6552 = vld [vmem:[%s6530 + $0x50] sm:%s6523]
                %6553 = vst [vmem:[%s6531 + $0x50] sm:%s6523] %v6552
                %v6554 = vld [vmem:[%s6530 + $0x58] sm:%s6523]
                %6555 = vst [vmem:[%s6531 + $0x58] sm:%s6523] %v6554
                %v6556 = vld [vmem:[%s6530 + $0x60] sm:%s6523]
                %6557 = vst [vmem:[%s6531 + $0x60] sm:%s6523] %v6556
                %v6558 = vld [vmem:[%s6530 + $0x68] sm:%s6523]
                %6559 = vst [vmem:[%s6531 + $0x68] sm:%s6523] %v6558
                %v6560 = vld [vmem:[%s6530 + $0x70] sm:%s6523]
                %6561 = vst [vmem:[%s6531 + $0x70] sm:%s6523] %v6560
                %v6562 = vld [vmem:[%s6530 + $0x78] sm:%s6523]
                %6563 = vst [vmem:[%s6531 + $0x78] sm:%s6523] %v6562
                %v6564 = vld [vmem:[%s6530 + $0x80] sm:%s6523]
                %6565 = vst [vmem:[%s6531 + $0x80] sm:%s6523] %v6564
                %v6566 = vld [vmem:[%s6530 + $0x88] sm:%s6523]
                %6567 = vst [vmem:[%s6531 + $0x88] sm:%s6523] %v6566
                %v6568 = vld [vmem:[%s6530 + $0x90] sm:%s6523]
                %6569 = vst [vmem:[%s6531 + $0x90] sm:%s6523] %v6568
                %v6570 = vld [vmem:[%s6530 + $0x98] sm:%s6523]
                %6571 = vst [vmem:[%s6531 + $0x98] sm:%s6523] %v6570
                %v6572 = vld [vmem:[%s6530 + $0xa0] sm:%s6523]
                %6573 = vst [vmem:[%s6531 + $0xa0] sm:%s6523] %v6572
                %v6574 = vld [vmem:[%s6530 + $0xa8] sm:%s6523]
                %6575 = vst [vmem:[%s6531 + $0xa8] sm:%s6523] %v6574
                %v6576 = vld [vmem:[%s6530 + $0xb0] sm:%s6523]
                %6577 = vst [vmem:[%s6531 + $0xb0] sm:%s6523] %v6576
                %v6578 = vld [vmem:[%s6530 + $0xb8] sm:%s6523]
                %6579 = vst [vmem:[%s6531 + $0xb8] sm:%s6523] %v6578
                %v6580 = vld [vmem:[%s6530 + $0xc0] sm:%s6523]
                %6581 = vst [vmem:[%s6531 + $0xc0] sm:%s6523] %v6580
                %v6582 = vld [vmem:[%s6530 + $0xc8] sm:%s6523]
                %6583 = vst [vmem:[%s6531 + $0xc8] sm:%s6523] %v6582
                %v6584 = vld [vmem:[%s6530 + $0xd0] sm:%s6523]
                %6585 = vst [vmem:[%s6531 + $0xd0] sm:%s6523] %v6584
                %v6586 = vld [vmem:[%s6530 + $0xd8] sm:%s6523]
                %6587 = vst [vmem:[%s6531 + $0xd8] sm:%s6523] %v6586
                %v6588 = vld [vmem:[%s6530 + $0xe0] sm:%s6523]
                %6589 = vst [vmem:[%s6531 + $0xe0] sm:%s6523] %v6588
                %v6590 = vld [vmem:[%s6530 + $0xe8] sm:%s6523]
                %6591 = vst [vmem:[%s6531 + $0xe8] sm:%s6523] %v6590
                %v6592 = vld [vmem:[%s6530 + $0xf0] sm:%s6523]
                %6593 = vst [vmem:[%s6531 + $0xf0] sm:%s6523] %v6592
                %v6594 = vld [vmem:[%s6530 + $0xf8] sm:%s6523]
                %6595 = vst [vmem:[%s6531 + $0xf8] sm:%s6523] %v6594
                %v6596 = vld [vmem:[%s6530 + $0x100] sm:%s6523]
                %6597 = vst [vmem:[%s6531 + $0x200] sm:%s6523] %v6596
                %v6598 = vld [vmem:[%s6530 + $0x108] sm:%s6523]
                %6599 = vst [vmem:[%s6531 + $0x208] sm:%s6523] %v6598
                %v6600 = vld [vmem:[%s6530 + $0x110] sm:%s6523]
                %6601 = vst [vmem:[%s6531 + $0x210] sm:%s6523] %v6600
                %v6602 = vld [vmem:[%s6530 + $0x118] sm:%s6523]
                %6603 = vst [vmem:[%s6531 + $0x218] sm:%s6523] %v6602
                %v6604 = vld [vmem:[%s6530 + $0x120] sm:%s6523]
                %6605 = vst [vmem:[%s6531 + $0x220] sm:%s6523] %v6604
                %v6606 = vld [vmem:[%s6530 + $0x128] sm:%s6523]
                %6607 = vst [vmem:[%s6531 + $0x228] sm:%s6523] %v6606
                %v6608 = vld [vmem:[%s6530 + $0x130] sm:%s6523]
                %6609 = vst [vmem:[%s6531 + $0x230] sm:%s6523] %v6608
                %v6610 = vld [vmem:[%s6530 + $0x138] sm:%s6523]
                %6611 = vst [vmem:[%s6531 + $0x238] sm:%s6523] %v6610
                %v6612 = vld [vmem:[%s6530 + $0x140] sm:%s6523]
                %6613 = vst [vmem:[%s6531 + $0x240] sm:%s6523] %v6612
                %v6614 = vld [vmem:[%s6530 + $0x148] sm:%s6523]
                %6615 = vst [vmem:[%s6531 + $0x248] sm:%s6523] %v6614
                %v6616 = vld [vmem:[%s6530 + $0x150] sm:%s6523]
                %6617 = vst [vmem:[%s6531 + $0x250] sm:%s6523] %v6616
                %v6618 = vld [vmem:[%s6530 + $0x158] sm:%s6523]
                %6619 = vst [vmem:[%s6531 + $0x258] sm:%s6523] %v6618
                %v6620 = vld [vmem:[%s6530 + $0x160] sm:%s6523]
                %6621 = vst [vmem:[%s6531 + $0x260] sm:%s6523] %v6620
                %v6622 = vld [vmem:[%s6530 + $0x168] sm:%s6523]
                %6623 = vst [vmem:[%s6531 + $0x268] sm:%s6523] %v6622
                %v6624 = vld [vmem:[%s6530 + $0x170] sm:%s6523]
                %6625 = vst [vmem:[%s6531 + $0x270] sm:%s6523] %v6624
                %v6626 = vld [vmem:[%s6530 + $0x178] sm:%s6523]
                %6627 = vst [vmem:[%s6531 + $0x278] sm:%s6523] %v6626
                %v6628 = vld [vmem:[%s6530 + $0x180] sm:%s6523]
                %6629 = vst [vmem:[%s6531 + $0x280] sm:%s6523] %v6628
                %v6630 = vld [vmem:[%s6530 + $0x188] sm:%s6523]
                %6631 = vst [vmem:[%s6531 + $0x288] sm:%s6523] %v6630
                %v6632 = vld [vmem:[%s6530 + $0x190] sm:%s6523]
                %6633 = vst [vmem:[%s6531 + $0x290] sm:%s6523] %v6632
                %v6634 = vld [vmem:[%s6530 + $0x198] sm:%s6523]
                %6635 = vst [vmem:[%s6531 + $0x298] sm:%s6523] %v6634
                %v6636 = vld [vmem:[%s6530 + $0x1a0] sm:%s6523]
                %6637 = vst [vmem:[%s6531 + $0x2a0] sm:%s6523] %v6636
                %v6638 = vld [vmem:[%s6530 + $0x1a8] sm:%s6523]
                %6639 = vst [vmem:[%s6531 + $0x2a8] sm:%s6523] %v6638
                %v6640 = vld [vmem:[%s6530 + $0x1b0] sm:%s6523]
                %6641 = vst [vmem:[%s6531 + $0x2b0] sm:%s6523] %v6640
                %v6642 = vld [vmem:[%s6530 + $0x1b8] sm:%s6523]
                %6643 = vst [vmem:[%s6531 + $0x2b8] sm:%s6523] %v6642
                %v6644 = vld [vmem:[%s6530 + $0x1c0] sm:%s6523]
                %6645 = vst [vmem:[%s6531 + $0x2c0] sm:%s6523] %v6644
                %v6646 = vld [vmem:[%s6530 + $0x1c8] sm:%s6523]
                %6647 = vst [vmem:[%s6531 + $0x2c8] sm:%s6523] %v6646
                %v6648 = vld [vmem:[%s6530 + $0x1d0] sm:%s6523]
                %6649 = vst [vmem:[%s6531 + $0x2d0] sm:%s6523] %v6648
                %v6650 = vld [vmem:[%s6530 + $0x1d8] sm:%s6523]
                %6651 = vst [vmem:[%s6531 + $0x2d8] sm:%s6523] %v6650
                %v6652 = vld [vmem:[%s6530 + $0x1e0] sm:%s6523]
                %6653 = vst [vmem:[%s6531 + $0x2e0] sm:%s6523] %v6652
                %v6654 = vld [vmem:[%s6530 + $0x1e8] sm:%s6523]
                %6655 = vst [vmem:[%s6531 + $0x2e8] sm:%s6523] %v6654
                %v6656 = vld [vmem:[%s6530 + $0x1f0] sm:%s6523]
                %6657 = vst [vmem:[%s6531 + $0x2f0] sm:%s6523] %v6656
                %v6658 = vld [vmem:[%s6530 + $0x1f8] sm:%s6523]
                %6659 = vst [vmem:[%s6531 + $0x2f8] sm:%s6523] %v6658
                %v6660 = vld [vmem:[%s6530 + $0x200] sm:%s6523]
                %6661 = vst [vmem:[%s6531 + $0x400] sm:%s6523] %v6660
                %v6662 = vld [vmem:[%s6530 + $0x208] sm:%s6523]
                %6663 = vst [vmem:[%s6531 + $0x408] sm:%s6523] %v6662
                %v6664 = vld [vmem:[%s6530 + $0x210] sm:%s6523]
                %6665 = vst [vmem:[%s6531 + $0x410] sm:%s6523] %v6664
                %v6666 = vld [vmem:[%s6530 + $0x218] sm:%s6523]
                %6667 = vst [vmem:[%s6531 + $0x418] sm:%s6523] %v6666
                %v6668 = vld [vmem:[%s6530 + $0x220] sm:%s6523]
                %6669 = vst [vmem:[%s6531 + $0x420] sm:%s6523] %v6668
                %v6670 = vld [vmem:[%s6530 + $0x228] sm:%s6523]
                %6671 = vst [vmem:[%s6531 + $0x428] sm:%s6523] %v6670
                %v6672 = vld [vmem:[%s6530 + $0x230] sm:%s6523]
                %6673 = vst [vmem:[%s6531 + $0x430] sm:%s6523] %v6672
                %v6674 = vld [vmem:[%s6530 + $0x238] sm:%s6523]
                %6675 = vst [vmem:[%s6531 + $0x438] sm:%s6523] %v6674
                %v6676 = vld [vmem:[%s6530 + $0x240] sm:%s6523]
                %6677 = vst [vmem:[%s6531 + $0x440] sm:%s6523] %v6676
                %v6678 = vld [vmem:[%s6530 + $0x248] sm:%s6523]
                %6679 = vst [vmem:[%s6531 + $0x448] sm:%s6523] %v6678
                %v6680 = vld [vmem:[%s6530 + $0x250] sm:%s6523]
                %6681 = vst [vmem:[%s6531 + $0x450] sm:%s6523] %v6680
                %v6682 = vld [vmem:[%s6530 + $0x258] sm:%s6523]
                %6683 = vst [vmem:[%s6531 + $0x458] sm:%s6523] %v6682
                %v6684 = vld [vmem:[%s6530 + $0x260] sm:%s6523]
                %6685 = vst [vmem:[%s6531 + $0x460] sm:%s6523] %v6684
                %v6686 = vld [vmem:[%s6530 + $0x268] sm:%s6523]
                %6687 = vst [vmem:[%s6531 + $0x468] sm:%s6523] %v6686
                %v6688 = vld [vmem:[%s6530 + $0x270] sm:%s6523]
                %6689 = vst [vmem:[%s6531 + $0x470] sm:%s6523] %v6688
                %v6690 = vld [vmem:[%s6530 + $0x278] sm:%s6523]
                %6691 = vst [vmem:[%s6531 + $0x478] sm:%s6523] %v6690
                %v6692 = vld [vmem:[%s6530 + $0x280] sm:%s6523]
                %6693 = vst [vmem:[%s6531 + $0x480] sm:%s6523] %v6692
                %v6694 = vld [vmem:[%s6530 + $0x288] sm:%s6523]
                %6695 = vst [vmem:[%s6531 + $0x488] sm:%s6523] %v6694
                %v6696 = vld [vmem:[%s6530 + $0x290] sm:%s6523]
                %6697 = vst [vmem:[%s6531 + $0x490] sm:%s6523] %v6696
                %v6698 = vld [vmem:[%s6530 + $0x298] sm:%s6523]
                %6699 = vst [vmem:[%s6531 + $0x498] sm:%s6523] %v6698
                %v6700 = vld [vmem:[%s6530 + $0x2a0] sm:%s6523]
                %6701 = vst [vmem:[%s6531 + $0x4a0] sm:%s6523] %v6700
                %v6702 = vld [vmem:[%s6530 + $0x2a8] sm:%s6523]
                %6703 = vst [vmem:[%s6531 + $0x4a8] sm:%s6523] %v6702
                %v6704 = vld [vmem:[%s6530 + $0x2b0] sm:%s6523]
                %6705 = vst [vmem:[%s6531 + $0x4b0] sm:%s6523] %v6704
                %v6706 = vld [vmem:[%s6530 + $0x2b8] sm:%s6523]
                %6707 = vst [vmem:[%s6531 + $0x4b8] sm:%s6523] %v6706
                %v6708 = vld [vmem:[%s6530 + $0x2c0] sm:%s6523]
                %6709 = vst [vmem:[%s6531 + $0x4c0] sm:%s6523] %v6708
                %v6710 = vld [vmem:[%s6530 + $0x2c8] sm:%s6523]
                %6711 = vst [vmem:[%s6531 + $0x4c8] sm:%s6523] %v6710
                %v6712 = vld [vmem:[%s6530 + $0x2d0] sm:%s6523]
                %6713 = vst [vmem:[%s6531 + $0x4d0] sm:%s6523] %v6712
                %v6714 = vld [vmem:[%s6530 + $0x2d8] sm:%s6523]
                %6715 = vst [vmem:[%s6531 + $0x4d8] sm:%s6523] %v6714
                %v6716 = vld [vmem:[%s6530 + $0x2e0] sm:%s6523]
                %6717 = vst [vmem:[%s6531 + $0x4e0] sm:%s6523] %v6716
                %v6718 = vld [vmem:[%s6530 + $0x2e8] sm:%s6523]
                %6719 = vst [vmem:[%s6531 + $0x4e8] sm:%s6523] %v6718
                %v6720 = vld [vmem:[%s6530 + $0x2f0] sm:%s6523]
                %6721 = vst [vmem:[%s6531 + $0x4f0] sm:%s6523] %v6720
                %v6722 = vld [vmem:[%s6530 + $0x2f8] sm:%s6523]
                %6723 = vst [vmem:[%s6531 + $0x4f8] sm:%s6523] %v6722
                %v6724 = vld [vmem:[%s6530 + $0x300] sm:%s6523]
                %6725 = vst [vmem:[%s6531 + $0x600] sm:%s6523] %v6724
                %v6726 = vld [vmem:[%s6530 + $0x308] sm:%s6523]
                %6727 = vst [vmem:[%s6531 + $0x608] sm:%s6523] %v6726
                %v6728 = vld [vmem:[%s6530 + $0x310] sm:%s6523]
                %6729 = vst [vmem:[%s6531 + $0x610] sm:%s6523] %v6728
                %v6730 = vld [vmem:[%s6530 + $0x318] sm:%s6523]
                %6731 = vst [vmem:[%s6531 + $0x618] sm:%s6523] %v6730
                %v6732 = vld [vmem:[%s6530 + $0x320] sm:%s6523]
                %6733 = vst [vmem:[%s6531 + $0x620] sm:%s6523] %v6732
                %v6734 = vld [vmem:[%s6530 + $0x328] sm:%s6523]
                %6735 = vst [vmem:[%s6531 + $0x628] sm:%s6523] %v6734
                %v6736 = vld [vmem:[%s6530 + $0x330] sm:%s6523]
                %6737 = vst [vmem:[%s6531 + $0x630] sm:%s6523] %v6736
                %v6738 = vld [vmem:[%s6530 + $0x338] sm:%s6523]
                %6739 = vst [vmem:[%s6531 + $0x638] sm:%s6523] %v6738
                %v6740 = vld [vmem:[%s6530 + $0x340] sm:%s6523]
                %6741 = vst [vmem:[%s6531 + $0x640] sm:%s6523] %v6740
                %v6742 = vld [vmem:[%s6530 + $0x348] sm:%s6523]
                %6743 = vst [vmem:[%s6531 + $0x648] sm:%s6523] %v6742
                %v6744 = vld [vmem:[%s6530 + $0x350] sm:%s6523]
                %6745 = vst [vmem:[%s6531 + $0x650] sm:%s6523] %v6744
                %v6746 = vld [vmem:[%s6530 + $0x358] sm:%s6523]
                %6747 = vst [vmem:[%s6531 + $0x658] sm:%s6523] %v6746
                %v6748 = vld [vmem:[%s6530 + $0x360] sm:%s6523]
                %6749 = vst [vmem:[%s6531 + $0x660] sm:%s6523] %v6748
                %v6750 = vld [vmem:[%s6530 + $0x368] sm:%s6523]
                %6751 = vst [vmem:[%s6531 + $0x668] sm:%s6523] %v6750
                %v6752 = vld [vmem:[%s6530 + $0x370] sm:%s6523]
                %6753 = vst [vmem:[%s6531 + $0x670] sm:%s6523] %v6752
                %v6754 = vld [vmem:[%s6530 + $0x378] sm:%s6523]
                %6755 = vst [vmem:[%s6531 + $0x678] sm:%s6523] %v6754
                %v6756 = vld [vmem:[%s6530 + $0x380] sm:%s6523]
                %6757 = vst [vmem:[%s6531 + $0x680] sm:%s6523] %v6756
                %v6758 = vld [vmem:[%s6530 + $0x388] sm:%s6523]
                %6759 = vst [vmem:[%s6531 + $0x688] sm:%s6523] %v6758
                %v6760 = vld [vmem:[%s6530 + $0x390] sm:%s6523]
                %6761 = vst [vmem:[%s6531 + $0x690] sm:%s6523] %v6760
                %v6762 = vld [vmem:[%s6530 + $0x398] sm:%s6523]
                %6763 = vst [vmem:[%s6531 + $0x698] sm:%s6523] %v6762
                %v6764 = vld [vmem:[%s6530 + $0x3a0] sm:%s6523]
                %6765 = vst [vmem:[%s6531 + $0x6a0] sm:%s6523] %v6764
                %v6766 = vld [vmem:[%s6530 + $0x3a8] sm:%s6523]
                %6767 = vst [vmem:[%s6531 + $0x6a8] sm:%s6523] %v6766
                %v6768 = vld [vmem:[%s6530 + $0x3b0] sm:%s6523]
                %6769 = vst [vmem:[%s6531 + $0x6b0] sm:%s6523] %v6768
                %v6770 = vld [vmem:[%s6530 + $0x3b8] sm:%s6523]
                %6771 = vst [vmem:[%s6531 + $0x6b8] sm:%s6523] %v6770
                %v6772 = vld [vmem:[%s6530 + $0x3c0] sm:%s6523]
                %6773 = vst [vmem:[%s6531 + $0x6c0] sm:%s6523] %v6772
                %v6774 = vld [vmem:[%s6530 + $0x3c8] sm:%s6523]
                %6775 = vst [vmem:[%s6531 + $0x6c8] sm:%s6523] %v6774
                %v6776 = vld [vmem:[%s6530 + $0x3d0] sm:%s6523]
                %6777 = vst [vmem:[%s6531 + $0x6d0] sm:%s6523] %v6776
                %v6778 = vld [vmem:[%s6530 + $0x3d8] sm:%s6523]
                %6779 = vst [vmem:[%s6531 + $0x6d8] sm:%s6523] %v6778
                %v6780 = vld [vmem:[%s6530 + $0x3e0] sm:%s6523]
                %6781 = vst [vmem:[%s6531 + $0x6e0] sm:%s6523] %v6780
                %v6782 = vld [vmem:[%s6530 + $0x3e8] sm:%s6523]
                %6783 = vst [vmem:[%s6531 + $0x6e8] sm:%s6523] %v6782
                %v6784 = vld [vmem:[%s6530 + $0x3f0] sm:%s6523]
                %6785 = vst [vmem:[%s6531 + $0x6f0] sm:%s6523] %v6784
                %v6786 = vld [vmem:[%s6530 + $0x3f8] sm:%s6523]
                %6787 = vst [vmem:[%s6531 + $0x6f8] sm:%s6523] %v6786
                %v6788 = vld [vmem:[%s6530 + $0x400] sm:%s6523]
                %6789 = vst [vmem:[%s6531 + $0x800] sm:%s6523] %v6788
                %v6790 = vld [vmem:[%s6530 + $0x408] sm:%s6523]
                %6791 = vst [vmem:[%s6531 + $0x808] sm:%s6523] %v6790
                %v6792 = vld [vmem:[%s6530 + $0x410] sm:%s6523]
                %6793 = vst [vmem:[%s6531 + $0x810] sm:%s6523] %v6792
                %v6794 = vld [vmem:[%s6530 + $0x418] sm:%s6523]
                %6795 = vst [vmem:[%s6531 + $0x818] sm:%s6523] %v6794
                %v6796 = vld [vmem:[%s6530 + $0x420] sm:%s6523]
                %6797 = vst [vmem:[%s6531 + $0x820] sm:%s6523] %v6796
                %v6798 = vld [vmem:[%s6530 + $0x428] sm:%s6523]
                %6799 = vst [vmem:[%s6531 + $0x828] sm:%s6523] %v6798
                %v6800 = vld [vmem:[%s6530 + $0x430] sm:%s6523]
                %6801 = vst [vmem:[%s6531 + $0x830] sm:%s6523] %v6800
                %v6802 = vld [vmem:[%s6530 + $0x438] sm:%s6523]
                %6803 = vst [vmem:[%s6531 + $0x838] sm:%s6523] %v6802
                %v6804 = vld [vmem:[%s6530 + $0x440] sm:%s6523]
                %6805 = vst [vmem:[%s6531 + $0x840] sm:%s6523] %v6804
                %v6806 = vld [vmem:[%s6530 + $0x448] sm:%s6523]
                %6807 = vst [vmem:[%s6531 + $0x848] sm:%s6523] %v6806
                %v6808 = vld [vmem:[%s6530 + $0x450] sm:%s6523]
                %6809 = vst [vmem:[%s6531 + $0x850] sm:%s6523] %v6808
                %v6810 = vld [vmem:[%s6530 + $0x458] sm:%s6523]
                %6811 = vst [vmem:[%s6531 + $0x858] sm:%s6523] %v6810
                %v6812 = vld [vmem:[%s6530 + $0x460] sm:%s6523]
                %6813 = vst [vmem:[%s6531 + $0x860] sm:%s6523] %v6812
                %v6814 = vld [vmem:[%s6530 + $0x468] sm:%s6523]
                %6815 = vst [vmem:[%s6531 + $0x868] sm:%s6523] %v6814
                %v6816 = vld [vmem:[%s6530 + $0x470] sm:%s6523]
                %6817 = vst [vmem:[%s6531 + $0x870] sm:%s6523] %v6816
                %v6818 = vld [vmem:[%s6530 + $0x478] sm:%s6523]
                %6819 = vst [vmem:[%s6531 + $0x878] sm:%s6523] %v6818
                %v6820 = vld [vmem:[%s6530 + $0x480] sm:%s6523]
                %6821 = vst [vmem:[%s6531 + $0x880] sm:%s6523] %v6820
                %v6822 = vld [vmem:[%s6530 + $0x488] sm:%s6523]
                %6823 = vst [vmem:[%s6531 + $0x888] sm:%s6523] %v6822
                %v6824 = vld [vmem:[%s6530 + $0x490] sm:%s6523]
                %6825 = vst [vmem:[%s6531 + $0x890] sm:%s6523] %v6824
                %v6826 = vld [vmem:[%s6530 + $0x498] sm:%s6523]
                %6827 = vst [vmem:[%s6531 + $0x898] sm:%s6523] %v6826
                %v6828 = vld [vmem:[%s6530 + $0x4a0] sm:%s6523]
                %6829 = vst [vmem:[%s6531 + $0x8a0] sm:%s6523] %v6828
                %v6830 = vld [vmem:[%s6530 + $0x4a8] sm:%s6523]
                %6831 = vst [vmem:[%s6531 + $0x8a8] sm:%s6523] %v6830
                %v6832 = vld [vmem:[%s6530 + $0x4b0] sm:%s6523]
                %6833 = vst [vmem:[%s6531 + $0x8b0] sm:%s6523] %v6832
                %v6834 = vld [vmem:[%s6530 + $0x4b8] sm:%s6523]
                %6835 = vst [vmem:[%s6531 + $0x8b8] sm:%s6523] %v6834
                %v6836 = vld [vmem:[%s6530 + $0x4c0] sm:%s6523]
                %6837 = vst [vmem:[%s6531 + $0x8c0] sm:%s6523] %v6836
                %v6838 = vld [vmem:[%s6530 + $0x4c8] sm:%s6523]
                %6839 = vst [vmem:[%s6531 + $0x8c8] sm:%s6523] %v6838
                %v6840 = vld [vmem:[%s6530 + $0x4d0] sm:%s6523]
                %6841 = vst [vmem:[%s6531 + $0x8d0] sm:%s6523] %v6840
                %v6842 = vld [vmem:[%s6530 + $0x4d8] sm:%s6523]
                %6843 = vst [vmem:[%s6531 + $0x8d8] sm:%s6523] %v6842
                %v6844 = vld [vmem:[%s6530 + $0x4e0] sm:%s6523]
                %6845 = vst [vmem:[%s6531 + $0x8e0] sm:%s6523] %v6844
                %v6846 = vld [vmem:[%s6530 + $0x4e8] sm:%s6523]
                %6847 = vst [vmem:[%s6531 + $0x8e8] sm:%s6523] %v6846
                %v6848 = vld [vmem:[%s6530 + $0x4f0] sm:%s6523]
                %6849 = vst [vmem:[%s6531 + $0x8f0] sm:%s6523] %v6848
                %v6850 = vld [vmem:[%s6530 + $0x4f8] sm:%s6523]
                %6851 = vst [vmem:[%s6531 + $0x8f8] sm:%s6523] %v6850
                %v6852 = vld [vmem:[%s6530 + $0x500] sm:%s6523]
                %6853 = vst [vmem:[%s6531 + $0xa00] sm:%s6523] %v6852
                %v6854 = vld [vmem:[%s6530 + $0x508] sm:%s6523]
                %6855 = vst [vmem:[%s6531 + $0xa08] sm:%s6523] %v6854
                %v6856 = vld [vmem:[%s6530 + $0x510] sm:%s6523]
                %6857 = vst [vmem:[%s6531 + $0xa10] sm:%s6523] %v6856
                %v6858 = vld [vmem:[%s6530 + $0x518] sm:%s6523]
                %6859 = vst [vmem:[%s6531 + $0xa18] sm:%s6523] %v6858
                %v6860 = vld [vmem:[%s6530 + $0x520] sm:%s6523]
                %6861 = vst [vmem:[%s6531 + $0xa20] sm:%s6523] %v6860
                %v6862 = vld [vmem:[%s6530 + $0x528] sm:%s6523]
                %6863 = vst [vmem:[%s6531 + $0xa28] sm:%s6523] %v6862
                %v6864 = vld [vmem:[%s6530 + $0x530] sm:%s6523]
                %6865 = vst [vmem:[%s6531 + $0xa30] sm:%s6523] %v6864
                %v6866 = vld [vmem:[%s6530 + $0x538] sm:%s6523]
                %6867 = vst [vmem:[%s6531 + $0xa38] sm:%s6523] %v6866
                %v6868 = vld [vmem:[%s6530 + $0x540] sm:%s6523]
                %6869 = vst [vmem:[%s6531 + $0xa40] sm:%s6523] %v6868
                %v6870 = vld [vmem:[%s6530 + $0x548] sm:%s6523]
                %6871 = vst [vmem:[%s6531 + $0xa48] sm:%s6523] %v6870
                %v6872 = vld [vmem:[%s6530 + $0x550] sm:%s6523]
                %6873 = vst [vmem:[%s6531 + $0xa50] sm:%s6523] %v6872
                %v6874 = vld [vmem:[%s6530 + $0x558] sm:%s6523]
                %6875 = vst [vmem:[%s6531 + $0xa58] sm:%s6523] %v6874
                %v6876 = vld [vmem:[%s6530 + $0x560] sm:%s6523]
                %6877 = vst [vmem:[%s6531 + $0xa60] sm:%s6523] %v6876
                %v6878 = vld [vmem:[%s6530 + $0x568] sm:%s6523]
                %6879 = vst [vmem:[%s6531 + $0xa68] sm:%s6523] %v6878
                %v6880 = vld [vmem:[%s6530 + $0x570] sm:%s6523]
                %6881 = vst [vmem:[%s6531 + $0xa70] sm:%s6523] %v6880
                %v6882 = vld [vmem:[%s6530 + $0x578] sm:%s6523]
                %6883 = vst [vmem:[%s6531 + $0xa78] sm:%s6523] %v6882
                %v6884 = vld [vmem:[%s6530 + $0x580] sm:%s6523]
                %6885 = vst [vmem:[%s6531 + $0xa80] sm:%s6523] %v6884
                %v6886 = vld [vmem:[%s6530 + $0x588] sm:%s6523]
                %6887 = vst [vmem:[%s6531 + $0xa88] sm:%s6523] %v6886
                %v6888 = vld [vmem:[%s6530 + $0x590] sm:%s6523]
                %6889 = vst [vmem:[%s6531 + $0xa90] sm:%s6523] %v6888
                %v6890 = vld [vmem:[%s6530 + $0x598] sm:%s6523]
                %6891 = vst [vmem:[%s6531 + $0xa98] sm:%s6523] %v6890
                %v6892 = vld [vmem:[%s6530 + $0x5a0] sm:%s6523]
                %6893 = vst [vmem:[%s6531 + $0xaa0] sm:%s6523] %v6892
                %v6894 = vld [vmem:[%s6530 + $0x5a8] sm:%s6523]
                %6895 = vst [vmem:[%s6531 + $0xaa8] sm:%s6523] %v6894
                %v6896 = vld [vmem:[%s6530 + $0x5b0] sm:%s6523]
                %6897 = vst [vmem:[%s6531 + $0xab0] sm:%s6523] %v6896
                %v6898 = vld [vmem:[%s6530 + $0x5b8] sm:%s6523]
                %6899 = vst [vmem:[%s6531 + $0xab8] sm:%s6523] %v6898
                %v6900 = vld [vmem:[%s6530 + $0x5c0] sm:%s6523]
                %6901 = vst [vmem:[%s6531 + $0xac0] sm:%s6523] %v6900
                %v6902 = vld [vmem:[%s6530 + $0x5c8] sm:%s6523]
                %6903 = vst [vmem:[%s6531 + $0xac8] sm:%s6523] %v6902
                %v6904 = vld [vmem:[%s6530 + $0x5d0] sm:%s6523]
                %6905 = vst [vmem:[%s6531 + $0xad0] sm:%s6523] %v6904
                %v6906 = vld [vmem:[%s6530 + $0x5d8] sm:%s6523]
                %6907 = vst [vmem:[%s6531 + $0xad8] sm:%s6523] %v6906
                %v6908 = vld [vmem:[%s6530 + $0x5e0] sm:%s6523]
                %6909 = vst [vmem:[%s6531 + $0xae0] sm:%s6523] %v6908
                %v6910 = vld [vmem:[%s6530 + $0x5e8] sm:%s6523]
                %6911 = vst [vmem:[%s6531 + $0xae8] sm:%s6523] %v6910
                %v6912 = vld [vmem:[%s6530 + $0x5f0] sm:%s6523]
                %6913 = vst [vmem:[%s6531 + $0xaf0] sm:%s6523] %v6912
                %v6914 = vld [vmem:[%s6530 + $0x5f8] sm:%s6523]
                %6915 = vst [vmem:[%s6531 + $0xaf8] sm:%s6523] %v6914
                %v6916 = vld [vmem:[%s6530 + $0x600] sm:%s6523]
                %6917 = vst [vmem:[%s6531 + $0xc00] sm:%s6523] %v6916
                %v6918 = vld [vmem:[%s6530 + $0x608] sm:%s6523]
                %6919 = vst [vmem:[%s6531 + $0xc08] sm:%s6523] %v6918
                %v6920 = vld [vmem:[%s6530 + $0x610] sm:%s6523]
                %6921 = vst [vmem:[%s6531 + $0xc10] sm:%s6523] %v6920
                %v6922 = vld [vmem:[%s6530 + $0x618] sm:%s6523]
                %6923 = vst [vmem:[%s6531 + $0xc18] sm:%s6523] %v6922
                %v6924 = vld [vmem:[%s6530 + $0x620] sm:%s6523]
                %6925 = vst [vmem:[%s6531 + $0xc20] sm:%s6523] %v6924
                %v6926 = vld [vmem:[%s6530 + $0x628] sm:%s6523]
                %6927 = vst [vmem:[%s6531 + $0xc28] sm:%s6523] %v6926
                %v6928 = vld [vmem:[%s6530 + $0x630] sm:%s6523]
                %6929 = vst [vmem:[%s6531 + $0xc30] sm:%s6523] %v6928
                %v6930 = vld [vmem:[%s6530 + $0x638] sm:%s6523]
                %6931 = vst [vmem:[%s6531 + $0xc38] sm:%s6523] %v6930
                %v6932 = vld [vmem:[%s6530 + $0x640] sm:%s6523]
                %6933 = vst [vmem:[%s6531 + $0xc40] sm:%s6523] %v6932
                %v6934 = vld [vmem:[%s6530 + $0x648] sm:%s6523]
                %6935 = vst [vmem:[%s6531 + $0xc48] sm:%s6523] %v6934
                %v6936 = vld [vmem:[%s6530 + $0x650] sm:%s6523]
                %6937 = vst [vmem:[%s6531 + $0xc50] sm:%s6523] %v6936
                %v6938 = vld [vmem:[%s6530 + $0x658] sm:%s6523]
                %6939 = vst [vmem:[%s6531 + $0xc58] sm:%s6523] %v6938
                %v6940 = vld [vmem:[%s6530 + $0x660] sm:%s6523]
                %6941 = vst [vmem:[%s6531 + $0xc60] sm:%s6523] %v6940
                %v6942 = vld [vmem:[%s6530 + $0x668] sm:%s6523]
                %6943 = vst [vmem:[%s6531 + $0xc68] sm:%s6523] %v6942
                %v6944 = vld [vmem:[%s6530 + $0x670] sm:%s6523]
                %6945 = vst [vmem:[%s6531 + $0xc70] sm:%s6523] %v6944
                %v6946 = vld [vmem:[%s6530 + $0x678] sm:%s6523]
                %6947 = vst [vmem:[%s6531 + $0xc78] sm:%s6523] %v6946
                %v6948 = vld [vmem:[%s6530 + $0x680] sm:%s6523]
                %6949 = vst [vmem:[%s6531 + $0xc80] sm:%s6523] %v6948
                %v6950 = vld [vmem:[%s6530 + $0x688] sm:%s6523]
                %6951 = vst [vmem:[%s6531 + $0xc88] sm:%s6523] %v6950
                %v6952 = vld [vmem:[%s6530 + $0x690] sm:%s6523]
                %6953 = vst [vmem:[%s6531 + $0xc90] sm:%s6523] %v6952
                %v6954 = vld [vmem:[%s6530 + $0x698] sm:%s6523]
                %6955 = vst [vmem:[%s6531 + $0xc98] sm:%s6523] %v6954
                %v6956 = vld [vmem:[%s6530 + $0x6a0] sm:%s6523]
                %6957 = vst [vmem:[%s6531 + $0xca0] sm:%s6523] %v6956
                %v6958 = vld [vmem:[%s6530 + $0x6a8] sm:%s6523]
                %6959 = vst [vmem:[%s6531 + $0xca8] sm:%s6523] %v6958
                %v6960 = vld [vmem:[%s6530 + $0x6b0] sm:%s6523]
                %6961 = vst [vmem:[%s6531 + $0xcb0] sm:%s6523] %v6960
                %v6962 = vld [vmem:[%s6530 + $0x6b8] sm:%s6523]
                %6963 = vst [vmem:[%s6531 + $0xcb8] sm:%s6523] %v6962
                %v6964 = vld [vmem:[%s6530 + $0x6c0] sm:%s6523]
                %6965 = vst [vmem:[%s6531 + $0xcc0] sm:%s6523] %v6964
                %v6966 = vld [vmem:[%s6530 + $0x6c8] sm:%s6523]
                %6967 = vst [vmem:[%s6531 + $0xcc8] sm:%s6523] %v6966
                %v6968 = vld [vmem:[%s6530 + $0x6d0] sm:%s6523]
                %6969 = vst [vmem:[%s6531 + $0xcd0] sm:%s6523] %v6968
                %v6970 = vld [vmem:[%s6530 + $0x6d8] sm:%s6523]
                %6971 = vst [vmem:[%s6531 + $0xcd8] sm:%s6523] %v6970
                %v6972 = vld [vmem:[%s6530 + $0x6e0] sm:%s6523]
                %6973 = vst [vmem:[%s6531 + $0xce0] sm:%s6523] %v6972
                %v6974 = vld [vmem:[%s6530 + $0x6e8] sm:%s6523]
                %6975 = vst [vmem:[%s6531 + $0xce8] sm:%s6523] %v6974
                %v6976 = vld [vmem:[%s6530 + $0x6f0] sm:%s6523]
                %6977 = vst [vmem:[%s6531 + $0xcf0] sm:%s6523] %v6976
                %v6978 = vld [vmem:[%s6530 + $0x6f8] sm:%s6523]
                %6979 = vst [vmem:[%s6531 + $0xcf8] sm:%s6523] %v6978
                %v6980 = vld [vmem:[%s6530 + $0x700] sm:%s6523]
                %6981 = vst [vmem:[%s6531 + $0xe00] sm:%s6523] %v6980
                %v6982 = vld [vmem:[%s6530 + $0x708] sm:%s6523]
                %6983 = vst [vmem:[%s6531 + $0xe08] sm:%s6523] %v6982
                %v6984 = vld [vmem:[%s6530 + $0x710] sm:%s6523]
                %6985 = vst [vmem:[%s6531 + $0xe10] sm:%s6523] %v6984
                %v6986 = vld [vmem:[%s6530 + $0x718] sm:%s6523]
                %6987 = vst [vmem:[%s6531 + $0xe18] sm:%s6523] %v6986
                %v6988 = vld [vmem:[%s6530 + $0x720] sm:%s6523]
                %6989 = vst [vmem:[%s6531 + $0xe20] sm:%s6523] %v6988
                %v6990 = vld [vmem:[%s6530 + $0x728] sm:%s6523]
                %6991 = vst [vmem:[%s6531 + $0xe28] sm:%s6523] %v6990
                %v6992 = vld [vmem:[%s6530 + $0x730] sm:%s6523]
                %6993 = vst [vmem:[%s6531 + $0xe30] sm:%s6523] %v6992
                %v6994 = vld [vmem:[%s6530 + $0x738] sm:%s6523]
                %6995 = vst [vmem:[%s6531 + $0xe38] sm:%s6523] %v6994
                %v6996 = vld [vmem:[%s6530 + $0x740] sm:%s6523]
                %6997 = vst [vmem:[%s6531 + $0xe40] sm:%s6523] %v6996
                %v6998 = vld [vmem:[%s6530 + $0x748] sm:%s6523]
                %6999 = vst [vmem:[%s6531 + $0xe48] sm:%s6523] %v6998
                %v7000 = vld [vmem:[%s6530 + $0x750] sm:%s6523]
                %7001 = vst [vmem:[%s6531 + $0xe50] sm:%s6523] %v7000
                %v7002 = vld [vmem:[%s6530 + $0x758] sm:%s6523]
                %7003 = vst [vmem:[%s6531 + $0xe58] sm:%s6523] %v7002
                %v7004 = vld [vmem:[%s6530 + $0x760] sm:%s6523]
                %7005 = vst [vmem:[%s6531 + $0xe60] sm:%s6523] %v7004
                %v7006 = vld [vmem:[%s6530 + $0x768] sm:%s6523]
                %7007 = vst [vmem:[%s6531 + $0xe68] sm:%s6523] %v7006
                %v7008 = vld [vmem:[%s6530 + $0x770] sm:%s6523]
                %7009 = vst [vmem:[%s6531 + $0xe70] sm:%s6523] %v7008
                %v7010 = vld [vmem:[%s6530 + $0x778] sm:%s6523]
                %7011 = vst [vmem:[%s6531 + $0xe78] sm:%s6523] %v7010
                %v7012 = vld [vmem:[%s6530 + $0x780] sm:%s6523]
                %7013 = vst [vmem:[%s6531 + $0xe80] sm:%s6523] %v7012
                %v7014 = vld [vmem:[%s6530 + $0x788] sm:%s6523]
                %7015 = vst [vmem:[%s6531 + $0xe88] sm:%s6523] %v7014
                %v7016 = vld [vmem:[%s6530 + $0x790] sm:%s6523]
                %7017 = vst [vmem:[%s6531 + $0xe90] sm:%s6523] %v7016
                %v7018 = vld [vmem:[%s6530 + $0x798] sm:%s6523]
                %7019 = vst [vmem:[%s6531 + $0xe98] sm:%s6523] %v7018
                %v7020 = vld [vmem:[%s6530 + $0x7a0] sm:%s6523]
                %7021 = vst [vmem:[%s6531 + $0xea0] sm:%s6523] %v7020
                %v7022 = vld [vmem:[%s6530 + $0x7a8] sm:%s6523]
                %7023 = vst [vmem:[%s6531 + $0xea8] sm:%s6523] %v7022
                %v7024 = vld [vmem:[%s6530 + $0x7b0] sm:%s6523]
                %7025 = vst [vmem:[%s6531 + $0xeb0] sm:%s6523] %v7024
                %v7026 = vld [vmem:[%s6530 + $0x7b8] sm:%s6523]
                %7027 = vst [vmem:[%s6531 + $0xeb8] sm:%s6523] %v7026
                %v7028 = vld [vmem:[%s6530 + $0x7c0] sm:%s6523]
                %7029 = vst [vmem:[%s6531 + $0xec0] sm:%s6523] %v7028
                %v7030 = vld [vmem:[%s6530 + $0x7c8] sm:%s6523]
                %7031 = vst [vmem:[%s6531 + $0xec8] sm:%s6523] %v7030
                %v7032 = vld [vmem:[%s6530 + $0x7d0] sm:%s6523]
                %7033 = vst [vmem:[%s6531 + $0xed0] sm:%s6523] %v7032
                %v7034 = vld [vmem:[%s6530 + $0x7d8] sm:%s6523]
                %7035 = vst [vmem:[%s6531 + $0xed8] sm:%s6523] %v7034
                %v7036 = vld [vmem:[%s6530 + $0x7e0] sm:%s6523]
                %7037 = vst [vmem:[%s6531 + $0xee0] sm:%s6523] %v7036
                %v7038 = vld [vmem:[%s6530 + $0x7e8] sm:%s6523]
                %7039 = vst [vmem:[%s6531 + $0xee8] sm:%s6523] %v7038
                %v7040 = vld [vmem:[%s6530 + $0x7f0] sm:%s6523]
                %7041 = vst [vmem:[%s6531 + $0xef0] sm:%s6523] %v7040
                %v7042 = vld [vmem:[%s6530 + $0x7f8] sm:%s6523]
                %7043 = vst [vmem:[%s6531 + $0xef8] sm:%s6523] %v7042
              $region99: #{tpu_custom_call.1} parent=93 // loop_footer
                %s6529 = sadd.s32 1, %s6525
              $region100: #{tpu_custom_call.1} parent=93 // loop_footer_branch
                %6524 = sbr.rel target = $region96
              $region101: #{tpu_custom_call.1} parent=93 // loop_exit
                _
            $region94: #{tpu_custom_call.1} parent=85 // pred_fallthru
              _
          $region86: #{tpu_custom_call.1} parent=81 // pred_fallthru
            _
          %7568 = vnop
        $region82: #{tpu_custom_call.1} parent=69 // pred_fallthru
          _
      $region70: #{tpu_custom_call.1} parent=5 // pred_fallthru
        _
      %p7569 = scmp.le.s32.totalorder 2, %s12
      // Predicated region
      $region117: #{tpu_custom_call.1} parent=5 // pred_check
        %p7570 = pneg %p7569
      $region118: #{tpu_custom_call.1} parent=5 // pred_check_branch
        %7572 = sbr.rel (%p7570) target = $region120
      $region119: #{tpu_custom_call.1} parent=5 // pred_region
        %s7573 = ssub.s32 %s12, 2
        // Predicated region
        $region121: #{tpu_custom_call.1} parent=119 // pred_check
          %p7574 = pneg %p135
        $region122: #{tpu_custom_call.1} parent=119 // pred_check_branch
          %7576 = sbr.rel (%p7574) target = $region124
        $region123: #{tpu_custom_call.1} parent=119 // pred_region
          %s7577 = smul.u32 32, %s18
          %p7578 = scmp.lt.s32.totalorder %s7577, 63
          %s7579 = scalar_select %p7578, %s7577, 63
          %s7580 = smul.addr %s7579, 8
          %s7581 = scalar_lea.vmem %s4, %s7580
        $region124: #{tpu_custom_call.1} parent=119 // pred_fallthru
          _
        // Predicated region
        $region125: #{tpu_custom_call.1} parent=119 // pred_check
          %p7582 = pneg %p161
        $region126: #{tpu_custom_call.1} parent=119 // pred_check_branch
          %7584 = sbr.rel (%p7582) target = $region128
        $region127: #{tpu_custom_call.1} parent=119 // pred_region
          %s7585 = sand.u32 %s146, 1
          %s7586 = sand.u32 %s146, 1
          %s7587 = smul.addr %s7586, 2048
          %s7588 = scalar_lea.vmem [#allocation3], %s7587
        $region128: #{tpu_custom_call.1} parent=119 // pred_fallthru
          _
      $region120: #{tpu_custom_call.1} parent=5 // pred_fallthru
        _
    $region6: #{tpu_custom_call.1} parent=1 // loop_footer
      %s16 = sadd.s32 1, %s12
    $region7: #{tpu_custom_call.1} parent=1 // loop_footer_branch
      %11 = sbr.rel target = $region3
    $region8: #{tpu_custom_call.1} parent=1 // loop_exit
      _

</llo_original>
